<compile_context>
chip_gen: v5e
topology: v5e:2x2
jax: 0.10.0
libtpu: 0.0.40
codegen_flags: <defaults>
</compile_context>

<pallas_src>
import functools
import numpy as np
import jax
import jax.numpy as jnp
from jax import lax
from jax.experimental import pallas as pl
from jax.experimental.pallas import tpu as pltpu


# ----------------------------------------------------------------------------
# Fused Pallas matmul kernel:  out = maybe_relu(A @ B (+ residual))
# ----------------------------------------------------------------------------

def _round_up(x, m):
    return ((x + m - 1) // m) * m


def _mm_kernel(a_ref, b_ref, o_ref, *, relu):
    acc = jnp.dot(a_ref[...], b_ref[...], preferred_element_type=jnp.float32)
    if relu:
        acc = jnp.maximum(acc, 0.0)
    o_ref[...] = acc.astype(o_ref.dtype)


def _mm_res_kernel(a_ref, b_ref, r_ref, o_ref, *, relu):
    acc = jnp.dot(a_ref[...], b_ref[...], preferred_element_type=jnp.float32)
    acc = acc + r_ref[...].astype(jnp.float32)
    if relu:
        acc = jnp.maximum(acc, 0.0)
    o_ref[...] = acc.astype(o_ref.dtype)


def pallas_matmul(a, b, residual=None, relu=False,
                  out_dtype=jnp.bfloat16, tm_cap=2048):
    """out = maybe_relu(A @ B (+ residual));  A:(M,K)  B:(K,N).

    bf16 MXU inputs, f32 accumulation, fused epilogue, adaptive M tiles.
    K and N are kept whole (channel counts in this model are small), so each
    grid step is a single MXU GEMM with a lane-dense output store.
    """
    M, K = a.shape
    K2, N = b.shape
    assert K == K2
    a = a.astype(jnp.bfloat16)
    b = b.astype(jnp.bfloat16)

    tm = min(tm_cap, _round_up(M, 8))
    Mp = _round_up(M, tm)
    if Mp != M:                      # rare; A is small (no im2col blow-up)
        a = jnp.pad(a, ((0, Mp - M), (0, 0)))

    args = [a, b]
    in_specs = [pl.BlockSpec((tm, K), lambda i: (i, 0)),
                pl.BlockSpec((K, N), lambda i: (0, 0))]
    if residual is not None:
        r = residual.astype(jnp.bfloat16)
        if Mp != M:
            r = jnp.pad(r, ((0, Mp - M), (0, 0)))
        args.append(r)
        in_specs.append(pl.BlockSpec((tm, N), lambda i: (i, 0)))
        kernel = functools.partial(_mm_res_kernel, relu=relu)
    else:
        kernel = functools.partial(_mm_kernel, relu=relu)

    out = pl.pallas_call(
        kernel,
        out_shape=jax.ShapeDtypeStruct((Mp, N), out_dtype),
        grid=(Mp // tm,),
        in_specs=in_specs,
        out_specs=pl.BlockSpec((tm, N), lambda i: (i, 0)),
        compiler_params=pltpu.CompilerParams(
            dimension_semantics=("parallel",)),
    )(*args)
    return out[:M] if Mp != M else out


# ----------------------------------------------------------------------------
# Residual-stack convolutions (im2col + fused GEMM)
# ----------------------------------------------------------------------------

def _im2col(x, kh, kw):
    """x: (B, H, W, C) already spatially padded -> (B, OH, OW, kh*kw*C)."""
    B, H, W, C = x.shape
    OH, OW = H - kh + 1, W - kw + 1
    cols = [x[:, i:i + OH, j:j + OW, :] for i in range(kh) for j in range(kw)]
    return jnp.concatenate(cols, axis=-1)


def conv3x3_relu(x, w_oihw):
    """relu(3x3 conv(x)), stride 1, pad 1, no bias.  w: (Cout, Cin, 3, 3)."""
    B, H, W, Cin = x.shape
    Cout = w_oihw.shape[0]
    xp = jnp.pad(x, ((0, 0), (1, 1), (1, 1), (0, 0)))
    a = _im2col(xp, 3, 3).reshape(B * H * W, 9 * Cin)
    wm = jnp.transpose(w_oihw, (2, 3, 1, 0)).reshape(9 * Cin, Cout)
    out = pallas_matmul(a, wm, relu=True)
    return out.reshape(B, H, W, Cout)


def conv1x1_add_relu(h, w_oihw, skip):
    """relu(skip + 1x1 conv(h)), no bias.  w: (Cout, Cin, 1, 1)."""
    B, H, W, Cin = h.shape
    Cout = w_oihw.shape[0]
    a = h.reshape(B * H * W, Cin)
    wm = w_oihw[:, :, 0, 0].T                          # (Cin, Cout)
    out = pallas_matmul(a, wm, residual=skip.reshape(B * H * W, Cout),
                        relu=True)
    return out.reshape(B, H, W, Cout)


# ----------------------------------------------------------------------------
# ConvTranspose2d(k=4, s=2, p=1) via tap-GEMM + overlap-add/depth-to-space
# ----------------------------------------------------------------------------

def conv_transpose_4x4_s2(x, w_t, bias, relu, out_dtype=jnp.bfloat16):
    """w_t: PyTorch layout (Cin, Cout, 4, 4), bias: (Cout,).

    taps[(b,h,w), (kh,kw,co)] = sum_ci x[b,h,w,ci] * w[ci,co,kh,kw]
    Output index relation (stride 2, pad 1):  oh = 2*ih - 1 + kh, so
      even rows (oh=2h):  taps (h, kh=1) + (h-1, kh=3)
      odd  rows (oh=2h+1): taps (h, kh=2) + (h+1, kh=0)
    (and the same along W with kw), then interleave the 2x2 phases.
    """
    B, H, W, Cin = x.shape
    Cout = w_t.shape[1]

    wm = jnp.transpose(w_t, (0, 2, 3, 1)).reshape(Cin, 16 * Cout)
    taps = pallas_matmul(x.reshape(B * H * W, Cin), wm, out_dtype=out_dtype)
    # TODO(synk): the overlap-add / depth-to-space assembly below stays in XLA
    # glue; fusing it into the GEMM epilogue would need halo (neighbor-row)
    # block indexing.
    t = taps.reshape(B, H, W, 4, 4, Cout).astype(jnp.float32)

    def sh_h(v, d):      # shift along H with zero fill: result[h] = v[h+d]
        if d < 0:
            return jnp.pad(v[:, :-1], ((0, 0), (1, 0), (0, 0), (0, 0), (0, 0)))
        return jnp.pad(v[:, 1:], ((0, 0), (0, 1), (0, 0), (0, 0), (0, 0)))

    r0 = t[:, :, :, 1] + sh_h(t[:, :, :, 3], -1)       # (B,H,W,4,Cout)
    r1 = t[:, :, :, 2] + sh_h(t[:, :, :, 0], +1)
    r = jnp.stack([r0, r1], axis=2)                    # (B,H,2,W,4,Cout)

    def sh_w(v, d):      # shift along W with zero fill
        if d < 0:
            return jnp.pad(v[:, :, :, :-1],
                           ((0, 0), (0, 0), (0, 0), (1, 0), (0, 0)))
        return jnp.pad(v[:, :, :, 1:],
                       ((0, 0), (0, 0), (0, 0), (0, 1), (0, 0)))

    y0 = r[..., 1, :] + sh_w(r[..., 3, :], -1)         # (B,H,2,W,Cout)
    y1 = r[..., 2, :] + sh_w(r[..., 0, :], +1)
    y = jnp.stack([y0, y1], axis=4)                    # (B,H,2,W,2,Cout)
    y = y + bias.astype(jnp.float32)
    if relu:
        y = jnp.maximum(y, 0.0)
    return y.reshape(B, 2 * H, 2 * W, Cout).astype(out_dtype)


# ----------------------------------------------------------------------------
# Decoder forward (Pallas)
# ----------------------------------------------------------------------------

def decoder_forward(x_nhwc, params):
    # First Residual block's in-place ReLU mutates its input, so the skip
    # connection is relu(x).  Later relus are fused into GEMM epilogues.
    xr = jnp.maximum(x_nhwc, 0.0).astype(jnp.bfloat16)
    for (w3, w1) in params["res"]:
        h = conv3x3_relu(xr, w3)
        # relu(skip + conv1x1(h)) == (next layer's / final stack) relu input
        xr = conv1x1_add_relu(h, w1, xr)
    x = xr                                    # == F.relu(residual stack out)
    n = len(params["deconv"])
    for i, (wt, bt) in enumerate(params["deconv"]):
        last = (i == n - 1)
        x = conv_transpose_4x4_s2(
            x, wt, bt, relu=not last,
            out_dtype=jnp.float32 if last else jnp.bfloat16)
    return x


# ----------------------------------------------------------------------------
# Pure-JAX reference (for correctness check)
# ----------------------------------------------------------------------------

def _ref_conv(x, w_oihw, pad):
    return lax.conv_general_dilated(
        x, jnp.transpose(w_oihw, (2, 3, 1, 0)), (1, 1),
        [(pad, pad), (pad, pad)],
        dimension_numbers=("NHWC", "HWIO", "NHWC"),
        precision=lax.Precision.HIGHEST)


def _ref_deconv(x, w_t, b):
    w_eq = jnp.transpose(jnp.flip(w_t, axis=(2, 3)), (2, 3, 0, 1))  # HWIO
    y = lax.conv_general_dilated(
        x, w_eq, (1, 1), [(2, 2), (2, 2)], lhs_dilation=(2, 2),
        dimension_numbers=("NHWC", "HWIO", "NHWC"),
        precision=lax.Precision.HIGHEST)
    return y + b


def decoder_ref(x, params):
    for (w3, w1) in params["res"]:
        xr = jax.nn.relu(x)
        h = jax.nn.relu(_ref_conv(xr, w3, 1))
        x = xr + _ref_conv(h, w1, 0)
    x = jax.nn.relu(x)
    n = len(params["deconv"])
    for i, (wt, bt) in enumerate(params["deconv"]):
        x = _ref_deconv(x, wt, bt)
        if i < n - 1:
            x = jax.nn.relu(x)
    return x


# ----------------------------------------------------------------------------
# Deterministic parameter init (matches module __init__ shapes)
# ----------------------------------------------------------------------------

def init_params(key, num_hiddens, num_res_layers, num_res_hiddens):
    def uni(k, shape, fan_in):
        bound = 1.0 / float(np.sqrt(fan_in))
        return jax.random.uniform(k, shape, jnp.float32, -bound, bound)

    params = {"res": [], "deconv": []}
    keys = jax.random.split(key, num_res_layers * 2 + 7 * 2)
    ki = 0
    for _ in range(num_res_layers):
        w3 = uni(keys[ki], (num_res_hiddens, num_hiddens, 3, 3),
                 num_hiddens * 9); ki += 1
        w1 = uni(keys[ki], (num_hiddens, num_res_hiddens, 1, 1),
                 num_res_hiddens); ki += 1
        params["res"].append((w3, w1))
    chans = ([(num_hiddens, num_hiddens // 2),
              (num_hiddens // 2, num_hiddens // 4)]
             + [(num_hiddens // 4, num_hiddens // 4)] * 4
             + [(num_hiddens // 4, 3)])
    for cin, cout in chans:
        wt = uni(keys[ki], (cin, cout, 4, 4), cin * 16); ki += 1  # (in,out,kH,kW)
        bt = uni(keys[ki], (cout,), cin * 16); ki += 1
        params["deconv"].append((wt, bt))
    return params


# ----------------------------------------------------------------------------
# Main
# ----------------------------------------------------------------------------

if __name__ == "__main__":
    B, NUM_HIDDENS, NUM_RES_LAYERS, NUM_RES_HIDDENS, S = 2, 32, 2, 16, 2

    key = jax.random.PRNGKey(0)
    kx, kp = jax.random.split(key)
    x_nchw = jax.random.normal(kx, (B, NUM_HIDDENS, S, S), jnp.float32)
    params = init_params(kp, NUM_HIDDENS, NUM_RES_LAYERS, NUM_RES_HIDDENS)

    x_nhwc = jnp.transpose(x_nchw, (0, 2, 3, 1))        # NCHW -> NHWC

    out = jax.jit(decoder_forward)(x_nhwc, params)
    out = jax.block_until_ready(out)

    assert out.shape == (B, S * 128, S * 128, 3), out.shape
    assert out.dtype == jnp.float32, out.dtype
    assert bool(jnp.all(jnp.isfinite(out)))

    # Correctness vs. fp32 XLA reference (kernel uses bf16 MXU / f32 accum).
    ref = decoder_ref(x_nhwc, params)
    scale = float(jnp.max(jnp.abs(ref)))
    err = float(jnp.max(jnp.abs(out - ref)))
    if err > 0.05 * scale + 1e-6:
        raise AssertionError(
            f"Pallas decoder mismatch: max_err={err:.3e}, ref_scale={scale:.3e}")

    print("KERNEL_OK")
</pallas_src>

<mosaic_0001>
module attributes {stable_mosaic.version = 11 : i64} {
  func.func @_mm_kernel(%arg0: i32, %arg1: memref<8x288xbf16, #tpu.memory_space<vmem>>, %arg2: memref<288x16xbf16, #tpu.memory_space<vmem>>, %arg3: memref<8x16xbf16, #tpu.memory_space<vmem>>) attributes {dimension_semantics = [#tpu.dimension_semantics<parallel>], iteration_bounds = array<i64: 1>, scalar_prefetch = 0 : i64, scratch_operands = 0 : i64, tpu.core_type = #tpu.core_type<tc>, window_params = [{transform_indices = @transform_0, window_bounds = array<i64: 8, 288>}, {pipeline_mode = #tpu.pipeline_mode<synchronous>, transform_indices = @transform_1, window_bounds = array<i64: 288, 16>}, {transform_indices = @transform_2, window_bounds = array<i64: 8, 16>}]} {
    %c0 = arith.constant 0 : index
    %c0_0 = arith.constant 0 : index
    %0 = vector.load %arg1[%c0, %c0_0] : memref<8x288xbf16, #tpu.memory_space<vmem>>, vector<8x288xbf16>
    %c0_1 = arith.constant 0 : index
    %c0_2 = arith.constant 0 : index
    %1 = vector.load %arg2[%c0_1, %c0_2] : memref<288x16xbf16, #tpu.memory_space<vmem>>, vector<288x16xbf16>
    %cst = arith.constant dense<0.000000e+00> : vector<8x16xf32>
    %2 = tpu.matmul %0, %1, %cst {dimension_numbers = #tpu.dot_dimension_numbers<[1], [0], [0], [1], [0, 0, 1, 1], [], []>} : vector<8x288xbf16>, vector<288x16xbf16>, vector<8x16xf32> -> vector<8x16xf32>
    %cst_3 = arith.constant 0.000000e+00 : f32
    %3 = vector.broadcast %cst_3 : f32 to vector<8x16xf32>
    %4 = arith.maximumf %2, %3 : vector<8x16xf32>
    %5 = arith.truncf %4 : vector<8x16xf32> to vector<8x16xbf16>
    %c0_4 = arith.constant 0 : index
    %c0_5 = arith.constant 0 : index
    %6 = vector.load %arg3[%c0_4, %c0_5] : memref<8x16xbf16, #tpu.memory_space<vmem>>, vector<8x16xbf16>
    tpu.vector_store %arg3[%c0_4, %c0_5], %5 {strides = array<i32>} : memref<8x16xbf16, #tpu.memory_space<vmem>>, vector<8x16xbf16>,
    return
  }
  func.func @transform_0(%arg0: i32) -> (i32, i32) {
    %c0_i32 = arith.constant 0 : i32
    %c0_i32_0 = arith.constant 0 : i32
    return %arg0, %c0_i32 : i32, i32
  }
  func.func @transform_1(%arg0: i32) -> (i32, i32) {
    %c0_i32 = arith.constant 0 : i32
    %c0_i32_0 = arith.constant 0 : i32
    %c0_i32_1 = arith.constant 0 : i32
    return %c0_i32, %c0_i32_0 : i32, i32
  }
  func.func @transform_2(%arg0: i32) -> (i32, i32) {
    %c0_i32 = arith.constant 0 : i32
    %c0_i32_0 = arith.constant 0 : i32
    return %arg0, %c0_i32 : i32, i32
  }
}

module attributes {stable_mosaic.version = 11 : i64} {
  func.func @_mm_res_kernel(%arg0: i32, %arg1: memref<8x16xbf16, #tpu.memory_space<vmem>>, %arg2: memref<16x32xbf16, #tpu.memory_space<vmem>>, %arg3: memref<8x32xbf16, #tpu.memory_space<vmem>>, %arg4: memref<8x32xbf16, #tpu.memory_space<vmem>>) attributes {dimension_semantics = [#tpu.dimension_semantics<parallel>], iteration_bounds = array<i64: 1>, scalar_prefetch = 0 : i64, scratch_operands = 0 : i64, tpu.core_type = #tpu.core_type<tc>, window_params = [{transform_indices = @transform_0, window_bounds = array<i64: 8, 16>}, {pipeline_mode = #tpu.pipeline_mode<synchronous>, transform_indices = @transform_1, window_bounds = array<i64: 16, 32>}, {transform_indices = @transform_2, window_bounds = array<i64: 8, 32>}, {transform_indices = @transform_3, window_bounds = array<i64: 8, 32>}]} {
    %c0 = arith.constant 0 : index
    %c0_0 = arith.constant 0 : index
    %0 = vector.load %arg1[%c0, %c0_0] : memref<8x16xbf16, #tpu.memory_space<vmem>>, vector<8x16xbf16>
    %c0_1 = arith.constant 0 : index
    %c0_2 = arith.constant 0 : index
    %1 = vector.load %arg2[%c0_1, %c0_2] : memref<16x32xbf16, #tpu.memory_space<vmem>>, vector<16x32xbf16>
    %cst = arith.constant dense<0.000000e+00> : vector<8x32xf32>
    %2 = tpu.matmul %0, %1, %cst {dimension_numbers = #tpu.dot_dimension_numbers<[1], [0], [0], [1], [0, 0, 1, 1], [], []>} : vector<8x16xbf16>, vector<16x32xbf16>, vector<8x32xf32> -> vector<8x32xf32>
    %c0_3 = arith.constant 0 : index
    %c0_4 = arith.constant 0 : index
    %3 = vector.load %arg3[%c0_3, %c0_4] : memref<8x32xbf16, #tpu.memory_space<vmem>>, vector<8x32xbf16>
    %4 = arith.extf %3 : vector<8x32xbf16> to vector<8x32xf32>
    %5 = arith.addf %2, %4 : vector<8x32xf32>
    %cst_5 = arith.constant 0.000000e+00 : f32
    %6 = vector.broadcast %cst_5 : f32 to vector<8x32xf32>
    %7 = arith.maximumf %5, %6 : vector<8x32xf32>
    %8 = arith.truncf %7 : vector<8x32xf32> to vector<8x32xbf16>
    %c0_6 = arith.constant 0 : index
    %c0_7 = arith.constant 0 : index
    %9 = vector.load %arg4[%c0_6, %c0_7] : memref<8x32xbf16, #tpu.memory_space<vmem>>, vector<8x32xbf16>
    tpu.vector_store %arg4[%c0_6, %c0_7], %8 {strides = array<i32>} : memref<8x32xbf16, #tpu.memory_space<vmem>>, vector<8x32xbf16>,
    return
  }
  func.func @transform_0(%arg0: i32) -> (i32, i32) {
    %c0_i32 = arith.constant 0 : i32
    %c0_i32_0 = arith.constant 0 : i32
    return %arg0, %c0_i32 : i32, i32
  }
  func.func @transform_1(%arg0: i32) -> (i32, i32) {
    %c0_i32 = arith.constant 0 : i32
    %c0_i32_0 = arith.constant 0 : i32
    %c0_i32_1 = arith.constant 0 : i32
    return %c0_i32, %c0_i32_0 : i32, i32
  }
  func.func @transform_2(%arg0: i32) -> (i32, i32) {
    %c0_i32 = arith.constant 0 : i32
    %c0_i32_0 = arith.constant 0 : i32
    return %arg0, %c0_i32 : i32, i32
  }
  func.func @transform_3(%arg0: i32) -> (i32, i32) {
    %c0_i32 = arith.constant 0 : i32
    %c0_i32_0 = arith.constant 0 : i32
    return %arg0, %c0_i32 : i32, i32
  }
}

module attributes {stable_mosaic.version = 11 : i64} {
  func.func @_mm_kernel(%arg0: i32, %arg1: memref<8x32xbf16, #tpu.memory_space<vmem>>, %arg2: memref<32x256xbf16, #tpu.memory_space<vmem>>, %arg3: memref<8x256xbf16, #tpu.memory_space<vmem>>) attributes {dimension_semantics = [#tpu.dimension_semantics<parallel>], iteration_bounds = array<i64: 1>, scalar_prefetch = 0 : i64, scratch_operands = 0 : i64, tpu.core_type = #tpu.core_type<tc>, window_params = [{transform_indices = @transform_0, window_bounds = array<i64: 8, 32>}, {pipeline_mode = #tpu.pipeline_mode<synchronous>, transform_indices = @transform_1, window_bounds = array<i64: 32, 256>}, {transform_indices = @transform_2, window_bounds = array<i64: 8, 256>}]} {
    %c0 = arith.constant 0 : index
    %c0_0 = arith.constant 0 : index
    %0 = vector.load %arg1[%c0, %c0_0] : memref<8x32xbf16, #tpu.memory_space<vmem>>, vector<8x32xbf16>
    %c0_1 = arith.constant 0 : index
    %c0_2 = arith.constant 0 : index
    %1 = vector.load %arg2[%c0_1, %c0_2] : memref<32x256xbf16, #tpu.memory_space<vmem>>, vector<32x256xbf16>
    %cst = arith.constant dense<0.000000e+00> : vector<8x256xf32>
    %2 = tpu.matmul %0, %1, %cst {dimension_numbers = #tpu.dot_dimension_numbers<[1], [0], [0], [1], [0, 0, 1, 1], [], []>} : vector<8x32xbf16>, vector<32x256xbf16>, vector<8x256xf32> -> vector<8x256xf32>
    %3 = arith.truncf %2 : vector<8x256xf32> to vector<8x256xbf16>
    %c0_3 = arith.constant 0 : index
    %c0_4 = arith.constant 0 : index
    %4 = vector.load %arg3[%c0_3, %c0_4] : memref<8x256xbf16, #tpu.memory_space<vmem>>, vector<8x256xbf16>
    tpu.vector_store %arg3[%c0_3, %c0_4], %3 {strides = array<i32>} : memref<8x256xbf16, #tpu.memory_space<vmem>>, vector<8x256xbf16>,
    return
  }
  func.func @transform_0(%arg0: i32) -> (i32, i32) {
    %c0_i32 = arith.constant 0 : i32
    %c0_i32_0 = arith.constant 0 : i32
    return %arg0, %c0_i32 : i32, i32
  }
  func.func @transform_1(%arg0: i32) -> (i32, i32) {
    %c0_i32 = arith.constant 0 : i32
    %c0_i32_0 = arith.constant 0 : i32
    %c0_i32_1 = arith.constant 0 : i32
    return %c0_i32, %c0_i32_0 : i32, i32
  }
  func.func @transform_2(%arg0: i32) -> (i32, i32) {
    %c0_i32 = arith.constant 0 : i32
    %c0_i32_0 = arith.constant 0 : i32
    return %arg0, %c0_i32 : i32, i32
  }
}

module attributes {stable_mosaic.version = 11 : i64} {
  func.func @_mm_kernel(%arg0: i32, %arg1: memref<32x16xbf16, #tpu.memory_space<vmem>>, %arg2: memref<16x128xbf16, #tpu.memory_space<vmem>>, %arg3: memref<32x128xbf16, #tpu.memory_space<vmem>>) attributes {dimension_semantics = [#tpu.dimension_semantics<parallel>], iteration_bounds = array<i64: 1>, scalar_prefetch = 0 : i64, scratch_operands = 0 : i64, tpu.core_type = #tpu.core_type<tc>, window_params = [{transform_indices = @transform_0, window_bounds = array<i64: 32, 16>}, {pipeline_mode = #tpu.pipeline_mode<synchronous>, transform_indices = @transform_1, window_bounds = array<i64: 16, 128>}, {transform_indices = @transform_2, window_bounds = array<i64: 32, 128>}]} {
    %c0 = arith.constant 0 : index
    %c0_0 = arith.constant 0 : index
    %0 = vector.load %arg1[%c0, %c0_0] : memref<32x16xbf16, #tpu.memory_space<vmem>>, vector<32x16xbf16>
    %c0_1 = arith.constant 0 : index
    %c0_2 = arith.constant 0 : index
    %1 = vector.load %arg2[%c0_1, %c0_2] : memref<16x128xbf16, #tpu.memory_space<vmem>>, vector<16x128xbf16>
    %cst = arith.constant dense<0.000000e+00> : vector<32x128xf32>
    %2 = tpu.matmul %0, %1, %cst {dimension_numbers = #tpu.dot_dimension_numbers<[1], [0], [0], [1], [0, 0, 1, 1], [], []>} : vector<32x16xbf16>, vector<16x128xbf16>, vector<32x128xf32> -> vector<32x128xf32>
    %3 = arith.truncf %2 : vector<32x128xf32> to vector<32x128xbf16>
    %c0_3 = arith.constant 0 : index
    %c0_4 = arith.constant 0 : index
    %4 = vector.load %arg3[%c0_3, %c0_4] : memref<32x128xbf16, #tpu.memory_space<vmem>>, vector<32x128xbf16>
    tpu.vector_store %arg3[%c0_3, %c0_4], %3 {strides = array<i32>} : memref<32x128xbf16, #tpu.memory_space<vmem>>, vector<32x128xbf16>,
    return
  }
  func.func @transform_0(%arg0: i32) -> (i32, i32) {
    %c0_i32 = arith.constant 0 : i32
    %c0_i32_0 = arith.constant 0 : i32
    return %arg0, %c0_i32 : i32, i32
  }
  func.func @transform_1(%arg0: i32) -> (i32, i32) {
    %c0_i32 = arith.constant 0 : i32
    %c0_i32_0 = arith.constant 0 : i32
    %c0_i32_1 = arith.constant 0 : i32
    return %c0_i32, %c0_i32_0 : i32, i32
  }
  func.func @transform_2(%arg0: i32) -> (i32, i32) {
    %c0_i32 = arith.constant 0 : i32
    %c0_i32_0 = arith.constant 0 : i32
    return %arg0, %c0_i32 : i32, i32
  }
}

module attributes {stable_mosaic.version = 11 : i64} {
  func.func @_mm_kernel(%arg0: i32, %arg1: memref<128x8xbf16, #tpu.memory_space<vmem>>, %arg2: memref<8x128xbf16, #tpu.memory_space<vmem>>, %arg3: memref<128x128xbf16, #tpu.memory_space<vmem>>) attributes {dimension_semantics = [#tpu.dimension_semantics<parallel>], iteration_bounds = array<i64: 1>, scalar_prefetch = 0 : i64, scratch_operands = 0 : i64, tpu.core_type = #tpu.core_type<tc>, window_params = [{transform_indices = @transform_0, window_bounds = array<i64: 128, 8>}, {pipeline_mode = #tpu.pipeline_mode<synchronous>, transform_indices = @transform_1, window_bounds = array<i64: 8, 128>}, {transform_indices = @transform_2, window_bounds = array<i64: 128, 128>}]} {
    %c0 = arith.constant 0 : index
    %c0_0 = arith.constant 0 : index
    %0 = vector.load %arg1[%c0, %c0_0] : memref<128x8xbf16, #tpu.memory_space<vmem>>, vector<128x8xbf16>
    %c0_1 = arith.constant 0 : index
    %c0_2 = arith.constant 0 : index
    %1 = vector.load %arg2[%c0_1, %c0_2] : memref<8x128xbf16, #tpu.memory_space<vmem>>, vector<8x128xbf16>
    %cst = arith.constant dense<0.000000e+00> : vector<128x128xf32>
    %2 = tpu.matmul %0, %1, %cst {dimension_numbers = #tpu.dot_dimension_numbers<[1], [0], [0], [1], [0, 0, 1, 1], [], []>} : vector<128x8xbf16>, vector<8x128xbf16>, vector<128x128xf32> -> vector<128x128xf32>
    %3 = arith.truncf %2 : vector<128x128xf32> to vector<128x128xbf16>
    %c0_3 = arith.constant 0 : index
    %c0_4 = arith.constant 0 : index
    %4 = vector.load %arg3[%c0_3, %c0_4] : memref<128x128xbf16, #tpu.memory_space<vmem>>, vector<128x128xbf16>
    tpu.vector_store %arg3[%c0_3, %c0_4], %3 {strides = array<i32>} : memref<128x128xbf16, #tpu.memory_space<vmem>>, vector<128x128xbf16>,
    return
  }
  func.func @transform_0(%arg0: i32) -> (i32, i32) {
    %c0_i32 = arith.constant 0 : i32
    %c0_i32_0 = arith.constant 0 : i32
    return %arg0, %c0_i32 : i32, i32
  }
  func.func @transform_1(%arg0: i32) -> (i32, i32) {
    %c0_i32 = arith.constant 0 : i32
    %c0_i32_0 = arith.constant 0 : i32
    %c0_i32_1 = arith.constant 0 : i32
    return %c0_i32, %c0_i32_0 : i32, i32
  }
  func.func @transform_2(%arg0: i32) -> (i32, i32) {
    %c0_i32 = arith.constant 0 : i32
    %c0_i32_0 = arith.constant 0 : i32
    return %arg0, %c0_i32 : i32, i32
  }
}

module attributes {stable_mosaic.version = 11 : i64} {
  func.func @_mm_kernel(%arg0: i32, %arg1: memref<512x8xbf16, #tpu.memory_space<vmem>>, %arg2: memref<8x128xbf16, #tpu.memory_space<vmem>>, %arg3: memref<512x128xbf16, #tpu.memory_space<vmem>>) attributes {dimension_semantics = [#tpu.dimension_semantics<parallel>], iteration_bounds = array<i64: 1>, scalar_prefetch = 0 : i64, scratch_operands = 0 : i64, tpu.core_type = #tpu.core_type<tc>, window_params = [{transform_indices = @transform_0, window_bounds = array<i64: 512, 8>}, {pipeline_mode = #tpu.pipeline_mode<synchronous>, transform_indices = @transform_1, window_bounds = array<i64: 8, 128>}, {transform_indices = @transform_2, window_bounds = array<i64: 512, 128>}]} {
    %c0 = arith.constant 0 : index
    %c0_0 = arith.constant 0 : index
    %0 = vector.load %arg1[%c0, %c0_0] : memref<512x8xbf16, #tpu.memory_space<vmem>>, vector<512x8xbf16>
    %c0_1 = arith.constant 0 : index
    %c0_2 = arith.constant 0 : index
    %1 = vector.load %arg2[%c0_1, %c0_2] : memref<8x128xbf16, #tpu.memory_space<vmem>>, vector<8x128xbf16>
    %cst = arith.constant dense<0.000000e+00> : vector<512x128xf32>
    %2 = tpu.matmul %0, %1, %cst {dimension_numbers = #tpu.dot_dimension_numbers<[1], [0], [0], [1], [0, 0, 1, 1], [], []>} : vector<512x8xbf16>, vector<8x128xbf16>, vector<512x128xf32> -> vector<512x128xf32>
    %3 = arith.truncf %2 : vector<512x128xf32> to vector<512x128xbf16>
    %c0_3 = arith.constant 0 : index
    %c0_4 = arith.constant 0 : index
    %4 = vector.load %arg3[%c0_3, %c0_4] : memref<512x128xbf16, #tpu.memory_space<vmem>>, vector<512x128xbf16>
    tpu.vector_store %arg3[%c0_3, %c0_4], %3 {strides = array<i32>} : memref<512x128xbf16, #tpu.memory_space<vmem>>, vector<512x128xbf16>,
    return
  }
  func.func @transform_0(%arg0: i32) -> (i32, i32) {
    %c0_i32 = arith.constant 0 : i32
    %c0_i32_0 = arith.constant 0 : i32
    return %arg0, %c0_i32 : i32, i32
  }
  func.func @transform_1(%arg0: i32) -> (i32, i32) {
    %c0_i32 = arith.constant 0 : i32
    %c0_i32_0 = arith.constant 0 : i32
    %c0_i32_1 = arith.constant 0 : i32
    return %c0_i32, %c0_i32_0 : i32, i32
  }
  func.func @transform_2(%arg0: i32) -> (i32, i32) {
    %c0_i32 = arith.constant 0 : i32
    %c0_i32_0 = arith.constant 0 : i32
    return %arg0, %c0_i32 : i32, i32
  }
}

module attributes {stable_mosaic.version = 11 : i64} {
  func.func @_mm_kernel(%arg0: i32, %arg1: memref<2048x8xbf16, #tpu.memory_space<vmem>>, %arg2: memref<8x128xbf16, #tpu.memory_space<vmem>>, %arg3: memref<2048x128xbf16, #tpu.memory_space<vmem>>) attributes {dimension_semantics = [#tpu.dimension_semantics<parallel>], iteration_bounds = array<i64: 1>, scalar_prefetch = 0 : i64, scratch_operands = 0 : i64, tpu.core_type = #tpu.core_type<tc>, window_params = [{transform_indices = @transform_0, window_bounds = array<i64: 2048, 8>}, {pipeline_mode = #tpu.pipeline_mode<synchronous>, transform_indices = @transform_1, window_bounds = array<i64: 8, 128>}, {transform_indices = @transform_2, window_bounds = array<i64: 2048, 128>}]} {
    %c0 = arith.constant 0 : index
    %c0_0 = arith.constant 0 : index
    %0 = vector.load %arg1[%c0, %c0_0] : memref<2048x8xbf16, #tpu.memory_space<vmem>>, vector<2048x8xbf16>
    %c0_1 = arith.constant 0 : index
    %c0_2 = arith.constant 0 : index
    %1 = vector.load %arg2[%c0_1, %c0_2] : memref<8x128xbf16, #tpu.memory_space<vmem>>, vector<8x128xbf16>
    %cst = arith.constant dense<0.000000e+00> : vector<2048x128xf32>
    %2 = tpu.matmul %0, %1, %cst {dimension_numbers = #tpu.dot_dimension_numbers<[1], [0], [0], [1], [0, 0, 1, 1], [], []>} : vector<2048x8xbf16>, vector<8x128xbf16>, vector<2048x128xf32> -> vector<2048x128xf32>
    %3 = arith.truncf %2 : vector<2048x128xf32> to vector<2048x128xbf16>
    %c0_3 = arith.constant 0 : index
    %c0_4 = arith.constant 0 : index
    %4 = vector.load %arg3[%c0_3, %c0_4] : memref<2048x128xbf16, #tpu.memory_space<vmem>>, vector<2048x128xbf16>
    tpu.vector_store %arg3[%c0_3, %c0_4], %3 {strides = array<i32>} : memref<2048x128xbf16, #tpu.memory_space<vmem>>, vector<2048x128xbf16>,
    return
  }
  func.func @transform_0(%arg0: i32) -> (i32, i32) {
    %c0_i32 = arith.constant 0 : i32
    %c0_i32_0 = arith.constant 0 : i32
    return %arg0, %c0_i32 : i32, i32
  }
  func.func @transform_1(%arg0: i32) -> (i32, i32) {
    %c0_i32 = arith.constant 0 : i32
    %c0_i32_0 = arith.constant 0 : i32
    %c0_i32_1 = arith.constant 0 : i32
    return %c0_i32, %c0_i32_0 : i32, i32
  }
  func.func @transform_2(%arg0: i32) -> (i32, i32) {
    %c0_i32 = arith.constant 0 : i32
    %c0_i32_0 = arith.constant 0 : i32
    return %arg0, %c0_i32 : i32, i32
  }
}

module attributes {stable_mosaic.version = 11 : i64} {
  func.func @_mm_kernel(%arg0: i32, %arg1: memref<2048x8xbf16, #tpu.memory_space<vmem>>, %arg2: memref<8x128xbf16, #tpu.memory_space<vmem>>, %arg3: memref<2048x128xbf16, #tpu.memory_space<vmem>>) attributes {dimension_semantics = [#tpu.dimension_semantics<parallel>], iteration_bounds = array<i64: 4>, scalar_prefetch = 0 : i64, scratch_operands = 0 : i64, tpu.core_type = #tpu.core_type<tc>, window_params = [{transform_indices = @transform_0, window_bounds = array<i64: 2048, 8>}, {pipeline_mode = #tpu.pipeline_mode<synchronous>, transform_indices = @transform_1, window_bounds = array<i64: 8, 128>}, {transform_indices = @transform_2, window_bounds = array<i64: 2048, 128>}]} {
    %c0 = arith.constant 0 : index
    %c0_0 = arith.constant 0 : index
    %0 = vector.load %arg1[%c0, %c0_0] : memref<2048x8xbf16, #tpu.memory_space<vmem>>, vector<2048x8xbf16>
    %c0_1 = arith.constant 0 : index
    %c0_2 = arith.constant 0 : index
    %1 = vector.load %arg2[%c0_1, %c0_2] : memref<8x128xbf16, #tpu.memory_space<vmem>>, vector<8x128xbf16>
    %cst = arith.constant dense<0.000000e+00> : vector<2048x128xf32>
    %2 = tpu.matmul %0, %1, %cst {dimension_numbers = #tpu.dot_dimension_numbers<[1], [0], [0], [1], [0, 0, 1, 1], [], []>} : vector<2048x8xbf16>, vector<8x128xbf16>, vector<2048x128xf32> -> vector<2048x128xf32>
    %3 = arith.truncf %2 : vector<2048x128xf32> to vector<2048x128xbf16>
    %c0_3 = arith.constant 0 : index
    %c0_4 = arith.constant 0 : index
    %4 = vector.load %arg3[%c0_3, %c0_4] : memref<2048x128xbf16, #tpu.memory_space<vmem>>, vector<2048x128xbf16>
    tpu.vector_store %arg3[%c0_3, %c0_4], %3 {strides = array<i32>} : memref<2048x128xbf16, #tpu.memory_space<vmem>>, vector<2048x128xbf16>,
    return
  }
  func.func @transform_0(%arg0: i32) -> (i32, i32) {
    %c0_i32 = arith.constant 0 : i32
    %c0_i32_0 = arith.constant 0 : i32
    return %arg0, %c0_i32 : i32, i32
  }
  func.func @transform_1(%arg0: i32) -> (i32, i32) {
    %c0_i32 = arith.constant 0 : i32
    %c0_i32_0 = arith.constant 0 : i32
    %c0_i32_1 = arith.constant 0 : i32
    return %c0_i32, %c0_i32_0 : i32, i32
  }
  func.func @transform_2(%arg0: i32) -> (i32, i32) {
    %c0_i32 = arith.constant 0 : i32
    %c0_i32_0 = arith.constant 0 : i32
    return %arg0, %c0_i32 : i32, i32
  }
}

module attributes {stable_mosaic.version = 11 : i64} {
  func.func @_mm_kernel(%arg0: i32, %arg1: memref<2048x8xbf16, #tpu.memory_space<vmem>>, %arg2: memref<8x48xbf16, #tpu.memory_space<vmem>>, %arg3: memref<2048x48xf32, #tpu.memory_space<vmem>>) attributes {dimension_semantics = [#tpu.dimension_semantics<parallel>], iteration_bounds = array<i64: 16>, scalar_prefetch = 0 : i64, scratch_operands = 0 : i64, tpu.core_type = #tpu.core_type<tc>, window_params = [{transform_indices = @transform_0, window_bounds = array<i64: 2048, 8>}, {pipeline_mode = #tpu.pipeline_mode<synchronous>, transform_indices = @transform_1, window_bounds = array<i64: 8, 48>}, {transform_indices = @transform_2, window_bounds = array<i64: 2048, 48>}]} {
    %c0 = arith.constant 0 : index
    %c0_0 = arith.constant 0 : index
    %0 = vector.load %arg1[%c0, %c0_0] : memref<2048x8xbf16, #tpu.memory_space<vmem>>, vector<2048x8xbf16>
    %c0_1 = arith.constant 0 : index
    %c0_2 = arith.constant 0 : index
    %1 = vector.load %arg2[%c0_1, %c0_2] : memref<8x48xbf16, #tpu.memory_space<vmem>>, vector<8x48xbf16>
    %cst = arith.constant dense<0.000000e+00> : vector<2048x48xf32>
    %2 = tpu.matmul %0, %1, %cst {dimension_numbers = #tpu.dot_dimension_numbers<[1], [0], [0], [1], [0, 0, 1, 1], [], []>} : vector<2048x8xbf16>, vector<8x48xbf16>, vector<2048x48xf32> -> vector<2048x48xf32>
    %c0_3 = arith.constant 0 : index
    %c0_4 = arith.constant 0 : index
    %3 = vector.load %arg3[%c0_3, %c0_4] : memref<2048x48xf32, #tpu.memory_space<vmem>>, vector<2048x48xf32>
    tpu.vector_store %arg3[%c0_3, %c0_4], %2 {strides = array<i32>} : memref<2048x48xf32, #tpu.memory_space<vmem>>, vector<2048x48xf32>,
    return
  }
  func.func @transform_0(%arg0: i32) -> (i32, i32) {
    %c0_i32 = arith.constant 0 : i32
    %c0_i32_0 = arith.constant 0 : i32
    return %arg0, %c0_i32 : i32, i32
  }
  func.func @transform_1(%arg0: i32) -> (i32, i32) {
    %c0_i32 = arith.constant 0 : i32
    %c0_i32_0 = arith.constant 0 : i32
    %c0_i32_1 = arith.constant 0 : i32
    return %c0_i32, %c0_i32_0 : i32, i32
  }
  func.func @transform_2(%arg0: i32) -> (i32, i32) {
    %c0_i32 = arith.constant 0 : i32
    %c0_i32_0 = arith.constant 0 : i32
    return %arg0, %c0_i32 : i32, i32
  }
}

</mosaic_0001>

<llo_original>
// kernel: decoder_forward.12
$region0: #{decoder_forward.12}
  #allocation0 [shape = 'u32[]', space=smem, size = 0x4, offset = 0x4, fixed_abs, tag = 'smem constant byte address 0x4 - core index']
  #allocation1 [shape = 'u32[72,128]{1,0:T(1,128)}', space=vmem, size = 0x9000, scoped, tag = 'internal scratch']
  %s0 = inlined_call_operand.vmem [shape: bf16[8,16], index: 0, kind: input, shape index: {}]
  %s1 = inlined_call_operand.vmem [shape: bf16[16,32], index: 1, kind: input, shape index: {}]
  %s2 = inlined_call_operand.vmem [shape: bf16[8,32], index: 2, kind: input, shape index: {}]
  %s3 = inlined_call_operand.vmem [shape: bf16[8,32], index: 3, kind: output, shape index: {}]
  %s4 = sld [smem:[#allocation0]]
  $region22: #{decoder_forward.12} parent=0
    _
  %s6 = ssub.s32 1, %s4
  %s7 = scalar_select 0, %s6, %s4
  // Predicated region
  $region2: #{decoder_forward.12} parent=0 // pred_check
    _
  $region3: #{decoder_forward.12} parent=0 // pred_check_branch
    %9 = sbr.rel (0) target = $region5
  $region4: #{decoder_forward.12} parent=0 // pred_region
    _
  $region5: #{decoder_forward.12} parent=0 // pred_fallthru
    _
  // Predicated region
  $region6: #{decoder_forward.12} parent=0 // pred_check
    _
  $region7: #{decoder_forward.12} parent=0 // pred_check_branch
    %11 = sbr.rel (0) target = $region9
  $region8: #{decoder_forward.12} parent=0 // pred_region
    _
  $region9: #{decoder_forward.12} parent=0 // pred_fallthru
    _
  // Predicated region
  $region10: #{decoder_forward.12} parent=0 // pred_check
    _
  $region11: #{decoder_forward.12} parent=0 // pred_check_branch
    %13 = sbr.rel (0) target = $region13
  $region12: #{decoder_forward.12} parent=0 // pred_region
    _
  $region13: #{decoder_forward.12} parent=0 // pred_fallthru
    _
  %v15 = vld [vmem:[%s0] sm:$0xf]
  %v16 = vld [vmem:[%s1] sm:$0xf]
  %v17 = vld [vmem:[%s1 + $0x4] sm:$0xf]
  %v18 = vld [vmem:[%s2] sm:$0xf]
  %v19 = vunpack.c.l.bf16 %v18
  %v22 = vunpack.c.l.b16 %v16
  %v23 = vunpack.c.l.b16 %v17
  %v24 = vpack.c.b16 %v23, %v22
  %vm26 = vcmask 130048
  %v28 = vsel %vm26, %v15, 0
  %30 = vmatpush.bf16.msra.mxu0 0
  %31 = vmatpush.bf16.msra.mxu0 0
  %32 = vmatpush.bf16.msra.mxu0 0
  %33 = vmatpush.bf16.msra.mxu0 0
  %34 = vmatpush.bf16.msra.mxu0 0
  %35 = vmatpush.bf16.msra.mxu0 0
  %36 = vmatpush.bf16.msra.mxu0 0
  %37 = vmatpush.bf16.msra.mxu0 %v24
  %38 = vmatmul.bf16.gmra.mxu0 %v28
  %v39 = vpop.f32.mrf.mxu0
  %v40 = vadd.f32 %v19, %v39
  %v41 = vpop.f32.mrf.mxu0
  %42 = vdwg.mxu0
  %v43 = vmax.f32 %v40, 0.0
  %v44 = vpack.c.bf16 %v43, %v43
  %vm45 = vcmask 257024
  %46 = vst.msk [vmem:[%s3] sm:$0xf] %vm45, %v44
  // Predicated region
  $region14: #{decoder_forward.12} parent=0 // pred_check
    _
  $region15: #{decoder_forward.12} parent=0 // pred_check_branch
    %48 = sbr.rel (0) target = $region17
  $region16: #{decoder_forward.12} parent=0 // pred_region
    _
  $region17: #{decoder_forward.12} parent=0 // pred_fallthru
    _
  // Predicated region
  $region18: #{decoder_forward.12} parent=0 // pred_check
    _
  $region19: #{decoder_forward.12} parent=0 // pred_check_branch
    %50 = sbr.rel (0) target = $region21
  $region20: #{decoder_forward.12} parent=0 // pred_region
    _
  $region21: #{decoder_forward.12} parent=0 // pred_fallthru
    _

// kernel: decoder_forward.11
$region0: #{decoder_forward.11}
  #allocation0 [shape = 'u32[]', space=smem, size = 0x4, offset = 0x4, fixed_abs, tag = 'smem constant byte address 0x4 - core index']
  #allocation1 [shape = 'u32[72,128]{1,0:T(1,128)}', space=vmem, size = 0x9000, scoped, tag = 'internal scratch']
  %s0 = inlined_call_operand.vmem [shape: bf16[8,288], index: 0, kind: input, shape index: {}]
  %s1 = inlined_call_operand.vmem [shape: bf16[288,16], index: 1, kind: input, shape index: {}]
  %s2 = inlined_call_operand.vmem [shape: bf16[8,16], index: 2, kind: output, shape index: {}]
  %s3 = sld [smem:[#allocation0]]
  $region18: #{decoder_forward.11} parent=0
    _
  %s5 = ssub.s32 1, %s3
  %s6 = scalar_select 0, %s5, %s3
  // Predicated region
  $region2: #{decoder_forward.11} parent=0 // pred_check
    _
  $region3: #{decoder_forward.11} parent=0 // pred_check_branch
    %8 = sbr.rel (0) target = $region5
  $region4: #{decoder_forward.11} parent=0 // pred_region
    _
  $region5: #{decoder_forward.11} parent=0 // pred_fallthru
    _
  // Predicated region
  $region6: #{decoder_forward.11} parent=0 // pred_check
    _
  $region7: #{decoder_forward.11} parent=0 // pred_check_branch
    %10 = sbr.rel (0) target = $region9
  $region8: #{decoder_forward.11} parent=0 // pred_region
    _
  $region9: #{decoder_forward.11} parent=0 // pred_fallthru
    _
  %v12 = vld [vmem:[%s0] sm:$0xff]
  %v13 = vld [vmem:[%s0 + $0x8] sm:$0xf]
  %v14 = vld [vmem:[%s1] sm:$0xf]
  %v15 = vld [vmem:[%s1 + $0x4] sm:$0xf]
  %v16 = vld [vmem:[%s1 + $0x8] sm:$0xf]
  %v17 = vld [vmem:[%s1 + $0xc] sm:$0xf]
  %v18 = vld [vmem:[%s1 + $0x10] sm:$0xf]
  %v19 = vld [vmem:[%s1 + $0x14] sm:$0xf]
  %v20 = vld [vmem:[%s1 + $0x18] sm:$0xf]
  %v21 = vld [vmem:[%s1 + $0x1c] sm:$0xf]
  %v22 = vld [vmem:[%s1 + $0x20] sm:$0xf]
  %v23 = vld [vmem:[%s1 + $0x24] sm:$0xf]
  %v24 = vld [vmem:[%s1 + $0x28] sm:$0xf]
  %v25 = vld [vmem:[%s1 + $0x2c] sm:$0xf]
  %v26 = vld [vmem:[%s1 + $0x30] sm:$0xf]
  %v27 = vld [vmem:[%s1 + $0x34] sm:$0xf]
  %v28 = vld [vmem:[%s1 + $0x38] sm:$0xf]
  %v29 = vld [vmem:[%s1 + $0x3c] sm:$0xf]
  %v30 = vld [vmem:[%s1 + $0x40] sm:$0xf]
  %v31 = vld [vmem:[%s1 + $0x44] sm:$0xf]
  %v32 = vld [vmem:[%s1 + $0x48] sm:$0xf]
  %v33 = vld [vmem:[%s1 + $0x4c] sm:$0xf]
  %v34 = vld [vmem:[%s1 + $0x50] sm:$0xf]
  %v35 = vld [vmem:[%s1 + $0x54] sm:$0xf]
  %v36 = vld [vmem:[%s1 + $0x58] sm:$0xf]
  %v37 = vld [vmem:[%s1 + $0x5c] sm:$0xf]
  %v38 = vld [vmem:[%s1 + $0x60] sm:$0xf]
  %v39 = vld [vmem:[%s1 + $0x64] sm:$0xf]
  %v40 = vld [vmem:[%s1 + $0x68] sm:$0xf]
  %v41 = vld [vmem:[%s1 + $0x6c] sm:$0xf]
  %v42 = vld [vmem:[%s1 + $0x70] sm:$0xf]
  %v43 = vld [vmem:[%s1 + $0x74] sm:$0xf]
  %v44 = vld [vmem:[%s1 + $0x78] sm:$0xf]
  %v45 = vld [vmem:[%s1 + $0x7c] sm:$0xf]
  %v46 = vld [vmem:[%s1 + $0x80] sm:$0xf]
  %v47 = vld [vmem:[%s1 + $0x84] sm:$0xf]
  %v48 = vld [vmem:[%s1 + $0x88] sm:$0xf]
  %v49 = vld [vmem:[%s1 + $0x8c] sm:$0xf]
  %v52 = vunpack.c.l.b16 %v12
  %v53 = vunpack.c.h.b16 %v12
  %v54 = vunpack.c.l.b16 %v13
  %v55 = vpack.c.b16 %v52, %v52
  %v56 = vpack.c.b16 %v53, %v53
  %v57 = vpack.c.b16 %v54, %v54
  %v96 = vunpack.c.l.b16 %v14
  %v97 = vunpack.c.l.b16 %v15
  %v98 = vunpack.c.l.b16 %v16
  %v99 = vunpack.c.l.b16 %v17
  %v100 = vunpack.c.l.b16 %v18
  %v101 = vunpack.c.l.b16 %v19
  %v102 = vunpack.c.l.b16 %v20
  %v103 = vunpack.c.l.b16 %v21
  %v104 = vunpack.c.l.b16 %v22
  %v105 = vunpack.c.l.b16 %v23
  %v106 = vunpack.c.l.b16 %v24
  %v107 = vunpack.c.l.b16 %v25
  %v108 = vunpack.c.l.b16 %v26
  %v109 = vunpack.c.l.b16 %v27
  %v110 = vunpack.c.l.b16 %v28
  %v111 = vunpack.c.l.b16 %v29
  %v112 = vunpack.c.l.b16 %v30
  %v113 = vunpack.c.l.b16 %v31
  %v114 = vunpack.c.l.b16 %v32
  %v115 = vunpack.c.l.b16 %v33
  %v116 = vunpack.c.l.b16 %v34
  %v117 = vunpack.c.l.b16 %v35
  %v118 = vunpack.c.l.b16 %v36
  %v119 = vunpack.c.l.b16 %v37
  %v120 = vunpack.c.l.b16 %v38
  %v121 = vunpack.c.l.b16 %v39
  %v122 = vunpack.c.l.b16 %v40
  %v123 = vunpack.c.l.b16 %v41
  %v124 = vunpack.c.l.b16 %v42
  %v125 = vunpack.c.l.b16 %v43
  %v126 = vunpack.c.l.b16 %v44
  %v127 = vunpack.c.l.b16 %v45
  %v128 = vunpack.c.l.b16 %v46
  %v129 = vunpack.c.l.b16 %v47
  %v130 = vunpack.c.l.b16 %v48
  %v131 = vunpack.c.l.b16 %v49
  %v132 = vpack.c.b16 %v97, %v96
  %v133 = vpack.c.b16 %v99, %v98
  %v134 = vpack.c.b16 %v101, %v100
  %v135 = vpack.c.b16 %v103, %v102
  %v136 = vpack.c.b16 %v105, %v104
  %v137 = vpack.c.b16 %v107, %v106
  %v138 = vpack.c.b16 %v109, %v108
  %v139 = vpack.c.b16 %v111, %v110
  %v140 = vpack.c.b16 %v113, %v112
  %v141 = vpack.c.b16 %v115, %v114
  %v142 = vpack.c.b16 %v117, %v116
  %v143 = vpack.c.b16 %v119, %v118
  %v144 = vpack.c.b16 %v121, %v120
  %v145 = vpack.c.b16 %v123, %v122
  %v146 = vpack.c.b16 %v125, %v124
  %v147 = vpack.c.b16 %v127, %v126
  %v148 = vpack.c.b16 %v129, %v128
  %v149 = vpack.c.b16 %v131, %v130
  %vm168 = vcmask 261120
  %v170 = vsel %vm168, %v57, 0
  %172 = vmatpush.bf16.msra.mxu0 %v139
  %173 = vmatpush.bf16.msra.mxu0 %v138
  %174 = vmatpush.bf16.msra.mxu0 %v137
  %175 = vmatpush.bf16.msra.mxu0 %v136
  %176 = vmatpush.bf16.msra.mxu0 %v135
  %177 = vmatpush.bf16.msra.mxu0 %v134
  %178 = vmatpush.bf16.msra.mxu0 %v133
  %179 = vmatpush.bf16.msra.mxu0 %v132
  %180 = vmatmul.bf16.gmra.mxu0 %v55
  %v181 = vpop.f32.mrf.mxu0
  %v182 = vadd.f32 0.0, %v181
  %v183 = vpop.f32.mrf.mxu0
  %184 = vdwg.mxu0
  %185 = vmatpush.bf16.msra.mxu0 %v147
  %186 = vmatpush.bf16.msra.mxu0 %v146
  %187 = vmatpush.bf16.msra.mxu0 %v145
  %188 = vmatpush.bf16.msra.mxu0 %v144
  %189 = vmatpush.bf16.msra.mxu0 %v143
  %190 = vmatpush.bf16.msra.mxu0 %v142
  %191 = vmatpush.bf16.msra.mxu0 %v141
  %192 = vmatpush.bf16.msra.mxu0 %v140
  %193 = vmatmul.bf16.gmra.mxu0 %v56
  %v194 = vpop.f32.mrf.mxu0
  %v195 = vadd.f32 %v182, %v194
  %v196 = vpop.f32.mrf.mxu0
  %197 = vdwg.mxu0
  %198 = vmatpush.bf16.msra.mxu0 0
  %199 = vmatpush.bf16.msra.mxu0 0
  %200 = vmatpush.bf16.msra.mxu0 0
  %201 = vmatpush.bf16.msra.mxu0 0
  %202 = vmatpush.bf16.msra.mxu0 0
  %203 = vmatpush.bf16.msra.mxu0 0
  %204 = vmatpush.bf16.msra.mxu0 %v149
  %205 = vmatpush.bf16.msra.mxu0 %v148
  %206 = vmatmul.bf16.gmra.mxu0 %v170
  %v207 = vpop.f32.mrf.mxu0
  %v208 = vadd.f32 %v195, %v207
  %v209 = vpop.f32.mrf.mxu0
  %210 = vdwg.mxu0
  %v211 = vmax.f32 %v208, 0.0
  %v212 = vpack.c.bf16 %v211, %v211
  %vm213 = vcmask 125952
  %214 = vst.msk [vmem:[%s2] sm:$0xf] %vm213, %v212
  // Predicated region
  $region10: #{decoder_forward.11} parent=0 // pred_check
    _
  $region11: #{decoder_forward.11} parent=0 // pred_check_branch
    %216 = sbr.rel (0) target = $region13
  $region12: #{decoder_forward.11} parent=0 // pred_region
    _
  $region13: #{decoder_forward.11} parent=0 // pred_fallthru
    _
  // Predicated region
  $region14: #{decoder_forward.11} parent=0 // pred_check
    _
  $region15: #{decoder_forward.11} parent=0 // pred_check_branch
    %218 = sbr.rel (0) target = $region17
  $region16: #{decoder_forward.11} parent=0 // pred_region
    _
  $region17: #{decoder_forward.11} parent=0 // pred_fallthru
    _

// kernel: decoder_forward.15
$region0: #{decoder_forward.15}
  #allocation0 [shape = 'u32[]', space=smem, size = 0x4, offset = 0x4, fixed_abs, tag = 'smem constant byte address 0x4 - core index']
  #allocation1 [shape = 'u32[72,128]{1,0:T(1,128)}', space=vmem, size = 0x9000, scoped, tag = 'internal scratch']
  %s0 = inlined_call_operand.vmem [shape: bf16[8,32], index: 0, kind: input, shape index: {}]
  %s1 = inlined_call_operand.vmem [shape: bf16[32,256], index: 1, kind: input, shape index: {}]
  %s2 = inlined_call_operand.vmem [shape: bf16[8,256], index: 2, kind: output, shape index: {}]
  %s3 = sld [smem:[#allocation0]]
  $region18: #{decoder_forward.15} parent=0
    _
  %s5 = ssub.s32 1, %s3
  %s6 = scalar_select 0, %s5, %s3
  // Predicated region
  $region2: #{decoder_forward.15} parent=0 // pred_check
    _
  $region3: #{decoder_forward.15} parent=0 // pred_check_branch
    %8 = sbr.rel (0) target = $region5
  $region4: #{decoder_forward.15} parent=0 // pred_region
    _
  $region5: #{decoder_forward.15} parent=0 // pred_fallthru
    _
  // Predicated region
  $region6: #{decoder_forward.15} parent=0 // pred_check
    _
  $region7: #{decoder_forward.15} parent=0 // pred_check_branch
    %10 = sbr.rel (0) target = $region9
  $region8: #{decoder_forward.15} parent=0 // pred_region
    _
  $region9: #{decoder_forward.15} parent=0 // pred_fallthru
    _
  %v12 = vld [vmem:[%s0] sm:$0xf]
  %v13 = vld [vmem:[%s1] sm:$0xff]
  %v14 = vld [vmem:[%s1 + $0x8] sm:$0xff]
  %v15 = vld [vmem:[%s1 + $0x10] sm:$0xff]
  %v16 = vld [vmem:[%s1 + $0x18] sm:$0xff]
  %v21 = vunpack.c.l.b16 %v13
  %v22 = vunpack.c.h.b16 %v13
  %v23 = vunpack.c.l.b16 %v14
  %v24 = vunpack.c.h.b16 %v14
  %v25 = vunpack.c.l.b16 %v15
  %v26 = vunpack.c.h.b16 %v15
  %v27 = vunpack.c.l.b16 %v16
  %v28 = vunpack.c.h.b16 %v16
  %v29 = vpack.c.b16 %v23, %v21
  %v30 = vpack.c.b16 %v24, %v22
  %v31 = vpack.c.b16 %v27, %v25
  %v32 = vpack.c.b16 %v28, %v26
  %vm37 = vcmask 261120
  %v39 = vsel %vm37, %v12, 0
  %41 = vmatpush.bf16.msra.mxu0 0
  %42 = vmatpush.bf16.msra.mxu0 0
  %43 = vmatpush.bf16.msra.mxu0 0
  %44 = vmatpush.bf16.msra.mxu0 0
  %45 = vmatpush.bf16.msra.mxu0 0
  %46 = vmatpush.bf16.msra.mxu0 0
  %47 = vmatpush.bf16.msra.mxu0 %v31
  %48 = vmatpush.bf16.msra.mxu0 %v29
  %49 = vmatmul.bf16.gmra.mxu0 %v39
  %v50 = vpop.f32.mrf.mxu0
  %v51 = vadd.f32 0.0, %v50
  %v52 = vpop.f32.mrf.mxu0
  %53 = vdwg.mxu0
  %54 = vmatpush.bf16.msra.mxu0 0
  %55 = vmatpush.bf16.msra.mxu0 0
  %56 = vmatpush.bf16.msra.mxu0 0
  %57 = vmatpush.bf16.msra.mxu0 0
  %58 = vmatpush.bf16.msra.mxu0 0
  %59 = vmatpush.bf16.msra.mxu0 0
  %60 = vmatpush.bf16.msra.mxu0 %v32
  %61 = vmatpush.bf16.msra.mxu0 %v30
  %62 = vmatmul.bf16.gmra.mxu0 %v39
  %v63 = vpop.f32.mrf.mxu0
  %v64 = vadd.f32 0.0, %v63
  %v65 = vpop.f32.mrf.mxu0
  %66 = vdwg.mxu0
  %v67 = vpack.c.bf16 %v64, %v51
  %68 = vst [vmem:[%s2] sm:$0xff] %v67
  // Predicated region
  $region10: #{decoder_forward.15} parent=0 // pred_check
    _
  $region11: #{decoder_forward.15} parent=0 // pred_check_branch
    %70 = sbr.rel (0) target = $region13
  $region12: #{decoder_forward.15} parent=0 // pred_region
    _
  $region13: #{decoder_forward.15} parent=0 // pred_fallthru
    _
  // Predicated region
  $region14: #{decoder_forward.15} parent=0 // pred_check
    _
  $region15: #{decoder_forward.15} parent=0 // pred_check_branch
    %72 = sbr.rel (0) target = $region17
  $region16: #{decoder_forward.15} parent=0 // pred_region
    _
  $region17: #{decoder_forward.15} parent=0 // pred_fallthru
    _

// kernel: decoder_forward.16
$region0: #{decoder_forward.16}
  #allocation0 [shape = 'u32[]', space=smem, size = 0x4, offset = 0x4, fixed_abs, tag = 'smem constant byte address 0x4 - core index']
  #allocation1 [shape = 'u32[72,128]{1,0:T(1,128)}', space=vmem, size = 0x9000, scoped, tag = 'internal scratch']
  %s0 = inlined_call_operand.vmem [shape: bf16[32,16], index: 0, kind: input, shape index: {}]
  %s1 = inlined_call_operand.vmem [shape: bf16[16,128], index: 1, kind: input, shape index: {}]
  %s2 = inlined_call_operand.vmem [shape: bf16[32,128], index: 2, kind: output, shape index: {}]
  %s3 = sld [smem:[#allocation0]]
  $region18: #{decoder_forward.16} parent=0
    _
  %s5 = ssub.s32 1, %s3
  %s6 = scalar_select 0, %s5, %s3
  // Predicated region
  $region2: #{decoder_forward.16} parent=0 // pred_check
    _
  $region3: #{decoder_forward.16} parent=0 // pred_check_branch
    %8 = sbr.rel (0) target = $region5
  $region4: #{decoder_forward.16} parent=0 // pred_region
    _
  $region5: #{decoder_forward.16} parent=0 // pred_fallthru
    _
  // Predicated region
  $region6: #{decoder_forward.16} parent=0 // pred_check
    _
  $region7: #{decoder_forward.16} parent=0 // pred_check_branch
    %10 = sbr.rel (0) target = $region9
  $region8: #{decoder_forward.16} parent=0 // pred_region
    _
  $region9: #{decoder_forward.16} parent=0 // pred_fallthru
    _
  %v12 = vld [vmem:[%s0] sm:$0xf]
  %v13 = vld [vmem:[%s0 + $0x4] sm:$0xf]
  %v14 = vld [vmem:[%s0 + $0x8] sm:$0xf]
  %v15 = vld [vmem:[%s0 + $0xc] sm:$0xf]
  %v16 = vld [vmem:[%s1] sm:$0xf]
  %v17 = vld [vmem:[%s1 + $0x4] sm:$0xf]
  %v22 = vunpack.c.l.b16 %v12
  %v23 = vunpack.c.l.b16 %v13
  %v24 = vunpack.c.l.b16 %v14
  %v25 = vunpack.c.l.b16 %v15
  %v26 = vpack.c.b16 %v23, %v22
  %v27 = vpack.c.b16 %v25, %v24
  %v30 = vunpack.c.l.b16 %v16
  %v31 = vunpack.c.l.b16 %v17
  %v32 = vpack.c.b16 %v31, %v30
  %vm34 = vcmask 130048
  %v36 = vsel %vm34, %v26, 0
  %v39 = vsel %vm34, %v27, 0
  %41 = vmatpush.bf16.msra.mxu0 0
  %42 = vmatpush.bf16.msra.mxu0 0
  %43 = vmatpush.bf16.msra.mxu0 0
  %44 = vmatpush.bf16.msra.mxu0 0
  %45 = vmatpush.bf16.msra.mxu0 0
  %46 = vmatpush.bf16.msra.mxu0 0
  %47 = vmatpush.bf16.msra.mxu0 0
  %48 = vmatpush.bf16.msra.mxu0 %v32
  %49 = vmatmul.bf16.gmra.mxu0 %v36
  %v50 = vpop.f32.mrf.mxu0
  %v51 = vadd.f32 0.0, %v50
  %v52 = vpop.f32.mrf.mxu0
  %v53 = vadd.f32 0.0, %v52
  %54 = vmatmul.bf16.gmra.mxu0 %v39
  %v55 = vpop.f32.mrf.mxu0
  %v56 = vadd.f32 0.0, %v55
  %v57 = vpop.f32.mrf.mxu0
  %v58 = vadd.f32 0.0, %v57
  %59 = vdwg.mxu0
  %v60 = vpack.c.bf16 %v51, %v51
  %v61 = vpack.c.bf16 %v53, %v53
  %v62 = vpack.c.bf16 %v56, %v56
  %v63 = vpack.c.bf16 %v58, %v58
  %64 = vst [vmem:[%s2] sm:$0xf] %v60
  %65 = vst [vmem:[%s2 + $0x4] sm:$0xf] %v61
  %66 = vst [vmem:[%s2 + $0x8] sm:$0xf] %v62
  %67 = vst [vmem:[%s2 + $0xc] sm:$0xf] %v63
  // Predicated region
  $region10: #{decoder_forward.16} parent=0 // pred_check
    _
  $region11: #{decoder_forward.16} parent=0 // pred_check_branch
    %69 = sbr.rel (0) target = $region13
  $region12: #{decoder_forward.16} parent=0 // pred_region
    _
  $region13: #{decoder_forward.16} parent=0 // pred_fallthru
    _
  // Predicated region
  $region14: #{decoder_forward.16} parent=0 // pred_check
    _
  $region15: #{decoder_forward.16} parent=0 // pred_check_branch
    %71 = sbr.rel (0) target = $region17
  $region16: #{decoder_forward.16} parent=0 // pred_region
    _
  $region17: #{decoder_forward.16} parent=0 // pred_fallthru
    _

// kernel: decoder_forward.17
$region0: #{decoder_forward.17}
  #allocation0 [shape = 'u32[]', space=smem, size = 0x4, offset = 0x4, fixed_abs, tag = 'smem constant byte address 0x4 - core index']
  #allocation1 [shape = 'u32[72,128]{1,0:T(1,128)}', space=vmem, size = 0x9000, scoped, tag = 'internal scratch']
  %s0 = inlined_call_operand.vmem [shape: bf16[128,8], index: 0, kind: input, shape index: {}]
  %s1 = inlined_call_operand.vmem [shape: bf16[8,128], index: 1, kind: input, shape index: {}]
  %s2 = inlined_call_operand.vmem [shape: bf16[128,128], index: 2, kind: output, shape index: {}]
  %s3 = sld [smem:[#allocation0]]
  $region18: #{decoder_forward.17} parent=0
    _
  %s5 = ssub.s32 1, %s3
  %s6 = scalar_select 0, %s5, %s3
  // Predicated region
  $region2: #{decoder_forward.17} parent=0 // pred_check
    _
  $region3: #{decoder_forward.17} parent=0 // pred_check_branch
    %8 = sbr.rel (0) target = $region5
  $region4: #{decoder_forward.17} parent=0 // pred_region
    _
  $region5: #{decoder_forward.17} parent=0 // pred_fallthru
    _
  // Predicated region
  $region6: #{decoder_forward.17} parent=0 // pred_check
    _
  $region7: #{decoder_forward.17} parent=0 // pred_check_branch
    %10 = sbr.rel (0) target = $region9
  $region8: #{decoder_forward.17} parent=0 // pred_region
    _
  $region9: #{decoder_forward.17} parent=0 // pred_fallthru
    _
  %v12 = vld [vmem:[%s0] sm:$0xf]
  %v13 = vld [vmem:[%s0 + $0x4] sm:$0xf]
  %v14 = vld [vmem:[%s0 + $0x8] sm:$0xf]
  %v15 = vld [vmem:[%s0 + $0xc] sm:$0xf]
  %v16 = vld [vmem:[%s0 + $0x10] sm:$0xf]
  %v17 = vld [vmem:[%s0 + $0x14] sm:$0xf]
  %v18 = vld [vmem:[%s0 + $0x18] sm:$0xf]
  %v19 = vld [vmem:[%s0 + $0x1c] sm:$0xf]
  %v20 = vld [vmem:[%s0 + $0x20] sm:$0xf]
  %v21 = vld [vmem:[%s0 + $0x24] sm:$0xf]
  %v22 = vld [vmem:[%s0 + $0x28] sm:$0xf]
  %v23 = vld [vmem:[%s0 + $0x2c] sm:$0xf]
  %v24 = vld [vmem:[%s0 + $0x30] sm:$0xf]
  %v25 = vld [vmem:[%s0 + $0x34] sm:$0xf]
  %v26 = vld [vmem:[%s0 + $0x38] sm:$0xf]
  %v27 = vld [vmem:[%s0 + $0x3c] sm:$0xf]
  %v28 = vld [vmem:[%s1] sm:$0xf]
  %v45 = vunpack.c.l.b16 %v12
  %v46 = vunpack.c.l.b16 %v13
  %v47 = vunpack.c.l.b16 %v14
  %v48 = vunpack.c.l.b16 %v15
  %v49 = vunpack.c.l.b16 %v16
  %v50 = vunpack.c.l.b16 %v17
  %v51 = vunpack.c.l.b16 %v18
  %v52 = vunpack.c.l.b16 %v19
  %v53 = vunpack.c.l.b16 %v20
  %v54 = vunpack.c.l.b16 %v21
  %v55 = vunpack.c.l.b16 %v22
  %v56 = vunpack.c.l.b16 %v23
  %v57 = vunpack.c.l.b16 %v24
  %v58 = vunpack.c.l.b16 %v25
  %v59 = vunpack.c.l.b16 %v26
  %v60 = vunpack.c.l.b16 %v27
  %v61 = vpack.c.b16 %v46, %v45
  %v62 = vpack.c.b16 %v48, %v47
  %v63 = vpack.c.b16 %v50, %v49
  %v64 = vpack.c.b16 %v52, %v51
  %v65 = vpack.c.b16 %v54, %v53
  %v66 = vpack.c.b16 %v56, %v55
  %v67 = vpack.c.b16 %v58, %v57
  %v68 = vpack.c.b16 %v60, %v59
  %vm69 = vcmask 64512
  %v71 = vsel %vm69, %v61, 0
  %v74 = vsel %vm69, %v62, 0
  %v77 = vsel %vm69, %v63, 0
  %v80 = vsel %vm69, %v64, 0
  %v83 = vsel %vm69, %v65, 0
  %v86 = vsel %vm69, %v66, 0
  %v89 = vsel %vm69, %v67, 0
  %v92 = vsel %vm69, %v68, 0
  %vm94 = vcmask 1043456
  %v96 = vsel %vm94, %v28, 0
  %98 = vmatpush.bf16.msra.mxu0 0
  %99 = vmatpush.bf16.msra.mxu0 0
  %100 = vmatpush.bf16.msra.mxu0 0
  %101 = vmatpush.bf16.msra.mxu0 0
  %102 = vmatpush.bf16.msra.mxu0 0
  %103 = vmatpush.bf16.msra.mxu0 0
  %104 = vmatpush.bf16.msra.mxu0 0
  %105 = vmatpush.bf16.msra.mxu0 %v96
  %106 = vmatmul.bf16.gmra.mxu0 %v71
  %v107 = vpop.f32.mrf.mxu0
  %v108 = vadd.f32 0.0, %v107
  %v109 = vpop.f32.mrf.mxu0
  %v110 = vadd.f32 0.0, %v109
  %111 = vmatmul.bf16.gmra.mxu0 %v74
  %v112 = vpop.f32.mrf.mxu0
  %v113 = vadd.f32 0.0, %v112
  %v114 = vpop.f32.mrf.mxu0
  %v115 = vadd.f32 0.0, %v114
  %116 = vmatmul.bf16.gmra.mxu0 %v77
  %v117 = vpop.f32.mrf.mxu0
  %v118 = vadd.f32 0.0, %v117
  %v119 = vpop.f32.mrf.mxu0
  %v120 = vadd.f32 0.0, %v119
  %121 = vmatmul.bf16.gmra.mxu0 %v80
  %v122 = vpop.f32.mrf.mxu0
  %v123 = vadd.f32 0.0, %v122
  %v124 = vpop.f32.mrf.mxu0
  %v125 = vadd.f32 0.0, %v124
  %126 = vmatmul.bf16.gmra.mxu0 %v83
  %v127 = vpop.f32.mrf.mxu0
  %v128 = vadd.f32 0.0, %v127
  %v129 = vpop.f32.mrf.mxu0
  %v130 = vadd.f32 0.0, %v129
  %131 = vmatmul.bf16.gmra.mxu0 %v86
  %v132 = vpop.f32.mrf.mxu0
  %v133 = vadd.f32 0.0, %v132
  %v134 = vpop.f32.mrf.mxu0
  %v135 = vadd.f32 0.0, %v134
  %136 = vmatmul.bf16.gmra.mxu0 %v89
  %v137 = vpop.f32.mrf.mxu0
  %v138 = vadd.f32 0.0, %v137
  %v139 = vpop.f32.mrf.mxu0
  %v140 = vadd.f32 0.0, %v139
  %141 = vmatmul.bf16.gmra.mxu0 %v92
  %v142 = vpop.f32.mrf.mxu0
  %v143 = vadd.f32 0.0, %v142
  %v144 = vpop.f32.mrf.mxu0
  %v145 = vadd.f32 0.0, %v144
  %146 = vdwg.mxu0
  %v147 = vpack.c.bf16 %v108, %v108
  %v148 = vpack.c.bf16 %v110, %v110
  %v149 = vpack.c.bf16 %v113, %v113
  %v150 = vpack.c.bf16 %v115, %v115
  %v151 = vpack.c.bf16 %v118, %v118
  %v152 = vpack.c.bf16 %v120, %v120
  %v153 = vpack.c.bf16 %v123, %v123
  %v154 = vpack.c.bf16 %v125, %v125
  %v155 = vpack.c.bf16 %v128, %v128
  %v156 = vpack.c.bf16 %v130, %v130
  %v157 = vpack.c.bf16 %v133, %v133
  %v158 = vpack.c.bf16 %v135, %v135
  %v159 = vpack.c.bf16 %v138, %v138
  %v160 = vpack.c.bf16 %v140, %v140
  %v161 = vpack.c.bf16 %v143, %v143
  %v162 = vpack.c.bf16 %v145, %v145
  %163 = vst [vmem:[%s2] sm:$0xf] %v147
  %164 = vst [vmem:[%s2 + $0x4] sm:$0xf] %v148
  %165 = vst [vmem:[%s2 + $0x8] sm:$0xf] %v149
  %166 = vst [vmem:[%s2 + $0xc] sm:$0xf] %v150
  %167 = vst [vmem:[%s2 + $0x10] sm:$0xf] %v151
  %168 = vst [vmem:[%s2 + $0x14] sm:$0xf] %v152
  %169 = vst [vmem:[%s2 + $0x18] sm:$0xf] %v153
  %170 = vst [vmem:[%s2 + $0x1c] sm:$0xf] %v154
  %171 = vst [vmem:[%s2 + $0x20] sm:$0xf] %v155
  %172 = vst [vmem:[%s2 + $0x24] sm:$0xf] %v156
  %173 = vst [vmem:[%s2 + $0x28] sm:$0xf] %v157
  %174 = vst [vmem:[%s2 + $0x2c] sm:$0xf] %v158
  %175 = vst [vmem:[%s2 + $0x30] sm:$0xf] %v159
  %176 = vst [vmem:[%s2 + $0x34] sm:$0xf] %v160
  %177 = vst [vmem:[%s2 + $0x38] sm:$0xf] %v161
  %178 = vst [vmem:[%s2 + $0x3c] sm:$0xf] %v162
  // Predicated region
  $region10: #{decoder_forward.17} parent=0 // pred_check
    _
  $region11: #{decoder_forward.17} parent=0 // pred_check_branch
    %180 = sbr.rel (0) target = $region13
  $region12: #{decoder_forward.17} parent=0 // pred_region
    _
  $region13: #{decoder_forward.17} parent=0 // pred_fallthru
    _
  // Predicated region
  $region14: #{decoder_forward.17} parent=0 // pred_check
    _
  $region15: #{decoder_forward.17} parent=0 // pred_check_branch
    %182 = sbr.rel (0) target = $region17
  $region16: #{decoder_forward.17} parent=0 // pred_region
    _
  $region17: #{decoder_forward.17} parent=0 // pred_fallthru
    _

// kernel: decoder_forward.18
$region0: #{decoder_forward.18}
  #allocation0 [shape = 'u32[]', space=smem, size = 0x4, offset = 0x4, fixed_abs, tag = 'smem constant byte address 0x4 - core index']
  #allocation1 [shape = 'u32[72,128]{1,0:T(1,128)}', space=vmem, size = 0x9000, scoped, tag = 'internal scratch']
  %s0 = inlined_call_operand.vmem [shape: bf16[512,8], index: 0, kind: input, shape index: {}]
  %s1 = inlined_call_operand.vmem [shape: bf16[8,128], index: 1, kind: input, shape index: {}]
  %s2 = inlined_call_operand.vmem [shape: bf16[512,128], index: 2, kind: output, shape index: {}]
  %s3 = sld [smem:[#allocation0]]
  $region18: #{decoder_forward.18} parent=0
    _
  %s5 = ssub.s32 1, %s3
  %s6 = scalar_select 0, %s5, %s3
  // Predicated region
  $region2: #{decoder_forward.18} parent=0 // pred_check
    _
  $region3: #{decoder_forward.18} parent=0 // pred_check_branch
    %8 = sbr.rel (0) target = $region5
  $region4: #{decoder_forward.18} parent=0 // pred_region
    _
  $region5: #{decoder_forward.18} parent=0 // pred_fallthru
    _
  // Predicated region
  $region6: #{decoder_forward.18} parent=0 // pred_check
    _
  $region7: #{decoder_forward.18} parent=0 // pred_check_branch
    %10 = sbr.rel (0) target = $region9
  $region8: #{decoder_forward.18} parent=0 // pred_region
    _
  $region9: #{decoder_forward.18} parent=0 // pred_fallthru
    _
  %v12 = vld [vmem:[%s0] sm:$0xf]
  %v13 = vld [vmem:[%s0 + $0x4] sm:$0xf]
  %v14 = vld [vmem:[%s0 + $0x8] sm:$0xf]
  %v15 = vld [vmem:[%s0 + $0xc] sm:$0xf]
  %v16 = vld [vmem:[%s0 + $0x10] sm:$0xf]
  %v17 = vld [vmem:[%s0 + $0x14] sm:$0xf]
  %v18 = vld [vmem:[%s0 + $0x18] sm:$0xf]
  %v19 = vld [vmem:[%s0 + $0x1c] sm:$0xf]
  %v20 = vld [vmem:[%s0 + $0x20] sm:$0xf]
  %v21 = vld [vmem:[%s0 + $0x24] sm:$0xf]
  %v22 = vld [vmem:[%s0 + $0x28] sm:$0xf]
  %v23 = vld [vmem:[%s0 + $0x2c] sm:$0xf]
  %v24 = vld [vmem:[%s0 + $0x30] sm:$0xf]
  %v25 = vld [vmem:[%s0 + $0x34] sm:$0xf]
  %v26 = vld [vmem:[%s0 + $0x38] sm:$0xf]
  %v27 = vld [vmem:[%s0 + $0x3c] sm:$0xf]
  %v28 = vld [vmem:[%s0 + $0x40] sm:$0xf]
  %v29 = vld [vmem:[%s0 + $0x44] sm:$0xf]
  %v30 = vld [vmem:[%s0 + $0x48] sm:$0xf]
  %v31 = vld [vmem:[%s0 + $0x4c] sm:$0xf]
  %v32 = vld [vmem:[%s0 + $0x50] sm:$0xf]
  %v33 = vld [vmem:[%s0 + $0x54] sm:$0xf]
  %v34 = vld [vmem:[%s0 + $0x58] sm:$0xf]
  %v35 = vld [vmem:[%s0 + $0x5c] sm:$0xf]
  %v36 = vld [vmem:[%s0 + $0x60] sm:$0xf]
  %v37 = vld [vmem:[%s0 + $0x64] sm:$0xf]
  %v38 = vld [vmem:[%s0 + $0x68] sm:$0xf]
  %v39 = vld [vmem:[%s0 + $0x6c] sm:$0xf]
  %v40 = vld [vmem:[%s0 + $0x70] sm:$0xf]
  %v41 = vld [vmem:[%s0 + $0x74] sm:$0xf]
  %v42 = vld [vmem:[%s0 + $0x78] sm:$0xf]
  %v43 = vld [vmem:[%s0 + $0x7c] sm:$0xf]
  %v44 = vld [vmem:[%s0 + $0x80] sm:$0xf]
  %v45 = vld [vmem:[%s0 + $0x84] sm:$0xf]
  %v46 = vld [vmem:[%s0 + $0x88] sm:$0xf]
  %v47 = vld [vmem:[%s0 + $0x8c] sm:$0xf]
  %v48 = vld [vmem:[%s0 + $0x90] sm:$0xf]
  %v49 = vld [vmem:[%s0 + $0x94] sm:$0xf]
  %v50 = vld [vmem:[%s0 + $0x98] sm:$0xf]
  %v51 = vld [vmem:[%s0 + $0x9c] sm:$0xf]
  %v52 = vld [vmem:[%s0 + $0xa0] sm:$0xf]
  %v53 = vld [vmem:[%s0 + $0xa4] sm:$0xf]
  %v54 = vld [vmem:[%s0 + $0xa8] sm:$0xf]
  %v55 = vld [vmem:[%s0 + $0xac] sm:$0xf]
  %v56 = vld [vmem:[%s0 + $0xb0] sm:$0xf]
  %v57 = vld [vmem:[%s0 + $0xb4] sm:$0xf]
  %v58 = vld [vmem:[%s0 + $0xb8] sm:$0xf]
  %v59 = vld [vmem:[%s0 + $0xbc] sm:$0xf]
  %v60 = vld [vmem:[%s0 + $0xc0] sm:$0xf]
  %v61 = vld [vmem:[%s0 + $0xc4] sm:$0xf]
  %v62 = vld [vmem:[%s0 + $0xc8] sm:$0xf]
  %v63 = vld [vmem:[%s0 + $0xcc] sm:$0xf]
  %v64 = vld [vmem:[%s0 + $0xd0] sm:$0xf]
  %v65 = vld [vmem:[%s0 + $0xd4] sm:$0xf]
  %v66 = vld [vmem:[%s0 + $0xd8] sm:$0xf]
  %v67 = vld [vmem:[%s0 + $0xdc] sm:$0xf]
  %v68 = vld [vmem:[%s0 + $0xe0] sm:$0xf]
  %v69 = vld [vmem:[%s0 + $0xe4] sm:$0xf]
  %v70 = vld [vmem:[%s0 + $0xe8] sm:$0xf]
  %v71 = vld [vmem:[%s0 + $0xec] sm:$0xf]
  %v72 = vld [vmem:[%s0 + $0xf0] sm:$0xf]
  %v73 = vld [vmem:[%s0 + $0xf4] sm:$0xf]
  %v74 = vld [vmem:[%s0 + $0xf8] sm:$0xf]
  %v75 = vld [vmem:[%s0 + $0xfc] sm:$0xf]
  %v76 = vld [vmem:[%s1] sm:$0xf]
  %v141 = vunpack.c.l.b16 %v12
  %v142 = vunpack.c.l.b16 %v13
  %v143 = vunpack.c.l.b16 %v14
  %v144 = vunpack.c.l.b16 %v15
  %v145 = vunpack.c.l.b16 %v16
  %v146 = vunpack.c.l.b16 %v17
  %v147 = vunpack.c.l.b16 %v18
  %v148 = vunpack.c.l.b16 %v19
  %v149 = vunpack.c.l.b16 %v20
  %v150 = vunpack.c.l.b16 %v21
  %v151 = vunpack.c.l.b16 %v22
  %v152 = vunpack.c.l.b16 %v23
  %v153 = vunpack.c.l.b16 %v24
  %v154 = vunpack.c.l.b16 %v25
  %v155 = vunpack.c.l.b16 %v26
  %v156 = vunpack.c.l.b16 %v27
  %v157 = vunpack.c.l.b16 %v28
  %v158 = vunpack.c.l.b16 %v29
  %v159 = vunpack.c.l.b16 %v30
  %v160 = vunpack.c.l.b16 %v31
  %v161 = vunpack.c.l.b16 %v32
  %v162 = vunpack.c.l.b16 %v33
  %v163 = vunpack.c.l.b16 %v34
  %v164 = vunpack.c.l.b16 %v35
  %v165 = vunpack.c.l.b16 %v36
  %v166 = vunpack.c.l.b16 %v37
  %v167 = vunpack.c.l.b16 %v38
  %v168 = vunpack.c.l.b16 %v39
  %v169 = vunpack.c.l.b16 %v40
  %v170 = vunpack.c.l.b16 %v41
  %v171 = vunpack.c.l.b16 %v42
  %v172 = vunpack.c.l.b16 %v43
  %v173 = vunpack.c.l.b16 %v44
  %v174 = vunpack.c.l.b16 %v45
  %v175 = vunpack.c.l.b16 %v46
  %v176 = vunpack.c.l.b16 %v47
  %v177 = vunpack.c.l.b16 %v48
  %v178 = vunpack.c.l.b16 %v49
  %v179 = vunpack.c.l.b16 %v50
  %v180 = vunpack.c.l.b16 %v51
  %v181 = vunpack.c.l.b16 %v52
  %v182 = vunpack.c.l.b16 %v53
  %v183 = vunpack.c.l.b16 %v54
  %v184 = vunpack.c.l.b16 %v55
  %v185 = vunpack.c.l.b16 %v56
  %v186 = vunpack.c.l.b16 %v57
  %v187 = vunpack.c.l.b16 %v58
  %v188 = vunpack.c.l.b16 %v59
  %v189 = vunpack.c.l.b16 %v60
  %v190 = vunpack.c.l.b16 %v61
  %v191 = vunpack.c.l.b16 %v62
  %v192 = vunpack.c.l.b16 %v63
  %v193 = vunpack.c.l.b16 %v64
  %v194 = vunpack.c.l.b16 %v65
  %v195 = vunpack.c.l.b16 %v66
  %v196 = vunpack.c.l.b16 %v67
  %v197 = vunpack.c.l.b16 %v68
  %v198 = vunpack.c.l.b16 %v69
  %v199 = vunpack.c.l.b16 %v70
  %v200 = vunpack.c.l.b16 %v71
  %v201 = vunpack.c.l.b16 %v72
  %v202 = vunpack.c.l.b16 %v73
  %v203 = vunpack.c.l.b16 %v74
  %v204 = vunpack.c.l.b16 %v75
  %v205 = vpack.c.b16 %v142, %v141
  %v206 = vpack.c.b16 %v144, %v143
  %v207 = vpack.c.b16 %v146, %v145
  %v208 = vpack.c.b16 %v148, %v147
  %v209 = vpack.c.b16 %v150, %v149
  %v210 = vpack.c.b16 %v152, %v151
  %v211 = vpack.c.b16 %v154, %v153
  %v212 = vpack.c.b16 %v156, %v155
  %v213 = vpack.c.b16 %v158, %v157
  %v214 = vpack.c.b16 %v160, %v159
  %v215 = vpack.c.b16 %v162, %v161
  %v216 = vpack.c.b16 %v164, %v163
  %v217 = vpack.c.b16 %v166, %v165
  %v218 = vpack.c.b16 %v168, %v167
  %v219 = vpack.c.b16 %v170, %v169
  %v220 = vpack.c.b16 %v172, %v171
  %v221 = vpack.c.b16 %v174, %v173
  %v222 = vpack.c.b16 %v176, %v175
  %v223 = vpack.c.b16 %v178, %v177
  %v224 = vpack.c.b16 %v180, %v179
  %v225 = vpack.c.b16 %v182, %v181
  %v226 = vpack.c.b16 %v184, %v183
  %v227 = vpack.c.b16 %v186, %v185
  %v228 = vpack.c.b16 %v188, %v187
  %v229 = vpack.c.b16 %v190, %v189
  %v230 = vpack.c.b16 %v192, %v191
  %v231 = vpack.c.b16 %v194, %v193
  %v232 = vpack.c.b16 %v196, %v195
  %v233 = vpack.c.b16 %v198, %v197
  %v234 = vpack.c.b16 %v200, %v199
  %v235 = vpack.c.b16 %v202, %v201
  %v236 = vpack.c.b16 %v204, %v203
  %vm237 = vcmask 64512
  %v239 = vsel %vm237, %v205, 0
  %v242 = vsel %vm237, %v206, 0
  %v245 = vsel %vm237, %v207, 0
  %v248 = vsel %vm237, %v208, 0
  %v251 = vsel %vm237, %v209, 0
  %v254 = vsel %vm237, %v210, 0
  %v257 = vsel %vm237, %v211, 0
  %v260 = vsel %vm237, %v212, 0
  %v263 = vsel %vm237, %v213, 0
  %v266 = vsel %vm237, %v214, 0
  %v269 = vsel %vm237, %v215, 0
  %v272 = vsel %vm237, %v216, 0
  %v275 = vsel %vm237, %v217, 0
  %v278 = vsel %vm237, %v218, 0
  %v281 = vsel %vm237, %v219, 0
  %v284 = vsel %vm237, %v220, 0
  %v287 = vsel %vm237, %v221, 0
  %v290 = vsel %vm237, %v222, 0
  %v293 = vsel %vm237, %v223, 0
  %v296 = vsel %vm237, %v224, 0
  %v299 = vsel %vm237, %v225, 0
  %v302 = vsel %vm237, %v226, 0
  %v305 = vsel %vm237, %v227, 0
  %v308 = vsel %vm237, %v228, 0
  %v311 = vsel %vm237, %v229, 0
  %v314 = vsel %vm237, %v230, 0
  %v317 = vsel %vm237, %v231, 0
  %v320 = vsel %vm237, %v232, 0
  %v323 = vsel %vm237, %v233, 0
  %v326 = vsel %vm237, %v234, 0
  %v329 = vsel %vm237, %v235, 0
  %v332 = vsel %vm237, %v236, 0
  %vm334 = vcmask 1043456
  %v336 = vsel %vm334, %v76, 0
  %338 = vmatpush.bf16.msra.mxu0 0
  %339 = vmatpush.bf16.msra.mxu0 0
  %340 = vmatpush.bf16.msra.mxu0 0
  %341 = vmatpush.bf16.msra.mxu0 0
  %342 = vmatpush.bf16.msra.mxu0 0
  %343 = vmatpush.bf16.msra.mxu0 0
  %344 = vmatpush.bf16.msra.mxu0 0
  %345 = vmatpush.bf16.msra.mxu0 %v336
  %346 = vmatmul.bf16.gmra.mxu0 %v239
  %v347 = vpop.f32.mrf.mxu0
  %v348 = vadd.f32 0.0, %v347
  %v349 = vpop.f32.mrf.mxu0
  %v350 = vadd.f32 0.0, %v349
  %351 = vmatmul.bf16.gmra.mxu0 %v242
  %v352 = vpop.f32.mrf.mxu0
  %v353 = vadd.f32 0.0, %v352
  %v354 = vpop.f32.mrf.mxu0
  %v355 = vadd.f32 0.0, %v354
  %356 = vmatmul.bf16.gmra.mxu0 %v245
  %v357 = vpop.f32.mrf.mxu0
  %v358 = vadd.f32 0.0, %v357
  %v359 = vpop.f32.mrf.mxu0
  %v360 = vadd.f32 0.0, %v359
  %361 = vmatmul.bf16.gmra.mxu0 %v248
  %v362 = vpop.f32.mrf.mxu0
  %v363 = vadd.f32 0.0, %v362
  %v364 = vpop.f32.mrf.mxu0
  %v365 = vadd.f32 0.0, %v364
  %366 = vmatmul.bf16.gmra.mxu0 %v251
  %v367 = vpop.f32.mrf.mxu0
  %v368 = vadd.f32 0.0, %v367
  %v369 = vpop.f32.mrf.mxu0
  %v370 = vadd.f32 0.0, %v369
  %371 = vmatmul.bf16.gmra.mxu0 %v254
  %v372 = vpop.f32.mrf.mxu0
  %v373 = vadd.f32 0.0, %v372
  %v374 = vpop.f32.mrf.mxu0
  %v375 = vadd.f32 0.0, %v374
  %376 = vmatmul.bf16.gmra.mxu0 %v257
  %v377 = vpop.f32.mrf.mxu0
  %v378 = vadd.f32 0.0, %v377
  %v379 = vpop.f32.mrf.mxu0
  %v380 = vadd.f32 0.0, %v379
  %381 = vmatmul.bf16.gmra.mxu0 %v260
  %v382 = vpop.f32.mrf.mxu0
  %v383 = vadd.f32 0.0, %v382
  %v384 = vpop.f32.mrf.mxu0
  %v385 = vadd.f32 0.0, %v384
  %386 = vmatmul.bf16.gmra.mxu0 %v263
  %v387 = vpop.f32.mrf.mxu0
  %v388 = vadd.f32 0.0, %v387
  %v389 = vpop.f32.mrf.mxu0
  %v390 = vadd.f32 0.0, %v389
  %391 = vmatmul.bf16.gmra.mxu0 %v266
  %v392 = vpop.f32.mrf.mxu0
  %v393 = vadd.f32 0.0, %v392
  %v394 = vpop.f32.mrf.mxu0
  %v395 = vadd.f32 0.0, %v394
  %396 = vmatmul.bf16.gmra.mxu0 %v269
  %v397 = vpop.f32.mrf.mxu0
  %v398 = vadd.f32 0.0, %v397
  %v399 = vpop.f32.mrf.mxu0
  %v400 = vadd.f32 0.0, %v399
  %401 = vmatmul.bf16.gmra.mxu0 %v272
  %v402 = vpop.f32.mrf.mxu0
  %v403 = vadd.f32 0.0, %v402
  %v404 = vpop.f32.mrf.mxu0
  %v405 = vadd.f32 0.0, %v404
  %406 = vmatmul.bf16.gmra.mxu0 %v275
  %v407 = vpop.f32.mrf.mxu0
  %v408 = vadd.f32 0.0, %v407
  %v409 = vpop.f32.mrf.mxu0
  %v410 = vadd.f32 0.0, %v409
  %411 = vmatmul.bf16.gmra.mxu0 %v278
  %v412 = vpop.f32.mrf.mxu0
  %v413 = vadd.f32 0.0, %v412
  %v414 = vpop.f32.mrf.mxu0
  %v415 = vadd.f32 0.0, %v414
  %416 = vmatmul.bf16.gmra.mxu0 %v281
  %v417 = vpop.f32.mrf.mxu0
  %v418 = vadd.f32 0.0, %v417
  %v419 = vpop.f32.mrf.mxu0
  %v420 = vadd.f32 0.0, %v419
  %421 = vmatmul.bf16.gmra.mxu0 %v284
  %v422 = vpop.f32.mrf.mxu0
  %v423 = vadd.f32 0.0, %v422
  %v424 = vpop.f32.mrf.mxu0
  %v425 = vadd.f32 0.0, %v424
  %426 = vmatmul.bf16.gmra.mxu0 %v287
  %v427 = vpop.f32.mrf.mxu0
  %v428 = vadd.f32 0.0, %v427
  %v429 = vpop.f32.mrf.mxu0
  %v430 = vadd.f32 0.0, %v429
  %431 = vmatmul.bf16.gmra.mxu0 %v290
  %v432 = vpop.f32.mrf.mxu0
  %v433 = vadd.f32 0.0, %v432
  %v434 = vpop.f32.mrf.mxu0
  %v435 = vadd.f32 0.0, %v434
  %436 = vmatmul.bf16.gmra.mxu0 %v293
  %v437 = vpop.f32.mrf.mxu0
  %v438 = vadd.f32 0.0, %v437
  %v439 = vpop.f32.mrf.mxu0
  %v440 = vadd.f32 0.0, %v439
  %441 = vmatmul.bf16.gmra.mxu0 %v296
  %v442 = vpop.f32.mrf.mxu0
  %v443 = vadd.f32 0.0, %v442
  %v444 = vpop.f32.mrf.mxu0
  %v445 = vadd.f32 0.0, %v444
  %446 = vmatmul.bf16.gmra.mxu0 %v299
  %v447 = vpop.f32.mrf.mxu0
  %v448 = vadd.f32 0.0, %v447
  %v449 = vpop.f32.mrf.mxu0
  %v450 = vadd.f32 0.0, %v449
  %451 = vmatmul.bf16.gmra.mxu0 %v302
  %v452 = vpop.f32.mrf.mxu0
  %v453 = vadd.f32 0.0, %v452
  %v454 = vpop.f32.mrf.mxu0
  %v455 = vadd.f32 0.0, %v454
  %456 = vmatmul.bf16.gmra.mxu0 %v305
  %v457 = vpop.f32.mrf.mxu0
  %v458 = vadd.f32 0.0, %v457
  %v459 = vpop.f32.mrf.mxu0
  %v460 = vadd.f32 0.0, %v459
  %461 = vmatmul.bf16.gmra.mxu0 %v308
  %v462 = vpop.f32.mrf.mxu0
  %v463 = vadd.f32 0.0, %v462
  %v464 = vpop.f32.mrf.mxu0
  %v465 = vadd.f32 0.0, %v464
  %466 = vmatmul.bf16.gmra.mxu0 %v311
  %v467 = vpop.f32.mrf.mxu0
  %v468 = vadd.f32 0.0, %v467
  %v469 = vpop.f32.mrf.mxu0
  %v470 = vadd.f32 0.0, %v469
  %471 = vmatmul.bf16.gmra.mxu0 %v314
  %v472 = vpop.f32.mrf.mxu0
  %v473 = vadd.f32 0.0, %v472
  %v474 = vpop.f32.mrf.mxu0
  %v475 = vadd.f32 0.0, %v474
  %476 = vmatmul.bf16.gmra.mxu0 %v317
  %v477 = vpop.f32.mrf.mxu0
  %v478 = vadd.f32 0.0, %v477
  %v479 = vpop.f32.mrf.mxu0
  %v480 = vadd.f32 0.0, %v479
  %481 = vmatmul.bf16.gmra.mxu0 %v320
  %v482 = vpop.f32.mrf.mxu0
  %v483 = vadd.f32 0.0, %v482
  %v484 = vpop.f32.mrf.mxu0
  %v485 = vadd.f32 0.0, %v484
  %486 = vmatmul.bf16.gmra.mxu0 %v323
  %v487 = vpop.f32.mrf.mxu0
  %v488 = vadd.f32 0.0, %v487
  %v489 = vpop.f32.mrf.mxu0
  %v490 = vadd.f32 0.0, %v489
  %491 = vmatmul.bf16.gmra.mxu0 %v326
  %v492 = vpop.f32.mrf.mxu0
  %v493 = vadd.f32 0.0, %v492
  %v494 = vpop.f32.mrf.mxu0
  %v495 = vadd.f32 0.0, %v494
  %496 = vmatmul.bf16.gmra.mxu0 %v329
  %v497 = vpop.f32.mrf.mxu0
  %v498 = vadd.f32 0.0, %v497
  %v499 = vpop.f32.mrf.mxu0
  %v500 = vadd.f32 0.0, %v499
  %501 = vmatmul.bf16.gmra.mxu0 %v332
  %v502 = vpop.f32.mrf.mxu0
  %v503 = vadd.f32 0.0, %v502
  %v504 = vpop.f32.mrf.mxu0
  %v505 = vadd.f32 0.0, %v504
  %506 = vdwg.mxu0
  %v507 = vpack.c.bf16 %v348, %v348
  %v508 = vpack.c.bf16 %v350, %v350
  %v509 = vpack.c.bf16 %v353, %v353
  %v510 = vpack.c.bf16 %v355, %v355
  %v511 = vpack.c.bf16 %v358, %v358
  %v512 = vpack.c.bf16 %v360, %v360
  %v513 = vpack.c.bf16 %v363, %v363
  %v514 = vpack.c.bf16 %v365, %v365
  %v515 = vpack.c.bf16 %v368, %v368
  %v516 = vpack.c.bf16 %v370, %v370
  %v517 = vpack.c.bf16 %v373, %v373
  %v518 = vpack.c.bf16 %v375, %v375
  %v519 = vpack.c.bf16 %v378, %v378
  %v520 = vpack.c.bf16 %v380, %v380
  %v521 = vpack.c.bf16 %v383, %v383
  %v522 = vpack.c.bf16 %v385, %v385
  %v523 = vpack.c.bf16 %v388, %v388
  %v524 = vpack.c.bf16 %v390, %v390
  %v525 = vpack.c.bf16 %v393, %v393
  %v526 = vpack.c.bf16 %v395, %v395
  %v527 = vpack.c.bf16 %v398, %v398
  %v528 = vpack.c.bf16 %v400, %v400
  %v529 = vpack.c.bf16 %v403, %v403
  %v530 = vpack.c.bf16 %v405, %v405
  %v531 = vpack.c.bf16 %v408, %v408
  %v532 = vpack.c.bf16 %v410, %v410
  %v533 = vpack.c.bf16 %v413, %v413
  %v534 = vpack.c.bf16 %v415, %v415
  %v535 = vpack.c.bf16 %v418, %v418
  %v536 = vpack.c.bf16 %v420, %v420
  %v537 = vpack.c.bf16 %v423, %v423
  %v538 = vpack.c.bf16 %v425, %v425
  %v539 = vpack.c.bf16 %v428, %v428
  %v540 = vpack.c.bf16 %v430, %v430
  %v541 = vpack.c.bf16 %v433, %v433
  %v542 = vpack.c.bf16 %v435, %v435
  %v543 = vpack.c.bf16 %v438, %v438
  %v544 = vpack.c.bf16 %v440, %v440
  %v545 = vpack.c.bf16 %v443, %v443
  %v546 = vpack.c.bf16 %v445, %v445
  %v547 = vpack.c.bf16 %v448, %v448
  %v548 = vpack.c.bf16 %v450, %v450
  %v549 = vpack.c.bf16 %v453, %v453
  %v550 = vpack.c.bf16 %v455, %v455
  %v551 = vpack.c.bf16 %v458, %v458
  %v552 = vpack.c.bf16 %v460, %v460
  %v553 = vpack.c.bf16 %v463, %v463
  %v554 = vpack.c.bf16 %v465, %v465
  %v555 = vpack.c.bf16 %v468, %v468
  %v556 = vpack.c.bf16 %v470, %v470
  %v557 = vpack.c.bf16 %v473, %v473
  %v558 = vpack.c.bf16 %v475, %v475
  %v559 = vpack.c.bf16 %v478, %v478
  %v560 = vpack.c.bf16 %v480, %v480
  %v561 = vpack.c.bf16 %v483, %v483
  %v562 = vpack.c.bf16 %v485, %v485
  %v563 = vpack.c.bf16 %v488, %v488
  %v564 = vpack.c.bf16 %v490, %v490
  %v565 = vpack.c.bf16 %v493, %v493
  %v566 = vpack.c.bf16 %v495, %v495
  %v567 = vpack.c.bf16 %v498, %v498
  %v568 = vpack.c.bf16 %v500, %v500
  %v569 = vpack.c.bf16 %v503, %v503
  %v570 = vpack.c.bf16 %v505, %v505
  %571 = vst [vmem:[%s2] sm:$0xf] %v507
  %572 = vst [vmem:[%s2 + $0x4] sm:$0xf] %v508
  %573 = vst [vmem:[%s2 + $0x8] sm:$0xf] %v509
  %574 = vst [vmem:[%s2 + $0xc] sm:$0xf] %v510
  %575 = vst [vmem:[%s2 + $0x10] sm:$0xf] %v511
  %576 = vst [vmem:[%s2 + $0x14] sm:$0xf] %v512
  %577 = vst [vmem:[%s2 + $0x18] sm:$0xf] %v513
  %578 = vst [vmem:[%s2 + $0x1c] sm:$0xf] %v514
  %579 = vst [vmem:[%s2 + $0x20] sm:$0xf] %v515
  %580 = vst [vmem:[%s2 + $0x24] sm:$0xf] %v516
  %581 = vst [vmem:[%s2 + $0x28] sm:$0xf] %v517
  %582 = vst [vmem:[%s2 + $0x2c] sm:$0xf] %v518
  %583 = vst [vmem:[%s2 + $0x30] sm:$0xf] %v519
  %584 = vst [vmem:[%s2 + $0x34] sm:$0xf] %v520
  %585 = vst [vmem:[%s2 + $0x38] sm:$0xf] %v521
  %586 = vst [vmem:[%s2 + $0x3c] sm:$0xf] %v522
  %587 = vst [vmem:[%s2 + $0x40] sm:$0xf] %v523
  %588 = vst [vmem:[%s2 + $0x44] sm:$0xf] %v524
  %589 = vst [vmem:[%s2 + $0x48] sm:$0xf] %v525
  %590 = vst [vmem:[%s2 + $0x4c] sm:$0xf] %v526
  %591 = vst [vmem:[%s2 + $0x50] sm:$0xf] %v527
  %592 = vst [vmem:[%s2 + $0x54] sm:$0xf] %v528
  %593 = vst [vmem:[%s2 + $0x58] sm:$0xf] %v529
  %594 = vst [vmem:[%s2 + $0x5c] sm:$0xf] %v530
  %595 = vst [vmem:[%s2 + $0x60] sm:$0xf] %v531
  %596 = vst [vmem:[%s2 + $0x64] sm:$0xf] %v532
  %597 = vst [vmem:[%s2 + $0x68] sm:$0xf] %v533
  %598 = vst [vmem:[%s2 + $0x6c] sm:$0xf] %v534
  %599 = vst [vmem:[%s2 + $0x70] sm:$0xf] %v535
  %600 = vst [vmem:[%s2 + $0x74] sm:$0xf] %v536
  %601 = vst [vmem:[%s2 + $0x78] sm:$0xf] %v537
  %602 = vst [vmem:[%s2 + $0x7c] sm:$0xf] %v538
  %603 = vst [vmem:[%s2 + $0x80] sm:$0xf] %v539
  %604 = vst [vmem:[%s2 + $0x84] sm:$0xf] %v540
  %605 = vst [vmem:[%s2 + $0x88] sm:$0xf] %v541
  %606 = vst [vmem:[%s2 + $0x8c] sm:$0xf] %v542
  %607 = vst [vmem:[%s2 + $0x90] sm:$0xf] %v543
  %608 = vst [vmem:[%s2 + $0x94] sm:$0xf] %v544
  %609 = vst [vmem:[%s2 + $0x98] sm:$0xf] %v545
  %610 = vst [vmem:[%s2 + $0x9c] sm:$0xf] %v546
  %611 = vst [vmem:[%s2 + $0xa0] sm:$0xf] %v547
  %612 = vst [vmem:[%s2 + $0xa4] sm:$0xf] %v548
  %613 = vst [vmem:[%s2 + $0xa8] sm:$0xf] %v549
  %614 = vst [vmem:[%s2 + $0xac] sm:$0xf] %v550
  %615 = vst [vmem:[%s2 + $0xb0] sm:$0xf] %v551
  %616 = vst [vmem:[%s2 + $0xb4] sm:$0xf] %v552
  %617 = vst [vmem:[%s2 + $0xb8] sm:$0xf] %v553
  %618 = vst [vmem:[%s2 + $0xbc] sm:$0xf] %v554
  %619 = vst [vmem:[%s2 + $0xc0] sm:$0xf] %v555
  %620 = vst [vmem:[%s2 + $0xc4] sm:$0xf] %v556
  %621 = vst [vmem:[%s2 + $0xc8] sm:$0xf] %v557
  %622 = vst [vmem:[%s2 + $0xcc] sm:$0xf] %v558
  %623 = vst [vmem:[%s2 + $0xd0] sm:$0xf] %v559
  %624 = vst [vmem:[%s2 + $0xd4] sm:$0xf] %v560
  %625 = vst [vmem:[%s2 + $0xd8] sm:$0xf] %v561
  %626 = vst [vmem:[%s2 + $0xdc] sm:$0xf] %v562
  %627 = vst [vmem:[%s2 + $0xe0] sm:$0xf] %v563
  %628 = vst [vmem:[%s2 + $0xe4] sm:$0xf] %v564
  %629 = vst [vmem:[%s2 + $0xe8] sm:$0xf] %v565
  %630 = vst [vmem:[%s2 + $0xec] sm:$0xf] %v566
  %631 = vst [vmem:[%s2 + $0xf0] sm:$0xf] %v567
  %632 = vst [vmem:[%s2 + $0xf4] sm:$0xf] %v568
  %633 = vst [vmem:[%s2 + $0xf8] sm:$0xf] %v569
  %634 = vst [vmem:[%s2 + $0xfc] sm:$0xf] %v570
  // Predicated region
  $region10: #{decoder_forward.18} parent=0 // pred_check
    _
  $region11: #{decoder_forward.18} parent=0 // pred_check_branch
    %636 = sbr.rel (0) target = $region13
  $region12: #{decoder_forward.18} parent=0 // pred_region
    _
  $region13: #{decoder_forward.18} parent=0 // pred_fallthru
    _
  // Predicated region
  $region14: #{decoder_forward.18} parent=0 // pred_check
    _
  $region15: #{decoder_forward.18} parent=0 // pred_check_branch
    %638 = sbr.rel (0) target = $region17
  $region16: #{decoder_forward.18} parent=0 // pred_region
    _
  $region17: #{decoder_forward.18} parent=0 // pred_fallthru
    _

// kernel: decoder_forward.19
$region0: #{decoder_forward.19}
  #allocation0 [shape = 'u32[]', space=smem, size = 0x4, offset = 0x4, fixed_abs, tag = 'smem constant byte address 0x4 - core index']
  #allocation1 [shape = 'u32[72,128]{1,0:T(1,128)}', space=vmem, size = 0x9000, scoped, tag = 'internal scratch']
  %s0 = inlined_call_operand.vmem [shape: bf16[2048,8], index: 0, kind: input, shape index: {}]
  %s1 = inlined_call_operand.vmem [shape: bf16[8,128], index: 1, kind: input, shape index: {}]
  %s2 = inlined_call_operand.vmem [shape: bf16[2048,128], index: 2, kind: output, shape index: {}]
  %s3 = sld [smem:[#allocation0]]
  $region18: #{decoder_forward.19} parent=0
    _
  %s5 = ssub.s32 1, %s3
  %s6 = scalar_select 0, %s5, %s3
  // Predicated region
  $region2: #{decoder_forward.19} parent=0 // pred_check
    _
  $region3: #{decoder_forward.19} parent=0 // pred_check_branch
    %8 = sbr.rel (0) target = $region5
  $region4: #{decoder_forward.19} parent=0 // pred_region
    _
  $region5: #{decoder_forward.19} parent=0 // pred_fallthru
    _
  // Predicated region
  $region6: #{decoder_forward.19} parent=0 // pred_check
    _
  $region7: #{decoder_forward.19} parent=0 // pred_check_branch
    %10 = sbr.rel (0) target = $region9
  $region8: #{decoder_forward.19} parent=0 // pred_region
    _
  $region9: #{decoder_forward.19} parent=0 // pred_fallthru
    _
  %v12 = vld [vmem:[%s0] sm:$0xf]
  %v13 = vld [vmem:[%s0 + $0x4] sm:$0xf]
  %v14 = vld [vmem:[%s0 + $0x8] sm:$0xf]
  %v15 = vld [vmem:[%s0 + $0xc] sm:$0xf]
  %v16 = vld [vmem:[%s0 + $0x10] sm:$0xf]
  %v17 = vld [vmem:[%s0 + $0x14] sm:$0xf]
  %v18 = vld [vmem:[%s0 + $0x18] sm:$0xf]
  %v19 = vld [vmem:[%s0 + $0x1c] sm:$0xf]
  %v20 = vld [vmem:[%s0 + $0x20] sm:$0xf]
  %v21 = vld [vmem:[%s0 + $0x24] sm:$0xf]
  %v22 = vld [vmem:[%s0 + $0x28] sm:$0xf]
  %v23 = vld [vmem:[%s0 + $0x2c] sm:$0xf]
  %v24 = vld [vmem:[%s0 + $0x30] sm:$0xf]
  %v25 = vld [vmem:[%s0 + $0x34] sm:$0xf]
  %v26 = vld [vmem:[%s0 + $0x38] sm:$0xf]
  %v27 = vld [vmem:[%s0 + $0x3c] sm:$0xf]
  %v28 = vld [vmem:[%s0 + $0x40] sm:$0xf]
  %v29 = vld [vmem:[%s0 + $0x44] sm:$0xf]
  %v30 = vld [vmem:[%s0 + $0x48] sm:$0xf]
  %v31 = vld [vmem:[%s0 + $0x4c] sm:$0xf]
  %v32 = vld [vmem:[%s0 + $0x50] sm:$0xf]
  %v33 = vld [vmem:[%s0 + $0x54] sm:$0xf]
  %v34 = vld [vmem:[%s0 + $0x58] sm:$0xf]
  %v35 = vld [vmem:[%s0 + $0x5c] sm:$0xf]
  %v36 = vld [vmem:[%s0 + $0x60] sm:$0xf]
  %v37 = vld [vmem:[%s0 + $0x64] sm:$0xf]
  %v38 = vld [vmem:[%s0 + $0x68] sm:$0xf]
  %v39 = vld [vmem:[%s0 + $0x6c] sm:$0xf]
  %v40 = vld [vmem:[%s0 + $0x70] sm:$0xf]
  %v41 = vld [vmem:[%s0 + $0x74] sm:$0xf]
  %v42 = vld [vmem:[%s0 + $0x78] sm:$0xf]
  %v43 = vld [vmem:[%s0 + $0x7c] sm:$0xf]
  %v44 = vld [vmem:[%s0 + $0x80] sm:$0xf]
  %v45 = vld [vmem:[%s0 + $0x84] sm:$0xf]
  %v46 = vld [vmem:[%s0 + $0x88] sm:$0xf]
  %v47 = vld [vmem:[%s0 + $0x8c] sm:$0xf]
  %v48 = vld [vmem:[%s0 + $0x90] sm:$0xf]
  %v49 = vld [vmem:[%s0 + $0x94] sm:$0xf]
  %v50 = vld [vmem:[%s0 + $0x98] sm:$0xf]
  %v51 = vld [vmem:[%s0 + $0x9c] sm:$0xf]
  %v52 = vld [vmem:[%s0 + $0xa0] sm:$0xf]
  %v53 = vld [vmem:[%s0 + $0xa4] sm:$0xf]
  %v54 = vld [vmem:[%s0 + $0xa8] sm:$0xf]
  %v55 = vld [vmem:[%s0 + $0xac] sm:$0xf]
  %v56 = vld [vmem:[%s0 + $0xb0] sm:$0xf]
  %v57 = vld [vmem:[%s0 + $0xb4] sm:$0xf]
  %v58 = vld [vmem:[%s0 + $0xb8] sm:$0xf]
  %v59 = vld [vmem:[%s0 + $0xbc] sm:$0xf]
  %v60 = vld [vmem:[%s0 + $0xc0] sm:$0xf]
  %v61 = vld [vmem:[%s0 + $0xc4] sm:$0xf]
  %v62 = vld [vmem:[%s0 + $0xc8] sm:$0xf]
  %v63 = vld [vmem:[%s0 + $0xcc] sm:$0xf]
  %v64 = vld [vmem:[%s0 + $0xd0] sm:$0xf]
  %v65 = vld [vmem:[%s0 + $0xd4] sm:$0xf]
  %v66 = vld [vmem:[%s0 + $0xd8] sm:$0xf]
  %v67 = vld [vmem:[%s0 + $0xdc] sm:$0xf]
  %v68 = vld [vmem:[%s0 + $0xe0] sm:$0xf]
  %v69 = vld [vmem:[%s0 + $0xe4] sm:$0xf]
  %v70 = vld [vmem:[%s0 + $0xe8] sm:$0xf]
  %v71 = vld [vmem:[%s0 + $0xec] sm:$0xf]
  %v72 = vld [vmem:[%s0 + $0xf0] sm:$0xf]
  %v73 = vld [vmem:[%s0 + $0xf4] sm:$0xf]
  %v74 = vld [vmem:[%s0 + $0xf8] sm:$0xf]
  %v75 = vld [vmem:[%s0 + $0xfc] sm:$0xf]
  %v76 = vld [vmem:[%s0 + $0x100] sm:$0xf]
  %v77 = vld [vmem:[%s0 + $0x104] sm:$0xf]
  %v78 = vld [vmem:[%s0 + $0x108] sm:$0xf]
  %v79 = vld [vmem:[%s0 + $0x10c] sm:$0xf]
  %v80 = vld [vmem:[%s0 + $0x110] sm:$0xf]
  %v81 = vld [vmem:[%s0 + $0x114] sm:$0xf]
  %v82 = vld [vmem:[%s0 + $0x118] sm:$0xf]
  %v83 = vld [vmem:[%s0 + $0x11c] sm:$0xf]
  %v84 = vld [vmem:[%s0 + $0x120] sm:$0xf]
  %v85 = vld [vmem:[%s0 + $0x124] sm:$0xf]
  %v86 = vld [vmem:[%s0 + $0x128] sm:$0xf]
  %v87 = vld [vmem:[%s0 + $0x12c] sm:$0xf]
  %v88 = vld [vmem:[%s0 + $0x130] sm:$0xf]
  %v89 = vld [vmem:[%s0 + $0x134] sm:$0xf]
  %v90 = vld [vmem:[%s0 + $0x138] sm:$0xf]
  %v91 = vld [vmem:[%s0 + $0x13c] sm:$0xf]
  %v92 = vld [vmem:[%s0 + $0x140] sm:$0xf]
  %v93 = vld [vmem:[%s0 + $0x144] sm:$0xf]
  %v94 = vld [vmem:[%s0 + $0x148] sm:$0xf]
  %v95 = vld [vmem:[%s0 + $0x14c] sm:$0xf]
  %v96 = vld [vmem:[%s0 + $0x150] sm:$0xf]
  %v97 = vld [vmem:[%s0 + $0x154] sm:$0xf]
  %v98 = vld [vmem:[%s0 + $0x158] sm:$0xf]
  %v99 = vld [vmem:[%s0 + $0x15c] sm:$0xf]
  %v100 = vld [vmem:[%s0 + $0x160] sm:$0xf]
  %v101 = vld [vmem:[%s0 + $0x164] sm:$0xf]
  %v102 = vld [vmem:[%s0 + $0x168] sm:$0xf]
  %v103 = vld [vmem:[%s0 + $0x16c] sm:$0xf]
  %v104 = vld [vmem:[%s0 + $0x170] sm:$0xf]
  %v105 = vld [vmem:[%s0 + $0x174] sm:$0xf]
  %v106 = vld [vmem:[%s0 + $0x178] sm:$0xf]
  %v107 = vld [vmem:[%s0 + $0x17c] sm:$0xf]
  %v108 = vld [vmem:[%s0 + $0x180] sm:$0xf]
  %v109 = vld [vmem:[%s0 + $0x184] sm:$0xf]
  %v110 = vld [vmem:[%s0 + $0x188] sm:$0xf]
  %v111 = vld [vmem:[%s0 + $0x18c] sm:$0xf]
  %v112 = vld [vmem:[%s0 + $0x190] sm:$0xf]
  %v113 = vld [vmem:[%s0 + $0x194] sm:$0xf]
  %v114 = vld [vmem:[%s0 + $0x198] sm:$0xf]
  %v115 = vld [vmem:[%s0 + $0x19c] sm:$0xf]
  %v116 = vld [vmem:[%s0 + $0x1a0] sm:$0xf]
  %v117 = vld [vmem:[%s0 + $0x1a4] sm:$0xf]
  %v118 = vld [vmem:[%s0 + $0x1a8] sm:$0xf]
  %v119 = vld [vmem:[%s0 + $0x1ac] sm:$0xf]
  %v120 = vld [vmem:[%s0 + $0x1b0] sm:$0xf]
  %v121 = vld [vmem:[%s0 + $0x1b4] sm:$0xf]
  %v122 = vld [vmem:[%s0 + $0x1b8] sm:$0xf]
  %v123 = vld [vmem:[%s0 + $0x1bc] sm:$0xf]
  %v124 = vld [vmem:[%s0 + $0x1c0] sm:$0xf]
  %v125 = vld [vmem:[%s0 + $0x1c4] sm:$0xf]
  %v126 = vld [vmem:[%s0 + $0x1c8] sm:$0xf]
  %v127 = vld [vmem:[%s0 + $0x1cc] sm:$0xf]
  %v128 = vld [vmem:[%s0 + $0x1d0] sm:$0xf]
  %v129 = vld [vmem:[%s0 + $0x1d4] sm:$0xf]
  %v130 = vld [vmem:[%s0 + $0x1d8] sm:$0xf]
  %v131 = vld [vmem:[%s0 + $0x1dc] sm:$0xf]
  %v132 = vld [vmem:[%s0 + $0x1e0] sm:$0xf]
  %v133 = vld [vmem:[%s0 + $0x1e4] sm:$0xf]
  %v134 = vld [vmem:[%s0 + $0x1e8] sm:$0xf]
  %v135 = vld [vmem:[%s0 + $0x1ec] sm:$0xf]
  %v136 = vld [vmem:[%s0 + $0x1f0] sm:$0xf]
  %v137 = vld [vmem:[%s0 + $0x1f4] sm:$0xf]
  %v138 = vld [vmem:[%s0 + $0x1f8] sm:$0xf]
  %v139 = vld [vmem:[%s0 + $0x1fc] sm:$0xf]
  %v140 = vld [vmem:[%s0 + $0x200] sm:$0xf]
  %v141 = vld [vmem:[%s0 + $0x204] sm:$0xf]
  %v142 = vld [vmem:[%s0 + $0x208] sm:$0xf]
  %v143 = vld [vmem:[%s0 + $0x20c] sm:$0xf]
  %v144 = vld [vmem:[%s0 + $0x210] sm:$0xf]
  %v145 = vld [vmem:[%s0 + $0x214] sm:$0xf]
  %v146 = vld [vmem:[%s0 + $0x218] sm:$0xf]
  %v147 = vld [vmem:[%s0 + $0x21c] sm:$0xf]
  %v148 = vld [vmem:[%s0 + $0x220] sm:$0xf]
  %v149 = vld [vmem:[%s0 + $0x224] sm:$0xf]
  %v150 = vld [vmem:[%s0 + $0x228] sm:$0xf]
  %v151 = vld [vmem:[%s0 + $0x22c] sm:$0xf]
  %v152 = vld [vmem:[%s0 + $0x230] sm:$0xf]
  %v153 = vld [vmem:[%s0 + $0x234] sm:$0xf]
  %v154 = vld [vmem:[%s0 + $0x238] sm:$0xf]
  %v155 = vld [vmem:[%s0 + $0x23c] sm:$0xf]
  %v156 = vld [vmem:[%s0 + $0x240] sm:$0xf]
  %v157 = vld [vmem:[%s0 + $0x244] sm:$0xf]
  %v158 = vld [vmem:[%s0 + $0x248] sm:$0xf]
  %v159 = vld [vmem:[%s0 + $0x24c] sm:$0xf]
  %v160 = vld [vmem:[%s0 + $0x250] sm:$0xf]
  %v161 = vld [vmem:[%s0 + $0x254] sm:$0xf]
  %v162 = vld [vmem:[%s0 + $0x258] sm:$0xf]
  %v163 = vld [vmem:[%s0 + $0x25c] sm:$0xf]
  %v164 = vld [vmem:[%s0 + $0x260] sm:$0xf]
  %v165 = vld [vmem:[%s0 + $0x264] sm:$0xf]
  %v166 = vld [vmem:[%s0 + $0x268] sm:$0xf]
  %v167 = vld [vmem:[%s0 + $0x26c] sm:$0xf]
  %v168 = vld [vmem:[%s0 + $0x270] sm:$0xf]
  %v169 = vld [vmem:[%s0 + $0x274] sm:$0xf]
  %v170 = vld [vmem:[%s0 + $0x278] sm:$0xf]
  %v171 = vld [vmem:[%s0 + $0x27c] sm:$0xf]
  %v172 = vld [vmem:[%s0 + $0x280] sm:$0xf]
  %v173 = vld [vmem:[%s0 + $0x284] sm:$0xf]
  %v174 = vld [vmem:[%s0 + $0x288] sm:$0xf]
  %v175 = vld [vmem:[%s0 + $0x28c] sm:$0xf]
  %v176 = vld [vmem:[%s0 + $0x290] sm:$0xf]
  %v177 = vld [vmem:[%s0 + $0x294] sm:$0xf]
  %v178 = vld [vmem:[%s0 + $0x298] sm:$0xf]
  %v179 = vld [vmem:[%s0 + $0x29c] sm:$0xf]
  %v180 = vld [vmem:[%s0 + $0x2a0] sm:$0xf]
  %v181 = vld [vmem:[%s0 + $0x2a4] sm:$0xf]
  %v182 = vld [vmem:[%s0 + $0x2a8] sm:$0xf]
  %v183 = vld [vmem:[%s0 + $0x2ac] sm:$0xf]
  %v184 = vld [vmem:[%s0 + $0x2b0] sm:$0xf]
  %v185 = vld [vmem:[%s0 + $0x2b4] sm:$0xf]
  %v186 = vld [vmem:[%s0 + $0x2b8] sm:$0xf]
  %v187 = vld [vmem:[%s0 + $0x2bc] sm:$0xf]
  %v188 = vld [vmem:[%s0 + $0x2c0] sm:$0xf]
  %v189 = vld [vmem:[%s0 + $0x2c4] sm:$0xf]
  %v190 = vld [vmem:[%s0 + $0x2c8] sm:$0xf]
  %v191 = vld [vmem:[%s0 + $0x2cc] sm:$0xf]
  %v192 = vld [vmem:[%s0 + $0x2d0] sm:$0xf]
  %v193 = vld [vmem:[%s0 + $0x2d4] sm:$0xf]
  %v194 = vld [vmem:[%s0 + $0x2d8] sm:$0xf]
  %v195 = vld [vmem:[%s0 + $0x2dc] sm:$0xf]
  %v196 = vld [vmem:[%s0 + $0x2e0] sm:$0xf]
  %v197 = vld [vmem:[%s0 + $0x2e4] sm:$0xf]
  %v198 = vld [vmem:[%s0 + $0x2e8] sm:$0xf]
  %v199 = vld [vmem:[%s0 + $0x2ec] sm:$0xf]
  %v200 = vld [vmem:[%s0 + $0x2f0] sm:$0xf]
  %v201 = vld [vmem:[%s0 + $0x2f4] sm:$0xf]
  %v202 = vld [vmem:[%s0 + $0x2f8] sm:$0xf]
  %v203 = vld [vmem:[%s0 + $0x2fc] sm:$0xf]
  %v204 = vld [vmem:[%s0 + $0x300] sm:$0xf]
  %v205 = vld [vmem:[%s0 + $0x304] sm:$0xf]
  %v206 = vld [vmem:[%s0 + $0x308] sm:$0xf]
  %v207 = vld [vmem:[%s0 + $0x30c] sm:$0xf]
  %v208 = vld [vmem:[%s0 + $0x310] sm:$0xf]
  %v209 = vld [vmem:[%s0 + $0x314] sm:$0xf]
  %v210 = vld [vmem:[%s0 + $0x318] sm:$0xf]
  %v211 = vld [vmem:[%s0 + $0x31c] sm:$0xf]
  %v212 = vld [vmem:[%s0 + $0x320] sm:$0xf]
  %v213 = vld [vmem:[%s0 + $0x324] sm:$0xf]
  %v214 = vld [vmem:[%s0 + $0x328] sm:$0xf]
  %v215 = vld [vmem:[%s0 + $0x32c] sm:$0xf]
  %v216 = vld [vmem:[%s0 + $0x330] sm:$0xf]
  %v217 = vld [vmem:[%s0 + $0x334] sm:$0xf]
  %v218 = vld [vmem:[%s0 + $0x338] sm:$0xf]
  %v219 = vld [vmem:[%s0 + $0x33c] sm:$0xf]
  %v220 = vld [vmem:[%s0 + $0x340] sm:$0xf]
  %v221 = vld [vmem:[%s0 + $0x344] sm:$0xf]
  %v222 = vld [vmem:[%s0 + $0x348] sm:$0xf]
  %v223 = vld [vmem:[%s0 + $0x34c] sm:$0xf]
  %v224 = vld [vmem:[%s0 + $0x350] sm:$0xf]
  %v225 = vld [vmem:[%s0 + $0x354] sm:$0xf]
  %v226 = vld [vmem:[%s0 + $0x358] sm:$0xf]
  %v227 = vld [vmem:[%s0 + $0x35c] sm:$0xf]
  %v228 = vld [vmem:[%s0 + $0x360] sm:$0xf]
  %v229 = vld [vmem:[%s0 + $0x364] sm:$0xf]
  %v230 = vld [vmem:[%s0 + $0x368] sm:$0xf]
  %v231 = vld [vmem:[%s0 + $0x36c] sm:$0xf]
  %v232 = vld [vmem:[%s0 + $0x370] sm:$0xf]
  %v233 = vld [vmem:[%s0 + $0x374] sm:$0xf]
  %v234 = vld [vmem:[%s0 + $0x378] sm:$0xf]
  %v235 = vld [vmem:[%s0 + $0x37c] sm:$0xf]
  %v236 = vld [vmem:[%s0 + $0x380] sm:$0xf]
  %v237 = vld [vmem:[%s0 + $0x384] sm:$0xf]
  %v238 = vld [vmem:[%s0 + $0x388] sm:$0xf]
  %v239 = vld [vmem:[%s0 + $0x38c] sm:$0xf]
  %v240 = vld [vmem:[%s0 + $0x390] sm:$0xf]
  %v241 = vld [vmem:[%s0 + $0x394] sm:$0xf]
  %v242 = vld [vmem:[%s0 + $0x398] sm:$0xf]
  %v243 = vld [vmem:[%s0 + $0x39c] sm:$0xf]
  %v244 = vld [vmem:[%s0 + $0x3a0] sm:$0xf]
  %v245 = vld [vmem:[%s0 + $0x3a4] sm:$0xf]
  %v246 = vld [vmem:[%s0 + $0x3a8] sm:$0xf]
  %v247 = vld [vmem:[%s0 + $0x3ac] sm:$0xf]
  %v248 = vld [vmem:[%s0 + $0x3b0] sm:$0xf]
  %v249 = vld [vmem:[%s0 + $0x3b4] sm:$0xf]
  %v250 = vld [vmem:[%s0 + $0x3b8] sm:$0xf]
  %v251 = vld [vmem:[%s0 + $0x3bc] sm:$0xf]
  %v252 = vld [vmem:[%s0 + $0x3c0] sm:$0xf]
  %v253 = vld [vmem:[%s0 + $0x3c4] sm:$0xf]
  %v254 = vld [vmem:[%s0 + $0x3c8] sm:$0xf]
  %v255 = vld [vmem:[%s0 + $0x3cc] sm:$0xf]
  %v256 = vld [vmem:[%s0 + $0x3d0] sm:$0xf]
  %v257 = vld [vmem:[%s0 + $0x3d4] sm:$0xf]
  %v258 = vld [vmem:[%s0 + $0x3d8] sm:$0xf]
  %v259 = vld [vmem:[%s0 + $0x3dc] sm:$0xf]
  %v260 = vld [vmem:[%s0 + $0x3e0] sm:$0xf]
  %v261 = vld [vmem:[%s0 + $0x3e4] sm:$0xf]
  %v262 = vld [vmem:[%s0 + $0x3e8] sm:$0xf]
  %v263 = vld [vmem:[%s0 + $0x3ec] sm:$0xf]
  %v264 = vld [vmem:[%s0 + $0x3f0] sm:$0xf]
  %v265 = vld [vmem:[%s0 + $0x3f4] sm:$0xf]
  %v266 = vld [vmem:[%s0 + $0x3f8] sm:$0xf]
  %v267 = vld [vmem:[%s0 + $0x3fc] sm:$0xf]
  %v268 = vld [vmem:[%s1] sm:$0xf]
  %v525 = vunpack.c.l.b16 %v12
  %v526 = vunpack.c.l.b16 %v13
  %v527 = vunpack.c.l.b16 %v14
  %v528 = vunpack.c.l.b16 %v15
  %v529 = vunpack.c.l.b16 %v16
  %v530 = vunpack.c.l.b16 %v17
  %v531 = vunpack.c.l.b16 %v18
  %v532 = vunpack.c.l.b16 %v19
  %v533 = vunpack.c.l.b16 %v20
  %v534 = vunpack.c.l.b16 %v21
  %v535 = vunpack.c.l.b16 %v22
  %v536 = vunpack.c.l.b16 %v23
  %v537 = vunpack.c.l.b16 %v24
  %v538 = vunpack.c.l.b16 %v25
  %v539 = vunpack.c.l.b16 %v26
  %v540 = vunpack.c.l.b16 %v27
  %v541 = vunpack.c.l.b16 %v28
  %v542 = vunpack.c.l.b16 %v29
  %v543 = vunpack.c.l.b16 %v30
  %v544 = vunpack.c.l.b16 %v31
  %v545 = vunpack.c.l.b16 %v32
  %v546 = vunpack.c.l.b16 %v33
  %v547 = vunpack.c.l.b16 %v34
  %v548 = vunpack.c.l.b16 %v35
  %v549 = vunpack.c.l.b16 %v36
  %v550 = vunpack.c.l.b16 %v37
  %v551 = vunpack.c.l.b16 %v38
  %v552 = vunpack.c.l.b16 %v39
  %v553 = vunpack.c.l.b16 %v40
  %v554 = vunpack.c.l.b16 %v41
  %v555 = vunpack.c.l.b16 %v42
  %v556 = vunpack.c.l.b16 %v43
  %v557 = vunpack.c.l.b16 %v44
  %v558 = vunpack.c.l.b16 %v45
  %v559 = vunpack.c.l.b16 %v46
  %v560 = vunpack.c.l.b16 %v47
  %v561 = vunpack.c.l.b16 %v48
  %v562 = vunpack.c.l.b16 %v49
  %v563 = vunpack.c.l.b16 %v50
  %v564 = vunpack.c.l.b16 %v51
  %v565 = vunpack.c.l.b16 %v52
  %v566 = vunpack.c.l.b16 %v53
  %v567 = vunpack.c.l.b16 %v54
  %v568 = vunpack.c.l.b16 %v55
  %v569 = vunpack.c.l.b16 %v56
  %v570 = vunpack.c.l.b16 %v57
  %v571 = vunpack.c.l.b16 %v58
  %v572 = vunpack.c.l.b16 %v59
  %v573 = vunpack.c.l.b16 %v60
  %v574 = vunpack.c.l.b16 %v61
  %v575 = vunpack.c.l.b16 %v62
  %v576 = vunpack.c.l.b16 %v63
  %v577 = vunpack.c.l.b16 %v64
  %v578 = vunpack.c.l.b16 %v65
  %v579 = vunpack.c.l.b16 %v66
  %v580 = vunpack.c.l.b16 %v67
  %v581 = vunpack.c.l.b16 %v68
  %v582 = vunpack.c.l.b16 %v69
  %v583 = vunpack.c.l.b16 %v70
  %v584 = vunpack.c.l.b16 %v71
  %v585 = vunpack.c.l.b16 %v72
  %v586 = vunpack.c.l.b16 %v73
  %v587 = vunpack.c.l.b16 %v74
  %v588 = vunpack.c.l.b16 %v75
  %v589 = vunpack.c.l.b16 %v76
  %v590 = vunpack.c.l.b16 %v77
  %v591 = vunpack.c.l.b16 %v78
  %v592 = vunpack.c.l.b16 %v79
  %v593 = vunpack.c.l.b16 %v80
  %v594 = vunpack.c.l.b16 %v81
  %v595 = vunpack.c.l.b16 %v82
  %v596 = vunpack.c.l.b16 %v83
  %v597 = vunpack.c.l.b16 %v84
  %v598 = vunpack.c.l.b16 %v85
  %v599 = vunpack.c.l.b16 %v86
  %v600 = vunpack.c.l.b16 %v87
  %v601 = vunpack.c.l.b16 %v88
  %v602 = vunpack.c.l.b16 %v89
  %v603 = vunpack.c.l.b16 %v90
  %v604 = vunpack.c.l.b16 %v91
  %v605 = vunpack.c.l.b16 %v92
  %v606 = vunpack.c.l.b16 %v93
  %v607 = vunpack.c.l.b16 %v94
  %v608 = vunpack.c.l.b16 %v95
  %v609 = vunpack.c.l.b16 %v96
  %v610 = vunpack.c.l.b16 %v97
  %v611 = vunpack.c.l.b16 %v98
  %v612 = vunpack.c.l.b16 %v99
  %v613 = vunpack.c.l.b16 %v100
  %v614 = vunpack.c.l.b16 %v101
  %v615 = vunpack.c.l.b16 %v102
  %v616 = vunpack.c.l.b16 %v103
  %v617 = vunpack.c.l.b16 %v104
  %v618 = vunpack.c.l.b16 %v105
  %v619 = vunpack.c.l.b16 %v106
  %v620 = vunpack.c.l.b16 %v107
  %v621 = vunpack.c.l.b16 %v108
  %v622 = vunpack.c.l.b16 %v109
  %v623 = vunpack.c.l.b16 %v110
  %v624 = vunpack.c.l.b16 %v111
  %v625 = vunpack.c.l.b16 %v112
  %v626 = vunpack.c.l.b16 %v113
  %v627 = vunpack.c.l.b16 %v114
  %v628 = vunpack.c.l.b16 %v115
  %v629 = vunpack.c.l.b16 %v116
  %v630 = vunpack.c.l.b16 %v117
  %v631 = vunpack.c.l.b16 %v118
  %v632 = vunpack.c.l.b16 %v119
  %v633 = vunpack.c.l.b16 %v120
  %v634 = vunpack.c.l.b16 %v121
  %v635 = vunpack.c.l.b16 %v122
  %v636 = vunpack.c.l.b16 %v123
  %v637 = vunpack.c.l.b16 %v124
  %v638 = vunpack.c.l.b16 %v125
  %v639 = vunpack.c.l.b16 %v126
  %v640 = vunpack.c.l.b16 %v127
  %v641 = vunpack.c.l.b16 %v128
  %v642 = vunpack.c.l.b16 %v129
  %v643 = vunpack.c.l.b16 %v130
  %v644 = vunpack.c.l.b16 %v131
  %v645 = vunpack.c.l.b16 %v132
  %v646 = vunpack.c.l.b16 %v133
  %v647 = vunpack.c.l.b16 %v134
  %v648 = vunpack.c.l.b16 %v135
  %v649 = vunpack.c.l.b16 %v136
  %v650 = vunpack.c.l.b16 %v137
  %v651 = vunpack.c.l.b16 %v138
  %v652 = vunpack.c.l.b16 %v139
  %v653 = vunpack.c.l.b16 %v140
  %v654 = vunpack.c.l.b16 %v141
  %v655 = vunpack.c.l.b16 %v142
  %v656 = vunpack.c.l.b16 %v143
  %v657 = vunpack.c.l.b16 %v144
  %v658 = vunpack.c.l.b16 %v145
  %v659 = vunpack.c.l.b16 %v146
  %v660 = vunpack.c.l.b16 %v147
  %v661 = vunpack.c.l.b16 %v148
  %v662 = vunpack.c.l.b16 %v149
  %v663 = vunpack.c.l.b16 %v150
  %v664 = vunpack.c.l.b16 %v151
  %v665 = vunpack.c.l.b16 %v152
  %v666 = vunpack.c.l.b16 %v153
  %v667 = vunpack.c.l.b16 %v154
  %v668 = vunpack.c.l.b16 %v155
  %v669 = vunpack.c.l.b16 %v156
  %v670 = vunpack.c.l.b16 %v157
  %v671 = vunpack.c.l.b16 %v158
  %v672 = vunpack.c.l.b16 %v159
  %v673 = vunpack.c.l.b16 %v160
  %v674 = vunpack.c.l.b16 %v161
  %v675 = vunpack.c.l.b16 %v162
  %v676 = vunpack.c.l.b16 %v163
  %v677 = vunpack.c.l.b16 %v164
  %v678 = vunpack.c.l.b16 %v165
  %v679 = vunpack.c.l.b16 %v166
  %v680 = vunpack.c.l.b16 %v167
  %v681 = vunpack.c.l.b16 %v168
  %v682 = vunpack.c.l.b16 %v169
  %v683 = vunpack.c.l.b16 %v170
  %v684 = vunpack.c.l.b16 %v171
  %v685 = vunpack.c.l.b16 %v172
  %v686 = vunpack.c.l.b16 %v173
  %v687 = vunpack.c.l.b16 %v174
  %v688 = vunpack.c.l.b16 %v175
  %v689 = vunpack.c.l.b16 %v176
  %v690 = vunpack.c.l.b16 %v177
  %v691 = vunpack.c.l.b16 %v178
  %v692 = vunpack.c.l.b16 %v179
  %v693 = vunpack.c.l.b16 %v180
  %v694 = vunpack.c.l.b16 %v181
  %v695 = vunpack.c.l.b16 %v182
  %v696 = vunpack.c.l.b16 %v183
  %v697 = vunpack.c.l.b16 %v184
  %v698 = vunpack.c.l.b16 %v185
  %v699 = vunpack.c.l.b16 %v186
  %v700 = vunpack.c.l.b16 %v187
  %v701 = vunpack.c.l.b16 %v188
  %v702 = vunpack.c.l.b16 %v189
  %v703 = vunpack.c.l.b16 %v190
  %v704 = vunpack.c.l.b16 %v191
  %v705 = vunpack.c.l.b16 %v192
  %v706 = vunpack.c.l.b16 %v193
  %v707 = vunpack.c.l.b16 %v194
  %v708 = vunpack.c.l.b16 %v195
  %v709 = vunpack.c.l.b16 %v196
  %v710 = vunpack.c.l.b16 %v197
  %v711 = vunpack.c.l.b16 %v198
  %v712 = vunpack.c.l.b16 %v199
  %v713 = vunpack.c.l.b16 %v200
  %v714 = vunpack.c.l.b16 %v201
  %v715 = vunpack.c.l.b16 %v202
  %v716 = vunpack.c.l.b16 %v203
  %v717 = vunpack.c.l.b16 %v204
  %v718 = vunpack.c.l.b16 %v205
  %v719 = vunpack.c.l.b16 %v206
  %v720 = vunpack.c.l.b16 %v207
  %v721 = vunpack.c.l.b16 %v208
  %v722 = vunpack.c.l.b16 %v209
  %v723 = vunpack.c.l.b16 %v210
  %v724 = vunpack.c.l.b16 %v211
  %v725 = vunpack.c.l.b16 %v212
  %v726 = vunpack.c.l.b16 %v213
  %v727 = vunpack.c.l.b16 %v214
  %v728 = vunpack.c.l.b16 %v215
  %v729 = vunpack.c.l.b16 %v216
  %v730 = vunpack.c.l.b16 %v217
  %v731 = vunpack.c.l.b16 %v218
  %v732 = vunpack.c.l.b16 %v219
  %v733 = vunpack.c.l.b16 %v220
  %v734 = vunpack.c.l.b16 %v221
  %v735 = vunpack.c.l.b16 %v222
  %v736 = vunpack.c.l.b16 %v223
  %v737 = vunpack.c.l.b16 %v224
  %v738 = vunpack.c.l.b16 %v225
  %v739 = vunpack.c.l.b16 %v226
  %v740 = vunpack.c.l.b16 %v227
  %v741 = vunpack.c.l.b16 %v228
  %v742 = vunpack.c.l.b16 %v229
  %v743 = vunpack.c.l.b16 %v230
  %v744 = vunpack.c.l.b16 %v231
  %v745 = vunpack.c.l.b16 %v232
  %v746 = vunpack.c.l.b16 %v233
  %v747 = vunpack.c.l.b16 %v234
  %v748 = vunpack.c.l.b16 %v235
  %v749 = vunpack.c.l.b16 %v236
  %v750 = vunpack.c.l.b16 %v237
  %v751 = vunpack.c.l.b16 %v238
  %v752 = vunpack.c.l.b16 %v239
  %v753 = vunpack.c.l.b16 %v240
  %v754 = vunpack.c.l.b16 %v241
  %v755 = vunpack.c.l.b16 %v242
  %v756 = vunpack.c.l.b16 %v243
  %v757 = vunpack.c.l.b16 %v244
  %v758 = vunpack.c.l.b16 %v245
  %v759 = vunpack.c.l.b16 %v246
  %v760 = vunpack.c.l.b16 %v247
  %v761 = vunpack.c.l.b16 %v248
  %v762 = vunpack.c.l.b16 %v249
  %v763 = vunpack.c.l.b16 %v250
  %v764 = vunpack.c.l.b16 %v251
  %v765 = vunpack.c.l.b16 %v252
  %v766 = vunpack.c.l.b16 %v253
  %v767 = vunpack.c.l.b16 %v254
  %v768 = vunpack.c.l.b16 %v255
  %v769 = vunpack.c.l.b16 %v256
  %v770 = vunpack.c.l.b16 %v257
  %v771 = vunpack.c.l.b16 %v258
  %v772 = vunpack.c.l.b16 %v259
  %v773 = vunpack.c.l.b16 %v260
  %v774 = vunpack.c.l.b16 %v261
  %v775 = vunpack.c.l.b16 %v262
  %v776 = vunpack.c.l.b16 %v263
  %v777 = vunpack.c.l.b16 %v264
  %v778 = vunpack.c.l.b16 %v265
  %v779 = vunpack.c.l.b16 %v266
  %v780 = vunpack.c.l.b16 %v267
  %v781 = vpack.c.b16 %v526, %v525
  %v782 = vpack.c.b16 %v528, %v527
  %v783 = vpack.c.b16 %v530, %v529
  %v784 = vpack.c.b16 %v532, %v531
  %v785 = vpack.c.b16 %v534, %v533
  %v786 = vpack.c.b16 %v536, %v535
  %v787 = vpack.c.b16 %v538, %v537
  %v788 = vpack.c.b16 %v540, %v539
  %v789 = vpack.c.b16 %v542, %v541
  %v790 = vpack.c.b16 %v544, %v543
  %v791 = vpack.c.b16 %v546, %v545
  %v792 = vpack.c.b16 %v548, %v547
  %v793 = vpack.c.b16 %v550, %v549
  %v794 = vpack.c.b16 %v552, %v551
  %v795 = vpack.c.b16 %v554, %v553
  %v796 = vpack.c.b16 %v556, %v555
  %v797 = vpack.c.b16 %v558, %v557
  %v798 = vpack.c.b16 %v560, %v559
  %v799 = vpack.c.b16 %v562, %v561
  %v800 = vpack.c.b16 %v564, %v563
  %v801 = vpack.c.b16 %v566, %v565
  %v802 = vpack.c.b16 %v568, %v567
  %v803 = vpack.c.b16 %v570, %v569
  %v804 = vpack.c.b16 %v572, %v571
  %v805 = vpack.c.b16 %v574, %v573
  %v806 = vpack.c.b16 %v576, %v575
  %v807 = vpack.c.b16 %v578, %v577
  %v808 = vpack.c.b16 %v580, %v579
  %v809 = vpack.c.b16 %v582, %v581
  %v810 = vpack.c.b16 %v584, %v583
  %v811 = vpack.c.b16 %v586, %v585
  %v812 = vpack.c.b16 %v588, %v587
  %v813 = vpack.c.b16 %v590, %v589
  %v814 = vpack.c.b16 %v592, %v591
  %v815 = vpack.c.b16 %v594, %v593
  %v816 = vpack.c.b16 %v596, %v595
  %v817 = vpack.c.b16 %v598, %v597
  %v818 = vpack.c.b16 %v600, %v599
  %v819 = vpack.c.b16 %v602, %v601
  %v820 = vpack.c.b16 %v604, %v603
  %v821 = vpack.c.b16 %v606, %v605
  %v822 = vpack.c.b16 %v608, %v607
  %v823 = vpack.c.b16 %v610, %v609
  %v824 = vpack.c.b16 %v612, %v611
  %v825 = vpack.c.b16 %v614, %v613
  %v826 = vpack.c.b16 %v616, %v615
  %v827 = vpack.c.b16 %v618, %v617
  %v828 = vpack.c.b16 %v620, %v619
  %v829 = vpack.c.b16 %v622, %v621
  %v830 = vpack.c.b16 %v624, %v623
  %v831 = vpack.c.b16 %v626, %v625
  %v832 = vpack.c.b16 %v628, %v627
  %v833 = vpack.c.b16 %v630, %v629
  %v834 = vpack.c.b16 %v632, %v631
  %v835 = vpack.c.b16 %v634, %v633
  %v836 = vpack.c.b16 %v636, %v635
  %v837 = vpack.c.b16 %v638, %v637
  %v838 = vpack.c.b16 %v640, %v639
  %v839 = vpack.c.b16 %v642, %v641
  %v840 = vpack.c.b16 %v644, %v643
  %v841 = vpack.c.b16 %v646, %v645
  %v842 = vpack.c.b16 %v648, %v647
  %v843 = vpack.c.b16 %v650, %v649
  %v844 = vpack.c.b16 %v652, %v651
  %v845 = vpack.c.b16 %v654, %v653
  %v846 = vpack.c.b16 %v656, %v655
  %v847 = vpack.c.b16 %v658, %v657
  %v848 = vpack.c.b16 %v660, %v659
  %v849 = vpack.c.b16 %v662, %v661
  %v850 = vpack.c.b16 %v664, %v663
  %v851 = vpack.c.b16 %v666, %v665
  %v852 = vpack.c.b16 %v668, %v667
  %v853 = vpack.c.b16 %v670, %v669
  %v854 = vpack.c.b16 %v672, %v671
  %v855 = vpack.c.b16 %v674, %v673
  %v856 = vpack.c.b16 %v676, %v675
  %v857 = vpack.c.b16 %v678, %v677
  %v858 = vpack.c.b16 %v680, %v679
  %v859 = vpack.c.b16 %v682, %v681
  %v860 = vpack.c.b16 %v684, %v683
  %v861 = vpack.c.b16 %v686, %v685
  %v862 = vpack.c.b16 %v688, %v687
  %v863 = vpack.c.b16 %v690, %v689
  %v864 = vpack.c.b16 %v692, %v691
  %v865 = vpack.c.b16 %v694, %v693
  %v866 = vpack.c.b16 %v696, %v695
  %v867 = vpack.c.b16 %v698, %v697
  %v868 = vpack.c.b16 %v700, %v699
  %v869 = vpack.c.b16 %v702, %v701
  %v870 = vpack.c.b16 %v704, %v703
  %v871 = vpack.c.b16 %v706, %v705
  %v872 = vpack.c.b16 %v708, %v707
  %v873 = vpack.c.b16 %v710, %v709
  %v874 = vpack.c.b16 %v712, %v711
  %v875 = vpack.c.b16 %v714, %v713
  %v876 = vpack.c.b16 %v716, %v715
  %v877 = vpack.c.b16 %v718, %v717
  %v878 = vpack.c.b16 %v720, %v719
  %v879 = vpack.c.b16 %v722, %v721
  %v880 = vpack.c.b16 %v724, %v723
  %v881 = vpack.c.b16 %v726, %v725
  %v882 = vpack.c.b16 %v728, %v727
  %v883 = vpack.c.b16 %v730, %v729
  %v884 = vpack.c.b16 %v732, %v731
  %v885 = vpack.c.b16 %v734, %v733
  %v886 = vpack.c.b16 %v736, %v735
  %v887 = vpack.c.b16 %v738, %v737
  %v888 = vpack.c.b16 %v740, %v739
  %v889 = vpack.c.b16 %v742, %v741
  %v890 = vpack.c.b16 %v744, %v743
  %v891 = vpack.c.b16 %v746, %v745
  %v892 = vpack.c.b16 %v748, %v747
  %v893 = vpack.c.b16 %v750, %v749
  %v894 = vpack.c.b16 %v752, %v751
  %v895 = vpack.c.b16 %v754, %v753
  %v896 = vpack.c.b16 %v756, %v755
  %v897 = vpack.c.b16 %v758, %v757
  %v898 = vpack.c.b16 %v760, %v759
  %v899 = vpack.c.b16 %v762, %v761
  %v900 = vpack.c.b16 %v764, %v763
  %v901 = vpack.c.b16 %v766, %v765
  %v902 = vpack.c.b16 %v768, %v767
  %v903 = vpack.c.b16 %v770, %v769
  %v904 = vpack.c.b16 %v772, %v771
  %v905 = vpack.c.b16 %v774, %v773
  %v906 = vpack.c.b16 %v776, %v775
  %v907 = vpack.c.b16 %v778, %v777
  %v908 = vpack.c.b16 %v780, %v779
  %vm909 = vcmask 64512
  %v911 = vsel %vm909, %v781, 0
  %v914 = vsel %vm909, %v782, 0
  %v917 = vsel %vm909, %v783, 0
  %v920 = vsel %vm909, %v784, 0
  %v923 = vsel %vm909, %v785, 0
  %v926 = vsel %vm909, %v786, 0
  %v929 = vsel %vm909, %v787, 0
  %v932 = vsel %vm909, %v788, 0
  %v935 = vsel %vm909, %v789, 0
  %v938 = vsel %vm909, %v790, 0
  %v941 = vsel %vm909, %v791, 0
  %v944 = vsel %vm909, %v792, 0
  %v947 = vsel %vm909, %v793, 0
  %v950 = vsel %vm909, %v794, 0
  %v953 = vsel %vm909, %v795, 0
  %v956 = vsel %vm909, %v796, 0
  %v959 = vsel %vm909, %v797, 0
  %v962 = vsel %vm909, %v798, 0
  %v965 = vsel %vm909, %v799, 0
  %v968 = vsel %vm909, %v800, 0
  %v971 = vsel %vm909, %v801, 0
  %v974 = vsel %vm909, %v802, 0
  %v977 = vsel %vm909, %v803, 0
  %v980 = vsel %vm909, %v804, 0
  %v983 = vsel %vm909, %v805, 0
  %v986 = vsel %vm909, %v806, 0
  %v989 = vsel %vm909, %v807, 0
  %v992 = vsel %vm909, %v808, 0
  %v995 = vsel %vm909, %v809, 0
  %v998 = vsel %vm909, %v810, 0
  %v1001 = vsel %vm909, %v811, 0
  %v1004 = vsel %vm909, %v812, 0
  %v1007 = vsel %vm909, %v813, 0
  %v1010 = vsel %vm909, %v814, 0
  %v1013 = vsel %vm909, %v815, 0
  %v1016 = vsel %vm909, %v816, 0
  %v1019 = vsel %vm909, %v817, 0
  %v1022 = vsel %vm909, %v818, 0
  %v1025 = vsel %vm909, %v819, 0
  %v1028 = vsel %vm909, %v820, 0
  %v1031 = vsel %vm909, %v821, 0
  %v1034 = vsel %vm909, %v822, 0
  %v1037 = vsel %vm909, %v823, 0
  %v1040 = vsel %vm909, %v824, 0
  %v1043 = vsel %vm909, %v825, 0
  %v1046 = vsel %vm909, %v826, 0
  %v1049 = vsel %vm909, %v827, 0
  %v1052 = vsel %vm909, %v828, 0
  %v1055 = vsel %vm909, %v829, 0
  %v1058 = vsel %vm909, %v830, 0
  %v1061 = vsel %vm909, %v831, 0
  %v1064 = vsel %vm909, %v832, 0
  %v1067 = vsel %vm909, %v833, 0
  %v1070 = vsel %vm909, %v834, 0
  %v1073 = vsel %vm909, %v835, 0
  %v1076 = vsel %vm909, %v836, 0
  %v1079 = vsel %vm909, %v837, 0
  %v1082 = vsel %vm909, %v838, 0
  %v1085 = vsel %vm909, %v839, 0
  %v1088 = vsel %vm909, %v840, 0
  %v1091 = vsel %vm909, %v841, 0
  %v1094 = vsel %vm909, %v842, 0
  %v1097 = vsel %vm909, %v843, 0
  %v1100 = vsel %vm909, %v844, 0
  %v1103 = vsel %vm909, %v845, 0
  %v1106 = vsel %vm909, %v846, 0
  %v1109 = vsel %vm909, %v847, 0
  %v1112 = vsel %vm909, %v848, 0
  %v1115 = vsel %vm909, %v849, 0
  %v1118 = vsel %vm909, %v850, 0
  %v1121 = vsel %vm909, %v851, 0
  %v1124 = vsel %vm909, %v852, 0
  %v1127 = vsel %vm909, %v853, 0
  %v1130 = vsel %vm909, %v854, 0
  %v1133 = vsel %vm909, %v855, 0
  %v1136 = vsel %vm909, %v856, 0
  %v1139 = vsel %vm909, %v857, 0
  %v1142 = vsel %vm909, %v858, 0
  %v1145 = vsel %vm909, %v859, 0
  %v1148 = vsel %vm909, %v860, 0
  %v1151 = vsel %vm909, %v861, 0
  %v1154 = vsel %vm909, %v862, 0
  %v1157 = vsel %vm909, %v863, 0
  %v1160 = vsel %vm909, %v864, 0
  %v1163 = vsel %vm909, %v865, 0
  %v1166 = vsel %vm909, %v866, 0
  %v1169 = vsel %vm909, %v867, 0
  %v1172 = vsel %vm909, %v868, 0
  %v1175 = vsel %vm909, %v869, 0
  %v1178 = vsel %vm909, %v870, 0
  %v1181 = vsel %vm909, %v871, 0
  %v1184 = vsel %vm909, %v872, 0
  %v1187 = vsel %vm909, %v873, 0
  %v1190 = vsel %vm909, %v874, 0
  %v1193 = vsel %vm909, %v875, 0
  %v1196 = vsel %vm909, %v876, 0
  %v1199 = vsel %vm909, %v877, 0
  %v1202 = vsel %vm909, %v878, 0
  %v1205 = vsel %vm909, %v879, 0
  %v1208 = vsel %vm909, %v880, 0
  %v1211 = vsel %vm909, %v881, 0
  %v1214 = vsel %vm909, %v882, 0
  %v1217 = vsel %vm909, %v883, 0
  %v1220 = vsel %vm909, %v884, 0
  %v1223 = vsel %vm909, %v885, 0
  %v1226 = vsel %vm909, %v886, 0
  %v1229 = vsel %vm909, %v887, 0
  %v1232 = vsel %vm909, %v888, 0
  %v1235 = vsel %vm909, %v889, 0
  %v1238 = vsel %vm909, %v890, 0
  %v1241 = vsel %vm909, %v891, 0
  %v1244 = vsel %vm909, %v892, 0
  %v1247 = vsel %vm909, %v893, 0
  %v1250 = vsel %vm909, %v894, 0
  %v1253 = vsel %vm909, %v895, 0
  %v1256 = vsel %vm909, %v896, 0
  %v1259 = vsel %vm909, %v897, 0
  %v1262 = vsel %vm909, %v898, 0
  %v1265 = vsel %vm909, %v899, 0
  %v1268 = vsel %vm909, %v900, 0
  %v1271 = vsel %vm909, %v901, 0
  %v1274 = vsel %vm909, %v902, 0
  %v1277 = vsel %vm909, %v903, 0
  %v1280 = vsel %vm909, %v904, 0
  %v1283 = vsel %vm909, %v905, 0
  %v1286 = vsel %vm909, %v906, 0
  %v1289 = vsel %vm909, %v907, 0
  %v1292 = vsel %vm909, %v908, 0
  %vm1294 = vcmask 1043456
  %v1296 = vsel %vm1294, %v268, 0
  %1298 = vmatpush.bf16.msra.mxu0 0
  %1299 = vmatpush.bf16.msra.mxu0 0
  %1300 = vmatpush.bf16.msra.mxu0 0
  %1301 = vmatpush.bf16.msra.mxu0 0
  %1302 = vmatpush.bf16.msra.mxu0 0
  %1303 = vmatpush.bf16.msra.mxu0 0
  %1304 = vmatpush.bf16.msra.mxu0 0
  %1305 = vmatpush.bf16.msra.mxu0 %v1296
  %1306 = vmatmul.bf16.gmra.mxu0 %v911
  %v1307 = vpop.f32.mrf.mxu0
  %v1308 = vadd.f32 0.0, %v1307
  %v1309 = vpop.f32.mrf.mxu0
  %v1310 = vadd.f32 0.0, %v1309
  %1311 = vmatmul.bf16.gmra.mxu0 %v914
  %v1312 = vpop.f32.mrf.mxu0
  %v1313 = vadd.f32 0.0, %v1312
  %v1314 = vpop.f32.mrf.mxu0
  %v1315 = vadd.f32 0.0, %v1314
  %1316 = vmatmul.bf16.gmra.mxu0 %v917
  %v1317 = vpop.f32.mrf.mxu0
  %v1318 = vadd.f32 0.0, %v1317
  %v1319 = vpop.f32.mrf.mxu0
  %v1320 = vadd.f32 0.0, %v1319
  %1321 = vmatmul.bf16.gmra.mxu0 %v920
  %v1322 = vpop.f32.mrf.mxu0
  %v1323 = vadd.f32 0.0, %v1322
  %v1324 = vpop.f32.mrf.mxu0
  %v1325 = vadd.f32 0.0, %v1324
  %1326 = vmatmul.bf16.gmra.mxu0 %v923
  %v1327 = vpop.f32.mrf.mxu0
  %v1328 = vadd.f32 0.0, %v1327
  %v1329 = vpop.f32.mrf.mxu0
  %v1330 = vadd.f32 0.0, %v1329
  %1331 = vmatmul.bf16.gmra.mxu0 %v926
  %v1332 = vpop.f32.mrf.mxu0
  %v1333 = vadd.f32 0.0, %v1332
  %v1334 = vpop.f32.mrf.mxu0
  %v1335 = vadd.f32 0.0, %v1334
  %1336 = vmatmul.bf16.gmra.mxu0 %v929
  %v1337 = vpop.f32.mrf.mxu0
  %v1338 = vadd.f32 0.0, %v1337
  %v1339 = vpop.f32.mrf.mxu0
  %v1340 = vadd.f32 0.0, %v1339
  %1341 = vmatmul.bf16.gmra.mxu0 %v932
  %v1342 = vpop.f32.mrf.mxu0
  %v1343 = vadd.f32 0.0, %v1342
  %v1344 = vpop.f32.mrf.mxu0
  %v1345 = vadd.f32 0.0, %v1344
  %1346 = vmatmul.bf16.gmra.mxu0 %v935
  %v1347 = vpop.f32.mrf.mxu0
  %v1348 = vadd.f32 0.0, %v1347
  %v1349 = vpop.f32.mrf.mxu0
  %v1350 = vadd.f32 0.0, %v1349
  %1351 = vmatmul.bf16.gmra.mxu0 %v938
  %v1352 = vpop.f32.mrf.mxu0
  %v1353 = vadd.f32 0.0, %v1352
  %v1354 = vpop.f32.mrf.mxu0
  %v1355 = vadd.f32 0.0, %v1354
  %1356 = vmatmul.bf16.gmra.mxu0 %v941
  %v1357 = vpop.f32.mrf.mxu0
  %v1358 = vadd.f32 0.0, %v1357
  %v1359 = vpop.f32.mrf.mxu0
  %v1360 = vadd.f32 0.0, %v1359
  %1361 = vmatmul.bf16.gmra.mxu0 %v944
  %v1362 = vpop.f32.mrf.mxu0
  %v1363 = vadd.f32 0.0, %v1362
  %v1364 = vpop.f32.mrf.mxu0
  %v1365 = vadd.f32 0.0, %v1364
  %1366 = vmatmul.bf16.gmra.mxu0 %v947
  %v1367 = vpop.f32.mrf.mxu0
  %v1368 = vadd.f32 0.0, %v1367
  %v1369 = vpop.f32.mrf.mxu0
  %v1370 = vadd.f32 0.0, %v1369
  %1371 = vmatmul.bf16.gmra.mxu0 %v950
  %v1372 = vpop.f32.mrf.mxu0
  %v1373 = vadd.f32 0.0, %v1372
  %v1374 = vpop.f32.mrf.mxu0
  %v1375 = vadd.f32 0.0, %v1374
  %1376 = vmatmul.bf16.gmra.mxu0 %v953
  %v1377 = vpop.f32.mrf.mxu0
  %v1378 = vadd.f32 0.0, %v1377
  %v1379 = vpop.f32.mrf.mxu0
  %v1380 = vadd.f32 0.0, %v1379
  %1381 = vmatmul.bf16.gmra.mxu0 %v956
  %v1382 = vpop.f32.mrf.mxu0
  %v1383 = vadd.f32 0.0, %v1382
  %v1384 = vpop.f32.mrf.mxu0
  %v1385 = vadd.f32 0.0, %v1384
  %1386 = vmatmul.bf16.gmra.mxu0 %v959
  %v1387 = vpop.f32.mrf.mxu0
  %v1388 = vadd.f32 0.0, %v1387
  %v1389 = vpop.f32.mrf.mxu0
  %v1390 = vadd.f32 0.0, %v1389
  %1391 = vmatmul.bf16.gmra.mxu0 %v962
  %v1392 = vpop.f32.mrf.mxu0
  %v1393 = vadd.f32 0.0, %v1392
  %v1394 = vpop.f32.mrf.mxu0
  %v1395 = vadd.f32 0.0, %v1394
  %1396 = vmatmul.bf16.gmra.mxu0 %v965
  %v1397 = vpop.f32.mrf.mxu0
  %v1398 = vadd.f32 0.0, %v1397
  %v1399 = vpop.f32.mrf.mxu0
  %v1400 = vadd.f32 0.0, %v1399
  %1401 = vmatmul.bf16.gmra.mxu0 %v968
  %v1402 = vpop.f32.mrf.mxu0
  %v1403 = vadd.f32 0.0, %v1402
  %v1404 = vpop.f32.mrf.mxu0
  %v1405 = vadd.f32 0.0, %v1404
  %1406 = vmatmul.bf16.gmra.mxu0 %v971
  %v1407 = vpop.f32.mrf.mxu0
  %v1408 = vadd.f32 0.0, %v1407
  %v1409 = vpop.f32.mrf.mxu0
  %v1410 = vadd.f32 0.0, %v1409
  %1411 = vmatmul.bf16.gmra.mxu0 %v974
  %v1412 = vpop.f32.mrf.mxu0
  %v1413 = vadd.f32 0.0, %v1412
  %v1414 = vpop.f32.mrf.mxu0
  %v1415 = vadd.f32 0.0, %v1414
  %1416 = vmatmul.bf16.gmra.mxu0 %v977
  %v1417 = vpop.f32.mrf.mxu0
  %v1418 = vadd.f32 0.0, %v1417
  %v1419 = vpop.f32.mrf.mxu0
  %v1420 = vadd.f32 0.0, %v1419
  %1421 = vmatmul.bf16.gmra.mxu0 %v980
  %v1422 = vpop.f32.mrf.mxu0
  %v1423 = vadd.f32 0.0, %v1422
  %v1424 = vpop.f32.mrf.mxu0
  %v1425 = vadd.f32 0.0, %v1424
  %1426 = vmatmul.bf16.gmra.mxu0 %v983
  %v1427 = vpop.f32.mrf.mxu0
  %v1428 = vadd.f32 0.0, %v1427
  %v1429 = vpop.f32.mrf.mxu0
  %v1430 = vadd.f32 0.0, %v1429
  %1431 = vmatmul.bf16.gmra.mxu0 %v986
  %v1432 = vpop.f32.mrf.mxu0
  %v1433 = vadd.f32 0.0, %v1432
  %v1434 = vpop.f32.mrf.mxu0
  %v1435 = vadd.f32 0.0, %v1434
  %1436 = vmatmul.bf16.gmra.mxu0 %v989
  %v1437 = vpop.f32.mrf.mxu0
  %v1438 = vadd.f32 0.0, %v1437
  %v1439 = vpop.f32.mrf.mxu0
  %v1440 = vadd.f32 0.0, %v1439
  %1441 = vmatmul.bf16.gmra.mxu0 %v992
  %v1442 = vpop.f32.mrf.mxu0
  %v1443 = vadd.f32 0.0, %v1442
  %v1444 = vpop.f32.mrf.mxu0
  %v1445 = vadd.f32 0.0, %v1444
  %1446 = vmatmul.bf16.gmra.mxu0 %v995
  %v1447 = vpop.f32.mrf.mxu0
  %v1448 = vadd.f32 0.0, %v1447
  %v1449 = vpop.f32.mrf.mxu0
  %v1450 = vadd.f32 0.0, %v1449
  %1451 = vmatmul.bf16.gmra.mxu0 %v998
  %v1452 = vpop.f32.mrf.mxu0
  %v1453 = vadd.f32 0.0, %v1452
  %v1454 = vpop.f32.mrf.mxu0
  %v1455 = vadd.f32 0.0, %v1454
  %1456 = vmatmul.bf16.gmra.mxu0 %v1001
  %v1457 = vpop.f32.mrf.mxu0
  %v1458 = vadd.f32 0.0, %v1457
  %v1459 = vpop.f32.mrf.mxu0
  %v1460 = vadd.f32 0.0, %v1459
  %1461 = vmatmul.bf16.gmra.mxu0 %v1004
  %v1462 = vpop.f32.mrf.mxu0
  %v1463 = vadd.f32 0.0, %v1462
  %v1464 = vpop.f32.mrf.mxu0
  %v1465 = vadd.f32 0.0, %v1464
  %1466 = vmatmul.bf16.gmra.mxu0 %v1007
  %v1467 = vpop.f32.mrf.mxu0
  %v1468 = vadd.f32 0.0, %v1467
  %v1469 = vpop.f32.mrf.mxu0
  %v1470 = vadd.f32 0.0, %v1469
  %1471 = vmatmul.bf16.gmra.mxu0 %v1010
  %v1472 = vpop.f32.mrf.mxu0
  %v1473 = vadd.f32 0.0, %v1472
  %v1474 = vpop.f32.mrf.mxu0
  %v1475 = vadd.f32 0.0, %v1474
  %1476 = vmatmul.bf16.gmra.mxu0 %v1013
  %v1477 = vpop.f32.mrf.mxu0
  %v1478 = vadd.f32 0.0, %v1477
  %v1479 = vpop.f32.mrf.mxu0
  %v1480 = vadd.f32 0.0, %v1479
  %1481 = vmatmul.bf16.gmra.mxu0 %v1016
  %v1482 = vpop.f32.mrf.mxu0
  %v1483 = vadd.f32 0.0, %v1482
  %v1484 = vpop.f32.mrf.mxu0
  %v1485 = vadd.f32 0.0, %v1484
  %1486 = vmatmul.bf16.gmra.mxu0 %v1019
  %v1487 = vpop.f32.mrf.mxu0
  %v1488 = vadd.f32 0.0, %v1487
  %v1489 = vpop.f32.mrf.mxu0
  %v1490 = vadd.f32 0.0, %v1489
  %1491 = vmatmul.bf16.gmra.mxu0 %v1022
  %v1492 = vpop.f32.mrf.mxu0
  %v1493 = vadd.f32 0.0, %v1492
  %v1494 = vpop.f32.mrf.mxu0
  %v1495 = vadd.f32 0.0, %v1494
  %1496 = vmatmul.bf16.gmra.mxu0 %v1025
  %v1497 = vpop.f32.mrf.mxu0
  %v1498 = vadd.f32 0.0, %v1497
  %v1499 = vpop.f32.mrf.mxu0
  %v1500 = vadd.f32 0.0, %v1499
  %1501 = vmatmul.bf16.gmra.mxu0 %v1028
  %v1502 = vpop.f32.mrf.mxu0
  %v1503 = vadd.f32 0.0, %v1502
  %v1504 = vpop.f32.mrf.mxu0
  %v1505 = vadd.f32 0.0, %v1504
  %1506 = vmatmul.bf16.gmra.mxu0 %v1031
  %v1507 = vpop.f32.mrf.mxu0
  %v1508 = vadd.f32 0.0, %v1507
  %v1509 = vpop.f32.mrf.mxu0
  %v1510 = vadd.f32 0.0, %v1509
  %1511 = vmatmul.bf16.gmra.mxu0 %v1034
  %v1512 = vpop.f32.mrf.mxu0
  %v1513 = vadd.f32 0.0, %v1512
  %v1514 = vpop.f32.mrf.mxu0
  %v1515 = vadd.f32 0.0, %v1514
  %1516 = vmatmul.bf16.gmra.mxu0 %v1037
  %v1517 = vpop.f32.mrf.mxu0
  %v1518 = vadd.f32 0.0, %v1517
  %v1519 = vpop.f32.mrf.mxu0
  %v1520 = vadd.f32 0.0, %v1519
  %1521 = vmatmul.bf16.gmra.mxu0 %v1040
  %v1522 = vpop.f32.mrf.mxu0
  %v1523 = vadd.f32 0.0, %v1522
  %v1524 = vpop.f32.mrf.mxu0
  %v1525 = vadd.f32 0.0, %v1524
  %1526 = vmatmul.bf16.gmra.mxu0 %v1043
  %v1527 = vpop.f32.mrf.mxu0
  %v1528 = vadd.f32 0.0, %v1527
  %v1529 = vpop.f32.mrf.mxu0
  %v1530 = vadd.f32 0.0, %v1529
  %1531 = vmatmul.bf16.gmra.mxu0 %v1046
  %v1532 = vpop.f32.mrf.mxu0
  %v1533 = vadd.f32 0.0, %v1532
  %v1534 = vpop.f32.mrf.mxu0
  %v1535 = vadd.f32 0.0, %v1534
  %1536 = vmatmul.bf16.gmra.mxu0 %v1049
  %v1537 = vpop.f32.mrf.mxu0
  %v1538 = vadd.f32 0.0, %v1537
  %v1539 = vpop.f32.mrf.mxu0
  %v1540 = vadd.f32 0.0, %v1539
  %1541 = vmatmul.bf16.gmra.mxu0 %v1052
  %v1542 = vpop.f32.mrf.mxu0
  %v1543 = vadd.f32 0.0, %v1542
  %v1544 = vpop.f32.mrf.mxu0
  %v1545 = vadd.f32 0.0, %v1544
  %1546 = vmatmul.bf16.gmra.mxu0 %v1055
  %v1547 = vpop.f32.mrf.mxu0
  %v1548 = vadd.f32 0.0, %v1547
  %v1549 = vpop.f32.mrf.mxu0
  %v1550 = vadd.f32 0.0, %v1549
  %1551 = vmatmul.bf16.gmra.mxu0 %v1058
  %v1552 = vpop.f32.mrf.mxu0
  %v1553 = vadd.f32 0.0, %v1552
  %v1554 = vpop.f32.mrf.mxu0
  %v1555 = vadd.f32 0.0, %v1554
  %1556 = vmatmul.bf16.gmra.mxu0 %v1061
  %v1557 = vpop.f32.mrf.mxu0
  %v1558 = vadd.f32 0.0, %v1557
  %v1559 = vpop.f32.mrf.mxu0
  %v1560 = vadd.f32 0.0, %v1559
  %1561 = vmatmul.bf16.gmra.mxu0 %v1064
  %v1562 = vpop.f32.mrf.mxu0
  %v1563 = vadd.f32 0.0, %v1562
  %v1564 = vpop.f32.mrf.mxu0
  %v1565 = vadd.f32 0.0, %v1564
  %1566 = vmatmul.bf16.gmra.mxu0 %v1067
  %v1567 = vpop.f32.mrf.mxu0
  %v1568 = vadd.f32 0.0, %v1567
  %v1569 = vpop.f32.mrf.mxu0
  %v1570 = vadd.f32 0.0, %v1569
  %1571 = vmatmul.bf16.gmra.mxu0 %v1070
  %v1572 = vpop.f32.mrf.mxu0
  %v1573 = vadd.f32 0.0, %v1572
  %v1574 = vpop.f32.mrf.mxu0
  %v1575 = vadd.f32 0.0, %v1574
  %1576 = vmatmul.bf16.gmra.mxu0 %v1073
  %v1577 = vpop.f32.mrf.mxu0
  %v1578 = vadd.f32 0.0, %v1577
  %v1579 = vpop.f32.mrf.mxu0
  %v1580 = vadd.f32 0.0, %v1579
  %1581 = vmatmul.bf16.gmra.mxu0 %v1076
  %v1582 = vpop.f32.mrf.mxu0
  %v1583 = vadd.f32 0.0, %v1582
  %v1584 = vpop.f32.mrf.mxu0
  %v1585 = vadd.f32 0.0, %v1584
  %1586 = vmatmul.bf16.gmra.mxu0 %v1079
  %v1587 = vpop.f32.mrf.mxu0
  %v1588 = vadd.f32 0.0, %v1587
  %v1589 = vpop.f32.mrf.mxu0
  %v1590 = vadd.f32 0.0, %v1589
  %1591 = vmatmul.bf16.gmra.mxu0 %v1082
  %v1592 = vpop.f32.mrf.mxu0
  %v1593 = vadd.f32 0.0, %v1592
  %v1594 = vpop.f32.mrf.mxu0
  %v1595 = vadd.f32 0.0, %v1594
  %1596 = vmatmul.bf16.gmra.mxu0 %v1085
  %v1597 = vpop.f32.mrf.mxu0
  %v1598 = vadd.f32 0.0, %v1597
  %v1599 = vpop.f32.mrf.mxu0
  %v1600 = vadd.f32 0.0, %v1599
  %1601 = vmatmul.bf16.gmra.mxu0 %v1088
  %v1602 = vpop.f32.mrf.mxu0
  %v1603 = vadd.f32 0.0, %v1602
  %v1604 = vpop.f32.mrf.mxu0
  %v1605 = vadd.f32 0.0, %v1604
  %1606 = vmatmul.bf16.gmra.mxu0 %v1091
  %v1607 = vpop.f32.mrf.mxu0
  %v1608 = vadd.f32 0.0, %v1607
  %v1609 = vpop.f32.mrf.mxu0
  %v1610 = vadd.f32 0.0, %v1609
  %1611 = vmatmul.bf16.gmra.mxu0 %v1094
  %v1612 = vpop.f32.mrf.mxu0
  %v1613 = vadd.f32 0.0, %v1612
  %v1614 = vpop.f32.mrf.mxu0
  %v1615 = vadd.f32 0.0, %v1614
  %1616 = vmatmul.bf16.gmra.mxu0 %v1097
  %v1617 = vpop.f32.mrf.mxu0
  %v1618 = vadd.f32 0.0, %v1617
  %v1619 = vpop.f32.mrf.mxu0
  %v1620 = vadd.f32 0.0, %v1619
  %1621 = vmatmul.bf16.gmra.mxu0 %v1100
  %v1622 = vpop.f32.mrf.mxu0
  %v1623 = vadd.f32 0.0, %v1622
  %v1624 = vpop.f32.mrf.mxu0
  %v1625 = vadd.f32 0.0, %v1624
  %1626 = vmatmul.bf16.gmra.mxu0 %v1103
  %v1627 = vpop.f32.mrf.mxu0
  %v1628 = vadd.f32 0.0, %v1627
  %v1629 = vpop.f32.mrf.mxu0
  %v1630 = vadd.f32 0.0, %v1629
  %1631 = vmatmul.bf16.gmra.mxu0 %v1106
  %v1632 = vpop.f32.mrf.mxu0
  %v1633 = vadd.f32 0.0, %v1632
  %v1634 = vpop.f32.mrf.mxu0
  %v1635 = vadd.f32 0.0, %v1634
  %1636 = vmatmul.bf16.gmra.mxu0 %v1109
  %v1637 = vpop.f32.mrf.mxu0
  %v1638 = vadd.f32 0.0, %v1637
  %v1639 = vpop.f32.mrf.mxu0
  %v1640 = vadd.f32 0.0, %v1639
  %1641 = vmatmul.bf16.gmra.mxu0 %v1112
  %v1642 = vpop.f32.mrf.mxu0
  %v1643 = vadd.f32 0.0, %v1642
  %v1644 = vpop.f32.mrf.mxu0
  %v1645 = vadd.f32 0.0, %v1644
  %1646 = vmatmul.bf16.gmra.mxu0 %v1115
  %v1647 = vpop.f32.mrf.mxu0
  %v1648 = vadd.f32 0.0, %v1647
  %v1649 = vpop.f32.mrf.mxu0
  %v1650 = vadd.f32 0.0, %v1649
  %1651 = vmatmul.bf16.gmra.mxu0 %v1118
  %v1652 = vpop.f32.mrf.mxu0
  %v1653 = vadd.f32 0.0, %v1652
  %v1654 = vpop.f32.mrf.mxu0
  %v1655 = vadd.f32 0.0, %v1654
  %1656 = vmatmul.bf16.gmra.mxu0 %v1121
  %v1657 = vpop.f32.mrf.mxu0
  %v1658 = vadd.f32 0.0, %v1657
  %v1659 = vpop.f32.mrf.mxu0
  %v1660 = vadd.f32 0.0, %v1659
  %1661 = vmatmul.bf16.gmra.mxu0 %v1124
  %v1662 = vpop.f32.mrf.mxu0
  %v1663 = vadd.f32 0.0, %v1662
  %v1664 = vpop.f32.mrf.mxu0
  %v1665 = vadd.f32 0.0, %v1664
  %1666 = vmatmul.bf16.gmra.mxu0 %v1127
  %v1667 = vpop.f32.mrf.mxu0
  %v1668 = vadd.f32 0.0, %v1667
  %v1669 = vpop.f32.mrf.mxu0
  %v1670 = vadd.f32 0.0, %v1669
  %1671 = vmatmul.bf16.gmra.mxu0 %v1130
  %v1672 = vpop.f32.mrf.mxu0
  %v1673 = vadd.f32 0.0, %v1672
  %v1674 = vpop.f32.mrf.mxu0
  %v1675 = vadd.f32 0.0, %v1674
  %1676 = vmatmul.bf16.gmra.mxu0 %v1133
  %v1677 = vpop.f32.mrf.mxu0
  %v1678 = vadd.f32 0.0, %v1677
  %v1679 = vpop.f32.mrf.mxu0
  %v1680 = vadd.f32 0.0, %v1679
  %1681 = vmatmul.bf16.gmra.mxu0 %v1136
  %v1682 = vpop.f32.mrf.mxu0
  %v1683 = vadd.f32 0.0, %v1682
  %v1684 = vpop.f32.mrf.mxu0
  %v1685 = vadd.f32 0.0, %v1684
  %1686 = vmatmul.bf16.gmra.mxu0 %v1139
  %v1687 = vpop.f32.mrf.mxu0
  %v1688 = vadd.f32 0.0, %v1687
  %v1689 = vpop.f32.mrf.mxu0
  %v1690 = vadd.f32 0.0, %v1689
  %1691 = vmatmul.bf16.gmra.mxu0 %v1142
  %v1692 = vpop.f32.mrf.mxu0
  %v1693 = vadd.f32 0.0, %v1692
  %v1694 = vpop.f32.mrf.mxu0
  %v1695 = vadd.f32 0.0, %v1694
  %1696 = vmatmul.bf16.gmra.mxu0 %v1145
  %v1697 = vpop.f32.mrf.mxu0
  %v1698 = vadd.f32 0.0, %v1697
  %v1699 = vpop.f32.mrf.mxu0
  %v1700 = vadd.f32 0.0, %v1699
  %1701 = vmatmul.bf16.gmra.mxu0 %v1148
  %v1702 = vpop.f32.mrf.mxu0
  %v1703 = vadd.f32 0.0, %v1702
  %v1704 = vpop.f32.mrf.mxu0
  %v1705 = vadd.f32 0.0, %v1704
  %1706 = vmatmul.bf16.gmra.mxu0 %v1151
  %v1707 = vpop.f32.mrf.mxu0
  %v1708 = vadd.f32 0.0, %v1707
  %v1709 = vpop.f32.mrf.mxu0
  %v1710 = vadd.f32 0.0, %v1709
  %1711 = vmatmul.bf16.gmra.mxu0 %v1154
  %v1712 = vpop.f32.mrf.mxu0
  %v1713 = vadd.f32 0.0, %v1712
  %v1714 = vpop.f32.mrf.mxu0
  %v1715 = vadd.f32 0.0, %v1714
  %1716 = vmatmul.bf16.gmra.mxu0 %v1157
  %v1717 = vpop.f32.mrf.mxu0
  %v1718 = vadd.f32 0.0, %v1717
  %v1719 = vpop.f32.mrf.mxu0
  %v1720 = vadd.f32 0.0, %v1719
  %1721 = vmatmul.bf16.gmra.mxu0 %v1160
  %v1722 = vpop.f32.mrf.mxu0
  %v1723 = vadd.f32 0.0, %v1722
  %v1724 = vpop.f32.mrf.mxu0
  %v1725 = vadd.f32 0.0, %v1724
  %1726 = vmatmul.bf16.gmra.mxu0 %v1163
  %v1727 = vpop.f32.mrf.mxu0
  %v1728 = vadd.f32 0.0, %v1727
  %v1729 = vpop.f32.mrf.mxu0
  %v1730 = vadd.f32 0.0, %v1729
  %1731 = vmatmul.bf16.gmra.mxu0 %v1166
  %v1732 = vpop.f32.mrf.mxu0
  %v1733 = vadd.f32 0.0, %v1732
  %v1734 = vpop.f32.mrf.mxu0
  %v1735 = vadd.f32 0.0, %v1734
  %1736 = vmatmul.bf16.gmra.mxu0 %v1169
  %v1737 = vpop.f32.mrf.mxu0
  %v1738 = vadd.f32 0.0, %v1737
  %v1739 = vpop.f32.mrf.mxu0
  %v1740 = vadd.f32 0.0, %v1739
  %1741 = vmatmul.bf16.gmra.mxu0 %v1172
  %v1742 = vpop.f32.mrf.mxu0
  %v1743 = vadd.f32 0.0, %v1742
  %v1744 = vpop.f32.mrf.mxu0
  %v1745 = vadd.f32 0.0, %v1744
  %1746 = vmatmul.bf16.gmra.mxu0 %v1175
  %v1747 = vpop.f32.mrf.mxu0
  %v1748 = vadd.f32 0.0, %v1747
  %v1749 = vpop.f32.mrf.mxu0
  %v1750 = vadd.f32 0.0, %v1749
  %1751 = vmatmul.bf16.gmra.mxu0 %v1178
  %v1752 = vpop.f32.mrf.mxu0
  %v1753 = vadd.f32 0.0, %v1752
  %v1754 = vpop.f32.mrf.mxu0
  %v1755 = vadd.f32 0.0, %v1754
  %1756 = vmatmul.bf16.gmra.mxu0 %v1181
  %v1757 = vpop.f32.mrf.mxu0
  %v1758 = vadd.f32 0.0, %v1757
  %v1759 = vpop.f32.mrf.mxu0
  %v1760 = vadd.f32 0.0, %v1759
  %1761 = vmatmul.bf16.gmra.mxu0 %v1184
  %v1762 = vpop.f32.mrf.mxu0
  %v1763 = vadd.f32 0.0, %v1762
  %v1764 = vpop.f32.mrf.mxu0
  %v1765 = vadd.f32 0.0, %v1764
  %1766 = vmatmul.bf16.gmra.mxu0 %v1187
  %v1767 = vpop.f32.mrf.mxu0
  %v1768 = vadd.f32 0.0, %v1767
  %v1769 = vpop.f32.mrf.mxu0
  %v1770 = vadd.f32 0.0, %v1769
  %1771 = vmatmul.bf16.gmra.mxu0 %v1190
  %v1772 = vpop.f32.mrf.mxu0
  %v1773 = vadd.f32 0.0, %v1772
  %v1774 = vpop.f32.mrf.mxu0
  %v1775 = vadd.f32 0.0, %v1774
  %1776 = vmatmul.bf16.gmra.mxu0 %v1193
  %v1777 = vpop.f32.mrf.mxu0
  %v1778 = vadd.f32 0.0, %v1777
  %v1779 = vpop.f32.mrf.mxu0
  %v1780 = vadd.f32 0.0, %v1779
  %1781 = vmatmul.bf16.gmra.mxu0 %v1196
  %v1782 = vpop.f32.mrf.mxu0
  %v1783 = vadd.f32 0.0, %v1782
  %v1784 = vpop.f32.mrf.mxu0
  %v1785 = vadd.f32 0.0, %v1784
  %1786 = vmatmul.bf16.gmra.mxu0 %v1199
  %v1787 = vpop.f32.mrf.mxu0
  %v1788 = vadd.f32 0.0, %v1787
  %v1789 = vpop.f32.mrf.mxu0
  %v1790 = vadd.f32 0.0, %v1789
  %1791 = vmatmul.bf16.gmra.mxu0 %v1202
  %v1792 = vpop.f32.mrf.mxu0
  %v1793 = vadd.f32 0.0, %v1792
  %v1794 = vpop.f32.mrf.mxu0
  %v1795 = vadd.f32 0.0, %v1794
  %1796 = vmatmul.bf16.gmra.mxu0 %v1205
  %v1797 = vpop.f32.mrf.mxu0
  %v1798 = vadd.f32 0.0, %v1797
  %v1799 = vpop.f32.mrf.mxu0
  %v1800 = vadd.f32 0.0, %v1799
  %1801 = vmatmul.bf16.gmra.mxu0 %v1208
  %v1802 = vpop.f32.mrf.mxu0
  %v1803 = vadd.f32 0.0, %v1802
  %v1804 = vpop.f32.mrf.mxu0
  %v1805 = vadd.f32 0.0, %v1804
  %1806 = vmatmul.bf16.gmra.mxu0 %v1211
  %v1807 = vpop.f32.mrf.mxu0
  %v1808 = vadd.f32 0.0, %v1807
  %v1809 = vpop.f32.mrf.mxu0
  %v1810 = vadd.f32 0.0, %v1809
  %1811 = vmatmul.bf16.gmra.mxu0 %v1214
  %v1812 = vpop.f32.mrf.mxu0
  %v1813 = vadd.f32 0.0, %v1812
  %v1814 = vpop.f32.mrf.mxu0
  %v1815 = vadd.f32 0.0, %v1814
  %1816 = vmatmul.bf16.gmra.mxu0 %v1217
  %v1817 = vpop.f32.mrf.mxu0
  %v1818 = vadd.f32 0.0, %v1817
  %v1819 = vpop.f32.mrf.mxu0
  %v1820 = vadd.f32 0.0, %v1819
  %1821 = vmatmul.bf16.gmra.mxu0 %v1220
  %v1822 = vpop.f32.mrf.mxu0
  %v1823 = vadd.f32 0.0, %v1822
  %v1824 = vpop.f32.mrf.mxu0
  %v1825 = vadd.f32 0.0, %v1824
  %1826 = vmatmul.bf16.gmra.mxu0 %v1223
  %v1827 = vpop.f32.mrf.mxu0
  %v1828 = vadd.f32 0.0, %v1827
  %v1829 = vpop.f32.mrf.mxu0
  %v1830 = vadd.f32 0.0, %v1829
  %1831 = vmatmul.bf16.gmra.mxu0 %v1226
  %v1832 = vpop.f32.mrf.mxu0
  %v1833 = vadd.f32 0.0, %v1832
  %v1834 = vpop.f32.mrf.mxu0
  %v1835 = vadd.f32 0.0, %v1834
  %1836 = vmatmul.bf16.gmra.mxu0 %v1229
  %v1837 = vpop.f32.mrf.mxu0
  %v1838 = vadd.f32 0.0, %v1837
  %v1839 = vpop.f32.mrf.mxu0
  %v1840 = vadd.f32 0.0, %v1839
  %1841 = vmatmul.bf16.gmra.mxu0 %v1232
  %v1842 = vpop.f32.mrf.mxu0
  %v1843 = vadd.f32 0.0, %v1842
  %v1844 = vpop.f32.mrf.mxu0
  %v1845 = vadd.f32 0.0, %v1844
  %1846 = vmatmul.bf16.gmra.mxu0 %v1235
  %v1847 = vpop.f32.mrf.mxu0
  %v1848 = vadd.f32 0.0, %v1847
  %v1849 = vpop.f32.mrf.mxu0
  %v1850 = vadd.f32 0.0, %v1849
  %1851 = vmatmul.bf16.gmra.mxu0 %v1238
  %v1852 = vpop.f32.mrf.mxu0
  %v1853 = vadd.f32 0.0, %v1852
  %v1854 = vpop.f32.mrf.mxu0
  %v1855 = vadd.f32 0.0, %v1854
  %1856 = vmatmul.bf16.gmra.mxu0 %v1241
  %v1857 = vpop.f32.mrf.mxu0
  %v1858 = vadd.f32 0.0, %v1857
  %v1859 = vpop.f32.mrf.mxu0
  %v1860 = vadd.f32 0.0, %v1859
  %1861 = vmatmul.bf16.gmra.mxu0 %v1244
  %v1862 = vpop.f32.mrf.mxu0
  %v1863 = vadd.f32 0.0, %v1862
  %v1864 = vpop.f32.mrf.mxu0
  %v1865 = vadd.f32 0.0, %v1864
  %1866 = vmatmul.bf16.gmra.mxu0 %v1247
  %v1867 = vpop.f32.mrf.mxu0
  %v1868 = vadd.f32 0.0, %v1867
  %v1869 = vpop.f32.mrf.mxu0
  %v1870 = vadd.f32 0.0, %v1869
  %1871 = vmatmul.bf16.gmra.mxu0 %v1250
  %v1872 = vpop.f32.mrf.mxu0
  %v1873 = vadd.f32 0.0, %v1872
  %v1874 = vpop.f32.mrf.mxu0
  %v1875 = vadd.f32 0.0, %v1874
  %1876 = vmatmul.bf16.gmra.mxu0 %v1253
  %v1877 = vpop.f32.mrf.mxu0
  %v1878 = vadd.f32 0.0, %v1877
  %v1879 = vpop.f32.mrf.mxu0
  %v1880 = vadd.f32 0.0, %v1879
  %1881 = vmatmul.bf16.gmra.mxu0 %v1256
  %v1882 = vpop.f32.mrf.mxu0
  %v1883 = vadd.f32 0.0, %v1882
  %v1884 = vpop.f32.mrf.mxu0
  %v1885 = vadd.f32 0.0, %v1884
  %1886 = vmatmul.bf16.gmra.mxu0 %v1259
  %v1887 = vpop.f32.mrf.mxu0
  %v1888 = vadd.f32 0.0, %v1887
  %v1889 = vpop.f32.mrf.mxu0
  %v1890 = vadd.f32 0.0, %v1889
  %1891 = vmatmul.bf16.gmra.mxu0 %v1262
  %v1892 = vpop.f32.mrf.mxu0
  %v1893 = vadd.f32 0.0, %v1892
  %v1894 = vpop.f32.mrf.mxu0
  %v1895 = vadd.f32 0.0, %v1894
  %1896 = vmatmul.bf16.gmra.mxu0 %v1265
  %v1897 = vpop.f32.mrf.mxu0
  %v1898 = vadd.f32 0.0, %v1897
  %v1899 = vpop.f32.mrf.mxu0
  %v1900 = vadd.f32 0.0, %v1899
  %1901 = vmatmul.bf16.gmra.mxu0 %v1268
  %v1902 = vpop.f32.mrf.mxu0
  %v1903 = vadd.f32 0.0, %v1902
  %v1904 = vpop.f32.mrf.mxu0
  %v1905 = vadd.f32 0.0, %v1904
  %1906 = vmatmul.bf16.gmra.mxu0 %v1271
  %v1907 = vpop.f32.mrf.mxu0
  %v1908 = vadd.f32 0.0, %v1907
  %v1909 = vpop.f32.mrf.mxu0
  %v1910 = vadd.f32 0.0, %v1909
  %1911 = vmatmul.bf16.gmra.mxu0 %v1274
  %v1912 = vpop.f32.mrf.mxu0
  %v1913 = vadd.f32 0.0, %v1912
  %v1914 = vpop.f32.mrf.mxu0
  %v1915 = vadd.f32 0.0, %v1914
  %1916 = vmatmul.bf16.gmra.mxu0 %v1277
  %v1917 = vpop.f32.mrf.mxu0
  %v1918 = vadd.f32 0.0, %v1917
  %v1919 = vpop.f32.mrf.mxu0
  %v1920 = vadd.f32 0.0, %v1919
  %1921 = vmatmul.bf16.gmra.mxu0 %v1280
  %v1922 = vpop.f32.mrf.mxu0
  %v1923 = vadd.f32 0.0, %v1922
  %v1924 = vpop.f32.mrf.mxu0
  %v1925 = vadd.f32 0.0, %v1924
  %1926 = vmatmul.bf16.gmra.mxu0 %v1283
  %v1927 = vpop.f32.mrf.mxu0
  %v1928 = vadd.f32 0.0, %v1927
  %v1929 = vpop.f32.mrf.mxu0
  %v1930 = vadd.f32 0.0, %v1929
  %1931 = vmatmul.bf16.gmra.mxu0 %v1286
  %v1932 = vpop.f32.mrf.mxu0
  %v1933 = vadd.f32 0.0, %v1932
  %v1934 = vpop.f32.mrf.mxu0
  %v1935 = vadd.f32 0.0, %v1934
  %1936 = vmatmul.bf16.gmra.mxu0 %v1289
  %v1937 = vpop.f32.mrf.mxu0
  %v1938 = vadd.f32 0.0, %v1937
  %v1939 = vpop.f32.mrf.mxu0
  %v1940 = vadd.f32 0.0, %v1939
  %1941 = vmatmul.bf16.gmra.mxu0 %v1292
  %v1942 = vpop.f32.mrf.mxu0
  %v1943 = vadd.f32 0.0, %v1942
  %v1944 = vpop.f32.mrf.mxu0
  %v1945 = vadd.f32 0.0, %v1944
  %1946 = vdwg.mxu0
  %v1947 = vpack.c.bf16 %v1308, %v1308
  %v1948 = vpack.c.bf16 %v1310, %v1310
  %v1949 = vpack.c.bf16 %v1313, %v1313
  %v1950 = vpack.c.bf16 %v1315, %v1315
  %v1951 = vpack.c.bf16 %v1318, %v1318
  %v1952 = vpack.c.bf16 %v1320, %v1320
  %v1953 = vpack.c.bf16 %v1323, %v1323
  %v1954 = vpack.c.bf16 %v1325, %v1325
  %v1955 = vpack.c.bf16 %v1328, %v1328
  %v1956 = vpack.c.bf16 %v1330, %v1330
  %v1957 = vpack.c.bf16 %v1333, %v1333
  %v1958 = vpack.c.bf16 %v1335, %v1335
  %v1959 = vpack.c.bf16 %v1338, %v1338
  %v1960 = vpack.c.bf16 %v1340, %v1340
  %v1961 = vpack.c.bf16 %v1343, %v1343
  %v1962 = vpack.c.bf16 %v1345, %v1345
  %v1963 = vpack.c.bf16 %v1348, %v1348
  %v1964 = vpack.c.bf16 %v1350, %v1350
  %v1965 = vpack.c.bf16 %v1353, %v1353
  %v1966 = vpack.c.bf16 %v1355, %v1355
  %v1967 = vpack.c.bf16 %v1358, %v1358
  %v1968 = vpack.c.bf16 %v1360, %v1360
  %v1969 = vpack.c.bf16 %v1363, %v1363
  %v1970 = vpack.c.bf16 %v1365, %v1365
  %v1971 = vpack.c.bf16 %v1368, %v1368
  %v1972 = vpack.c.bf16 %v1370, %v1370
  %v1973 = vpack.c.bf16 %v1373, %v1373
  %v1974 = vpack.c.bf16 %v1375, %v1375
  %v1975 = vpack.c.bf16 %v1378, %v1378
  %v1976 = vpack.c.bf16 %v1380, %v1380
  %v1977 = vpack.c.bf16 %v1383, %v1383
  %v1978 = vpack.c.bf16 %v1385, %v1385
  %v1979 = vpack.c.bf16 %v1388, %v1388
  %v1980 = vpack.c.bf16 %v1390, %v1390
  %v1981 = vpack.c.bf16 %v1393, %v1393
  %v1982 = vpack.c.bf16 %v1395, %v1395
  %v1983 = vpack.c.bf16 %v1398, %v1398
  %v1984 = vpack.c.bf16 %v1400, %v1400
  %v1985 = vpack.c.bf16 %v1403, %v1403
  %v1986 = vpack.c.bf16 %v1405, %v1405
  %v1987 = vpack.c.bf16 %v1408, %v1408
  %v1988 = vpack.c.bf16 %v1410, %v1410
  %v1989 = vpack.c.bf16 %v1413, %v1413
  %v1990 = vpack.c.bf16 %v1415, %v1415
  %v1991 = vpack.c.bf16 %v1418, %v1418
  %v1992 = vpack.c.bf16 %v1420, %v1420
  %v1993 = vpack.c.bf16 %v1423, %v1423
  %v1994 = vpack.c.bf16 %v1425, %v1425
  %v1995 = vpack.c.bf16 %v1428, %v1428
  %v1996 = vpack.c.bf16 %v1430, %v1430
  %v1997 = vpack.c.bf16 %v1433, %v1433
  %v1998 = vpack.c.bf16 %v1435, %v1435
  %v1999 = vpack.c.bf16 %v1438, %v1438
  %v2000 = vpack.c.bf16 %v1440, %v1440
  %v2001 = vpack.c.bf16 %v1443, %v1443
  %v2002 = vpack.c.bf16 %v1445, %v1445
  %v2003 = vpack.c.bf16 %v1448, %v1448
  %v2004 = vpack.c.bf16 %v1450, %v1450
  %v2005 = vpack.c.bf16 %v1453, %v1453
  %v2006 = vpack.c.bf16 %v1455, %v1455
  %v2007 = vpack.c.bf16 %v1458, %v1458
  %v2008 = vpack.c.bf16 %v1460, %v1460
  %v2009 = vpack.c.bf16 %v1463, %v1463
  %v2010 = vpack.c.bf16 %v1465, %v1465
  %v2011 = vpack.c.bf16 %v1468, %v1468
  %v2012 = vpack.c.bf16 %v1470, %v1470
  %v2013 = vpack.c.bf16 %v1473, %v1473
  %v2014 = vpack.c.bf16 %v1475, %v1475
  %v2015 = vpack.c.bf16 %v1478, %v1478
  %v2016 = vpack.c.bf16 %v1480, %v1480
  %v2017 = vpack.c.bf16 %v1483, %v1483
  %v2018 = vpack.c.bf16 %v1485, %v1485
  %v2019 = vpack.c.bf16 %v1488, %v1488
  %v2020 = vpack.c.bf16 %v1490, %v1490
  %v2021 = vpack.c.bf16 %v1493, %v1493
  %v2022 = vpack.c.bf16 %v1495, %v1495
  %v2023 = vpack.c.bf16 %v1498, %v1498
  %v2024 = vpack.c.bf16 %v1500, %v1500
  %v2025 = vpack.c.bf16 %v1503, %v1503
  %v2026 = vpack.c.bf16 %v1505, %v1505
  %v2027 = vpack.c.bf16 %v1508, %v1508
  %v2028 = vpack.c.bf16 %v1510, %v1510
  %v2029 = vpack.c.bf16 %v1513, %v1513
  %v2030 = vpack.c.bf16 %v1515, %v1515
  %v2031 = vpack.c.bf16 %v1518, %v1518
  %v2032 = vpack.c.bf16 %v1520, %v1520
  %v2033 = vpack.c.bf16 %v1523, %v1523
  %v2034 = vpack.c.bf16 %v1525, %v1525
  %v2035 = vpack.c.bf16 %v1528, %v1528
  %v2036 = vpack.c.bf16 %v1530, %v1530
  %v2037 = vpack.c.bf16 %v1533, %v1533
  %v2038 = vpack.c.bf16 %v1535, %v1535
  %v2039 = vpack.c.bf16 %v1538, %v1538
  %v2040 = vpack.c.bf16 %v1540, %v1540
  %v2041 = vpack.c.bf16 %v1543, %v1543
  %v2042 = vpack.c.bf16 %v1545, %v1545
  %v2043 = vpack.c.bf16 %v1548, %v1548
  %v2044 = vpack.c.bf16 %v1550, %v1550
  %v2045 = vpack.c.bf16 %v1553, %v1553
  %v2046 = vpack.c.bf16 %v1555, %v1555
  %v2047 = vpack.c.bf16 %v1558, %v1558
  %v2048 = vpack.c.bf16 %v1560, %v1560
  %v2049 = vpack.c.bf16 %v1563, %v1563
  %v2050 = vpack.c.bf16 %v1565, %v1565
  %v2051 = vpack.c.bf16 %v1568, %v1568
  %v2052 = vpack.c.bf16 %v1570, %v1570
  %v2053 = vpack.c.bf16 %v1573, %v1573
  %v2054 = vpack.c.bf16 %v1575, %v1575
  %v2055 = vpack.c.bf16 %v1578, %v1578
  %v2056 = vpack.c.bf16 %v1580, %v1580
  %v2057 = vpack.c.bf16 %v1583, %v1583
  %v2058 = vpack.c.bf16 %v1585, %v1585
  %v2059 = vpack.c.bf16 %v1588, %v1588
  %v2060 = vpack.c.bf16 %v1590, %v1590
  %v2061 = vpack.c.bf16 %v1593, %v1593
  %v2062 = vpack.c.bf16 %v1595, %v1595
  %v2063 = vpack.c.bf16 %v1598, %v1598
  %v2064 = vpack.c.bf16 %v1600, %v1600
  %v2065 = vpack.c.bf16 %v1603, %v1603
  %v2066 = vpack.c.bf16 %v1605, %v1605
  %v2067 = vpack.c.bf16 %v1608, %v1608
  %v2068 = vpack.c.bf16 %v1610, %v1610
  %v2069 = vpack.c.bf16 %v1613, %v1613
  %v2070 = vpack.c.bf16 %v1615, %v1615
  %v2071 = vpack.c.bf16 %v1618, %v1618
  %v2072 = vpack.c.bf16 %v1620, %v1620
  %v2073 = vpack.c.bf16 %v1623, %v1623
  %v2074 = vpack.c.bf16 %v1625, %v1625
  %v2075 = vpack.c.bf16 %v1628, %v1628
  %v2076 = vpack.c.bf16 %v1630, %v1630
  %v2077 = vpack.c.bf16 %v1633, %v1633
  %v2078 = vpack.c.bf16 %v1635, %v1635
  %v2079 = vpack.c.bf16 %v1638, %v1638
  %v2080 = vpack.c.bf16 %v1640, %v1640
  %v2081 = vpack.c.bf16 %v1643, %v1643
  %v2082 = vpack.c.bf16 %v1645, %v1645
  %v2083 = vpack.c.bf16 %v1648, %v1648
  %v2084 = vpack.c.bf16 %v1650, %v1650
  %v2085 = vpack.c.bf16 %v1653, %v1653
  %v2086 = vpack.c.bf16 %v1655, %v1655
  %v2087 = vpack.c.bf16 %v1658, %v1658
  %v2088 = vpack.c.bf16 %v1660, %v1660
  %v2089 = vpack.c.bf16 %v1663, %v1663
  %v2090 = vpack.c.bf16 %v1665, %v1665
  %v2091 = vpack.c.bf16 %v1668, %v1668
  %v2092 = vpack.c.bf16 %v1670, %v1670
  %v2093 = vpack.c.bf16 %v1673, %v1673
  %v2094 = vpack.c.bf16 %v1675, %v1675
  %v2095 = vpack.c.bf16 %v1678, %v1678
  %v2096 = vpack.c.bf16 %v1680, %v1680
  %v2097 = vpack.c.bf16 %v1683, %v1683
  %v2098 = vpack.c.bf16 %v1685, %v1685
  %v2099 = vpack.c.bf16 %v1688, %v1688
  %v2100 = vpack.c.bf16 %v1690, %v1690
  %v2101 = vpack.c.bf16 %v1693, %v1693
  %v2102 = vpack.c.bf16 %v1695, %v1695
  %v2103 = vpack.c.bf16 %v1698, %v1698
  %v2104 = vpack.c.bf16 %v1700, %v1700
  %v2105 = vpack.c.bf16 %v1703, %v1703
  %v2106 = vpack.c.bf16 %v1705, %v1705
  %v2107 = vpack.c.bf16 %v1708, %v1708
  %v2108 = vpack.c.bf16 %v1710, %v1710
  %v2109 = vpack.c.bf16 %v1713, %v1713
  %v2110 = vpack.c.bf16 %v1715, %v1715
  %v2111 = vpack.c.bf16 %v1718, %v1718
  %v2112 = vpack.c.bf16 %v1720, %v1720
  %v2113 = vpack.c.bf16 %v1723, %v1723
  %v2114 = vpack.c.bf16 %v1725, %v1725
  %v2115 = vpack.c.bf16 %v1728, %v1728
  %v2116 = vpack.c.bf16 %v1730, %v1730
  %v2117 = vpack.c.bf16 %v1733, %v1733
  %v2118 = vpack.c.bf16 %v1735, %v1735
  %v2119 = vpack.c.bf16 %v1738, %v1738
  %v2120 = vpack.c.bf16 %v1740, %v1740
  %v2121 = vpack.c.bf16 %v1743, %v1743
  %v2122 = vpack.c.bf16 %v1745, %v1745
  %v2123 = vpack.c.bf16 %v1748, %v1748
  %v2124 = vpack.c.bf16 %v1750, %v1750
  %v2125 = vpack.c.bf16 %v1753, %v1753
  %v2126 = vpack.c.bf16 %v1755, %v1755
  %v2127 = vpack.c.bf16 %v1758, %v1758
  %v2128 = vpack.c.bf16 %v1760, %v1760
  %v2129 = vpack.c.bf16 %v1763, %v1763
  %v2130 = vpack.c.bf16 %v1765, %v1765
  %v2131 = vpack.c.bf16 %v1768, %v1768
  %v2132 = vpack.c.bf16 %v1770, %v1770
  %v2133 = vpack.c.bf16 %v1773, %v1773
  %v2134 = vpack.c.bf16 %v1775, %v1775
  %v2135 = vpack.c.bf16 %v1778, %v1778
  %v2136 = vpack.c.bf16 %v1780, %v1780
  %v2137 = vpack.c.bf16 %v1783, %v1783
  %v2138 = vpack.c.bf16 %v1785, %v1785
  %v2139 = vpack.c.bf16 %v1788, %v1788
  %v2140 = vpack.c.bf16 %v1790, %v1790
  %v2141 = vpack.c.bf16 %v1793, %v1793
  %v2142 = vpack.c.bf16 %v1795, %v1795
  %v2143 = vpack.c.bf16 %v1798, %v1798
  %v2144 = vpack.c.bf16 %v1800, %v1800
  %v2145 = vpack.c.bf16 %v1803, %v1803
  %v2146 = vpack.c.bf16 %v1805, %v1805
  %v2147 = vpack.c.bf16 %v1808, %v1808
  %v2148 = vpack.c.bf16 %v1810, %v1810
  %v2149 = vpack.c.bf16 %v1813, %v1813
  %v2150 = vpack.c.bf16 %v1815, %v1815
  %v2151 = vpack.c.bf16 %v1818, %v1818
  %v2152 = vpack.c.bf16 %v1820, %v1820
  %v2153 = vpack.c.bf16 %v1823, %v1823
  %v2154 = vpack.c.bf16 %v1825, %v1825
  %v2155 = vpack.c.bf16 %v1828, %v1828
  %v2156 = vpack.c.bf16 %v1830, %v1830
  %v2157 = vpack.c.bf16 %v1833, %v1833
  %v2158 = vpack.c.bf16 %v1835, %v1835
  %v2159 = vpack.c.bf16 %v1838, %v1838
  %v2160 = vpack.c.bf16 %v1840, %v1840
  %v2161 = vpack.c.bf16 %v1843, %v1843
  %v2162 = vpack.c.bf16 %v1845, %v1845
  %v2163 = vpack.c.bf16 %v1848, %v1848
  %v2164 = vpack.c.bf16 %v1850, %v1850
  %v2165 = vpack.c.bf16 %v1853, %v1853
  %v2166 = vpack.c.bf16 %v1855, %v1855
  %v2167 = vpack.c.bf16 %v1858, %v1858
  %v2168 = vpack.c.bf16 %v1860, %v1860
  %v2169 = vpack.c.bf16 %v1863, %v1863
  %v2170 = vpack.c.bf16 %v1865, %v1865
  %v2171 = vpack.c.bf16 %v1868, %v1868
  %v2172 = vpack.c.bf16 %v1870, %v1870
  %v2173 = vpack.c.bf16 %v1873, %v1873
  %v2174 = vpack.c.bf16 %v1875, %v1875
  %v2175 = vpack.c.bf16 %v1878, %v1878
  %v2176 = vpack.c.bf16 %v1880, %v1880
  %v2177 = vpack.c.bf16 %v1883, %v1883
  %v2178 = vpack.c.bf16 %v1885, %v1885
  %v2179 = vpack.c.bf16 %v1888, %v1888
  %v2180 = vpack.c.bf16 %v1890, %v1890
  %v2181 = vpack.c.bf16 %v1893, %v1893
  %v2182 = vpack.c.bf16 %v1895, %v1895
  %v2183 = vpack.c.bf16 %v1898, %v1898
  %v2184 = vpack.c.bf16 %v1900, %v1900
  %v2185 = vpack.c.bf16 %v1903, %v1903
  %v2186 = vpack.c.bf16 %v1905, %v1905
  %v2187 = vpack.c.bf16 %v1908, %v1908
  %v2188 = vpack.c.bf16 %v1910, %v1910
  %v2189 = vpack.c.bf16 %v1913, %v1913
  %v2190 = vpack.c.bf16 %v1915, %v1915
  %v2191 = vpack.c.bf16 %v1918, %v1918
  %v2192 = vpack.c.bf16 %v1920, %v1920
  %v2193 = vpack.c.bf16 %v1923, %v1923
  %v2194 = vpack.c.bf16 %v1925, %v1925
  %v2195 = vpack.c.bf16 %v1928, %v1928
  %v2196 = vpack.c.bf16 %v1930, %v1930
  %v2197 = vpack.c.bf16 %v1933, %v1933
  %v2198 = vpack.c.bf16 %v1935, %v1935
  %v2199 = vpack.c.bf16 %v1938, %v1938
  %v2200 = vpack.c.bf16 %v1940, %v1940
  %v2201 = vpack.c.bf16 %v1943, %v1943
  %v2202 = vpack.c.bf16 %v1945, %v1945
  %2203 = vst [vmem:[%s2] sm:$0xf] %v1947
  %2204 = vst [vmem:[%s2 + $0x4] sm:$0xf] %v1948
  %2205 = vst [vmem:[%s2 + $0x8] sm:$0xf] %v1949
  %2206 = vst [vmem:[%s2 + $0xc] sm:$0xf] %v1950
  %2207 = vst [vmem:[%s2 + $0x10] sm:$0xf] %v1951
  %2208 = vst [vmem:[%s2 + $0x14] sm:$0xf] %v1952
  %2209 = vst [vmem:[%s2 + $0x18] sm:$0xf] %v1953
  %2210 = vst [vmem:[%s2 + $0x1c] sm:$0xf] %v1954
  %2211 = vst [vmem:[%s2 + $0x20] sm:$0xf] %v1955
  %2212 = vst [vmem:[%s2 + $0x24] sm:$0xf] %v1956
  %2213 = vst [vmem:[%s2 + $0x28] sm:$0xf] %v1957
  %2214 = vst [vmem:[%s2 + $0x2c] sm:$0xf] %v1958
  %2215 = vst [vmem:[%s2 + $0x30] sm:$0xf] %v1959
  %2216 = vst [vmem:[%s2 + $0x34] sm:$0xf] %v1960
  %2217 = vst [vmem:[%s2 + $0x38] sm:$0xf] %v1961
  %2218 = vst [vmem:[%s2 + $0x3c] sm:$0xf] %v1962
  %2219 = vst [vmem:[%s2 + $0x40] sm:$0xf] %v1963
  %2220 = vst [vmem:[%s2 + $0x44] sm:$0xf] %v1964
  %2221 = vst [vmem:[%s2 + $0x48] sm:$0xf] %v1965
  %2222 = vst [vmem:[%s2 + $0x4c] sm:$0xf] %v1966
  %2223 = vst [vmem:[%s2 + $0x50] sm:$0xf] %v1967
  %2224 = vst [vmem:[%s2 + $0x54] sm:$0xf] %v1968
  %2225 = vst [vmem:[%s2 + $0x58] sm:$0xf] %v1969
  %2226 = vst [vmem:[%s2 + $0x5c] sm:$0xf] %v1970
  %2227 = vst [vmem:[%s2 + $0x60] sm:$0xf] %v1971
  %2228 = vst [vmem:[%s2 + $0x64] sm:$0xf] %v1972
  %2229 = vst [vmem:[%s2 + $0x68] sm:$0xf] %v1973
  %2230 = vst [vmem:[%s2 + $0x6c] sm:$0xf] %v1974
  %2231 = vst [vmem:[%s2 + $0x70] sm:$0xf] %v1975
  %2232 = vst [vmem:[%s2 + $0x74] sm:$0xf] %v1976
  %2233 = vst [vmem:[%s2 + $0x78] sm:$0xf] %v1977
  %2234 = vst [vmem:[%s2 + $0x7c] sm:$0xf] %v1978
  %2235 = vst [vmem:[%s2 + $0x80] sm:$0xf] %v1979
  %2236 = vst [vmem:[%s2 + $0x84] sm:$0xf] %v1980
  %2237 = vst [vmem:[%s2 + $0x88] sm:$0xf] %v1981
  %2238 = vst [vmem:[%s2 + $0x8c] sm:$0xf] %v1982
  %2239 = vst [vmem:[%s2 + $0x90] sm:$0xf] %v1983
  %2240 = vst [vmem:[%s2 + $0x94] sm:$0xf] %v1984
  %2241 = vst [vmem:[%s2 + $0x98] sm:$0xf] %v1985
  %2242 = vst [vmem:[%s2 + $0x9c] sm:$0xf] %v1986
  %2243 = vst [vmem:[%s2 + $0xa0] sm:$0xf] %v1987
  %2244 = vst [vmem:[%s2 + $0xa4] sm:$0xf] %v1988
  %2245 = vst [vmem:[%s2 + $0xa8] sm:$0xf] %v1989
  %2246 = vst [vmem:[%s2 + $0xac] sm:$0xf] %v1990
  %2247 = vst [vmem:[%s2 + $0xb0] sm:$0xf] %v1991
  %2248 = vst [vmem:[%s2 + $0xb4] sm:$0xf] %v1992
  %2249 = vst [vmem:[%s2 + $0xb8] sm:$0xf] %v1993
  %2250 = vst [vmem:[%s2 + $0xbc] sm:$0xf] %v1994
  %2251 = vst [vmem:[%s2 + $0xc0] sm:$0xf] %v1995
  %2252 = vst [vmem:[%s2 + $0xc4] sm:$0xf] %v1996
  %2253 = vst [vmem:[%s2 + $0xc8] sm:$0xf] %v1997
  %2254 = vst [vmem:[%s2 + $0xcc] sm:$0xf] %v1998
  %2255 = vst [vmem:[%s2 + $0xd0] sm:$0xf] %v1999
  %2256 = vst [vmem:[%s2 + $0xd4] sm:$0xf] %v2000
  %2257 = vst [vmem:[%s2 + $0xd8] sm:$0xf] %v2001
  %2258 = vst [vmem:[%s2 + $0xdc] sm:$0xf] %v2002
  %2259 = vst [vmem:[%s2 + $0xe0] sm:$0xf] %v2003
  %2260 = vst [vmem:[%s2 + $0xe4] sm:$0xf] %v2004
  %2261 = vst [vmem:[%s2 + $0xe8] sm:$0xf] %v2005
  %2262 = vst [vmem:[%s2 + $0xec] sm:$0xf] %v2006
  %2263 = vst [vmem:[%s2 + $0xf0] sm:$0xf] %v2007
  %2264 = vst [vmem:[%s2 + $0xf4] sm:$0xf] %v2008
  %2265 = vst [vmem:[%s2 + $0xf8] sm:$0xf] %v2009
  %2266 = vst [vmem:[%s2 + $0xfc] sm:$0xf] %v2010
  %2267 = vst [vmem:[%s2 + $0x100] sm:$0xf] %v2011
  %2268 = vst [vmem:[%s2 + $0x104] sm:$0xf] %v2012
  %2269 = vst [vmem:[%s2 + $0x108] sm:$0xf] %v2013
  %2270 = vst [vmem:[%s2 + $0x10c] sm:$0xf] %v2014
  %2271 = vst [vmem:[%s2 + $0x110] sm:$0xf] %v2015
  %2272 = vst [vmem:[%s2 + $0x114] sm:$0xf] %v2016
  %2273 = vst [vmem:[%s2 + $0x118] sm:$0xf] %v2017
  %2274 = vst [vmem:[%s2 + $0x11c] sm:$0xf] %v2018
  %2275 = vst [vmem:[%s2 + $0x120] sm:$0xf] %v2019
  %2276 = vst [vmem:[%s2 + $0x124] sm:$0xf] %v2020
  %2277 = vst [vmem:[%s2 + $0x128] sm:$0xf] %v2021
  %2278 = vst [vmem:[%s2 + $0x12c] sm:$0xf] %v2022
  %2279 = vst [vmem:[%s2 + $0x130] sm:$0xf] %v2023
  %2280 = vst [vmem:[%s2 + $0x134] sm:$0xf] %v2024
  %2281 = vst [vmem:[%s2 + $0x138] sm:$0xf] %v2025
  %2282 = vst [vmem:[%s2 + $0x13c] sm:$0xf] %v2026
  %2283 = vst [vmem:[%s2 + $0x140] sm:$0xf] %v2027
  %2284 = vst [vmem:[%s2 + $0x144] sm:$0xf] %v2028
  %2285 = vst [vmem:[%s2 + $0x148] sm:$0xf] %v2029
  %2286 = vst [vmem:[%s2 + $0x14c] sm:$0xf] %v2030
  %2287 = vst [vmem:[%s2 + $0x150] sm:$0xf] %v2031
  %2288 = vst [vmem:[%s2 + $0x154] sm:$0xf] %v2032
  %2289 = vst [vmem:[%s2 + $0x158] sm:$0xf] %v2033
  %2290 = vst [vmem:[%s2 + $0x15c] sm:$0xf] %v2034
  %2291 = vst [vmem:[%s2 + $0x160] sm:$0xf] %v2035
  %2292 = vst [vmem:[%s2 + $0x164] sm:$0xf] %v2036
  %2293 = vst [vmem:[%s2 + $0x168] sm:$0xf] %v2037
  %2294 = vst [vmem:[%s2 + $0x16c] sm:$0xf] %v2038
  %2295 = vst [vmem:[%s2 + $0x170] sm:$0xf] %v2039
  %2296 = vst [vmem:[%s2 + $0x174] sm:$0xf] %v2040
  %2297 = vst [vmem:[%s2 + $0x178] sm:$0xf] %v2041
  %2298 = vst [vmem:[%s2 + $0x17c] sm:$0xf] %v2042
  %2299 = vst [vmem:[%s2 + $0x180] sm:$0xf] %v2043
  %2300 = vst [vmem:[%s2 + $0x184] sm:$0xf] %v2044
  %2301 = vst [vmem:[%s2 + $0x188] sm:$0xf] %v2045
  %2302 = vst [vmem:[%s2 + $0x18c] sm:$0xf] %v2046
  %2303 = vst [vmem:[%s2 + $0x190] sm:$0xf] %v2047
  %2304 = vst [vmem:[%s2 + $0x194] sm:$0xf] %v2048
  %2305 = vst [vmem:[%s2 + $0x198] sm:$0xf] %v2049
  %2306 = vst [vmem:[%s2 + $0x19c] sm:$0xf] %v2050
  %2307 = vst [vmem:[%s2 + $0x1a0] sm:$0xf] %v2051
  %2308 = vst [vmem:[%s2 + $0x1a4] sm:$0xf] %v2052
  %2309 = vst [vmem:[%s2 + $0x1a8] sm:$0xf] %v2053
  %2310 = vst [vmem:[%s2 + $0x1ac] sm:$0xf] %v2054
  %2311 = vst [vmem:[%s2 + $0x1b0] sm:$0xf] %v2055
  %2312 = vst [vmem:[%s2 + $0x1b4] sm:$0xf] %v2056
  %2313 = vst [vmem:[%s2 + $0x1b8] sm:$0xf] %v2057
  %2314 = vst [vmem:[%s2 + $0x1bc] sm:$0xf] %v2058
  %2315 = vst [vmem:[%s2 + $0x1c0] sm:$0xf] %v2059
  %2316 = vst [vmem:[%s2 + $0x1c4] sm:$0xf] %v2060
  %2317 = vst [vmem:[%s2 + $0x1c8] sm:$0xf] %v2061
  %2318 = vst [vmem:[%s2 + $0x1cc] sm:$0xf] %v2062
  %2319 = vst [vmem:[%s2 + $0x1d0] sm:$0xf] %v2063
  %2320 = vst [vmem:[%s2 + $0x1d4] sm:$0xf] %v2064
  %2321 = vst [vmem:[%s2 + $0x1d8] sm:$0xf] %v2065
  %2322 = vst [vmem:[%s2 + $0x1dc] sm:$0xf] %v2066
  %2323 = vst [vmem:[%s2 + $0x1e0] sm:$0xf] %v2067
  %2324 = vst [vmem:[%s2 + $0x1e4] sm:$0xf] %v2068
  %2325 = vst [vmem:[%s2 + $0x1e8] sm:$0xf] %v2069
  %2326 = vst [vmem:[%s2 + $0x1ec] sm:$0xf] %v2070
  %2327 = vst [vmem:[%s2 + $0x1f0] sm:$0xf] %v2071
  %2328 = vst [vmem:[%s2 + $0x1f4] sm:$0xf] %v2072
  %2329 = vst [vmem:[%s2 + $0x1f8] sm:$0xf] %v2073
  %2330 = vst [vmem:[%s2 + $0x1fc] sm:$0xf] %v2074
  %2331 = vst [vmem:[%s2 + $0x200] sm:$0xf] %v2075
  %2332 = vst [vmem:[%s2 + $0x204] sm:$0xf] %v2076
  %2333 = vst [vmem:[%s2 + $0x208] sm:$0xf] %v2077
  %2334 = vst [vmem:[%s2 + $0x20c] sm:$0xf] %v2078
  %2335 = vst [vmem:[%s2 + $0x210] sm:$0xf] %v2079
  %2336 = vst [vmem:[%s2 + $0x214] sm:$0xf] %v2080
  %2337 = vst [vmem:[%s2 + $0x218] sm:$0xf] %v2081
  %2338 = vst [vmem:[%s2 + $0x21c] sm:$0xf] %v2082
  %2339 = vst [vmem:[%s2 + $0x220] sm:$0xf] %v2083
  %2340 = vst [vmem:[%s2 + $0x224] sm:$0xf] %v2084
  %2341 = vst [vmem:[%s2 + $0x228] sm:$0xf] %v2085
  %2342 = vst [vmem:[%s2 + $0x22c] sm:$0xf] %v2086
  %2343 = vst [vmem:[%s2 + $0x230] sm:$0xf] %v2087
  %2344 = vst [vmem:[%s2 + $0x234] sm:$0xf] %v2088
  %2345 = vst [vmem:[%s2 + $0x238] sm:$0xf] %v2089
  %2346 = vst [vmem:[%s2 + $0x23c] sm:$0xf] %v2090
  %2347 = vst [vmem:[%s2 + $0x240] sm:$0xf] %v2091
  %2348 = vst [vmem:[%s2 + $0x244] sm:$0xf] %v2092
  %2349 = vst [vmem:[%s2 + $0x248] sm:$0xf] %v2093
  %2350 = vst [vmem:[%s2 + $0x24c] sm:$0xf] %v2094
  %2351 = vst [vmem:[%s2 + $0x250] sm:$0xf] %v2095
  %2352 = vst [vmem:[%s2 + $0x254] sm:$0xf] %v2096
  %2353 = vst [vmem:[%s2 + $0x258] sm:$0xf] %v2097
  %2354 = vst [vmem:[%s2 + $0x25c] sm:$0xf] %v2098
  %2355 = vst [vmem:[%s2 + $0x260] sm:$0xf] %v2099
  %2356 = vst [vmem:[%s2 + $0x264] sm:$0xf] %v2100
  %2357 = vst [vmem:[%s2 + $0x268] sm:$0xf] %v2101
  %2358 = vst [vmem:[%s2 + $0x26c] sm:$0xf] %v2102
  %2359 = vst [vmem:[%s2 + $0x270] sm:$0xf] %v2103
  %2360 = vst [vmem:[%s2 + $0x274] sm:$0xf] %v2104
  %2361 = vst [vmem:[%s2 + $0x278] sm:$0xf] %v2105
  %2362 = vst [vmem:[%s2 + $0x27c] sm:$0xf] %v2106
  %2363 = vst [vmem:[%s2 + $0x280] sm:$0xf] %v2107
  %2364 = vst [vmem:[%s2 + $0x284] sm:$0xf] %v2108
  %2365 = vst [vmem:[%s2 + $0x288] sm:$0xf] %v2109
  %2366 = vst [vmem:[%s2 + $0x28c] sm:$0xf] %v2110
  %2367 = vst [vmem:[%s2 + $0x290] sm:$0xf] %v2111
  %2368 = vst [vmem:[%s2 + $0x294] sm:$0xf] %v2112
  %2369 = vst [vmem:[%s2 + $0x298] sm:$0xf] %v2113
  %2370 = vst [vmem:[%s2 + $0x29c] sm:$0xf] %v2114
  %2371 = vst [vmem:[%s2 + $0x2a0] sm:$0xf] %v2115
  %2372 = vst [vmem:[%s2 + $0x2a4] sm:$0xf] %v2116
  %2373 = vst [vmem:[%s2 + $0x2a8] sm:$0xf] %v2117
  %2374 = vst [vmem:[%s2 + $0x2ac] sm:$0xf] %v2118
  %2375 = vst [vmem:[%s2 + $0x2b0] sm:$0xf] %v2119
  %2376 = vst [vmem:[%s2 + $0x2b4] sm:$0xf] %v2120
  %2377 = vst [vmem:[%s2 + $0x2b8] sm:$0xf] %v2121
  %2378 = vst [vmem:[%s2 + $0x2bc] sm:$0xf] %v2122
  %2379 = vst [vmem:[%s2 + $0x2c0] sm:$0xf] %v2123
  %2380 = vst [vmem:[%s2 + $0x2c4] sm:$0xf] %v2124
  %2381 = vst [vmem:[%s2 + $0x2c8] sm:$0xf] %v2125
  %2382 = vst [vmem:[%s2 + $0x2cc] sm:$0xf] %v2126
  %2383 = vst [vmem:[%s2 + $0x2d0] sm:$0xf] %v2127
  %2384 = vst [vmem:[%s2 + $0x2d4] sm:$0xf] %v2128
  %2385 = vst [vmem:[%s2 + $0x2d8] sm:$0xf] %v2129
  %2386 = vst [vmem:[%s2 + $0x2dc] sm:$0xf] %v2130
  %2387 = vst [vmem:[%s2 + $0x2e0] sm:$0xf] %v2131
  %2388 = vst [vmem:[%s2 + $0x2e4] sm:$0xf] %v2132
  %2389 = vst [vmem:[%s2 + $0x2e8] sm:$0xf] %v2133
  %2390 = vst [vmem:[%s2 + $0x2ec] sm:$0xf] %v2134
  %2391 = vst [vmem:[%s2 + $0x2f0] sm:$0xf] %v2135
  %2392 = vst [vmem:[%s2 + $0x2f4] sm:$0xf] %v2136
  %2393 = vst [vmem:[%s2 + $0x2f8] sm:$0xf] %v2137
  %2394 = vst [vmem:[%s2 + $0x2fc] sm:$0xf] %v2138
  %2395 = vst [vmem:[%s2 + $0x300] sm:$0xf] %v2139
  %2396 = vst [vmem:[%s2 + $0x304] sm:$0xf] %v2140
  %2397 = vst [vmem:[%s2 + $0x308] sm:$0xf] %v2141
  %2398 = vst [vmem:[%s2 + $0x30c] sm:$0xf] %v2142
  %2399 = vst [vmem:[%s2 + $0x310] sm:$0xf] %v2143
  %2400 = vst [vmem:[%s2 + $0x314] sm:$0xf] %v2144
  %2401 = vst [vmem:[%s2 + $0x318] sm:$0xf] %v2145
  %2402 = vst [vmem:[%s2 + $0x31c] sm:$0xf] %v2146
  %2403 = vst [vmem:[%s2 + $0x320] sm:$0xf] %v2147
  %2404 = vst [vmem:[%s2 + $0x324] sm:$0xf] %v2148
  %2405 = vst [vmem:[%s2 + $0x328] sm:$0xf] %v2149
  %2406 = vst [vmem:[%s2 + $0x32c] sm:$0xf] %v2150
  %2407 = vst [vmem:[%s2 + $0x330] sm:$0xf] %v2151
  %2408 = vst [vmem:[%s2 + $0x334] sm:$0xf] %v2152
  %2409 = vst [vmem:[%s2 + $0x338] sm:$0xf] %v2153
  %2410 = vst [vmem:[%s2 + $0x33c] sm:$0xf] %v2154
  %2411 = vst [vmem:[%s2 + $0x340] sm:$0xf] %v2155
  %2412 = vst [vmem:[%s2 + $0x344] sm:$0xf] %v2156
  %2413 = vst [vmem:[%s2 + $0x348] sm:$0xf] %v2157
  %2414 = vst [vmem:[%s2 + $0x34c] sm:$0xf] %v2158
  %2415 = vst [vmem:[%s2 + $0x350] sm:$0xf] %v2159
  %2416 = vst [vmem:[%s2 + $0x354] sm:$0xf] %v2160
  %2417 = vst [vmem:[%s2 + $0x358] sm:$0xf] %v2161
  %2418 = vst [vmem:[%s2 + $0x35c] sm:$0xf] %v2162
  %2419 = vst [vmem:[%s2 + $0x360] sm:$0xf] %v2163
  %2420 = vst [vmem:[%s2 + $0x364] sm:$0xf] %v2164
  %2421 = vst [vmem:[%s2 + $0x368] sm:$0xf] %v2165
  %2422 = vst [vmem:[%s2 + $0x36c] sm:$0xf] %v2166
  %2423 = vst [vmem:[%s2 + $0x370] sm:$0xf] %v2167
  %2424 = vst [vmem:[%s2 + $0x374] sm:$0xf] %v2168
  %2425 = vst [vmem:[%s2 + $0x378] sm:$0xf] %v2169
  %2426 = vst [vmem:[%s2 + $0x37c] sm:$0xf] %v2170
  %2427 = vst [vmem:[%s2 + $0x380] sm:$0xf] %v2171
  %2428 = vst [vmem:[%s2 + $0x384] sm:$0xf] %v2172
  %2429 = vst [vmem:[%s2 + $0x388] sm:$0xf] %v2173
  %2430 = vst [vmem:[%s2 + $0x38c] sm:$0xf] %v2174
  %2431 = vst [vmem:[%s2 + $0x390] sm:$0xf] %v2175
  %2432 = vst [vmem:[%s2 + $0x394] sm:$0xf] %v2176
  %2433 = vst [vmem:[%s2 + $0x398] sm:$0xf] %v2177
  %2434 = vst [vmem:[%s2 + $0x39c] sm:$0xf] %v2178
  %2435 = vst [vmem:[%s2 + $0x3a0] sm:$0xf] %v2179
  %2436 = vst [vmem:[%s2 + $0x3a4] sm:$0xf] %v2180
  %2437 = vst [vmem:[%s2 + $0x3a8] sm:$0xf] %v2181
  %2438 = vst [vmem:[%s2 + $0x3ac] sm:$0xf] %v2182
  %2439 = vst [vmem:[%s2 + $0x3b0] sm:$0xf] %v2183
  %2440 = vst [vmem:[%s2 + $0x3b4] sm:$0xf] %v2184
  %2441 = vst [vmem:[%s2 + $0x3b8] sm:$0xf] %v2185
  %2442 = vst [vmem:[%s2 + $0x3bc] sm:$0xf] %v2186
  %2443 = vst [vmem:[%s2 + $0x3c0] sm:$0xf] %v2187
  %2444 = vst [vmem:[%s2 + $0x3c4] sm:$0xf] %v2188
  %2445 = vst [vmem:[%s2 + $0x3c8] sm:$0xf] %v2189
  %2446 = vst [vmem:[%s2 + $0x3cc] sm:$0xf] %v2190
  %2447 = vst [vmem:[%s2 + $0x3d0] sm:$0xf] %v2191
  %2448 = vst [vmem:[%s2 + $0x3d4] sm:$0xf] %v2192
  %2449 = vst [vmem:[%s2 + $0x3d8] sm:$0xf] %v2193
  %2450 = vst [vmem:[%s2 + $0x3dc] sm:$0xf] %v2194
  %2451 = vst [vmem:[%s2 + $0x3e0] sm:$0xf] %v2195
  %2452 = vst [vmem:[%s2 + $0x3e4] sm:$0xf] %v2196
  %2453 = vst [vmem:[%s2 + $0x3e8] sm:$0xf] %v2197
  %2454 = vst [vmem:[%s2 + $0x3ec] sm:$0xf] %v2198
  %2455 = vst [vmem:[%s2 + $0x3f0] sm:$0xf] %v2199
  %2456 = vst [vmem:[%s2 + $0x3f4] sm:$0xf] %v2200
  %2457 = vst [vmem:[%s2 + $0x3f8] sm:$0xf] %v2201
  %2458 = vst [vmem:[%s2 + $0x3fc] sm:$0xf] %v2202
  // Predicated region
  $region10: #{decoder_forward.19} parent=0 // pred_check
    _
  $region11: #{decoder_forward.19} parent=0 // pred_check_branch
    %2460 = sbr.rel (0) target = $region13
  $region12: #{decoder_forward.19} parent=0 // pred_region
    _
  $region13: #{decoder_forward.19} parent=0 // pred_fallthru
    _
  // Predicated region
  $region14: #{decoder_forward.19} parent=0 // pred_check
    _
  $region15: #{decoder_forward.19} parent=0 // pred_check_branch
    %2462 = sbr.rel (0) target = $region17
  $region16: #{decoder_forward.19} parent=0 // pred_region
    _
  $region17: #{decoder_forward.19} parent=0 // pred_fallthru
    _

// kernel: decoder_forward.20
$region0: #{decoder_forward.20}
  #allocation0 [shape = 'u32[]', space=smem, size = 0x4, offset = 0x4, fixed_abs, tag = 'smem constant byte address 0x4 - core index']
  #allocation1 [shape = 'u32[72,128]{1,0:T(1,128)}', space=vmem, size = 0x9000, scoped, tag = 'internal scratch']
  %s0 = inlined_call_operand.vmem [shape: bf16[8192,8], index: 0, kind: input, shape index: {}]
  %s1 = inlined_call_operand.vmem [shape: bf16[8,128], index: 1, kind: input, shape index: {}]
  %s2 = inlined_call_operand.vmem [shape: bf16[8192,128], index: 2, kind: output, shape index: {}]
  %s3 = sld [smem:[#allocation0]]
  $region41: #{decoder_forward.20} parent=0
    _
  %s5 = ssub.s32 1, %s3
  %s6 = scalar_select 0, %s5, %s3
  loop: start=0, step=1, limit=6
  $region2: #{decoder_forward.20} parent=0 // loop_pre_header
    _
  $region3: #{decoder_forward.20} parent=0 // loop_header
    %s8 = sphi 0, %s12
    %p9 = scmp.ge.s32.totalorder %s8, 6
    %s18 = sphi 0, %s20
    %s21 = sphi 0, %s18
    %s22 = sphi 0, %s21
    %s38 = sphi 0, %s22
    %s42 = sphi 0, %s42
    %s44 = sphi 0, %s42
    %s45 = sphi 0, %s44
    %s59 = sphi 0, %s45
    %s65 = sphi 0, %s67
    %s68 = sphi 0, %s65
    %s69 = sphi 0, %s68
    %s85 = sphi 0, %s69
  $region4: #{decoder_forward.20} parent=0 // loop_header_branch
    %11 = sbr.rel (%p9) target = $region8
  $region5: #{decoder_forward.20} parent=0 // loop_body
    %s13 = ssub.s32 %s8, 1
    %s14 = ssub.s32 %s8, 2
    %s15 = sadd.s32 %s8, 1
    %s16 = ssub.s32 %s8, %s15
    %p17 = scmp.eq.s32.totalorder %s16, 0
    %s19 = sadd.s32 %s18, 1
    %s20 = scalar_select %p17, %s18, %s19
    %p23 = pneg %p17
    %p24 = scmp.eq.s32.totalorder %s8, 3
    %p25 = por %p23, %p24
    %p26 = scmp.ne.s32.totalorder %s18, %s21
    %p27 = scmp.eq.s32.totalorder %s8, 0
    %p28 = por %p26, %p27
    %p29 = scmp.ne.s32.totalorder %s18, %s21
    %p30 = scmp.eq.s32.totalorder %s13, 3
    %p31 = por %p29, %p30
    %p32 = scmp.ne.s32.totalorder %s21, %s22
    %p33 = scmp.eq.s32.totalorder %s13, 0
    %p34 = por %p32, %p33
    %p35 = scmp.ne.s32.totalorder %s21, %s22
    %p36 = scmp.eq.s32.totalorder %s14, 3
    %p37 = por %p35, %p36
    %p39 = scmp.ne.s32.totalorder %s22, %s38
    %p40 = scmp.eq.s32.totalorder %s14, 0
    %p41 = por %p39, %p40
    %s43 = sadd.s32 %s42, 1
    %p46 = scmp.eq.s32.totalorder %s8, 3
    %p47 = scmp.ne.s32.totalorder %s42, %s44
    %p48 = scmp.eq.s32.totalorder %s8, 0
    %p49 = por %p47, %p48
    %p50 = scmp.ne.s32.totalorder %s42, %s44
    %p51 = scmp.eq.s32.totalorder %s13, 3
    %p52 = por %p50, %p51
    %p53 = scmp.ne.s32.totalorder %s44, %s45
    %p54 = scmp.eq.s32.totalorder %s13, 0
    %p55 = por %p53, %p54
    %p56 = scmp.ne.s32.totalorder %s44, %s45
    %p57 = scmp.eq.s32.totalorder %s14, 3
    %p58 = por %p56, %p57
    %p60 = scmp.ne.s32.totalorder %s45, %s59
    %p61 = scmp.eq.s32.totalorder %s14, 0
    %p62 = por %p60, %p61
    %s63 = ssub.s32 %s8, %s15
    %p64 = scmp.eq.s32.totalorder %s63, 0
    %s66 = sadd.s32 %s65, 1
    %s67 = scalar_select %p64, %s65, %s66
    %p70 = pneg %p64
    %p71 = scmp.eq.s32.totalorder %s8, 3
    %p72 = por %p70, %p71
    %p73 = scmp.ne.s32.totalorder %s65, %s68
    %p74 = scmp.eq.s32.totalorder %s8, 0
    %p75 = por %p73, %p74
    %p76 = scmp.ne.s32.totalorder %s65, %s68
    %p77 = scmp.eq.s32.totalorder %s13, 3
    %p78 = por %p76, %p77
    %p79 = scmp.ne.s32.totalorder %s68, %s69
    %p80 = scmp.eq.s32.totalorder %s13, 0
    %p81 = por %p79, %p80
    %p82 = scmp.ne.s32.totalorder %s68, %s69
    %p83 = scmp.eq.s32.totalorder %s14, 3
    %p84 = por %p82, %p83
    %p86 = scmp.ne.s32.totalorder %s69, %s85
    %p87 = scmp.eq.s32.totalorder %s14, 0
    %p88 = por %p86, %p87
    %p89 = scmp.le.s32.totalorder 1, %s8
    %p90 = scmp.lt.s32.totalorder %s8, 5
    %p91 = pnand %p89, %p90
    %p92 = pneg %p91
    // Predicated region
    $region9: #{decoder_forward.20} parent=5 // pred_check
      _
    $region10: #{decoder_forward.20} parent=5 // pred_check_branch
      %94 = sbr.rel (%p91) target = $region12
    $region11: #{decoder_forward.20} parent=5 // pred_region
      %s95 = ssub.s32 %s8, 1
      // Predicated region
      $region13: #{decoder_forward.20} parent=11 // pred_check
        %p96 = pneg %p55
      $region14: #{decoder_forward.20} parent=11 // pred_check_branch
        %98 = sbr.rel (%p96) target = $region16
      $region15: #{decoder_forward.20} parent=11 // pred_region
        _
      $region16: #{decoder_forward.20} parent=11 // pred_fallthru
        _
    $region12: #{decoder_forward.20} parent=5 // pred_fallthru
      _
    %p99 = scmp.lt.s32.totalorder %s8, 4
    // Predicated region
    $region17: #{decoder_forward.20} parent=5 // pred_check
      %p100 = pneg %p99
    $region18: #{decoder_forward.20} parent=5 // pred_check_branch
      %102 = sbr.rel (%p100) target = $region20
    $region19: #{decoder_forward.20} parent=5 // pred_region
      // Predicated region
      $region21: #{decoder_forward.20} parent=19 // pred_check
        %p103 = pneg %p28
      $region22: #{decoder_forward.20} parent=19 // pred_check_branch
        %105 = sbr.rel (%p103) target = $region24
      $region23: #{decoder_forward.20} parent=19 // pred_region
        %s106 = smul.u32 256, %s8
        %p107 = scmp.lt.s32.totalorder %s106, 1023
        %s108 = scalar_select %p107, %s106, 1023
        %s109 = smul.addr %s108, 4
        %s110 = scalar_lea.vmem %s0, %s109
        %s111 = smul.u32 256, %s8
      $region24: #{decoder_forward.20} parent=19 // pred_fallthru
        _
    $region20: #{decoder_forward.20} parent=5 // pred_fallthru
      _
    %p112 = scmp.le.s32.totalorder 1, %s8
    %p113 = scmp.lt.s32.totalorder %s8, 5
    %p114 = pnand %p112, %p113
    %p115 = pneg %p114
    // Predicated region
    $region25: #{decoder_forward.20} parent=5 // pred_check
      _
    $region26: #{decoder_forward.20} parent=5 // pred_check_branch
      %117 = sbr.rel (%p114) target = $region28
    $region27: #{decoder_forward.20} parent=5 // pred_region
      %s118 = ssub.s32 %s8, 1
      %s119 = smul.u32 256, %s13
      %p120 = scmp.lt.s32.totalorder %s119, 1023
      %s121 = scalar_select %p120, %s119, 1023
      %s122 = smul.addr %s121, 4
      %s123 = scalar_lea.vmem %s0, %s122
      %p124 = pneg %p34
      %p125 = pneg %p31
      %p126 = pneg %p55
      %p127 = pneg %p52
      %p128 = pneg %p81
      %p129 = pneg %p78
      %s130 = smul.u32 256, %s13
      %p131 = scmp.lt.s32.totalorder %s130, 1023
      %s132 = scalar_select %p131, %s130, 1023
      %s133 = smul.addr %s132, 4
      %s134 = scalar_lea.vmem %s2, %s133
      %s135 = smul.u32 256, %s13
      %p136 = scmp.lt.s32.totalorder %s135, 1023
      %s137 = scalar_select %p136, %s135, 1023
      %s138 = smul.addr %s137, 4
      %s139 = scalar_lea.vmem %s0, %s138
      %s140 = smul.u32 256, %s13
      %s141 = smul.u32 256, %s13
      %p142 = scmp.lt.s32.totalorder %s141, 1023
      %s143 = scalar_select %p142, %s141, 1023
      %s144 = smul.addr %s143, 4
      %s145 = scalar_lea.vmem %s2, %s144
      %s146 = smul.u32 256, %s13
      %v148 = vld [vmem:[%s139] sm:$0xf]
      %v149 = vld [vmem:[%s139 + $0x4] sm:$0xf]
      %v150 = vld [vmem:[%s139 + $0x8] sm:$0xf]
      %v151 = vld [vmem:[%s139 + $0xc] sm:$0xf]
      %v152 = vld [vmem:[%s139 + $0x10] sm:$0xf]
      %v153 = vld [vmem:[%s139 + $0x14] sm:$0xf]
      %v154 = vld [vmem:[%s139 + $0x18] sm:$0xf]
      %v155 = vld [vmem:[%s139 + $0x1c] sm:$0xf]
      %v156 = vld [vmem:[%s139 + $0x20] sm:$0xf]
      %v157 = vld [vmem:[%s139 + $0x24] sm:$0xf]
      %v158 = vld [vmem:[%s139 + $0x28] sm:$0xf]
      %v159 = vld [vmem:[%s139 + $0x2c] sm:$0xf]
      %v160 = vld [vmem:[%s139 + $0x30] sm:$0xf]
      %v161 = vld [vmem:[%s139 + $0x34] sm:$0xf]
      %v162 = vld [vmem:[%s139 + $0x38] sm:$0xf]
      %v163 = vld [vmem:[%s139 + $0x3c] sm:$0xf]
      %v164 = vld [vmem:[%s139 + $0x40] sm:$0xf]
      %v165 = vld [vmem:[%s139 + $0x44] sm:$0xf]
      %v166 = vld [vmem:[%s139 + $0x48] sm:$0xf]
      %v167 = vld [vmem:[%s139 + $0x4c] sm:$0xf]
      %v168 = vld [vmem:[%s139 + $0x50] sm:$0xf]
      %v169 = vld [vmem:[%s139 + $0x54] sm:$0xf]
      %v170 = vld [vmem:[%s139 + $0x58] sm:$0xf]
      %v171 = vld [vmem:[%s139 + $0x5c] sm:$0xf]
      %v172 = vld [vmem:[%s139 + $0x60] sm:$0xf]
      %v173 = vld [vmem:[%s139 + $0x64] sm:$0xf]
      %v174 = vld [vmem:[%s139 + $0x68] sm:$0xf]
      %v175 = vld [vmem:[%s139 + $0x6c] sm:$0xf]
      %v176 = vld [vmem:[%s139 + $0x70] sm:$0xf]
      %v177 = vld [vmem:[%s139 + $0x74] sm:$0xf]
      %v178 = vld [vmem:[%s139 + $0x78] sm:$0xf]
      %v179 = vld [vmem:[%s139 + $0x7c] sm:$0xf]
      %v180 = vld [vmem:[%s139 + $0x80] sm:$0xf]
      %v181 = vld [vmem:[%s139 + $0x84] sm:$0xf]
      %v182 = vld [vmem:[%s139 + $0x88] sm:$0xf]
      %v183 = vld [vmem:[%s139 + $0x8c] sm:$0xf]
      %v184 = vld [vmem:[%s139 + $0x90] sm:$0xf]
      %v185 = vld [vmem:[%s139 + $0x94] sm:$0xf]
      %v186 = vld [vmem:[%s139 + $0x98] sm:$0xf]
      %v187 = vld [vmem:[%s139 + $0x9c] sm:$0xf]
      %v188 = vld [vmem:[%s139 + $0xa0] sm:$0xf]
      %v189 = vld [vmem:[%s139 + $0xa4] sm:$0xf]
      %v190 = vld [vmem:[%s139 + $0xa8] sm:$0xf]
      %v191 = vld [vmem:[%s139 + $0xac] sm:$0xf]
      %v192 = vld [vmem:[%s139 + $0xb0] sm:$0xf]
      %v193 = vld [vmem:[%s139 + $0xb4] sm:$0xf]
      %v194 = vld [vmem:[%s139 + $0xb8] sm:$0xf]
      %v195 = vld [vmem:[%s139 + $0xbc] sm:$0xf]
      %v196 = vld [vmem:[%s139 + $0xc0] sm:$0xf]
      %v197 = vld [vmem:[%s139 + $0xc4] sm:$0xf]
      %v198 = vld [vmem:[%s139 + $0xc8] sm:$0xf]
      %v199 = vld [vmem:[%s139 + $0xcc] sm:$0xf]
      %v200 = vld [vmem:[%s139 + $0xd0] sm:$0xf]
      %v201 = vld [vmem:[%s139 + $0xd4] sm:$0xf]
      %v202 = vld [vmem:[%s139 + $0xd8] sm:$0xf]
      %v203 = vld [vmem:[%s139 + $0xdc] sm:$0xf]
      %v204 = vld [vmem:[%s139 + $0xe0] sm:$0xf]
      %v205 = vld [vmem:[%s139 + $0xe4] sm:$0xf]
      %v206 = vld [vmem:[%s139 + $0xe8] sm:$0xf]
      %v207 = vld [vmem:[%s139 + $0xec] sm:$0xf]
      %v208 = vld [vmem:[%s139 + $0xf0] sm:$0xf]
      %v209 = vld [vmem:[%s139 + $0xf4] sm:$0xf]
      %v210 = vld [vmem:[%s139 + $0xf8] sm:$0xf]
      %v211 = vld [vmem:[%s139 + $0xfc] sm:$0xf]
      %v212 = vld [vmem:[%s139 + $0x100] sm:$0xf]
      %v213 = vld [vmem:[%s139 + $0x104] sm:$0xf]
      %v214 = vld [vmem:[%s139 + $0x108] sm:$0xf]
      %v215 = vld [vmem:[%s139 + $0x10c] sm:$0xf]
      %v216 = vld [vmem:[%s139 + $0x110] sm:$0xf]
      %v217 = vld [vmem:[%s139 + $0x114] sm:$0xf]
      %v218 = vld [vmem:[%s139 + $0x118] sm:$0xf]
      %v219 = vld [vmem:[%s139 + $0x11c] sm:$0xf]
      %v220 = vld [vmem:[%s139 + $0x120] sm:$0xf]
      %v221 = vld [vmem:[%s139 + $0x124] sm:$0xf]
      %v222 = vld [vmem:[%s139 + $0x128] sm:$0xf]
      %v223 = vld [vmem:[%s139 + $0x12c] sm:$0xf]
      %v224 = vld [vmem:[%s139 + $0x130] sm:$0xf]
      %v225 = vld [vmem:[%s139 + $0x134] sm:$0xf]
      %v226 = vld [vmem:[%s139 + $0x138] sm:$0xf]
      %v227 = vld [vmem:[%s139 + $0x13c] sm:$0xf]
      %v228 = vld [vmem:[%s139 + $0x140] sm:$0xf]
      %v229 = vld [vmem:[%s139 + $0x144] sm:$0xf]
      %v230 = vld [vmem:[%s139 + $0x148] sm:$0xf]
      %v231 = vld [vmem:[%s139 + $0x14c] sm:$0xf]
      %v232 = vld [vmem:[%s139 + $0x150] sm:$0xf]
      %v233 = vld [vmem:[%s139 + $0x154] sm:$0xf]
      %v234 = vld [vmem:[%s139 + $0x158] sm:$0xf]
      %v235 = vld [vmem:[%s139 + $0x15c] sm:$0xf]
      %v236 = vld [vmem:[%s139 + $0x160] sm:$0xf]
      %v237 = vld [vmem:[%s139 + $0x164] sm:$0xf]
      %v238 = vld [vmem:[%s139 + $0x168] sm:$0xf]
      %v239 = vld [vmem:[%s139 + $0x16c] sm:$0xf]
      %v240 = vld [vmem:[%s139 + $0x170] sm:$0xf]
      %v241 = vld [vmem:[%s139 + $0x174] sm:$0xf]
      %v242 = vld [vmem:[%s139 + $0x178] sm:$0xf]
      %v243 = vld [vmem:[%s139 + $0x17c] sm:$0xf]
      %v244 = vld [vmem:[%s139 + $0x180] sm:$0xf]
      %v245 = vld [vmem:[%s139 + $0x184] sm:$0xf]
      %v246 = vld [vmem:[%s139 + $0x188] sm:$0xf]
      %v247 = vld [vmem:[%s139 + $0x18c] sm:$0xf]
      %v248 = vld [vmem:[%s139 + $0x190] sm:$0xf]
      %v249 = vld [vmem:[%s139 + $0x194] sm:$0xf]
      %v250 = vld [vmem:[%s139 + $0x198] sm:$0xf]
      %v251 = vld [vmem:[%s139 + $0x19c] sm:$0xf]
      %v252 = vld [vmem:[%s139 + $0x1a0] sm:$0xf]
      %v253 = vld [vmem:[%s139 + $0x1a4] sm:$0xf]
      %v254 = vld [vmem:[%s139 + $0x1a8] sm:$0xf]
      %v255 = vld [vmem:[%s139 + $0x1ac] sm:$0xf]
      %v256 = vld [vmem:[%s139 + $0x1b0] sm:$0xf]
      %v257 = vld [vmem:[%s139 + $0x1b4] sm:$0xf]
      %v258 = vld [vmem:[%s139 + $0x1b8] sm:$0xf]
      %v259 = vld [vmem:[%s139 + $0x1bc] sm:$0xf]
      %v260 = vld [vmem:[%s139 + $0x1c0] sm:$0xf]
      %v261 = vld [vmem:[%s139 + $0x1c4] sm:$0xf]
      %v262 = vld [vmem:[%s139 + $0x1c8] sm:$0xf]
      %v263 = vld [vmem:[%s139 + $0x1cc] sm:$0xf]
      %v264 = vld [vmem:[%s139 + $0x1d0] sm:$0xf]
      %v265 = vld [vmem:[%s139 + $0x1d4] sm:$0xf]
      %v266 = vld [vmem:[%s139 + $0x1d8] sm:$0xf]
      %v267 = vld [vmem:[%s139 + $0x1dc] sm:$0xf]
      %v268 = vld [vmem:[%s139 + $0x1e0] sm:$0xf]
      %v269 = vld [vmem:[%s139 + $0x1e4] sm:$0xf]
      %v270 = vld [vmem:[%s139 + $0x1e8] sm:$0xf]
      %v271 = vld [vmem:[%s139 + $0x1ec] sm:$0xf]
      %v272 = vld [vmem:[%s139 + $0x1f0] sm:$0xf]
      %v273 = vld [vmem:[%s139 + $0x1f4] sm:$0xf]
      %v274 = vld [vmem:[%s139 + $0x1f8] sm:$0xf]
      %v275 = vld [vmem:[%s139 + $0x1fc] sm:$0xf]
      %v276 = vld [vmem:[%s139 + $0x200] sm:$0xf]
      %v277 = vld [vmem:[%s139 + $0x204] sm:$0xf]
      %v278 = vld [vmem:[%s139 + $0x208] sm:$0xf]
      %v279 = vld [vmem:[%s139 + $0x20c] sm:$0xf]
      %v280 = vld [vmem:[%s139 + $0x210] sm:$0xf]
      %v281 = vld [vmem:[%s139 + $0x214] sm:$0xf]
      %v282 = vld [vmem:[%s139 + $0x218] sm:$0xf]
      %v283 = vld [vmem:[%s139 + $0x21c] sm:$0xf]
      %v284 = vld [vmem:[%s139 + $0x220] sm:$0xf]
      %v285 = vld [vmem:[%s139 + $0x224] sm:$0xf]
      %v286 = vld [vmem:[%s139 + $0x228] sm:$0xf]
      %v287 = vld [vmem:[%s139 + $0x22c] sm:$0xf]
      %v288 = vld [vmem:[%s139 + $0x230] sm:$0xf]
      %v289 = vld [vmem:[%s139 + $0x234] sm:$0xf]
      %v290 = vld [vmem:[%s139 + $0x238] sm:$0xf]
      %v291 = vld [vmem:[%s139 + $0x23c] sm:$0xf]
      %v292 = vld [vmem:[%s139 + $0x240] sm:$0xf]
      %v293 = vld [vmem:[%s139 + $0x244] sm:$0xf]
      %v294 = vld [vmem:[%s139 + $0x248] sm:$0xf]
      %v295 = vld [vmem:[%s139 + $0x24c] sm:$0xf]
      %v296 = vld [vmem:[%s139 + $0x250] sm:$0xf]
      %v297 = vld [vmem:[%s139 + $0x254] sm:$0xf]
      %v298 = vld [vmem:[%s139 + $0x258] sm:$0xf]
      %v299 = vld [vmem:[%s139 + $0x25c] sm:$0xf]
      %v300 = vld [vmem:[%s139 + $0x260] sm:$0xf]
      %v301 = vld [vmem:[%s139 + $0x264] sm:$0xf]
      %v302 = vld [vmem:[%s139 + $0x268] sm:$0xf]
      %v303 = vld [vmem:[%s139 + $0x26c] sm:$0xf]
      %v304 = vld [vmem:[%s139 + $0x270] sm:$0xf]
      %v305 = vld [vmem:[%s139 + $0x274] sm:$0xf]
      %v306 = vld [vmem:[%s139 + $0x278] sm:$0xf]
      %v307 = vld [vmem:[%s139 + $0x27c] sm:$0xf]
      %v308 = vld [vmem:[%s139 + $0x280] sm:$0xf]
      %v309 = vld [vmem:[%s139 + $0x284] sm:$0xf]
      %v310 = vld [vmem:[%s139 + $0x288] sm:$0xf]
      %v311 = vld [vmem:[%s139 + $0x28c] sm:$0xf]
      %v312 = vld [vmem:[%s139 + $0x290] sm:$0xf]
      %v313 = vld [vmem:[%s139 + $0x294] sm:$0xf]
      %v314 = vld [vmem:[%s139 + $0x298] sm:$0xf]
      %v315 = vld [vmem:[%s139 + $0x29c] sm:$0xf]
      %v316 = vld [vmem:[%s139 + $0x2a0] sm:$0xf]
      %v317 = vld [vmem:[%s139 + $0x2a4] sm:$0xf]
      %v318 = vld [vmem:[%s139 + $0x2a8] sm:$0xf]
      %v319 = vld [vmem:[%s139 + $0x2ac] sm:$0xf]
      %v320 = vld [vmem:[%s139 + $0x2b0] sm:$0xf]
      %v321 = vld [vmem:[%s139 + $0x2b4] sm:$0xf]
      %v322 = vld [vmem:[%s139 + $0x2b8] sm:$0xf]
      %v323 = vld [vmem:[%s139 + $0x2bc] sm:$0xf]
      %v324 = vld [vmem:[%s139 + $0x2c0] sm:$0xf]
      %v325 = vld [vmem:[%s139 + $0x2c4] sm:$0xf]
      %v326 = vld [vmem:[%s139 + $0x2c8] sm:$0xf]
      %v327 = vld [vmem:[%s139 + $0x2cc] sm:$0xf]
      %v328 = vld [vmem:[%s139 + $0x2d0] sm:$0xf]
      %v329 = vld [vmem:[%s139 + $0x2d4] sm:$0xf]
      %v330 = vld [vmem:[%s139 + $0x2d8] sm:$0xf]
      %v331 = vld [vmem:[%s139 + $0x2dc] sm:$0xf]
      %v332 = vld [vmem:[%s139 + $0x2e0] sm:$0xf]
      %v333 = vld [vmem:[%s139 + $0x2e4] sm:$0xf]
      %v334 = vld [vmem:[%s139 + $0x2e8] sm:$0xf]
      %v335 = vld [vmem:[%s139 + $0x2ec] sm:$0xf]
      %v336 = vld [vmem:[%s139 + $0x2f0] sm:$0xf]
      %v337 = vld [vmem:[%s139 + $0x2f4] sm:$0xf]
      %v338 = vld [vmem:[%s139 + $0x2f8] sm:$0xf]
      %v339 = vld [vmem:[%s139 + $0x2fc] sm:$0xf]
      %v340 = vld [vmem:[%s139 + $0x300] sm:$0xf]
      %v341 = vld [vmem:[%s139 + $0x304] sm:$0xf]
      %v342 = vld [vmem:[%s139 + $0x308] sm:$0xf]
      %v343 = vld [vmem:[%s139 + $0x30c] sm:$0xf]
      %v344 = vld [vmem:[%s139 + $0x310] sm:$0xf]
      %v345 = vld [vmem:[%s139 + $0x314] sm:$0xf]
      %v346 = vld [vmem:[%s139 + $0x318] sm:$0xf]
      %v347 = vld [vmem:[%s139 + $0x31c] sm:$0xf]
      %v348 = vld [vmem:[%s139 + $0x320] sm:$0xf]
      %v349 = vld [vmem:[%s139 + $0x324] sm:$0xf]
      %v350 = vld [vmem:[%s139 + $0x328] sm:$0xf]
      %v351 = vld [vmem:[%s139 + $0x32c] sm:$0xf]
      %v352 = vld [vmem:[%s139 + $0x330] sm:$0xf]
      %v353 = vld [vmem:[%s139 + $0x334] sm:$0xf]
      %v354 = vld [vmem:[%s139 + $0x338] sm:$0xf]
      %v355 = vld [vmem:[%s139 + $0x33c] sm:$0xf]
      %v356 = vld [vmem:[%s139 + $0x340] sm:$0xf]
      %v357 = vld [vmem:[%s139 + $0x344] sm:$0xf]
      %v358 = vld [vmem:[%s139 + $0x348] sm:$0xf]
      %v359 = vld [vmem:[%s139 + $0x34c] sm:$0xf]
      %v360 = vld [vmem:[%s139 + $0x350] sm:$0xf]
      %v361 = vld [vmem:[%s139 + $0x354] sm:$0xf]
      %v362 = vld [vmem:[%s139 + $0x358] sm:$0xf]
      %v363 = vld [vmem:[%s139 + $0x35c] sm:$0xf]
      %v364 = vld [vmem:[%s139 + $0x360] sm:$0xf]
      %v365 = vld [vmem:[%s139 + $0x364] sm:$0xf]
      %v366 = vld [vmem:[%s139 + $0x368] sm:$0xf]
      %v367 = vld [vmem:[%s139 + $0x36c] sm:$0xf]
      %v368 = vld [vmem:[%s139 + $0x370] sm:$0xf]
      %v369 = vld [vmem:[%s139 + $0x374] sm:$0xf]
      %v370 = vld [vmem:[%s139 + $0x378] sm:$0xf]
      %v371 = vld [vmem:[%s139 + $0x37c] sm:$0xf]
      %v372 = vld [vmem:[%s139 + $0x380] sm:$0xf]
      %v373 = vld [vmem:[%s139 + $0x384] sm:$0xf]
      %v374 = vld [vmem:[%s139 + $0x388] sm:$0xf]
      %v375 = vld [vmem:[%s139 + $0x38c] sm:$0xf]
      %v376 = vld [vmem:[%s139 + $0x390] sm:$0xf]
      %v377 = vld [vmem:[%s139 + $0x394] sm:$0xf]
      %v378 = vld [vmem:[%s139 + $0x398] sm:$0xf]
      %v379 = vld [vmem:[%s139 + $0x39c] sm:$0xf]
      %v380 = vld [vmem:[%s139 + $0x3a0] sm:$0xf]
      %v381 = vld [vmem:[%s139 + $0x3a4] sm:$0xf]
      %v382 = vld [vmem:[%s139 + $0x3a8] sm:$0xf]
      %v383 = vld [vmem:[%s139 + $0x3ac] sm:$0xf]
      %v384 = vld [vmem:[%s139 + $0x3b0] sm:$0xf]
      %v385 = vld [vmem:[%s139 + $0x3b4] sm:$0xf]
      %v386 = vld [vmem:[%s139 + $0x3b8] sm:$0xf]
      %v387 = vld [vmem:[%s139 + $0x3bc] sm:$0xf]
      %v388 = vld [vmem:[%s139 + $0x3c0] sm:$0xf]
      %v389 = vld [vmem:[%s139 + $0x3c4] sm:$0xf]
      %v390 = vld [vmem:[%s139 + $0x3c8] sm:$0xf]
      %v391 = vld [vmem:[%s139 + $0x3cc] sm:$0xf]
      %v392 = vld [vmem:[%s139 + $0x3d0] sm:$0xf]
      %v393 = vld [vmem:[%s139 + $0x3d4] sm:$0xf]
      %v394 = vld [vmem:[%s139 + $0x3d8] sm:$0xf]
      %v395 = vld [vmem:[%s139 + $0x3dc] sm:$0xf]
      %v396 = vld [vmem:[%s139 + $0x3e0] sm:$0xf]
      %v397 = vld [vmem:[%s139 + $0x3e4] sm:$0xf]
      %v398 = vld [vmem:[%s139 + $0x3e8] sm:$0xf]
      %v399 = vld [vmem:[%s139 + $0x3ec] sm:$0xf]
      %v400 = vld [vmem:[%s139 + $0x3f0] sm:$0xf]
      %v401 = vld [vmem:[%s139 + $0x3f4] sm:$0xf]
      %v402 = vld [vmem:[%s139 + $0x3f8] sm:$0xf]
      %v403 = vld [vmem:[%s139 + $0x3fc] sm:$0xf]
      %v404 = vld [vmem:[%s1] sm:$0xf]
      %v661 = vunpack.c.l.b16 %v148
      %v662 = vunpack.c.l.b16 %v149
      %v663 = vunpack.c.l.b16 %v150
      %v664 = vunpack.c.l.b16 %v151
      %v665 = vunpack.c.l.b16 %v152
      %v666 = vunpack.c.l.b16 %v153
      %v667 = vunpack.c.l.b16 %v154
      %v668 = vunpack.c.l.b16 %v155
      %v669 = vunpack.c.l.b16 %v156
      %v670 = vunpack.c.l.b16 %v157
      %v671 = vunpack.c.l.b16 %v158
      %v672 = vunpack.c.l.b16 %v159
      %v673 = vunpack.c.l.b16 %v160
      %v674 = vunpack.c.l.b16 %v161
      %v675 = vunpack.c.l.b16 %v162
      %v676 = vunpack.c.l.b16 %v163
      %v677 = vunpack.c.l.b16 %v164
      %v678 = vunpack.c.l.b16 %v165
      %v679 = vunpack.c.l.b16 %v166
      %v680 = vunpack.c.l.b16 %v167
      %v681 = vunpack.c.l.b16 %v168
      %v682 = vunpack.c.l.b16 %v169
      %v683 = vunpack.c.l.b16 %v170
      %v684 = vunpack.c.l.b16 %v171
      %v685 = vunpack.c.l.b16 %v172
      %v686 = vunpack.c.l.b16 %v173
      %v687 = vunpack.c.l.b16 %v174
      %v688 = vunpack.c.l.b16 %v175
      %v689 = vunpack.c.l.b16 %v176
      %v690 = vunpack.c.l.b16 %v177
      %v691 = vunpack.c.l.b16 %v178
      %v692 = vunpack.c.l.b16 %v179
      %v693 = vunpack.c.l.b16 %v180
      %v694 = vunpack.c.l.b16 %v181
      %v695 = vunpack.c.l.b16 %v182
      %v696 = vunpack.c.l.b16 %v183
      %v697 = vunpack.c.l.b16 %v184
      %v698 = vunpack.c.l.b16 %v185
      %v699 = vunpack.c.l.b16 %v186
      %v700 = vunpack.c.l.b16 %v187
      %v701 = vunpack.c.l.b16 %v188
      %v702 = vunpack.c.l.b16 %v189
      %v703 = vunpack.c.l.b16 %v190
      %v704 = vunpack.c.l.b16 %v191
      %v705 = vunpack.c.l.b16 %v192
      %v706 = vunpack.c.l.b16 %v193
      %v707 = vunpack.c.l.b16 %v194
      %v708 = vunpack.c.l.b16 %v195
      %v709 = vunpack.c.l.b16 %v196
      %v710 = vunpack.c.l.b16 %v197
      %v711 = vunpack.c.l.b16 %v198
      %v712 = vunpack.c.l.b16 %v199
      %v713 = vunpack.c.l.b16 %v200
      %v714 = vunpack.c.l.b16 %v201
      %v715 = vunpack.c.l.b16 %v202
      %v716 = vunpack.c.l.b16 %v203
      %v717 = vunpack.c.l.b16 %v204
      %v718 = vunpack.c.l.b16 %v205
      %v719 = vunpack.c.l.b16 %v206
      %v720 = vunpack.c.l.b16 %v207
      %v721 = vunpack.c.l.b16 %v208
      %v722 = vunpack.c.l.b16 %v209
      %v723 = vunpack.c.l.b16 %v210
      %v724 = vunpack.c.l.b16 %v211
      %v725 = vunpack.c.l.b16 %v212
      %v726 = vunpack.c.l.b16 %v213
      %v727 = vunpack.c.l.b16 %v214
      %v728 = vunpack.c.l.b16 %v215
      %v729 = vunpack.c.l.b16 %v216
      %v730 = vunpack.c.l.b16 %v217
      %v731 = vunpack.c.l.b16 %v218
      %v732 = vunpack.c.l.b16 %v219
      %v733 = vunpack.c.l.b16 %v220
      %v734 = vunpack.c.l.b16 %v221
      %v735 = vunpack.c.l.b16 %v222
      %v736 = vunpack.c.l.b16 %v223
      %v737 = vunpack.c.l.b16 %v224
      %v738 = vunpack.c.l.b16 %v225
      %v739 = vunpack.c.l.b16 %v226
      %v740 = vunpack.c.l.b16 %v227
      %v741 = vunpack.c.l.b16 %v228
      %v742 = vunpack.c.l.b16 %v229
      %v743 = vunpack.c.l.b16 %v230
      %v744 = vunpack.c.l.b16 %v231
      %v745 = vunpack.c.l.b16 %v232
      %v746 = vunpack.c.l.b16 %v233
      %v747 = vunpack.c.l.b16 %v234
      %v748 = vunpack.c.l.b16 %v235
      %v749 = vunpack.c.l.b16 %v236
      %v750 = vunpack.c.l.b16 %v237
      %v751 = vunpack.c.l.b16 %v238
      %v752 = vunpack.c.l.b16 %v239
      %v753 = vunpack.c.l.b16 %v240
      %v754 = vunpack.c.l.b16 %v241
      %v755 = vunpack.c.l.b16 %v242
      %v756 = vunpack.c.l.b16 %v243
      %v757 = vunpack.c.l.b16 %v244
      %v758 = vunpack.c.l.b16 %v245
      %v759 = vunpack.c.l.b16 %v246
      %v760 = vunpack.c.l.b16 %v247
      %v761 = vunpack.c.l.b16 %v248
      %v762 = vunpack.c.l.b16 %v249
      %v763 = vunpack.c.l.b16 %v250
      %v764 = vunpack.c.l.b16 %v251
      %v765 = vunpack.c.l.b16 %v252
      %v766 = vunpack.c.l.b16 %v253
      %v767 = vunpack.c.l.b16 %v254
      %v768 = vunpack.c.l.b16 %v255
      %v769 = vunpack.c.l.b16 %v256
      %v770 = vunpack.c.l.b16 %v257
      %v771 = vunpack.c.l.b16 %v258
      %v772 = vunpack.c.l.b16 %v259
      %v773 = vunpack.c.l.b16 %v260
      %v774 = vunpack.c.l.b16 %v261
      %v775 = vunpack.c.l.b16 %v262
      %v776 = vunpack.c.l.b16 %v263
      %v777 = vunpack.c.l.b16 %v264
      %v778 = vunpack.c.l.b16 %v265
      %v779 = vunpack.c.l.b16 %v266
      %v780 = vunpack.c.l.b16 %v267
      %v781 = vunpack.c.l.b16 %v268
      %v782 = vunpack.c.l.b16 %v269
      %v783 = vunpack.c.l.b16 %v270
      %v784 = vunpack.c.l.b16 %v271
      %v785 = vunpack.c.l.b16 %v272
      %v786 = vunpack.c.l.b16 %v273
      %v787 = vunpack.c.l.b16 %v274
      %v788 = vunpack.c.l.b16 %v275
      %v789 = vunpack.c.l.b16 %v276
      %v790 = vunpack.c.l.b16 %v277
      %v791 = vunpack.c.l.b16 %v278
      %v792 = vunpack.c.l.b16 %v279
      %v793 = vunpack.c.l.b16 %v280
      %v794 = vunpack.c.l.b16 %v281
      %v795 = vunpack.c.l.b16 %v282
      %v796 = vunpack.c.l.b16 %v283
      %v797 = vunpack.c.l.b16 %v284
      %v798 = vunpack.c.l.b16 %v285
      %v799 = vunpack.c.l.b16 %v286
      %v800 = vunpack.c.l.b16 %v287
      %v801 = vunpack.c.l.b16 %v288
      %v802 = vunpack.c.l.b16 %v289
      %v803 = vunpack.c.l.b16 %v290
      %v804 = vunpack.c.l.b16 %v291
      %v805 = vunpack.c.l.b16 %v292
      %v806 = vunpack.c.l.b16 %v293
      %v807 = vunpack.c.l.b16 %v294
      %v808 = vunpack.c.l.b16 %v295
      %v809 = vunpack.c.l.b16 %v296
      %v810 = vunpack.c.l.b16 %v297
      %v811 = vunpack.c.l.b16 %v298
      %v812 = vunpack.c.l.b16 %v299
      %v813 = vunpack.c.l.b16 %v300
      %v814 = vunpack.c.l.b16 %v301
      %v815 = vunpack.c.l.b16 %v302
      %v816 = vunpack.c.l.b16 %v303
      %v817 = vunpack.c.l.b16 %v304
      %v818 = vunpack.c.l.b16 %v305
      %v819 = vunpack.c.l.b16 %v306
      %v820 = vunpack.c.l.b16 %v307
      %v821 = vunpack.c.l.b16 %v308
      %v822 = vunpack.c.l.b16 %v309
      %v823 = vunpack.c.l.b16 %v310
      %v824 = vunpack.c.l.b16 %v311
      %v825 = vunpack.c.l.b16 %v312
      %v826 = vunpack.c.l.b16 %v313
      %v827 = vunpack.c.l.b16 %v314
      %v828 = vunpack.c.l.b16 %v315
      %v829 = vunpack.c.l.b16 %v316
      %v830 = vunpack.c.l.b16 %v317
      %v831 = vunpack.c.l.b16 %v318
      %v832 = vunpack.c.l.b16 %v319
      %v833 = vunpack.c.l.b16 %v320
      %v834 = vunpack.c.l.b16 %v321
      %v835 = vunpack.c.l.b16 %v322
      %v836 = vunpack.c.l.b16 %v323
      %v837 = vunpack.c.l.b16 %v324
      %v838 = vunpack.c.l.b16 %v325
      %v839 = vunpack.c.l.b16 %v326
      %v840 = vunpack.c.l.b16 %v327
      %v841 = vunpack.c.l.b16 %v328
      %v842 = vunpack.c.l.b16 %v329
      %v843 = vunpack.c.l.b16 %v330
      %v844 = vunpack.c.l.b16 %v331
      %v845 = vunpack.c.l.b16 %v332
      %v846 = vunpack.c.l.b16 %v333
      %v847 = vunpack.c.l.b16 %v334
      %v848 = vunpack.c.l.b16 %v335
      %v849 = vunpack.c.l.b16 %v336
      %v850 = vunpack.c.l.b16 %v337
      %v851 = vunpack.c.l.b16 %v338
      %v852 = vunpack.c.l.b16 %v339
      %v853 = vunpack.c.l.b16 %v340
      %v854 = vunpack.c.l.b16 %v341
      %v855 = vunpack.c.l.b16 %v342
      %v856 = vunpack.c.l.b16 %v343
      %v857 = vunpack.c.l.b16 %v344
      %v858 = vunpack.c.l.b16 %v345
      %v859 = vunpack.c.l.b16 %v346
      %v860 = vunpack.c.l.b16 %v347
      %v861 = vunpack.c.l.b16 %v348
      %v862 = vunpack.c.l.b16 %v349
      %v863 = vunpack.c.l.b16 %v350
      %v864 = vunpack.c.l.b16 %v351
      %v865 = vunpack.c.l.b16 %v352
      %v866 = vunpack.c.l.b16 %v353
      %v867 = vunpack.c.l.b16 %v354
      %v868 = vunpack.c.l.b16 %v355
      %v869 = vunpack.c.l.b16 %v356
      %v870 = vunpack.c.l.b16 %v357
      %v871 = vunpack.c.l.b16 %v358
      %v872 = vunpack.c.l.b16 %v359
      %v873 = vunpack.c.l.b16 %v360
      %v874 = vunpack.c.l.b16 %v361
      %v875 = vunpack.c.l.b16 %v362
      %v876 = vunpack.c.l.b16 %v363
      %v877 = vunpack.c.l.b16 %v364
      %v878 = vunpack.c.l.b16 %v365
      %v879 = vunpack.c.l.b16 %v366
      %v880 = vunpack.c.l.b16 %v367
      %v881 = vunpack.c.l.b16 %v368
      %v882 = vunpack.c.l.b16 %v369
      %v883 = vunpack.c.l.b16 %v370
      %v884 = vunpack.c.l.b16 %v371
      %v885 = vunpack.c.l.b16 %v372
      %v886 = vunpack.c.l.b16 %v373
      %v887 = vunpack.c.l.b16 %v374
      %v888 = vunpack.c.l.b16 %v375
      %v889 = vunpack.c.l.b16 %v376
      %v890 = vunpack.c.l.b16 %v377
      %v891 = vunpack.c.l.b16 %v378
      %v892 = vunpack.c.l.b16 %v379
      %v893 = vunpack.c.l.b16 %v380
      %v894 = vunpack.c.l.b16 %v381
      %v895 = vunpack.c.l.b16 %v382
      %v896 = vunpack.c.l.b16 %v383
      %v897 = vunpack.c.l.b16 %v384
      %v898 = vunpack.c.l.b16 %v385
      %v899 = vunpack.c.l.b16 %v386
      %v900 = vunpack.c.l.b16 %v387
      %v901 = vunpack.c.l.b16 %v388
      %v902 = vunpack.c.l.b16 %v389
      %v903 = vunpack.c.l.b16 %v390
      %v904 = vunpack.c.l.b16 %v391
      %v905 = vunpack.c.l.b16 %v392
      %v906 = vunpack.c.l.b16 %v393
      %v907 = vunpack.c.l.b16 %v394
      %v908 = vunpack.c.l.b16 %v395
      %v909 = vunpack.c.l.b16 %v396
      %v910 = vunpack.c.l.b16 %v397
      %v911 = vunpack.c.l.b16 %v398
      %v912 = vunpack.c.l.b16 %v399
      %v913 = vunpack.c.l.b16 %v400
      %v914 = vunpack.c.l.b16 %v401
      %v915 = vunpack.c.l.b16 %v402
      %v916 = vunpack.c.l.b16 %v403
      %v917 = vpack.c.b16 %v662, %v661
      %v918 = vpack.c.b16 %v664, %v663
      %v919 = vpack.c.b16 %v666, %v665
      %v920 = vpack.c.b16 %v668, %v667
      %v921 = vpack.c.b16 %v670, %v669
      %v922 = vpack.c.b16 %v672, %v671
      %v923 = vpack.c.b16 %v674, %v673
      %v924 = vpack.c.b16 %v676, %v675
      %v925 = vpack.c.b16 %v678, %v677
      %v926 = vpack.c.b16 %v680, %v679
      %v927 = vpack.c.b16 %v682, %v681
      %v928 = vpack.c.b16 %v684, %v683
      %v929 = vpack.c.b16 %v686, %v685
      %v930 = vpack.c.b16 %v688, %v687
      %v931 = vpack.c.b16 %v690, %v689
      %v932 = vpack.c.b16 %v692, %v691
      %v933 = vpack.c.b16 %v694, %v693
      %v934 = vpack.c.b16 %v696, %v695
      %v935 = vpack.c.b16 %v698, %v697
      %v936 = vpack.c.b16 %v700, %v699
      %v937 = vpack.c.b16 %v702, %v701
      %v938 = vpack.c.b16 %v704, %v703
      %v939 = vpack.c.b16 %v706, %v705
      %v940 = vpack.c.b16 %v708, %v707
      %v941 = vpack.c.b16 %v710, %v709
      %v942 = vpack.c.b16 %v712, %v711
      %v943 = vpack.c.b16 %v714, %v713
      %v944 = vpack.c.b16 %v716, %v715
      %v945 = vpack.c.b16 %v718, %v717
      %v946 = vpack.c.b16 %v720, %v719
      %v947 = vpack.c.b16 %v722, %v721
      %v948 = vpack.c.b16 %v724, %v723
      %v949 = vpack.c.b16 %v726, %v725
      %v950 = vpack.c.b16 %v728, %v727
      %v951 = vpack.c.b16 %v730, %v729
      %v952 = vpack.c.b16 %v732, %v731
      %v953 = vpack.c.b16 %v734, %v733
      %v954 = vpack.c.b16 %v736, %v735
      %v955 = vpack.c.b16 %v738, %v737
      %v956 = vpack.c.b16 %v740, %v739
      %v957 = vpack.c.b16 %v742, %v741
      %v958 = vpack.c.b16 %v744, %v743
      %v959 = vpack.c.b16 %v746, %v745
      %v960 = vpack.c.b16 %v748, %v747
      %v961 = vpack.c.b16 %v750, %v749
      %v962 = vpack.c.b16 %v752, %v751
      %v963 = vpack.c.b16 %v754, %v753
      %v964 = vpack.c.b16 %v756, %v755
      %v965 = vpack.c.b16 %v758, %v757
      %v966 = vpack.c.b16 %v760, %v759
      %v967 = vpack.c.b16 %v762, %v761
      %v968 = vpack.c.b16 %v764, %v763
      %v969 = vpack.c.b16 %v766, %v765
      %v970 = vpack.c.b16 %v768, %v767
      %v971 = vpack.c.b16 %v770, %v769
      %v972 = vpack.c.b16 %v772, %v771
      %v973 = vpack.c.b16 %v774, %v773
      %v974 = vpack.c.b16 %v776, %v775
      %v975 = vpack.c.b16 %v778, %v777
      %v976 = vpack.c.b16 %v780, %v779
      %v977 = vpack.c.b16 %v782, %v781
      %v978 = vpack.c.b16 %v784, %v783
      %v979 = vpack.c.b16 %v786, %v785
      %v980 = vpack.c.b16 %v788, %v787
      %v981 = vpack.c.b16 %v790, %v789
      %v982 = vpack.c.b16 %v792, %v791
      %v983 = vpack.c.b16 %v794, %v793
      %v984 = vpack.c.b16 %v796, %v795
      %v985 = vpack.c.b16 %v798, %v797
      %v986 = vpack.c.b16 %v800, %v799
      %v987 = vpack.c.b16 %v802, %v801
      %v988 = vpack.c.b16 %v804, %v803
      %v989 = vpack.c.b16 %v806, %v805
      %v990 = vpack.c.b16 %v808, %v807
      %v991 = vpack.c.b16 %v810, %v809
      %v992 = vpack.c.b16 %v812, %v811
      %v993 = vpack.c.b16 %v814, %v813
      %v994 = vpack.c.b16 %v816, %v815
      %v995 = vpack.c.b16 %v818, %v817
      %v996 = vpack.c.b16 %v820, %v819
      %v997 = vpack.c.b16 %v822, %v821
      %v998 = vpack.c.b16 %v824, %v823
      %v999 = vpack.c.b16 %v826, %v825
      %v1000 = vpack.c.b16 %v828, %v827
      %v1001 = vpack.c.b16 %v830, %v829
      %v1002 = vpack.c.b16 %v832, %v831
      %v1003 = vpack.c.b16 %v834, %v833
      %v1004 = vpack.c.b16 %v836, %v835
      %v1005 = vpack.c.b16 %v838, %v837
      %v1006 = vpack.c.b16 %v840, %v839
      %v1007 = vpack.c.b16 %v842, %v841
      %v1008 = vpack.c.b16 %v844, %v843
      %v1009 = vpack.c.b16 %v846, %v845
      %v1010 = vpack.c.b16 %v848, %v847
      %v1011 = vpack.c.b16 %v850, %v849
      %v1012 = vpack.c.b16 %v852, %v851
      %v1013 = vpack.c.b16 %v854, %v853
      %v1014 = vpack.c.b16 %v856, %v855
      %v1015 = vpack.c.b16 %v858, %v857
      %v1016 = vpack.c.b16 %v860, %v859
      %v1017 = vpack.c.b16 %v862, %v861
      %v1018 = vpack.c.b16 %v864, %v863
      %v1019 = vpack.c.b16 %v866, %v865
      %v1020 = vpack.c.b16 %v868, %v867
      %v1021 = vpack.c.b16 %v870, %v869
      %v1022 = vpack.c.b16 %v872, %v871
      %v1023 = vpack.c.b16 %v874, %v873
      %v1024 = vpack.c.b16 %v876, %v875
      %v1025 = vpack.c.b16 %v878, %v877
      %v1026 = vpack.c.b16 %v880, %v879
      %v1027 = vpack.c.b16 %v882, %v881
      %v1028 = vpack.c.b16 %v884, %v883
      %v1029 = vpack.c.b16 %v886, %v885
      %v1030 = vpack.c.b16 %v888, %v887
      %v1031 = vpack.c.b16 %v890, %v889
      %v1032 = vpack.c.b16 %v892, %v891
      %v1033 = vpack.c.b16 %v894, %v893
      %v1034 = vpack.c.b16 %v896, %v895
      %v1035 = vpack.c.b16 %v898, %v897
      %v1036 = vpack.c.b16 %v900, %v899
      %v1037 = vpack.c.b16 %v902, %v901
      %v1038 = vpack.c.b16 %v904, %v903
      %v1039 = vpack.c.b16 %v906, %v905
      %v1040 = vpack.c.b16 %v908, %v907
      %v1041 = vpack.c.b16 %v910, %v909
      %v1042 = vpack.c.b16 %v912, %v911
      %v1043 = vpack.c.b16 %v914, %v913
      %v1044 = vpack.c.b16 %v916, %v915
      %vm1045 = vcmask 64512
      %v1047 = vsel %vm1045, %v917, 0
      %v1050 = vsel %vm1045, %v918, 0
      %v1053 = vsel %vm1045, %v919, 0
      %v1056 = vsel %vm1045, %v920, 0
      %v1059 = vsel %vm1045, %v921, 0
      %v1062 = vsel %vm1045, %v922, 0
      %v1065 = vsel %vm1045, %v923, 0
      %v1068 = vsel %vm1045, %v924, 0
      %v1071 = vsel %vm1045, %v925, 0
      %v1074 = vsel %vm1045, %v926, 0
      %v1077 = vsel %vm1045, %v927, 0
      %v1080 = vsel %vm1045, %v928, 0
      %v1083 = vsel %vm1045, %v929, 0
      %v1086 = vsel %vm1045, %v930, 0
      %v1089 = vsel %vm1045, %v931, 0
      %v1092 = vsel %vm1045, %v932, 0
      %v1095 = vsel %vm1045, %v933, 0
      %v1098 = vsel %vm1045, %v934, 0
      %v1101 = vsel %vm1045, %v935, 0
      %v1104 = vsel %vm1045, %v936, 0
      %v1107 = vsel %vm1045, %v937, 0
      %v1110 = vsel %vm1045, %v938, 0
      %v1113 = vsel %vm1045, %v939, 0
      %v1116 = vsel %vm1045, %v940, 0
      %v1119 = vsel %vm1045, %v941, 0
      %v1122 = vsel %vm1045, %v942, 0
      %v1125 = vsel %vm1045, %v943, 0
      %v1128 = vsel %vm1045, %v944, 0
      %v1131 = vsel %vm1045, %v945, 0
      %v1134 = vsel %vm1045, %v946, 0
      %v1137 = vsel %vm1045, %v947, 0
      %v1140 = vsel %vm1045, %v948, 0
      %v1143 = vsel %vm1045, %v949, 0
      %v1146 = vsel %vm1045, %v950, 0
      %v1149 = vsel %vm1045, %v951, 0
      %v1152 = vsel %vm1045, %v952, 0
      %v1155 = vsel %vm1045, %v953, 0
      %v1158 = vsel %vm1045, %v954, 0
      %v1161 = vsel %vm1045, %v955, 0
      %v1164 = vsel %vm1045, %v956, 0
      %v1167 = vsel %vm1045, %v957, 0
      %v1170 = vsel %vm1045, %v958, 0
      %v1173 = vsel %vm1045, %v959, 0
      %v1176 = vsel %vm1045, %v960, 0
      %v1179 = vsel %vm1045, %v961, 0
      %v1182 = vsel %vm1045, %v962, 0
      %v1185 = vsel %vm1045, %v963, 0
      %v1188 = vsel %vm1045, %v964, 0
      %v1191 = vsel %vm1045, %v965, 0
      %v1194 = vsel %vm1045, %v966, 0
      %v1197 = vsel %vm1045, %v967, 0
      %v1200 = vsel %vm1045, %v968, 0
      %v1203 = vsel %vm1045, %v969, 0
      %v1206 = vsel %vm1045, %v970, 0
      %v1209 = vsel %vm1045, %v971, 0
      %v1212 = vsel %vm1045, %v972, 0
      %v1215 = vsel %vm1045, %v973, 0
      %v1218 = vsel %vm1045, %v974, 0
      %v1221 = vsel %vm1045, %v975, 0
      %v1224 = vsel %vm1045, %v976, 0
      %v1227 = vsel %vm1045, %v977, 0
      %v1230 = vsel %vm1045, %v978, 0
      %v1233 = vsel %vm1045, %v979, 0
      %v1236 = vsel %vm1045, %v980, 0
      %v1239 = vsel %vm1045, %v981, 0
      %v1242 = vsel %vm1045, %v982, 0
      %v1245 = vsel %vm1045, %v983, 0
      %v1248 = vsel %vm1045, %v984, 0
      %v1251 = vsel %vm1045, %v985, 0
      %v1254 = vsel %vm1045, %v986, 0
      %v1257 = vsel %vm1045, %v987, 0
      %v1260 = vsel %vm1045, %v988, 0
      %v1263 = vsel %vm1045, %v989, 0
      %v1266 = vsel %vm1045, %v990, 0
      %v1269 = vsel %vm1045, %v991, 0
      %v1272 = vsel %vm1045, %v992, 0
      %v1275 = vsel %vm1045, %v993, 0
      %v1278 = vsel %vm1045, %v994, 0
      %v1281 = vsel %vm1045, %v995, 0
      %v1284 = vsel %vm1045, %v996, 0
      %v1287 = vsel %vm1045, %v997, 0
      %v1290 = vsel %vm1045, %v998, 0
      %v1293 = vsel %vm1045, %v999, 0
      %v1296 = vsel %vm1045, %v1000, 0
      %v1299 = vsel %vm1045, %v1001, 0
      %v1302 = vsel %vm1045, %v1002, 0
      %v1305 = vsel %vm1045, %v1003, 0
      %v1308 = vsel %vm1045, %v1004, 0
      %v1311 = vsel %vm1045, %v1005, 0
      %v1314 = vsel %vm1045, %v1006, 0
      %v1317 = vsel %vm1045, %v1007, 0
      %v1320 = vsel %vm1045, %v1008, 0
      %v1323 = vsel %vm1045, %v1009, 0
      %v1326 = vsel %vm1045, %v1010, 0
      %v1329 = vsel %vm1045, %v1011, 0
      %v1332 = vsel %vm1045, %v1012, 0
      %v1335 = vsel %vm1045, %v1013, 0
      %v1338 = vsel %vm1045, %v1014, 0
      %v1341 = vsel %vm1045, %v1015, 0
      %v1344 = vsel %vm1045, %v1016, 0
      %v1347 = vsel %vm1045, %v1017, 0
      %v1350 = vsel %vm1045, %v1018, 0
      %v1353 = vsel %vm1045, %v1019, 0
      %v1356 = vsel %vm1045, %v1020, 0
      %v1359 = vsel %vm1045, %v1021, 0
      %v1362 = vsel %vm1045, %v1022, 0
      %v1365 = vsel %vm1045, %v1023, 0
      %v1368 = vsel %vm1045, %v1024, 0
      %v1371 = vsel %vm1045, %v1025, 0
      %v1374 = vsel %vm1045, %v1026, 0
      %v1377 = vsel %vm1045, %v1027, 0
      %v1380 = vsel %vm1045, %v1028, 0
      %v1383 = vsel %vm1045, %v1029, 0
      %v1386 = vsel %vm1045, %v1030, 0
      %v1389 = vsel %vm1045, %v1031, 0
      %v1392 = vsel %vm1045, %v1032, 0
      %v1395 = vsel %vm1045, %v1033, 0
      %v1398 = vsel %vm1045, %v1034, 0
      %v1401 = vsel %vm1045, %v1035, 0
      %v1404 = vsel %vm1045, %v1036, 0
      %v1407 = vsel %vm1045, %v1037, 0
      %v1410 = vsel %vm1045, %v1038, 0
      %v1413 = vsel %vm1045, %v1039, 0
      %v1416 = vsel %vm1045, %v1040, 0
      %v1419 = vsel %vm1045, %v1041, 0
      %v1422 = vsel %vm1045, %v1042, 0
      %v1425 = vsel %vm1045, %v1043, 0
      %v1428 = vsel %vm1045, %v1044, 0
      %vm1430 = vcmask 1043456
      %v1432 = vsel %vm1430, %v404, 0
      %1434 = vmatpush.bf16.msra.mxu0 0
      %1435 = vmatpush.bf16.msra.mxu0 0
      %1436 = vmatpush.bf16.msra.mxu0 0
      %1437 = vmatpush.bf16.msra.mxu0 0
      %1438 = vmatpush.bf16.msra.mxu0 0
      %1439 = vmatpush.bf16.msra.mxu0 0
      %1440 = vmatpush.bf16.msra.mxu0 0
      %1441 = vmatpush.bf16.msra.mxu0 %v1432
      %1442 = vmatmul.bf16.gmra.mxu0 %v1047
      %v1443 = vpop.f32.mrf.mxu0
      %v1444 = vadd.f32 0.0, %v1443
      %v1445 = vpop.f32.mrf.mxu0
      %v1446 = vadd.f32 0.0, %v1445
      %1447 = vmatmul.bf16.gmra.mxu0 %v1050
      %v1448 = vpop.f32.mrf.mxu0
      %v1449 = vadd.f32 0.0, %v1448
      %v1450 = vpop.f32.mrf.mxu0
      %v1451 = vadd.f32 0.0, %v1450
      %1452 = vmatmul.bf16.gmra.mxu0 %v1053
      %v1453 = vpop.f32.mrf.mxu0
      %v1454 = vadd.f32 0.0, %v1453
      %v1455 = vpop.f32.mrf.mxu0
      %v1456 = vadd.f32 0.0, %v1455
      %1457 = vmatmul.bf16.gmra.mxu0 %v1056
      %v1458 = vpop.f32.mrf.mxu0
      %v1459 = vadd.f32 0.0, %v1458
      %v1460 = vpop.f32.mrf.mxu0
      %v1461 = vadd.f32 0.0, %v1460
      %1462 = vmatmul.bf16.gmra.mxu0 %v1059
      %v1463 = vpop.f32.mrf.mxu0
      %v1464 = vadd.f32 0.0, %v1463
      %v1465 = vpop.f32.mrf.mxu0
      %v1466 = vadd.f32 0.0, %v1465
      %1467 = vmatmul.bf16.gmra.mxu0 %v1062
      %v1468 = vpop.f32.mrf.mxu0
      %v1469 = vadd.f32 0.0, %v1468
      %v1470 = vpop.f32.mrf.mxu0
      %v1471 = vadd.f32 0.0, %v1470
      %1472 = vmatmul.bf16.gmra.mxu0 %v1065
      %v1473 = vpop.f32.mrf.mxu0
      %v1474 = vadd.f32 0.0, %v1473
      %v1475 = vpop.f32.mrf.mxu0
      %v1476 = vadd.f32 0.0, %v1475
      %1477 = vmatmul.bf16.gmra.mxu0 %v1068
      %v1478 = vpop.f32.mrf.mxu0
      %v1479 = vadd.f32 0.0, %v1478
      %v1480 = vpop.f32.mrf.mxu0
      %v1481 = vadd.f32 0.0, %v1480
      %1482 = vmatmul.bf16.gmra.mxu0 %v1071
      %v1483 = vpop.f32.mrf.mxu0
      %v1484 = vadd.f32 0.0, %v1483
      %v1485 = vpop.f32.mrf.mxu0
      %v1486 = vadd.f32 0.0, %v1485
      %1487 = vmatmul.bf16.gmra.mxu0 %v1074
      %v1488 = vpop.f32.mrf.mxu0
      %v1489 = vadd.f32 0.0, %v1488
      %v1490 = vpop.f32.mrf.mxu0
      %v1491 = vadd.f32 0.0, %v1490
      %1492 = vmatmul.bf16.gmra.mxu0 %v1077
      %v1493 = vpop.f32.mrf.mxu0
      %v1494 = vadd.f32 0.0, %v1493
      %v1495 = vpop.f32.mrf.mxu0
      %v1496 = vadd.f32 0.0, %v1495
      %1497 = vmatmul.bf16.gmra.mxu0 %v1080
      %v1498 = vpop.f32.mrf.mxu0
      %v1499 = vadd.f32 0.0, %v1498
      %v1500 = vpop.f32.mrf.mxu0
      %v1501 = vadd.f32 0.0, %v1500
      %1502 = vmatmul.bf16.gmra.mxu0 %v1083
      %v1503 = vpop.f32.mrf.mxu0
      %v1504 = vadd.f32 0.0, %v1503
      %v1505 = vpop.f32.mrf.mxu0
      %v1506 = vadd.f32 0.0, %v1505
      %1507 = vmatmul.bf16.gmra.mxu0 %v1086
      %v1508 = vpop.f32.mrf.mxu0
      %v1509 = vadd.f32 0.0, %v1508
      %v1510 = vpop.f32.mrf.mxu0
      %v1511 = vadd.f32 0.0, %v1510
      %1512 = vmatmul.bf16.gmra.mxu0 %v1089
      %v1513 = vpop.f32.mrf.mxu0
      %v1514 = vadd.f32 0.0, %v1513
      %v1515 = vpop.f32.mrf.mxu0
      %v1516 = vadd.f32 0.0, %v1515
      %1517 = vmatmul.bf16.gmra.mxu0 %v1092
      %v1518 = vpop.f32.mrf.mxu0
      %v1519 = vadd.f32 0.0, %v1518
      %v1520 = vpop.f32.mrf.mxu0
      %v1521 = vadd.f32 0.0, %v1520
      %1522 = vmatmul.bf16.gmra.mxu0 %v1095
      %v1523 = vpop.f32.mrf.mxu0
      %v1524 = vadd.f32 0.0, %v1523
      %v1525 = vpop.f32.mrf.mxu0
      %v1526 = vadd.f32 0.0, %v1525
      %1527 = vmatmul.bf16.gmra.mxu0 %v1098
      %v1528 = vpop.f32.mrf.mxu0
      %v1529 = vadd.f32 0.0, %v1528
      %v1530 = vpop.f32.mrf.mxu0
      %v1531 = vadd.f32 0.0, %v1530
      %1532 = vmatmul.bf16.gmra.mxu0 %v1101
      %v1533 = vpop.f32.mrf.mxu0
      %v1534 = vadd.f32 0.0, %v1533
      %v1535 = vpop.f32.mrf.mxu0
      %v1536 = vadd.f32 0.0, %v1535
      %1537 = vmatmul.bf16.gmra.mxu0 %v1104
      %v1538 = vpop.f32.mrf.mxu0
      %v1539 = vadd.f32 0.0, %v1538
      %v1540 = vpop.f32.mrf.mxu0
      %v1541 = vadd.f32 0.0, %v1540
      %1542 = vmatmul.bf16.gmra.mxu0 %v1107
      %v1543 = vpop.f32.mrf.mxu0
      %v1544 = vadd.f32 0.0, %v1543
      %v1545 = vpop.f32.mrf.mxu0
      %v1546 = vadd.f32 0.0, %v1545
      %1547 = vmatmul.bf16.gmra.mxu0 %v1110
      %v1548 = vpop.f32.mrf.mxu0
      %v1549 = vadd.f32 0.0, %v1548
      %v1550 = vpop.f32.mrf.mxu0
      %v1551 = vadd.f32 0.0, %v1550
      %1552 = vmatmul.bf16.gmra.mxu0 %v1113
      %v1553 = vpop.f32.mrf.mxu0
      %v1554 = vadd.f32 0.0, %v1553
      %v1555 = vpop.f32.mrf.mxu0
      %v1556 = vadd.f32 0.0, %v1555
      %1557 = vmatmul.bf16.gmra.mxu0 %v1116
      %v1558 = vpop.f32.mrf.mxu0
      %v1559 = vadd.f32 0.0, %v1558
      %v1560 = vpop.f32.mrf.mxu0
      %v1561 = vadd.f32 0.0, %v1560
      %1562 = vmatmul.bf16.gmra.mxu0 %v1119
      %v1563 = vpop.f32.mrf.mxu0
      %v1564 = vadd.f32 0.0, %v1563
      %v1565 = vpop.f32.mrf.mxu0
      %v1566 = vadd.f32 0.0, %v1565
      %1567 = vmatmul.bf16.gmra.mxu0 %v1122
      %v1568 = vpop.f32.mrf.mxu0
      %v1569 = vadd.f32 0.0, %v1568
      %v1570 = vpop.f32.mrf.mxu0
      %v1571 = vadd.f32 0.0, %v1570
      %1572 = vmatmul.bf16.gmra.mxu0 %v1125
      %v1573 = vpop.f32.mrf.mxu0
      %v1574 = vadd.f32 0.0, %v1573
      %v1575 = vpop.f32.mrf.mxu0
      %v1576 = vadd.f32 0.0, %v1575
      %1577 = vmatmul.bf16.gmra.mxu0 %v1128
      %v1578 = vpop.f32.mrf.mxu0
      %v1579 = vadd.f32 0.0, %v1578
      %v1580 = vpop.f32.mrf.mxu0
      %v1581 = vadd.f32 0.0, %v1580
      %1582 = vmatmul.bf16.gmra.mxu0 %v1131
      %v1583 = vpop.f32.mrf.mxu0
      %v1584 = vadd.f32 0.0, %v1583
      %v1585 = vpop.f32.mrf.mxu0
      %v1586 = vadd.f32 0.0, %v1585
      %1587 = vmatmul.bf16.gmra.mxu0 %v1134
      %v1588 = vpop.f32.mrf.mxu0
      %v1589 = vadd.f32 0.0, %v1588
      %v1590 = vpop.f32.mrf.mxu0
      %v1591 = vadd.f32 0.0, %v1590
      %1592 = vmatmul.bf16.gmra.mxu0 %v1137
      %v1593 = vpop.f32.mrf.mxu0
      %v1594 = vadd.f32 0.0, %v1593
      %v1595 = vpop.f32.mrf.mxu0
      %v1596 = vadd.f32 0.0, %v1595
      %1597 = vmatmul.bf16.gmra.mxu0 %v1140
      %v1598 = vpop.f32.mrf.mxu0
      %v1599 = vadd.f32 0.0, %v1598
      %v1600 = vpop.f32.mrf.mxu0
      %v1601 = vadd.f32 0.0, %v1600
      %1602 = vmatmul.bf16.gmra.mxu0 %v1143
      %v1603 = vpop.f32.mrf.mxu0
      %v1604 = vadd.f32 0.0, %v1603
      %v1605 = vpop.f32.mrf.mxu0
      %v1606 = vadd.f32 0.0, %v1605
      %1607 = vmatmul.bf16.gmra.mxu0 %v1146
      %v1608 = vpop.f32.mrf.mxu0
      %v1609 = vadd.f32 0.0, %v1608
      %v1610 = vpop.f32.mrf.mxu0
      %v1611 = vadd.f32 0.0, %v1610
      %1612 = vmatmul.bf16.gmra.mxu0 %v1149
      %v1613 = vpop.f32.mrf.mxu0
      %v1614 = vadd.f32 0.0, %v1613
      %v1615 = vpop.f32.mrf.mxu0
      %v1616 = vadd.f32 0.0, %v1615
      %1617 = vmatmul.bf16.gmra.mxu0 %v1152
      %v1618 = vpop.f32.mrf.mxu0
      %v1619 = vadd.f32 0.0, %v1618
      %v1620 = vpop.f32.mrf.mxu0
      %v1621 = vadd.f32 0.0, %v1620
      %1622 = vmatmul.bf16.gmra.mxu0 %v1155
      %v1623 = vpop.f32.mrf.mxu0
      %v1624 = vadd.f32 0.0, %v1623
      %v1625 = vpop.f32.mrf.mxu0
      %v1626 = vadd.f32 0.0, %v1625
      %1627 = vmatmul.bf16.gmra.mxu0 %v1158
      %v1628 = vpop.f32.mrf.mxu0
      %v1629 = vadd.f32 0.0, %v1628
      %v1630 = vpop.f32.mrf.mxu0
      %v1631 = vadd.f32 0.0, %v1630
      %1632 = vmatmul.bf16.gmra.mxu0 %v1161
      %v1633 = vpop.f32.mrf.mxu0
      %v1634 = vadd.f32 0.0, %v1633
      %v1635 = vpop.f32.mrf.mxu0
      %v1636 = vadd.f32 0.0, %v1635
      %1637 = vmatmul.bf16.gmra.mxu0 %v1164
      %v1638 = vpop.f32.mrf.mxu0
      %v1639 = vadd.f32 0.0, %v1638
      %v1640 = vpop.f32.mrf.mxu0
      %v1641 = vadd.f32 0.0, %v1640
      %1642 = vmatmul.bf16.gmra.mxu0 %v1167
      %v1643 = vpop.f32.mrf.mxu0
      %v1644 = vadd.f32 0.0, %v1643
      %v1645 = vpop.f32.mrf.mxu0
      %v1646 = vadd.f32 0.0, %v1645
      %1647 = vmatmul.bf16.gmra.mxu0 %v1170
      %v1648 = vpop.f32.mrf.mxu0
      %v1649 = vadd.f32 0.0, %v1648
      %v1650 = vpop.f32.mrf.mxu0
      %v1651 = vadd.f32 0.0, %v1650
      %1652 = vmatmul.bf16.gmra.mxu0 %v1173
      %v1653 = vpop.f32.mrf.mxu0
      %v1654 = vadd.f32 0.0, %v1653
      %v1655 = vpop.f32.mrf.mxu0
      %v1656 = vadd.f32 0.0, %v1655
      %1657 = vmatmul.bf16.gmra.mxu0 %v1176
      %v1658 = vpop.f32.mrf.mxu0
      %v1659 = vadd.f32 0.0, %v1658
      %v1660 = vpop.f32.mrf.mxu0
      %v1661 = vadd.f32 0.0, %v1660
      %1662 = vmatmul.bf16.gmra.mxu0 %v1179
      %v1663 = vpop.f32.mrf.mxu0
      %v1664 = vadd.f32 0.0, %v1663
      %v1665 = vpop.f32.mrf.mxu0
      %v1666 = vadd.f32 0.0, %v1665
      %1667 = vmatmul.bf16.gmra.mxu0 %v1182
      %v1668 = vpop.f32.mrf.mxu0
      %v1669 = vadd.f32 0.0, %v1668
      %v1670 = vpop.f32.mrf.mxu0
      %v1671 = vadd.f32 0.0, %v1670
      %1672 = vmatmul.bf16.gmra.mxu0 %v1185
      %v1673 = vpop.f32.mrf.mxu0
      %v1674 = vadd.f32 0.0, %v1673
      %v1675 = vpop.f32.mrf.mxu0
      %v1676 = vadd.f32 0.0, %v1675
      %1677 = vmatmul.bf16.gmra.mxu0 %v1188
      %v1678 = vpop.f32.mrf.mxu0
      %v1679 = vadd.f32 0.0, %v1678
      %v1680 = vpop.f32.mrf.mxu0
      %v1681 = vadd.f32 0.0, %v1680
      %1682 = vmatmul.bf16.gmra.mxu0 %v1191
      %v1683 = vpop.f32.mrf.mxu0
      %v1684 = vadd.f32 0.0, %v1683
      %v1685 = vpop.f32.mrf.mxu0
      %v1686 = vadd.f32 0.0, %v1685
      %1687 = vmatmul.bf16.gmra.mxu0 %v1194
      %v1688 = vpop.f32.mrf.mxu0
      %v1689 = vadd.f32 0.0, %v1688
      %v1690 = vpop.f32.mrf.mxu0
      %v1691 = vadd.f32 0.0, %v1690
      %1692 = vmatmul.bf16.gmra.mxu0 %v1197
      %v1693 = vpop.f32.mrf.mxu0
      %v1694 = vadd.f32 0.0, %v1693
      %v1695 = vpop.f32.mrf.mxu0
      %v1696 = vadd.f32 0.0, %v1695
      %1697 = vmatmul.bf16.gmra.mxu0 %v1200
      %v1698 = vpop.f32.mrf.mxu0
      %v1699 = vadd.f32 0.0, %v1698
      %v1700 = vpop.f32.mrf.mxu0
      %v1701 = vadd.f32 0.0, %v1700
      %1702 = vmatmul.bf16.gmra.mxu0 %v1203
      %v1703 = vpop.f32.mrf.mxu0
      %v1704 = vadd.f32 0.0, %v1703
      %v1705 = vpop.f32.mrf.mxu0
      %v1706 = vadd.f32 0.0, %v1705
      %1707 = vmatmul.bf16.gmra.mxu0 %v1206
      %v1708 = vpop.f32.mrf.mxu0
      %v1709 = vadd.f32 0.0, %v1708
      %v1710 = vpop.f32.mrf.mxu0
      %v1711 = vadd.f32 0.0, %v1710
      %1712 = vmatmul.bf16.gmra.mxu0 %v1209
      %v1713 = vpop.f32.mrf.mxu0
      %v1714 = vadd.f32 0.0, %v1713
      %v1715 = vpop.f32.mrf.mxu0
      %v1716 = vadd.f32 0.0, %v1715
      %1717 = vmatmul.bf16.gmra.mxu0 %v1212
      %v1718 = vpop.f32.mrf.mxu0
      %v1719 = vadd.f32 0.0, %v1718
      %v1720 = vpop.f32.mrf.mxu0
      %v1721 = vadd.f32 0.0, %v1720
      %1722 = vmatmul.bf16.gmra.mxu0 %v1215
      %v1723 = vpop.f32.mrf.mxu0
      %v1724 = vadd.f32 0.0, %v1723
      %v1725 = vpop.f32.mrf.mxu0
      %v1726 = vadd.f32 0.0, %v1725
      %1727 = vmatmul.bf16.gmra.mxu0 %v1218
      %v1728 = vpop.f32.mrf.mxu0
      %v1729 = vadd.f32 0.0, %v1728
      %v1730 = vpop.f32.mrf.mxu0
      %v1731 = vadd.f32 0.0, %v1730
      %1732 = vmatmul.bf16.gmra.mxu0 %v1221
      %v1733 = vpop.f32.mrf.mxu0
      %v1734 = vadd.f32 0.0, %v1733
      %v1735 = vpop.f32.mrf.mxu0
      %v1736 = vadd.f32 0.0, %v1735
      %1737 = vmatmul.bf16.gmra.mxu0 %v1224
      %v1738 = vpop.f32.mrf.mxu0
      %v1739 = vadd.f32 0.0, %v1738
      %v1740 = vpop.f32.mrf.mxu0
      %v1741 = vadd.f32 0.0, %v1740
      %1742 = vmatmul.bf16.gmra.mxu0 %v1227
      %v1743 = vpop.f32.mrf.mxu0
      %v1744 = vadd.f32 0.0, %v1743
      %v1745 = vpop.f32.mrf.mxu0
      %v1746 = vadd.f32 0.0, %v1745
      %1747 = vmatmul.bf16.gmra.mxu0 %v1230
      %v1748 = vpop.f32.mrf.mxu0
      %v1749 = vadd.f32 0.0, %v1748
      %v1750 = vpop.f32.mrf.mxu0
      %v1751 = vadd.f32 0.0, %v1750
      %1752 = vmatmul.bf16.gmra.mxu0 %v1233
      %v1753 = vpop.f32.mrf.mxu0
      %v1754 = vadd.f32 0.0, %v1753
      %v1755 = vpop.f32.mrf.mxu0
      %v1756 = vadd.f32 0.0, %v1755
      %1757 = vmatmul.bf16.gmra.mxu0 %v1236
      %v1758 = vpop.f32.mrf.mxu0
      %v1759 = vadd.f32 0.0, %v1758
      %v1760 = vpop.f32.mrf.mxu0
      %v1761 = vadd.f32 0.0, %v1760
      %1762 = vmatmul.bf16.gmra.mxu0 %v1239
      %v1763 = vpop.f32.mrf.mxu0
      %v1764 = vadd.f32 0.0, %v1763
      %v1765 = vpop.f32.mrf.mxu0
      %v1766 = vadd.f32 0.0, %v1765
      %1767 = vmatmul.bf16.gmra.mxu0 %v1242
      %v1768 = vpop.f32.mrf.mxu0
      %v1769 = vadd.f32 0.0, %v1768
      %v1770 = vpop.f32.mrf.mxu0
      %v1771 = vadd.f32 0.0, %v1770
      %1772 = vmatmul.bf16.gmra.mxu0 %v1245
      %v1773 = vpop.f32.mrf.mxu0
      %v1774 = vadd.f32 0.0, %v1773
      %v1775 = vpop.f32.mrf.mxu0
      %v1776 = vadd.f32 0.0, %v1775
      %1777 = vmatmul.bf16.gmra.mxu0 %v1248
      %v1778 = vpop.f32.mrf.mxu0
      %v1779 = vadd.f32 0.0, %v1778
      %v1780 = vpop.f32.mrf.mxu0
      %v1781 = vadd.f32 0.0, %v1780
      %1782 = vmatmul.bf16.gmra.mxu0 %v1251
      %v1783 = vpop.f32.mrf.mxu0
      %v1784 = vadd.f32 0.0, %v1783
      %v1785 = vpop.f32.mrf.mxu0
      %v1786 = vadd.f32 0.0, %v1785
      %1787 = vmatmul.bf16.gmra.mxu0 %v1254
      %v1788 = vpop.f32.mrf.mxu0
      %v1789 = vadd.f32 0.0, %v1788
      %v1790 = vpop.f32.mrf.mxu0
      %v1791 = vadd.f32 0.0, %v1790
      %1792 = vmatmul.bf16.gmra.mxu0 %v1257
      %v1793 = vpop.f32.mrf.mxu0
      %v1794 = vadd.f32 0.0, %v1793
      %v1795 = vpop.f32.mrf.mxu0
      %v1796 = vadd.f32 0.0, %v1795
      %1797 = vmatmul.bf16.gmra.mxu0 %v1260
      %v1798 = vpop.f32.mrf.mxu0
      %v1799 = vadd.f32 0.0, %v1798
      %v1800 = vpop.f32.mrf.mxu0
      %v1801 = vadd.f32 0.0, %v1800
      %1802 = vmatmul.bf16.gmra.mxu0 %v1263
      %v1803 = vpop.f32.mrf.mxu0
      %v1804 = vadd.f32 0.0, %v1803
      %v1805 = vpop.f32.mrf.mxu0
      %v1806 = vadd.f32 0.0, %v1805
      %1807 = vmatmul.bf16.gmra.mxu0 %v1266
      %v1808 = vpop.f32.mrf.mxu0
      %v1809 = vadd.f32 0.0, %v1808
      %v1810 = vpop.f32.mrf.mxu0
      %v1811 = vadd.f32 0.0, %v1810
      %1812 = vmatmul.bf16.gmra.mxu0 %v1269
      %v1813 = vpop.f32.mrf.mxu0
      %v1814 = vadd.f32 0.0, %v1813
      %v1815 = vpop.f32.mrf.mxu0
      %v1816 = vadd.f32 0.0, %v1815
      %1817 = vmatmul.bf16.gmra.mxu0 %v1272
      %v1818 = vpop.f32.mrf.mxu0
      %v1819 = vadd.f32 0.0, %v1818
      %v1820 = vpop.f32.mrf.mxu0
      %v1821 = vadd.f32 0.0, %v1820
      %1822 = vmatmul.bf16.gmra.mxu0 %v1275
      %v1823 = vpop.f32.mrf.mxu0
      %v1824 = vadd.f32 0.0, %v1823
      %v1825 = vpop.f32.mrf.mxu0
      %v1826 = vadd.f32 0.0, %v1825
      %1827 = vmatmul.bf16.gmra.mxu0 %v1278
      %v1828 = vpop.f32.mrf.mxu0
      %v1829 = vadd.f32 0.0, %v1828
      %v1830 = vpop.f32.mrf.mxu0
      %v1831 = vadd.f32 0.0, %v1830
      %1832 = vmatmul.bf16.gmra.mxu0 %v1281
      %v1833 = vpop.f32.mrf.mxu0
      %v1834 = vadd.f32 0.0, %v1833
      %v1835 = vpop.f32.mrf.mxu0
      %v1836 = vadd.f32 0.0, %v1835
      %1837 = vmatmul.bf16.gmra.mxu0 %v1284
      %v1838 = vpop.f32.mrf.mxu0
      %v1839 = vadd.f32 0.0, %v1838
      %v1840 = vpop.f32.mrf.mxu0
      %v1841 = vadd.f32 0.0, %v1840
      %1842 = vmatmul.bf16.gmra.mxu0 %v1287
      %v1843 = vpop.f32.mrf.mxu0
      %v1844 = vadd.f32 0.0, %v1843
      %v1845 = vpop.f32.mrf.mxu0
      %v1846 = vadd.f32 0.0, %v1845
      %1847 = vmatmul.bf16.gmra.mxu0 %v1290
      %v1848 = vpop.f32.mrf.mxu0
      %v1849 = vadd.f32 0.0, %v1848
      %v1850 = vpop.f32.mrf.mxu0
      %v1851 = vadd.f32 0.0, %v1850
      %1852 = vmatmul.bf16.gmra.mxu0 %v1293
      %v1853 = vpop.f32.mrf.mxu0
      %v1854 = vadd.f32 0.0, %v1853
      %v1855 = vpop.f32.mrf.mxu0
      %v1856 = vadd.f32 0.0, %v1855
      %1857 = vmatmul.bf16.gmra.mxu0 %v1296
      %v1858 = vpop.f32.mrf.mxu0
      %v1859 = vadd.f32 0.0, %v1858
      %v1860 = vpop.f32.mrf.mxu0
      %v1861 = vadd.f32 0.0, %v1860
      %1862 = vmatmul.bf16.gmra.mxu0 %v1299
      %v1863 = vpop.f32.mrf.mxu0
      %v1864 = vadd.f32 0.0, %v1863
      %v1865 = vpop.f32.mrf.mxu0
      %v1866 = vadd.f32 0.0, %v1865
      %1867 = vmatmul.bf16.gmra.mxu0 %v1302
      %v1868 = vpop.f32.mrf.mxu0
      %v1869 = vadd.f32 0.0, %v1868
      %v1870 = vpop.f32.mrf.mxu0
      %v1871 = vadd.f32 0.0, %v1870
      %1872 = vmatmul.bf16.gmra.mxu0 %v1305
      %v1873 = vpop.f32.mrf.mxu0
      %v1874 = vadd.f32 0.0, %v1873
      %v1875 = vpop.f32.mrf.mxu0
      %v1876 = vadd.f32 0.0, %v1875
      %1877 = vmatmul.bf16.gmra.mxu0 %v1308
      %v1878 = vpop.f32.mrf.mxu0
      %v1879 = vadd.f32 0.0, %v1878
      %v1880 = vpop.f32.mrf.mxu0
      %v1881 = vadd.f32 0.0, %v1880
      %1882 = vmatmul.bf16.gmra.mxu0 %v1311
      %v1883 = vpop.f32.mrf.mxu0
      %v1884 = vadd.f32 0.0, %v1883
      %v1885 = vpop.f32.mrf.mxu0
      %v1886 = vadd.f32 0.0, %v1885
      %1887 = vmatmul.bf16.gmra.mxu0 %v1314
      %v1888 = vpop.f32.mrf.mxu0
      %v1889 = vadd.f32 0.0, %v1888
      %v1890 = vpop.f32.mrf.mxu0
      %v1891 = vadd.f32 0.0, %v1890
      %1892 = vmatmul.bf16.gmra.mxu0 %v1317
      %v1893 = vpop.f32.mrf.mxu0
      %v1894 = vadd.f32 0.0, %v1893
      %v1895 = vpop.f32.mrf.mxu0
      %v1896 = vadd.f32 0.0, %v1895
      %1897 = vmatmul.bf16.gmra.mxu0 %v1320
      %v1898 = vpop.f32.mrf.mxu0
      %v1899 = vadd.f32 0.0, %v1898
      %v1900 = vpop.f32.mrf.mxu0
      %v1901 = vadd.f32 0.0, %v1900
      %1902 = vmatmul.bf16.gmra.mxu0 %v1323
      %v1903 = vpop.f32.mrf.mxu0
      %v1904 = vadd.f32 0.0, %v1903
      %v1905 = vpop.f32.mrf.mxu0
      %v1906 = vadd.f32 0.0, %v1905
      %1907 = vmatmul.bf16.gmra.mxu0 %v1326
      %v1908 = vpop.f32.mrf.mxu0
      %v1909 = vadd.f32 0.0, %v1908
      %v1910 = vpop.f32.mrf.mxu0
      %v1911 = vadd.f32 0.0, %v1910
      %1912 = vmatmul.bf16.gmra.mxu0 %v1329
      %v1913 = vpop.f32.mrf.mxu0
      %v1914 = vadd.f32 0.0, %v1913
      %v1915 = vpop.f32.mrf.mxu0
      %v1916 = vadd.f32 0.0, %v1915
      %1917 = vmatmul.bf16.gmra.mxu0 %v1332
      %v1918 = vpop.f32.mrf.mxu0
      %v1919 = vadd.f32 0.0, %v1918
      %v1920 = vpop.f32.mrf.mxu0
      %v1921 = vadd.f32 0.0, %v1920
      %1922 = vmatmul.bf16.gmra.mxu0 %v1335
      %v1923 = vpop.f32.mrf.mxu0
      %v1924 = vadd.f32 0.0, %v1923
      %v1925 = vpop.f32.mrf.mxu0
      %v1926 = vadd.f32 0.0, %v1925
      %1927 = vmatmul.bf16.gmra.mxu0 %v1338
      %v1928 = vpop.f32.mrf.mxu0
      %v1929 = vadd.f32 0.0, %v1928
      %v1930 = vpop.f32.mrf.mxu0
      %v1931 = vadd.f32 0.0, %v1930
      %1932 = vmatmul.bf16.gmra.mxu0 %v1341
      %v1933 = vpop.f32.mrf.mxu0
      %v1934 = vadd.f32 0.0, %v1933
      %v1935 = vpop.f32.mrf.mxu0
      %v1936 = vadd.f32 0.0, %v1935
      %1937 = vmatmul.bf16.gmra.mxu0 %v1344
      %v1938 = vpop.f32.mrf.mxu0
      %v1939 = vadd.f32 0.0, %v1938
      %v1940 = vpop.f32.mrf.mxu0
      %v1941 = vadd.f32 0.0, %v1940
      %1942 = vmatmul.bf16.gmra.mxu0 %v1347
      %v1943 = vpop.f32.mrf.mxu0
      %v1944 = vadd.f32 0.0, %v1943
      %v1945 = vpop.f32.mrf.mxu0
      %v1946 = vadd.f32 0.0, %v1945
      %1947 = vmatmul.bf16.gmra.mxu0 %v1350
      %v1948 = vpop.f32.mrf.mxu0
      %v1949 = vadd.f32 0.0, %v1948
      %v1950 = vpop.f32.mrf.mxu0
      %v1951 = vadd.f32 0.0, %v1950
      %1952 = vmatmul.bf16.gmra.mxu0 %v1353
      %v1953 = vpop.f32.mrf.mxu0
      %v1954 = vadd.f32 0.0, %v1953
      %v1955 = vpop.f32.mrf.mxu0
      %v1956 = vadd.f32 0.0, %v1955
      %1957 = vmatmul.bf16.gmra.mxu0 %v1356
      %v1958 = vpop.f32.mrf.mxu0
      %v1959 = vadd.f32 0.0, %v1958
      %v1960 = vpop.f32.mrf.mxu0
      %v1961 = vadd.f32 0.0, %v1960
      %1962 = vmatmul.bf16.gmra.mxu0 %v1359
      %v1963 = vpop.f32.mrf.mxu0
      %v1964 = vadd.f32 0.0, %v1963
      %v1965 = vpop.f32.mrf.mxu0
      %v1966 = vadd.f32 0.0, %v1965
      %1967 = vmatmul.bf16.gmra.mxu0 %v1362
      %v1968 = vpop.f32.mrf.mxu0
      %v1969 = vadd.f32 0.0, %v1968
      %v1970 = vpop.f32.mrf.mxu0
      %v1971 = vadd.f32 0.0, %v1970
      %1972 = vmatmul.bf16.gmra.mxu0 %v1365
      %v1973 = vpop.f32.mrf.mxu0
      %v1974 = vadd.f32 0.0, %v1973
      %v1975 = vpop.f32.mrf.mxu0
      %v1976 = vadd.f32 0.0, %v1975
      %1977 = vmatmul.bf16.gmra.mxu0 %v1368
      %v1978 = vpop.f32.mrf.mxu0
      %v1979 = vadd.f32 0.0, %v1978
      %v1980 = vpop.f32.mrf.mxu0
      %v1981 = vadd.f32 0.0, %v1980
      %1982 = vmatmul.bf16.gmra.mxu0 %v1371
      %v1983 = vpop.f32.mrf.mxu0
      %v1984 = vadd.f32 0.0, %v1983
      %v1985 = vpop.f32.mrf.mxu0
      %v1986 = vadd.f32 0.0, %v1985
      %1987 = vmatmul.bf16.gmra.mxu0 %v1374
      %v1988 = vpop.f32.mrf.mxu0
      %v1989 = vadd.f32 0.0, %v1988
      %v1990 = vpop.f32.mrf.mxu0
      %v1991 = vadd.f32 0.0, %v1990
      %1992 = vmatmul.bf16.gmra.mxu0 %v1377
      %v1993 = vpop.f32.mrf.mxu0
      %v1994 = vadd.f32 0.0, %v1993
      %v1995 = vpop.f32.mrf.mxu0
      %v1996 = vadd.f32 0.0, %v1995
      %1997 = vmatmul.bf16.gmra.mxu0 %v1380
      %v1998 = vpop.f32.mrf.mxu0
      %v1999 = vadd.f32 0.0, %v1998
      %v2000 = vpop.f32.mrf.mxu0
      %v2001 = vadd.f32 0.0, %v2000
      %2002 = vmatmul.bf16.gmra.mxu0 %v1383
      %v2003 = vpop.f32.mrf.mxu0
      %v2004 = vadd.f32 0.0, %v2003
      %v2005 = vpop.f32.mrf.mxu0
      %v2006 = vadd.f32 0.0, %v2005
      %2007 = vmatmul.bf16.gmra.mxu0 %v1386
      %v2008 = vpop.f32.mrf.mxu0
      %v2009 = vadd.f32 0.0, %v2008
      %v2010 = vpop.f32.mrf.mxu0
      %v2011 = vadd.f32 0.0, %v2010
      %2012 = vmatmul.bf16.gmra.mxu0 %v1389
      %v2013 = vpop.f32.mrf.mxu0
      %v2014 = vadd.f32 0.0, %v2013
      %v2015 = vpop.f32.mrf.mxu0
      %v2016 = vadd.f32 0.0, %v2015
      %2017 = vmatmul.bf16.gmra.mxu0 %v1392
      %v2018 = vpop.f32.mrf.mxu0
      %v2019 = vadd.f32 0.0, %v2018
      %v2020 = vpop.f32.mrf.mxu0
      %v2021 = vadd.f32 0.0, %v2020
      %2022 = vmatmul.bf16.gmra.mxu0 %v1395
      %v2023 = vpop.f32.mrf.mxu0
      %v2024 = vadd.f32 0.0, %v2023
      %v2025 = vpop.f32.mrf.mxu0
      %v2026 = vadd.f32 0.0, %v2025
      %2027 = vmatmul.bf16.gmra.mxu0 %v1398
      %v2028 = vpop.f32.mrf.mxu0
      %v2029 = vadd.f32 0.0, %v2028
      %v2030 = vpop.f32.mrf.mxu0
      %v2031 = vadd.f32 0.0, %v2030
      %2032 = vmatmul.bf16.gmra.mxu0 %v1401
      %v2033 = vpop.f32.mrf.mxu0
      %v2034 = vadd.f32 0.0, %v2033
      %v2035 = vpop.f32.mrf.mxu0
      %v2036 = vadd.f32 0.0, %v2035
      %2037 = vmatmul.bf16.gmra.mxu0 %v1404
      %v2038 = vpop.f32.mrf.mxu0
      %v2039 = vadd.f32 0.0, %v2038
      %v2040 = vpop.f32.mrf.mxu0
      %v2041 = vadd.f32 0.0, %v2040
      %2042 = vmatmul.bf16.gmra.mxu0 %v1407
      %v2043 = vpop.f32.mrf.mxu0
      %v2044 = vadd.f32 0.0, %v2043
      %v2045 = vpop.f32.mrf.mxu0
      %v2046 = vadd.f32 0.0, %v2045
      %2047 = vmatmul.bf16.gmra.mxu0 %v1410
      %v2048 = vpop.f32.mrf.mxu0
      %v2049 = vadd.f32 0.0, %v2048
      %v2050 = vpop.f32.mrf.mxu0
      %v2051 = vadd.f32 0.0, %v2050
      %2052 = vmatmul.bf16.gmra.mxu0 %v1413
      %v2053 = vpop.f32.mrf.mxu0
      %v2054 = vadd.f32 0.0, %v2053
      %v2055 = vpop.f32.mrf.mxu0
      %v2056 = vadd.f32 0.0, %v2055
      %2057 = vmatmul.bf16.gmra.mxu0 %v1416
      %v2058 = vpop.f32.mrf.mxu0
      %v2059 = vadd.f32 0.0, %v2058
      %v2060 = vpop.f32.mrf.mxu0
      %v2061 = vadd.f32 0.0, %v2060
      %2062 = vmatmul.bf16.gmra.mxu0 %v1419
      %v2063 = vpop.f32.mrf.mxu0
      %v2064 = vadd.f32 0.0, %v2063
      %v2065 = vpop.f32.mrf.mxu0
      %v2066 = vadd.f32 0.0, %v2065
      %2067 = vmatmul.bf16.gmra.mxu0 %v1422
      %v2068 = vpop.f32.mrf.mxu0
      %v2069 = vadd.f32 0.0, %v2068
      %v2070 = vpop.f32.mrf.mxu0
      %v2071 = vadd.f32 0.0, %v2070
      %2072 = vmatmul.bf16.gmra.mxu0 %v1425
      %v2073 = vpop.f32.mrf.mxu0
      %v2074 = vadd.f32 0.0, %v2073
      %v2075 = vpop.f32.mrf.mxu0
      %v2076 = vadd.f32 0.0, %v2075
      %2077 = vmatmul.bf16.gmra.mxu0 %v1428
      %v2078 = vpop.f32.mrf.mxu0
      %v2079 = vadd.f32 0.0, %v2078
      %v2080 = vpop.f32.mrf.mxu0
      %v2081 = vadd.f32 0.0, %v2080
      %2082 = vdwg.mxu0
      %v2083 = vpack.c.bf16 %v1444, %v1444
      %v2084 = vpack.c.bf16 %v1446, %v1446
      %v2085 = vpack.c.bf16 %v1449, %v1449
      %v2086 = vpack.c.bf16 %v1451, %v1451
      %v2087 = vpack.c.bf16 %v1454, %v1454
      %v2088 = vpack.c.bf16 %v1456, %v1456
      %v2089 = vpack.c.bf16 %v1459, %v1459
      %v2090 = vpack.c.bf16 %v1461, %v1461
      %v2091 = vpack.c.bf16 %v1464, %v1464
      %v2092 = vpack.c.bf16 %v1466, %v1466
      %v2093 = vpack.c.bf16 %v1469, %v1469
      %v2094 = vpack.c.bf16 %v1471, %v1471
      %v2095 = vpack.c.bf16 %v1474, %v1474
      %v2096 = vpack.c.bf16 %v1476, %v1476
      %v2097 = vpack.c.bf16 %v1479, %v1479
      %v2098 = vpack.c.bf16 %v1481, %v1481
      %v2099 = vpack.c.bf16 %v1484, %v1484
      %v2100 = vpack.c.bf16 %v1486, %v1486
      %v2101 = vpack.c.bf16 %v1489, %v1489
      %v2102 = vpack.c.bf16 %v1491, %v1491
      %v2103 = vpack.c.bf16 %v1494, %v1494
      %v2104 = vpack.c.bf16 %v1496, %v1496
      %v2105 = vpack.c.bf16 %v1499, %v1499
      %v2106 = vpack.c.bf16 %v1501, %v1501
      %v2107 = vpack.c.bf16 %v1504, %v1504
      %v2108 = vpack.c.bf16 %v1506, %v1506
      %v2109 = vpack.c.bf16 %v1509, %v1509
      %v2110 = vpack.c.bf16 %v1511, %v1511
      %v2111 = vpack.c.bf16 %v1514, %v1514
      %v2112 = vpack.c.bf16 %v1516, %v1516
      %v2113 = vpack.c.bf16 %v1519, %v1519
      %v2114 = vpack.c.bf16 %v1521, %v1521
      %v2115 = vpack.c.bf16 %v1524, %v1524
      %v2116 = vpack.c.bf16 %v1526, %v1526
      %v2117 = vpack.c.bf16 %v1529, %v1529
      %v2118 = vpack.c.bf16 %v1531, %v1531
      %v2119 = vpack.c.bf16 %v1534, %v1534
      %v2120 = vpack.c.bf16 %v1536, %v1536
      %v2121 = vpack.c.bf16 %v1539, %v1539
      %v2122 = vpack.c.bf16 %v1541, %v1541
      %v2123 = vpack.c.bf16 %v1544, %v1544
      %v2124 = vpack.c.bf16 %v1546, %v1546
      %v2125 = vpack.c.bf16 %v1549, %v1549
      %v2126 = vpack.c.bf16 %v1551, %v1551
      %v2127 = vpack.c.bf16 %v1554, %v1554
      %v2128 = vpack.c.bf16 %v1556, %v1556
      %v2129 = vpack.c.bf16 %v1559, %v1559
      %v2130 = vpack.c.bf16 %v1561, %v1561
      %v2131 = vpack.c.bf16 %v1564, %v1564
      %v2132 = vpack.c.bf16 %v1566, %v1566
      %v2133 = vpack.c.bf16 %v1569, %v1569
      %v2134 = vpack.c.bf16 %v1571, %v1571
      %v2135 = vpack.c.bf16 %v1574, %v1574
      %v2136 = vpack.c.bf16 %v1576, %v1576
      %v2137 = vpack.c.bf16 %v1579, %v1579
      %v2138 = vpack.c.bf16 %v1581, %v1581
      %v2139 = vpack.c.bf16 %v1584, %v1584
      %v2140 = vpack.c.bf16 %v1586, %v1586
      %v2141 = vpack.c.bf16 %v1589, %v1589
      %v2142 = vpack.c.bf16 %v1591, %v1591
      %v2143 = vpack.c.bf16 %v1594, %v1594
      %v2144 = vpack.c.bf16 %v1596, %v1596
      %v2145 = vpack.c.bf16 %v1599, %v1599
      %v2146 = vpack.c.bf16 %v1601, %v1601
      %v2147 = vpack.c.bf16 %v1604, %v1604
      %v2148 = vpack.c.bf16 %v1606, %v1606
      %v2149 = vpack.c.bf16 %v1609, %v1609
      %v2150 = vpack.c.bf16 %v1611, %v1611
      %v2151 = vpack.c.bf16 %v1614, %v1614
      %v2152 = vpack.c.bf16 %v1616, %v1616
      %v2153 = vpack.c.bf16 %v1619, %v1619
      %v2154 = vpack.c.bf16 %v1621, %v1621
      %v2155 = vpack.c.bf16 %v1624, %v1624
      %v2156 = vpack.c.bf16 %v1626, %v1626
      %v2157 = vpack.c.bf16 %v1629, %v1629
      %v2158 = vpack.c.bf16 %v1631, %v1631
      %v2159 = vpack.c.bf16 %v1634, %v1634
      %v2160 = vpack.c.bf16 %v1636, %v1636
      %v2161 = vpack.c.bf16 %v1639, %v1639
      %v2162 = vpack.c.bf16 %v1641, %v1641
      %v2163 = vpack.c.bf16 %v1644, %v1644
      %v2164 = vpack.c.bf16 %v1646, %v1646
      %v2165 = vpack.c.bf16 %v1649, %v1649
      %v2166 = vpack.c.bf16 %v1651, %v1651
      %v2167 = vpack.c.bf16 %v1654, %v1654
      %v2168 = vpack.c.bf16 %v1656, %v1656
      %v2169 = vpack.c.bf16 %v1659, %v1659
      %v2170 = vpack.c.bf16 %v1661, %v1661
      %v2171 = vpack.c.bf16 %v1664, %v1664
      %v2172 = vpack.c.bf16 %v1666, %v1666
      %v2173 = vpack.c.bf16 %v1669, %v1669
      %v2174 = vpack.c.bf16 %v1671, %v1671
      %v2175 = vpack.c.bf16 %v1674, %v1674
      %v2176 = vpack.c.bf16 %v1676, %v1676
      %v2177 = vpack.c.bf16 %v1679, %v1679
      %v2178 = vpack.c.bf16 %v1681, %v1681
      %v2179 = vpack.c.bf16 %v1684, %v1684
      %v2180 = vpack.c.bf16 %v1686, %v1686
      %v2181 = vpack.c.bf16 %v1689, %v1689
      %v2182 = vpack.c.bf16 %v1691, %v1691
      %v2183 = vpack.c.bf16 %v1694, %v1694
      %v2184 = vpack.c.bf16 %v1696, %v1696
      %v2185 = vpack.c.bf16 %v1699, %v1699
      %v2186 = vpack.c.bf16 %v1701, %v1701
      %v2187 = vpack.c.bf16 %v1704, %v1704
      %v2188 = vpack.c.bf16 %v1706, %v1706
      %v2189 = vpack.c.bf16 %v1709, %v1709
      %v2190 = vpack.c.bf16 %v1711, %v1711
      %v2191 = vpack.c.bf16 %v1714, %v1714
      %v2192 = vpack.c.bf16 %v1716, %v1716
      %v2193 = vpack.c.bf16 %v1719, %v1719
      %v2194 = vpack.c.bf16 %v1721, %v1721
      %v2195 = vpack.c.bf16 %v1724, %v1724
      %v2196 = vpack.c.bf16 %v1726, %v1726
      %v2197 = vpack.c.bf16 %v1729, %v1729
      %v2198 = vpack.c.bf16 %v1731, %v1731
      %v2199 = vpack.c.bf16 %v1734, %v1734
      %v2200 = vpack.c.bf16 %v1736, %v1736
      %v2201 = vpack.c.bf16 %v1739, %v1739
      %v2202 = vpack.c.bf16 %v1741, %v1741
      %v2203 = vpack.c.bf16 %v1744, %v1744
      %v2204 = vpack.c.bf16 %v1746, %v1746
      %v2205 = vpack.c.bf16 %v1749, %v1749
      %v2206 = vpack.c.bf16 %v1751, %v1751
      %v2207 = vpack.c.bf16 %v1754, %v1754
      %v2208 = vpack.c.bf16 %v1756, %v1756
      %v2209 = vpack.c.bf16 %v1759, %v1759
      %v2210 = vpack.c.bf16 %v1761, %v1761
      %v2211 = vpack.c.bf16 %v1764, %v1764
      %v2212 = vpack.c.bf16 %v1766, %v1766
      %v2213 = vpack.c.bf16 %v1769, %v1769
      %v2214 = vpack.c.bf16 %v1771, %v1771
      %v2215 = vpack.c.bf16 %v1774, %v1774
      %v2216 = vpack.c.bf16 %v1776, %v1776
      %v2217 = vpack.c.bf16 %v1779, %v1779
      %v2218 = vpack.c.bf16 %v1781, %v1781
      %v2219 = vpack.c.bf16 %v1784, %v1784
      %v2220 = vpack.c.bf16 %v1786, %v1786
      %v2221 = vpack.c.bf16 %v1789, %v1789
      %v2222 = vpack.c.bf16 %v1791, %v1791
      %v2223 = vpack.c.bf16 %v1794, %v1794
      %v2224 = vpack.c.bf16 %v1796, %v1796
      %v2225 = vpack.c.bf16 %v1799, %v1799
      %v2226 = vpack.c.bf16 %v1801, %v1801
      %v2227 = vpack.c.bf16 %v1804, %v1804
      %v2228 = vpack.c.bf16 %v1806, %v1806
      %v2229 = vpack.c.bf16 %v1809, %v1809
      %v2230 = vpack.c.bf16 %v1811, %v1811
      %v2231 = vpack.c.bf16 %v1814, %v1814
      %v2232 = vpack.c.bf16 %v1816, %v1816
      %v2233 = vpack.c.bf16 %v1819, %v1819
      %v2234 = vpack.c.bf16 %v1821, %v1821
      %v2235 = vpack.c.bf16 %v1824, %v1824
      %v2236 = vpack.c.bf16 %v1826, %v1826
      %v2237 = vpack.c.bf16 %v1829, %v1829
      %v2238 = vpack.c.bf16 %v1831, %v1831
      %v2239 = vpack.c.bf16 %v1834, %v1834
      %v2240 = vpack.c.bf16 %v1836, %v1836
      %v2241 = vpack.c.bf16 %v1839, %v1839
      %v2242 = vpack.c.bf16 %v1841, %v1841
      %v2243 = vpack.c.bf16 %v1844, %v1844
      %v2244 = vpack.c.bf16 %v1846, %v1846
      %v2245 = vpack.c.bf16 %v1849, %v1849
      %v2246 = vpack.c.bf16 %v1851, %v1851
      %v2247 = vpack.c.bf16 %v1854, %v1854
      %v2248 = vpack.c.bf16 %v1856, %v1856
      %v2249 = vpack.c.bf16 %v1859, %v1859
      %v2250 = vpack.c.bf16 %v1861, %v1861
      %v2251 = vpack.c.bf16 %v1864, %v1864
      %v2252 = vpack.c.bf16 %v1866, %v1866
      %v2253 = vpack.c.bf16 %v1869, %v1869
      %v2254 = vpack.c.bf16 %v1871, %v1871
      %v2255 = vpack.c.bf16 %v1874, %v1874
      %v2256 = vpack.c.bf16 %v1876, %v1876
      %v2257 = vpack.c.bf16 %v1879, %v1879
      %v2258 = vpack.c.bf16 %v1881, %v1881
      %v2259 = vpack.c.bf16 %v1884, %v1884
      %v2260 = vpack.c.bf16 %v1886, %v1886
      %v2261 = vpack.c.bf16 %v1889, %v1889
      %v2262 = vpack.c.bf16 %v1891, %v1891
      %v2263 = vpack.c.bf16 %v1894, %v1894
      %v2264 = vpack.c.bf16 %v1896, %v1896
      %v2265 = vpack.c.bf16 %v1899, %v1899
      %v2266 = vpack.c.bf16 %v1901, %v1901
      %v2267 = vpack.c.bf16 %v1904, %v1904
      %v2268 = vpack.c.bf16 %v1906, %v1906
      %v2269 = vpack.c.bf16 %v1909, %v1909
      %v2270 = vpack.c.bf16 %v1911, %v1911
      %v2271 = vpack.c.bf16 %v1914, %v1914
      %v2272 = vpack.c.bf16 %v1916, %v1916
      %v2273 = vpack.c.bf16 %v1919, %v1919
      %v2274 = vpack.c.bf16 %v1921, %v1921
      %v2275 = vpack.c.bf16 %v1924, %v1924
      %v2276 = vpack.c.bf16 %v1926, %v1926
      %v2277 = vpack.c.bf16 %v1929, %v1929
      %v2278 = vpack.c.bf16 %v1931, %v1931
      %v2279 = vpack.c.bf16 %v1934, %v1934
      %v2280 = vpack.c.bf16 %v1936, %v1936
      %v2281 = vpack.c.bf16 %v1939, %v1939
      %v2282 = vpack.c.bf16 %v1941, %v1941
      %v2283 = vpack.c.bf16 %v1944, %v1944
      %v2284 = vpack.c.bf16 %v1946, %v1946
      %v2285 = vpack.c.bf16 %v1949, %v1949
      %v2286 = vpack.c.bf16 %v1951, %v1951
      %v2287 = vpack.c.bf16 %v1954, %v1954
      %v2288 = vpack.c.bf16 %v1956, %v1956
      %v2289 = vpack.c.bf16 %v1959, %v1959
      %v2290 = vpack.c.bf16 %v1961, %v1961
      %v2291 = vpack.c.bf16 %v1964, %v1964
      %v2292 = vpack.c.bf16 %v1966, %v1966
      %v2293 = vpack.c.bf16 %v1969, %v1969
      %v2294 = vpack.c.bf16 %v1971, %v1971
      %v2295 = vpack.c.bf16 %v1974, %v1974
      %v2296 = vpack.c.bf16 %v1976, %v1976
      %v2297 = vpack.c.bf16 %v1979, %v1979
      %v2298 = vpack.c.bf16 %v1981, %v1981
      %v2299 = vpack.c.bf16 %v1984, %v1984
      %v2300 = vpack.c.bf16 %v1986, %v1986
      %v2301 = vpack.c.bf16 %v1989, %v1989
      %v2302 = vpack.c.bf16 %v1991, %v1991
      %v2303 = vpack.c.bf16 %v1994, %v1994
      %v2304 = vpack.c.bf16 %v1996, %v1996
      %v2305 = vpack.c.bf16 %v1999, %v1999
      %v2306 = vpack.c.bf16 %v2001, %v2001
      %v2307 = vpack.c.bf16 %v2004, %v2004
      %v2308 = vpack.c.bf16 %v2006, %v2006
      %v2309 = vpack.c.bf16 %v2009, %v2009
      %v2310 = vpack.c.bf16 %v2011, %v2011
      %v2311 = vpack.c.bf16 %v2014, %v2014
      %v2312 = vpack.c.bf16 %v2016, %v2016
      %v2313 = vpack.c.bf16 %v2019, %v2019
      %v2314 = vpack.c.bf16 %v2021, %v2021
      %v2315 = vpack.c.bf16 %v2024, %v2024
      %v2316 = vpack.c.bf16 %v2026, %v2026
      %v2317 = vpack.c.bf16 %v2029, %v2029
      %v2318 = vpack.c.bf16 %v2031, %v2031
      %v2319 = vpack.c.bf16 %v2034, %v2034
      %v2320 = vpack.c.bf16 %v2036, %v2036
      %v2321 = vpack.c.bf16 %v2039, %v2039
      %v2322 = vpack.c.bf16 %v2041, %v2041
      %v2323 = vpack.c.bf16 %v2044, %v2044
      %v2324 = vpack.c.bf16 %v2046, %v2046
      %v2325 = vpack.c.bf16 %v2049, %v2049
      %v2326 = vpack.c.bf16 %v2051, %v2051
      %v2327 = vpack.c.bf16 %v2054, %v2054
      %v2328 = vpack.c.bf16 %v2056, %v2056
      %v2329 = vpack.c.bf16 %v2059, %v2059
      %v2330 = vpack.c.bf16 %v2061, %v2061
      %v2331 = vpack.c.bf16 %v2064, %v2064
      %v2332 = vpack.c.bf16 %v2066, %v2066
      %v2333 = vpack.c.bf16 %v2069, %v2069
      %v2334 = vpack.c.bf16 %v2071, %v2071
      %v2335 = vpack.c.bf16 %v2074, %v2074
      %v2336 = vpack.c.bf16 %v2076, %v2076
      %v2337 = vpack.c.bf16 %v2079, %v2079
      %v2338 = vpack.c.bf16 %v2081, %v2081
      %2339 = vst [vmem:[%s145] sm:$0xf] %v2083
      %2340 = vst [vmem:[%s145 + $0x4] sm:$0xf] %v2084
      %2341 = vst [vmem:[%s145 + $0x8] sm:$0xf] %v2085
      %2342 = vst [vmem:[%s145 + $0xc] sm:$0xf] %v2086
      %2343 = vst [vmem:[%s145 + $0x10] sm:$0xf] %v2087
      %2344 = vst [vmem:[%s145 + $0x14] sm:$0xf] %v2088
      %2345 = vst [vmem:[%s145 + $0x18] sm:$0xf] %v2089
      %2346 = vst [vmem:[%s145 + $0x1c] sm:$0xf] %v2090
      %2347 = vst [vmem:[%s145 + $0x20] sm:$0xf] %v2091
      %2348 = vst [vmem:[%s145 + $0x24] sm:$0xf] %v2092
      %2349 = vst [vmem:[%s145 + $0x28] sm:$0xf] %v2093
      %2350 = vst [vmem:[%s145 + $0x2c] sm:$0xf] %v2094
      %2351 = vst [vmem:[%s145 + $0x30] sm:$0xf] %v2095
      %2352 = vst [vmem:[%s145 + $0x34] sm:$0xf] %v2096
      %2353 = vst [vmem:[%s145 + $0x38] sm:$0xf] %v2097
      %2354 = vst [vmem:[%s145 + $0x3c] sm:$0xf] %v2098
      %2355 = vst [vmem:[%s145 + $0x40] sm:$0xf] %v2099
      %2356 = vst [vmem:[%s145 + $0x44] sm:$0xf] %v2100
      %2357 = vst [vmem:[%s145 + $0x48] sm:$0xf] %v2101
      %2358 = vst [vmem:[%s145 + $0x4c] sm:$0xf] %v2102
      %2359 = vst [vmem:[%s145 + $0x50] sm:$0xf] %v2103
      %2360 = vst [vmem:[%s145 + $0x54] sm:$0xf] %v2104
      %2361 = vst [vmem:[%s145 + $0x58] sm:$0xf] %v2105
      %2362 = vst [vmem:[%s145 + $0x5c] sm:$0xf] %v2106
      %2363 = vst [vmem:[%s145 + $0x60] sm:$0xf] %v2107
      %2364 = vst [vmem:[%s145 + $0x64] sm:$0xf] %v2108
      %2365 = vst [vmem:[%s145 + $0x68] sm:$0xf] %v2109
      %2366 = vst [vmem:[%s145 + $0x6c] sm:$0xf] %v2110
      %2367 = vst [vmem:[%s145 + $0x70] sm:$0xf] %v2111
      %2368 = vst [vmem:[%s145 + $0x74] sm:$0xf] %v2112
      %2369 = vst [vmem:[%s145 + $0x78] sm:$0xf] %v2113
      %2370 = vst [vmem:[%s145 + $0x7c] sm:$0xf] %v2114
      %2371 = vst [vmem:[%s145 + $0x80] sm:$0xf] %v2115
      %2372 = vst [vmem:[%s145 + $0x84] sm:$0xf] %v2116
      %2373 = vst [vmem:[%s145 + $0x88] sm:$0xf] %v2117
      %2374 = vst [vmem:[%s145 + $0x8c] sm:$0xf] %v2118
      %2375 = vst [vmem:[%s145 + $0x90] sm:$0xf] %v2119
      %2376 = vst [vmem:[%s145 + $0x94] sm:$0xf] %v2120
      %2377 = vst [vmem:[%s145 + $0x98] sm:$0xf] %v2121
      %2378 = vst [vmem:[%s145 + $0x9c] sm:$0xf] %v2122
      %2379 = vst [vmem:[%s145 + $0xa0] sm:$0xf] %v2123
      %2380 = vst [vmem:[%s145 + $0xa4] sm:$0xf] %v2124
      %2381 = vst [vmem:[%s145 + $0xa8] sm:$0xf] %v2125
      %2382 = vst [vmem:[%s145 + $0xac] sm:$0xf] %v2126
      %2383 = vst [vmem:[%s145 + $0xb0] sm:$0xf] %v2127
      %2384 = vst [vmem:[%s145 + $0xb4] sm:$0xf] %v2128
      %2385 = vst [vmem:[%s145 + $0xb8] sm:$0xf] %v2129
      %2386 = vst [vmem:[%s145 + $0xbc] sm:$0xf] %v2130
      %2387 = vst [vmem:[%s145 + $0xc0] sm:$0xf] %v2131
      %2388 = vst [vmem:[%s145 + $0xc4] sm:$0xf] %v2132
      %2389 = vst [vmem:[%s145 + $0xc8] sm:$0xf] %v2133
      %2390 = vst [vmem:[%s145 + $0xcc] sm:$0xf] %v2134
      %2391 = vst [vmem:[%s145 + $0xd0] sm:$0xf] %v2135
      %2392 = vst [vmem:[%s145 + $0xd4] sm:$0xf] %v2136
      %2393 = vst [vmem:[%s145 + $0xd8] sm:$0xf] %v2137
      %2394 = vst [vmem:[%s145 + $0xdc] sm:$0xf] %v2138
      %2395 = vst [vmem:[%s145 + $0xe0] sm:$0xf] %v2139
      %2396 = vst [vmem:[%s145 + $0xe4] sm:$0xf] %v2140
      %2397 = vst [vmem:[%s145 + $0xe8] sm:$0xf] %v2141
      %2398 = vst [vmem:[%s145 + $0xec] sm:$0xf] %v2142
      %2399 = vst [vmem:[%s145 + $0xf0] sm:$0xf] %v2143
      %2400 = vst [vmem:[%s145 + $0xf4] sm:$0xf] %v2144
      %2401 = vst [vmem:[%s145 + $0xf8] sm:$0xf] %v2145
      %2402 = vst [vmem:[%s145 + $0xfc] sm:$0xf] %v2146
      %2403 = vst [vmem:[%s145 + $0x100] sm:$0xf] %v2147
      %2404 = vst [vmem:[%s145 + $0x104] sm:$0xf] %v2148
      %2405 = vst [vmem:[%s145 + $0x108] sm:$0xf] %v2149
      %2406 = vst [vmem:[%s145 + $0x10c] sm:$0xf] %v2150
      %2407 = vst [vmem:[%s145 + $0x110] sm:$0xf] %v2151
      %2408 = vst [vmem:[%s145 + $0x114] sm:$0xf] %v2152
      %2409 = vst [vmem:[%s145 + $0x118] sm:$0xf] %v2153
      %2410 = vst [vmem:[%s145 + $0x11c] sm:$0xf] %v2154
      %2411 = vst [vmem:[%s145 + $0x120] sm:$0xf] %v2155
      %2412 = vst [vmem:[%s145 + $0x124] sm:$0xf] %v2156
      %2413 = vst [vmem:[%s145 + $0x128] sm:$0xf] %v2157
      %2414 = vst [vmem:[%s145 + $0x12c] sm:$0xf] %v2158
      %2415 = vst [vmem:[%s145 + $0x130] sm:$0xf] %v2159
      %2416 = vst [vmem:[%s145 + $0x134] sm:$0xf] %v2160
      %2417 = vst [vmem:[%s145 + $0x138] sm:$0xf] %v2161
      %2418 = vst [vmem:[%s145 + $0x13c] sm:$0xf] %v2162
      %2419 = vst [vmem:[%s145 + $0x140] sm:$0xf] %v2163
      %2420 = vst [vmem:[%s145 + $0x144] sm:$0xf] %v2164
      %2421 = vst [vmem:[%s145 + $0x148] sm:$0xf] %v2165
      %2422 = vst [vmem:[%s145 + $0x14c] sm:$0xf] %v2166
      %2423 = vst [vmem:[%s145 + $0x150] sm:$0xf] %v2167
      %2424 = vst [vmem:[%s145 + $0x154] sm:$0xf] %v2168
      %2425 = vst [vmem:[%s145 + $0x158] sm:$0xf] %v2169
      %2426 = vst [vmem:[%s145 + $0x15c] sm:$0xf] %v2170
      %2427 = vst [vmem:[%s145 + $0x160] sm:$0xf] %v2171
      %2428 = vst [vmem:[%s145 + $0x164] sm:$0xf] %v2172
      %2429 = vst [vmem:[%s145 + $0x168] sm:$0xf] %v2173
      %2430 = vst [vmem:[%s145 + $0x16c] sm:$0xf] %v2174
      %2431 = vst [vmem:[%s145 + $0x170] sm:$0xf] %v2175
      %2432 = vst [vmem:[%s145 + $0x174] sm:$0xf] %v2176
      %2433 = vst [vmem:[%s145 + $0x178] sm:$0xf] %v2177
      %2434 = vst [vmem:[%s145 + $0x17c] sm:$0xf] %v2178
      %2435 = vst [vmem:[%s145 + $0x180] sm:$0xf] %v2179
      %2436 = vst [vmem:[%s145 + $0x184] sm:$0xf] %v2180
      %2437 = vst [vmem:[%s145 + $0x188] sm:$0xf] %v2181
      %2438 = vst [vmem:[%s145 + $0x18c] sm:$0xf] %v2182
      %2439 = vst [vmem:[%s145 + $0x190] sm:$0xf] %v2183
      %2440 = vst [vmem:[%s145 + $0x194] sm:$0xf] %v2184
      %2441 = vst [vmem:[%s145 + $0x198] sm:$0xf] %v2185
      %2442 = vst [vmem:[%s145 + $0x19c] sm:$0xf] %v2186
      %2443 = vst [vmem:[%s145 + $0x1a0] sm:$0xf] %v2187
      %2444 = vst [vmem:[%s145 + $0x1a4] sm:$0xf] %v2188
      %2445 = vst [vmem:[%s145 + $0x1a8] sm:$0xf] %v2189
      %2446 = vst [vmem:[%s145 + $0x1ac] sm:$0xf] %v2190
      %2447 = vst [vmem:[%s145 + $0x1b0] sm:$0xf] %v2191
      %2448 = vst [vmem:[%s145 + $0x1b4] sm:$0xf] %v2192
      %2449 = vst [vmem:[%s145 + $0x1b8] sm:$0xf] %v2193
      %2450 = vst [vmem:[%s145 + $0x1bc] sm:$0xf] %v2194
      %2451 = vst [vmem:[%s145 + $0x1c0] sm:$0xf] %v2195
      %2452 = vst [vmem:[%s145 + $0x1c4] sm:$0xf] %v2196
      %2453 = vst [vmem:[%s145 + $0x1c8] sm:$0xf] %v2197
      %2454 = vst [vmem:[%s145 + $0x1cc] sm:$0xf] %v2198
      %2455 = vst [vmem:[%s145 + $0x1d0] sm:$0xf] %v2199
      %2456 = vst [vmem:[%s145 + $0x1d4] sm:$0xf] %v2200
      %2457 = vst [vmem:[%s145 + $0x1d8] sm:$0xf] %v2201
      %2458 = vst [vmem:[%s145 + $0x1dc] sm:$0xf] %v2202
      %2459 = vst [vmem:[%s145 + $0x1e0] sm:$0xf] %v2203
      %2460 = vst [vmem:[%s145 + $0x1e4] sm:$0xf] %v2204
      %2461 = vst [vmem:[%s145 + $0x1e8] sm:$0xf] %v2205
      %2462 = vst [vmem:[%s145 + $0x1ec] sm:$0xf] %v2206
      %2463 = vst [vmem:[%s145 + $0x1f0] sm:$0xf] %v2207
      %2464 = vst [vmem:[%s145 + $0x1f4] sm:$0xf] %v2208
      %2465 = vst [vmem:[%s145 + $0x1f8] sm:$0xf] %v2209
      %2466 = vst [vmem:[%s145 + $0x1fc] sm:$0xf] %v2210
      %2467 = vst [vmem:[%s145 + $0x200] sm:$0xf] %v2211
      %2468 = vst [vmem:[%s145 + $0x204] sm:$0xf] %v2212
      %2469 = vst [vmem:[%s145 + $0x208] sm:$0xf] %v2213
      %2470 = vst [vmem:[%s145 + $0x20c] sm:$0xf] %v2214
      %2471 = vst [vmem:[%s145 + $0x210] sm:$0xf] %v2215
      %2472 = vst [vmem:[%s145 + $0x214] sm:$0xf] %v2216
      %2473 = vst [vmem:[%s145 + $0x218] sm:$0xf] %v2217
      %2474 = vst [vmem:[%s145 + $0x21c] sm:$0xf] %v2218
      %2475 = vst [vmem:[%s145 + $0x220] sm:$0xf] %v2219
      %2476 = vst [vmem:[%s145 + $0x224] sm:$0xf] %v2220
      %2477 = vst [vmem:[%s145 + $0x228] sm:$0xf] %v2221
      %2478 = vst [vmem:[%s145 + $0x22c] sm:$0xf] %v2222
      %2479 = vst [vmem:[%s145 + $0x230] sm:$0xf] %v2223
      %2480 = vst [vmem:[%s145 + $0x234] sm:$0xf] %v2224
      %2481 = vst [vmem:[%s145 + $0x238] sm:$0xf] %v2225
      %2482 = vst [vmem:[%s145 + $0x23c] sm:$0xf] %v2226
      %2483 = vst [vmem:[%s145 + $0x240] sm:$0xf] %v2227
      %2484 = vst [vmem:[%s145 + $0x244] sm:$0xf] %v2228
      %2485 = vst [vmem:[%s145 + $0x248] sm:$0xf] %v2229
      %2486 = vst [vmem:[%s145 + $0x24c] sm:$0xf] %v2230
      %2487 = vst [vmem:[%s145 + $0x250] sm:$0xf] %v2231
      %2488 = vst [vmem:[%s145 + $0x254] sm:$0xf] %v2232
      %2489 = vst [vmem:[%s145 + $0x258] sm:$0xf] %v2233
      %2490 = vst [vmem:[%s145 + $0x25c] sm:$0xf] %v2234
      %2491 = vst [vmem:[%s145 + $0x260] sm:$0xf] %v2235
      %2492 = vst [vmem:[%s145 + $0x264] sm:$0xf] %v2236
      %2493 = vst [vmem:[%s145 + $0x268] sm:$0xf] %v2237
      %2494 = vst [vmem:[%s145 + $0x26c] sm:$0xf] %v2238
      %2495 = vst [vmem:[%s145 + $0x270] sm:$0xf] %v2239
      %2496 = vst [vmem:[%s145 + $0x274] sm:$0xf] %v2240
      %2497 = vst [vmem:[%s145 + $0x278] sm:$0xf] %v2241
      %2498 = vst [vmem:[%s145 + $0x27c] sm:$0xf] %v2242
      %2499 = vst [vmem:[%s145 + $0x280] sm:$0xf] %v2243
      %2500 = vst [vmem:[%s145 + $0x284] sm:$0xf] %v2244
      %2501 = vst [vmem:[%s145 + $0x288] sm:$0xf] %v2245
      %2502 = vst [vmem:[%s145 + $0x28c] sm:$0xf] %v2246
      %2503 = vst [vmem:[%s145 + $0x290] sm:$0xf] %v2247
      %2504 = vst [vmem:[%s145 + $0x294] sm:$0xf] %v2248
      %2505 = vst [vmem:[%s145 + $0x298] sm:$0xf] %v2249
      %2506 = vst [vmem:[%s145 + $0x29c] sm:$0xf] %v2250
      %2507 = vst [vmem:[%s145 + $0x2a0] sm:$0xf] %v2251
      %2508 = vst [vmem:[%s145 + $0x2a4] sm:$0xf] %v2252
      %2509 = vst [vmem:[%s145 + $0x2a8] sm:$0xf] %v2253
      %2510 = vst [vmem:[%s145 + $0x2ac] sm:$0xf] %v2254
      %2511 = vst [vmem:[%s145 + $0x2b0] sm:$0xf] %v2255
      %2512 = vst [vmem:[%s145 + $0x2b4] sm:$0xf] %v2256
      %2513 = vst [vmem:[%s145 + $0x2b8] sm:$0xf] %v2257
      %2514 = vst [vmem:[%s145 + $0x2bc] sm:$0xf] %v2258
      %2515 = vst [vmem:[%s145 + $0x2c0] sm:$0xf] %v2259
      %2516 = vst [vmem:[%s145 + $0x2c4] sm:$0xf] %v2260
      %2517 = vst [vmem:[%s145 + $0x2c8] sm:$0xf] %v2261
      %2518 = vst [vmem:[%s145 + $0x2cc] sm:$0xf] %v2262
      %2519 = vst [vmem:[%s145 + $0x2d0] sm:$0xf] %v2263
      %2520 = vst [vmem:[%s145 + $0x2d4] sm:$0xf] %v2264
      %2521 = vst [vmem:[%s145 + $0x2d8] sm:$0xf] %v2265
      %2522 = vst [vmem:[%s145 + $0x2dc] sm:$0xf] %v2266
      %2523 = vst [vmem:[%s145 + $0x2e0] sm:$0xf] %v2267
      %2524 = vst [vmem:[%s145 + $0x2e4] sm:$0xf] %v2268
      %2525 = vst [vmem:[%s145 + $0x2e8] sm:$0xf] %v2269
      %2526 = vst [vmem:[%s145 + $0x2ec] sm:$0xf] %v2270
      %2527 = vst [vmem:[%s145 + $0x2f0] sm:$0xf] %v2271
      %2528 = vst [vmem:[%s145 + $0x2f4] sm:$0xf] %v2272
      %2529 = vst [vmem:[%s145 + $0x2f8] sm:$0xf] %v2273
      %2530 = vst [vmem:[%s145 + $0x2fc] sm:$0xf] %v2274
      %2531 = vst [vmem:[%s145 + $0x300] sm:$0xf] %v2275
      %2532 = vst [vmem:[%s145 + $0x304] sm:$0xf] %v2276
      %2533 = vst [vmem:[%s145 + $0x308] sm:$0xf] %v2277
      %2534 = vst [vmem:[%s145 + $0x30c] sm:$0xf] %v2278
      %2535 = vst [vmem:[%s145 + $0x310] sm:$0xf] %v2279
      %2536 = vst [vmem:[%s145 + $0x314] sm:$0xf] %v2280
      %2537 = vst [vmem:[%s145 + $0x318] sm:$0xf] %v2281
      %2538 = vst [vmem:[%s145 + $0x31c] sm:$0xf] %v2282
      %2539 = vst [vmem:[%s145 + $0x320] sm:$0xf] %v2283
      %2540 = vst [vmem:[%s145 + $0x324] sm:$0xf] %v2284
      %2541 = vst [vmem:[%s145 + $0x328] sm:$0xf] %v2285
      %2542 = vst [vmem:[%s145 + $0x32c] sm:$0xf] %v2286
      %2543 = vst [vmem:[%s145 + $0x330] sm:$0xf] %v2287
      %2544 = vst [vmem:[%s145 + $0x334] sm:$0xf] %v2288
      %2545 = vst [vmem:[%s145 + $0x338] sm:$0xf] %v2289
      %2546 = vst [vmem:[%s145 + $0x33c] sm:$0xf] %v2290
      %2547 = vst [vmem:[%s145 + $0x340] sm:$0xf] %v2291
      %2548 = vst [vmem:[%s145 + $0x344] sm:$0xf] %v2292
      %2549 = vst [vmem:[%s145 + $0x348] sm:$0xf] %v2293
      %2550 = vst [vmem:[%s145 + $0x34c] sm:$0xf] %v2294
      %2551 = vst [vmem:[%s145 + $0x350] sm:$0xf] %v2295
      %2552 = vst [vmem:[%s145 + $0x354] sm:$0xf] %v2296
      %2553 = vst [vmem:[%s145 + $0x358] sm:$0xf] %v2297
      %2554 = vst [vmem:[%s145 + $0x35c] sm:$0xf] %v2298
      %2555 = vst [vmem:[%s145 + $0x360] sm:$0xf] %v2299
      %2556 = vst [vmem:[%s145 + $0x364] sm:$0xf] %v2300
      %2557 = vst [vmem:[%s145 + $0x368] sm:$0xf] %v2301
      %2558 = vst [vmem:[%s145 + $0x36c] sm:$0xf] %v2302
      %2559 = vst [vmem:[%s145 + $0x370] sm:$0xf] %v2303
      %2560 = vst [vmem:[%s145 + $0x374] sm:$0xf] %v2304
      %2561 = vst [vmem:[%s145 + $0x378] sm:$0xf] %v2305
      %2562 = vst [vmem:[%s145 + $0x37c] sm:$0xf] %v2306
      %2563 = vst [vmem:[%s145 + $0x380] sm:$0xf] %v2307
      %2564 = vst [vmem:[%s145 + $0x384] sm:$0xf] %v2308
      %2565 = vst [vmem:[%s145 + $0x388] sm:$0xf] %v2309
      %2566 = vst [vmem:[%s145 + $0x38c] sm:$0xf] %v2310
      %2567 = vst [vmem:[%s145 + $0x390] sm:$0xf] %v2311
      %2568 = vst [vmem:[%s145 + $0x394] sm:$0xf] %v2312
      %2569 = vst [vmem:[%s145 + $0x398] sm:$0xf] %v2313
      %2570 = vst [vmem:[%s145 + $0x39c] sm:$0xf] %v2314
      %2571 = vst [vmem:[%s145 + $0x3a0] sm:$0xf] %v2315
      %2572 = vst [vmem:[%s145 + $0x3a4] sm:$0xf] %v2316
      %2573 = vst [vmem:[%s145 + $0x3a8] sm:$0xf] %v2317
      %2574 = vst [vmem:[%s145 + $0x3ac] sm:$0xf] %v2318
      %2575 = vst [vmem:[%s145 + $0x3b0] sm:$0xf] %v2319
      %2576 = vst [vmem:[%s145 + $0x3b4] sm:$0xf] %v2320
      %2577 = vst [vmem:[%s145 + $0x3b8] sm:$0xf] %v2321
      %2578 = vst [vmem:[%s145 + $0x3bc] sm:$0xf] %v2322
      %2579 = vst [vmem:[%s145 + $0x3c0] sm:$0xf] %v2323
      %2580 = vst [vmem:[%s145 + $0x3c4] sm:$0xf] %v2324
      %2581 = vst [vmem:[%s145 + $0x3c8] sm:$0xf] %v2325
      %2582 = vst [vmem:[%s145 + $0x3cc] sm:$0xf] %v2326
      %2583 = vst [vmem:[%s145 + $0x3d0] sm:$0xf] %v2327
      %2584 = vst [vmem:[%s145 + $0x3d4] sm:$0xf] %v2328
      %2585 = vst [vmem:[%s145 + $0x3d8] sm:$0xf] %v2329
      %2586 = vst [vmem:[%s145 + $0x3dc] sm:$0xf] %v2330
      %2587 = vst [vmem:[%s145 + $0x3e0] sm:$0xf] %v2331
      %2588 = vst [vmem:[%s145 + $0x3e4] sm:$0xf] %v2332
      %2589 = vst [vmem:[%s145 + $0x3e8] sm:$0xf] %v2333
      %2590 = vst [vmem:[%s145 + $0x3ec] sm:$0xf] %v2334
      %2591 = vst [vmem:[%s145 + $0x3f0] sm:$0xf] %v2335
      %2592 = vst [vmem:[%s145 + $0x3f4] sm:$0xf] %v2336
      %2593 = vst [vmem:[%s145 + $0x3f8] sm:$0xf] %v2337
      %2594 = vst [vmem:[%s145 + $0x3fc] sm:$0xf] %v2338
      %s2595 = smul.u32 256, %s13
      %p2596 = scmp.lt.s32.totalorder %s2595, 1023
      %s2597 = scalar_select %p2596, %s2595, 1023
      %s2598 = smul.addr %s2597, 4
      %s2599 = scalar_lea.vmem %s2, %s2598
      // Predicated region
      $region29: #{decoder_forward.20} parent=27 // pred_check
        %p2600 = pneg %p78
      $region30: #{decoder_forward.20} parent=27 // pred_check_branch
        %2602 = sbr.rel (%p2600) target = $region32
      $region31: #{decoder_forward.20} parent=27 // pred_region
        %s2603 = smul.u32 256, %s13
      $region32: #{decoder_forward.20} parent=27 // pred_fallthru
        _
    $region28: #{decoder_forward.20} parent=5 // pred_fallthru
      _
    %p2604 = scmp.le.s32.totalorder 2, %s8
    // Predicated region
    $region33: #{decoder_forward.20} parent=5 // pred_check
      %p2605 = pneg %p2604
    $region34: #{decoder_forward.20} parent=5 // pred_check_branch
      %2607 = sbr.rel (%p2605) target = $region36
    $region35: #{decoder_forward.20} parent=5 // pred_region
      %s2608 = ssub.s32 %s8, 2
      // Predicated region
      $region37: #{decoder_forward.20} parent=35 // pred_check
        %p2609 = pneg %p84
      $region38: #{decoder_forward.20} parent=35 // pred_check_branch
        %2611 = sbr.rel (%p2609) target = $region40
      $region39: #{decoder_forward.20} parent=35 // pred_region
        %s2612 = smul.u32 256, %s14
        %p2613 = scmp.lt.s32.totalorder %s2612, 1023
        %s2614 = scalar_select %p2613, %s2612, 1023
        %s2615 = smul.addr %s2614, 4
        %s2616 = scalar_lea.vmem %s2, %s2615
      $region40: #{decoder_forward.20} parent=35 // pred_fallthru
        _
    $region36: #{decoder_forward.20} parent=5 // pred_fallthru
      _
  $region6: #{decoder_forward.20} parent=0 // loop_footer
    %s12 = sadd.s32 1, %s8
  $region7: #{decoder_forward.20} parent=0 // loop_footer_branch
    %7 = sbr.rel target = $region3
  $region8: #{decoder_forward.20} parent=0 // loop_exit
    _

// kernel: decoder_forward.21
$region0: #{decoder_forward.21}
  #allocation0 [shape = 'u32[]', space=smem, size = 0x4, offset = 0x4, fixed_abs, tag = 'smem constant byte address 0x4 - core index']
  #allocation1 [shape = 'u32[72,128]{1,0:T(1,128)}', space=vmem, size = 0x9000, scoped, tag = 'internal scratch']
  %s0 = inlined_call_operand.vmem [shape: bf16[32768,8], index: 0, kind: input, shape index: {}]
  %s1 = inlined_call_operand.vmem [shape: bf16[8,48], index: 1, kind: input, shape index: {}]
  %s2 = inlined_call_operand.vmem [shape: f32[32768,48], index: 2, kind: output, shape index: {}]
  %s3 = sld [smem:[#allocation0]]
  $region41: #{decoder_forward.21} parent=0
    _
  %s5 = ssub.s32 1, %s3
  %s6 = scalar_select 0, %s5, %s3
  loop: start=0, step=1, limit=18
  $region2: #{decoder_forward.21} parent=0 // loop_pre_header
    _
  $region3: #{decoder_forward.21} parent=0 // loop_header
    %s8 = sphi 0, %s12
    %p9 = scmp.ge.s32.totalorder %s8, 18
    %s18 = sphi 0, %s20
    %s21 = sphi 0, %s18
    %s22 = sphi 0, %s21
    %s38 = sphi 0, %s22
    %s42 = sphi 0, %s42
    %s44 = sphi 0, %s42
    %s45 = sphi 0, %s44
    %s59 = sphi 0, %s45
    %s65 = sphi 0, %s67
    %s68 = sphi 0, %s65
    %s69 = sphi 0, %s68
    %s85 = sphi 0, %s69
  $region4: #{decoder_forward.21} parent=0 // loop_header_branch
    %11 = sbr.rel (%p9) target = $region8
  $region5: #{decoder_forward.21} parent=0 // loop_body
    %s13 = ssub.s32 %s8, 1
    %s14 = ssub.s32 %s8, 2
    %s15 = sadd.s32 %s8, 1
    %s16 = ssub.s32 %s8, %s15
    %p17 = scmp.eq.s32.totalorder %s16, 0
    %s19 = sadd.s32 %s18, 1
    %s20 = scalar_select %p17, %s18, %s19
    %p23 = pneg %p17
    %p24 = scmp.eq.s32.totalorder %s8, 15
    %p25 = por %p23, %p24
    %p26 = scmp.ne.s32.totalorder %s18, %s21
    %p27 = scmp.eq.s32.totalorder %s8, 0
    %p28 = por %p26, %p27
    %p29 = scmp.ne.s32.totalorder %s18, %s21
    %p30 = scmp.eq.s32.totalorder %s13, 15
    %p31 = por %p29, %p30
    %p32 = scmp.ne.s32.totalorder %s21, %s22
    %p33 = scmp.eq.s32.totalorder %s13, 0
    %p34 = por %p32, %p33
    %p35 = scmp.ne.s32.totalorder %s21, %s22
    %p36 = scmp.eq.s32.totalorder %s14, 15
    %p37 = por %p35, %p36
    %p39 = scmp.ne.s32.totalorder %s22, %s38
    %p40 = scmp.eq.s32.totalorder %s14, 0
    %p41 = por %p39, %p40
    %s43 = sadd.s32 %s42, 1
    %p46 = scmp.eq.s32.totalorder %s8, 15
    %p47 = scmp.ne.s32.totalorder %s42, %s44
    %p48 = scmp.eq.s32.totalorder %s8, 0
    %p49 = por %p47, %p48
    %p50 = scmp.ne.s32.totalorder %s42, %s44
    %p51 = scmp.eq.s32.totalorder %s13, 15
    %p52 = por %p50, %p51
    %p53 = scmp.ne.s32.totalorder %s44, %s45
    %p54 = scmp.eq.s32.totalorder %s13, 0
    %p55 = por %p53, %p54
    %p56 = scmp.ne.s32.totalorder %s44, %s45
    %p57 = scmp.eq.s32.totalorder %s14, 15
    %p58 = por %p56, %p57
    %p60 = scmp.ne.s32.totalorder %s45, %s59
    %p61 = scmp.eq.s32.totalorder %s14, 0
    %p62 = por %p60, %p61
    %s63 = ssub.s32 %s8, %s15
    %p64 = scmp.eq.s32.totalorder %s63, 0
    %s66 = sadd.s32 %s65, 1
    %s67 = scalar_select %p64, %s65, %s66
    %p70 = pneg %p64
    %p71 = scmp.eq.s32.totalorder %s8, 15
    %p72 = por %p70, %p71
    %p73 = scmp.ne.s32.totalorder %s65, %s68
    %p74 = scmp.eq.s32.totalorder %s8, 0
    %p75 = por %p73, %p74
    %p76 = scmp.ne.s32.totalorder %s65, %s68
    %p77 = scmp.eq.s32.totalorder %s13, 15
    %p78 = por %p76, %p77
    %p79 = scmp.ne.s32.totalorder %s68, %s69
    %p80 = scmp.eq.s32.totalorder %s13, 0
    %p81 = por %p79, %p80
    %p82 = scmp.ne.s32.totalorder %s68, %s69
    %p83 = scmp.eq.s32.totalorder %s14, 15
    %p84 = por %p82, %p83
    %p86 = scmp.ne.s32.totalorder %s69, %s85
    %p87 = scmp.eq.s32.totalorder %s14, 0
    %p88 = por %p86, %p87
    %p89 = scmp.le.s32.totalorder 1, %s8
    %p90 = scmp.lt.s32.totalorder %s8, 17
    %p91 = pnand %p89, %p90
    %p92 = pneg %p91
    // Predicated region
    $region9: #{decoder_forward.21} parent=5 // pred_check
      _
    $region10: #{decoder_forward.21} parent=5 // pred_check_branch
      %94 = sbr.rel (%p91) target = $region12
    $region11: #{decoder_forward.21} parent=5 // pred_region
      %s95 = ssub.s32 %s8, 1
      // Predicated region
      $region13: #{decoder_forward.21} parent=11 // pred_check
        %p96 = pneg %p55
      $region14: #{decoder_forward.21} parent=11 // pred_check_branch
        %98 = sbr.rel (%p96) target = $region16
      $region15: #{decoder_forward.21} parent=11 // pred_region
        _
      $region16: #{decoder_forward.21} parent=11 // pred_fallthru
        _
    $region12: #{decoder_forward.21} parent=5 // pred_fallthru
      _
    %p99 = scmp.lt.s32.totalorder %s8, 16
    // Predicated region
    $region17: #{decoder_forward.21} parent=5 // pred_check
      %p100 = pneg %p99
    $region18: #{decoder_forward.21} parent=5 // pred_check_branch
      %102 = sbr.rel (%p100) target = $region20
    $region19: #{decoder_forward.21} parent=5 // pred_region
      // Predicated region
      $region21: #{decoder_forward.21} parent=19 // pred_check
        %p103 = pneg %p28
      $region22: #{decoder_forward.21} parent=19 // pred_check_branch
        %105 = sbr.rel (%p103) target = $region24
      $region23: #{decoder_forward.21} parent=19 // pred_region
        %s106 = smul.u32 256, %s8
        %p107 = scmp.lt.s32.totalorder %s106, 4095
        %s108 = scalar_select %p107, %s106, 4095
        %s109 = smul.addr %s108, 4
        %s110 = scalar_lea.vmem %s0, %s109
        %s111 = smul.u32 256, %s8
      $region24: #{decoder_forward.21} parent=19 // pred_fallthru
        _
    $region20: #{decoder_forward.21} parent=5 // pred_fallthru
      _
    %p112 = scmp.le.s32.totalorder 1, %s8
    %p113 = scmp.lt.s32.totalorder %s8, 17
    %p114 = pnand %p112, %p113
    %p115 = pneg %p114
    // Predicated region
    $region25: #{decoder_forward.21} parent=5 // pred_check
      _
    $region26: #{decoder_forward.21} parent=5 // pred_check_branch
      %117 = sbr.rel (%p114) target = $region28
    $region27: #{decoder_forward.21} parent=5 // pred_region
      %s118 = ssub.s32 %s8, 1
      %s119 = smul.u32 256, %s13
      %p120 = scmp.lt.s32.totalorder %s119, 4095
      %s121 = scalar_select %p120, %s119, 4095
      %s122 = smul.addr %s121, 4
      %s123 = scalar_lea.vmem %s0, %s122
      %p124 = pneg %p34
      %p125 = pneg %p31
      %p126 = pneg %p55
      %p127 = pneg %p52
      %p128 = pneg %p81
      %p129 = pneg %p78
      %s130 = smul.u32 256, %s13
      %p131 = scmp.lt.s32.totalorder %s130, 4095
      %s132 = scalar_select %p131, %s130, 4095
      %s133 = smul.addr %s132, 8
      %s134 = scalar_lea.vmem %s2, %s133
      %s135 = smul.u32 256, %s13
      %p136 = scmp.lt.s32.totalorder %s135, 4095
      %s137 = scalar_select %p136, %s135, 4095
      %s138 = smul.addr %s137, 4
      %s139 = scalar_lea.vmem %s0, %s138
      %s140 = smul.u32 256, %s13
      %s141 = smul.u32 256, %s13
      %p142 = scmp.lt.s32.totalorder %s141, 4095
      %s143 = scalar_select %p142, %s141, 4095
      %s144 = smul.addr %s143, 8
      %s145 = scalar_lea.vmem %s2, %s144
      %s146 = smul.u32 256, %s13
      %v148 = vld [vmem:[%s139] sm:$0xf]
      %v149 = vld [vmem:[%s139 + $0x4] sm:$0xf]
      %v150 = vld [vmem:[%s139 + $0x8] sm:$0xf]
      %v151 = vld [vmem:[%s139 + $0xc] sm:$0xf]
      %v152 = vld [vmem:[%s139 + $0x10] sm:$0xf]
      %v153 = vld [vmem:[%s139 + $0x14] sm:$0xf]
      %v154 = vld [vmem:[%s139 + $0x18] sm:$0xf]
      %v155 = vld [vmem:[%s139 + $0x1c] sm:$0xf]
      %v156 = vld [vmem:[%s139 + $0x20] sm:$0xf]
      %v157 = vld [vmem:[%s139 + $0x24] sm:$0xf]
      %v158 = vld [vmem:[%s139 + $0x28] sm:$0xf]
      %v159 = vld [vmem:[%s139 + $0x2c] sm:$0xf]
      %v160 = vld [vmem:[%s139 + $0x30] sm:$0xf]
      %v161 = vld [vmem:[%s139 + $0x34] sm:$0xf]
      %v162 = vld [vmem:[%s139 + $0x38] sm:$0xf]
      %v163 = vld [vmem:[%s139 + $0x3c] sm:$0xf]
      %v164 = vld [vmem:[%s139 + $0x40] sm:$0xf]
      %v165 = vld [vmem:[%s139 + $0x44] sm:$0xf]
      %v166 = vld [vmem:[%s139 + $0x48] sm:$0xf]
      %v167 = vld [vmem:[%s139 + $0x4c] sm:$0xf]
      %v168 = vld [vmem:[%s139 + $0x50] sm:$0xf]
      %v169 = vld [vmem:[%s139 + $0x54] sm:$0xf]
      %v170 = vld [vmem:[%s139 + $0x58] sm:$0xf]
      %v171 = vld [vmem:[%s139 + $0x5c] sm:$0xf]
      %v172 = vld [vmem:[%s139 + $0x60] sm:$0xf]
      %v173 = vld [vmem:[%s139 + $0x64] sm:$0xf]
      %v174 = vld [vmem:[%s139 + $0x68] sm:$0xf]
      %v175 = vld [vmem:[%s139 + $0x6c] sm:$0xf]
      %v176 = vld [vmem:[%s139 + $0x70] sm:$0xf]
      %v177 = vld [vmem:[%s139 + $0x74] sm:$0xf]
      %v178 = vld [vmem:[%s139 + $0x78] sm:$0xf]
      %v179 = vld [vmem:[%s139 + $0x7c] sm:$0xf]
      %v180 = vld [vmem:[%s139 + $0x80] sm:$0xf]
      %v181 = vld [vmem:[%s139 + $0x84] sm:$0xf]
      %v182 = vld [vmem:[%s139 + $0x88] sm:$0xf]
      %v183 = vld [vmem:[%s139 + $0x8c] sm:$0xf]
      %v184 = vld [vmem:[%s139 + $0x90] sm:$0xf]
      %v185 = vld [vmem:[%s139 + $0x94] sm:$0xf]
      %v186 = vld [vmem:[%s139 + $0x98] sm:$0xf]
      %v187 = vld [vmem:[%s139 + $0x9c] sm:$0xf]
      %v188 = vld [vmem:[%s139 + $0xa0] sm:$0xf]
      %v189 = vld [vmem:[%s139 + $0xa4] sm:$0xf]
      %v190 = vld [vmem:[%s139 + $0xa8] sm:$0xf]
      %v191 = vld [vmem:[%s139 + $0xac] sm:$0xf]
      %v192 = vld [vmem:[%s139 + $0xb0] sm:$0xf]
      %v193 = vld [vmem:[%s139 + $0xb4] sm:$0xf]
      %v194 = vld [vmem:[%s139 + $0xb8] sm:$0xf]
      %v195 = vld [vmem:[%s139 + $0xbc] sm:$0xf]
      %v196 = vld [vmem:[%s139 + $0xc0] sm:$0xf]
      %v197 = vld [vmem:[%s139 + $0xc4] sm:$0xf]
      %v198 = vld [vmem:[%s139 + $0xc8] sm:$0xf]
      %v199 = vld [vmem:[%s139 + $0xcc] sm:$0xf]
      %v200 = vld [vmem:[%s139 + $0xd0] sm:$0xf]
      %v201 = vld [vmem:[%s139 + $0xd4] sm:$0xf]
      %v202 = vld [vmem:[%s139 + $0xd8] sm:$0xf]
      %v203 = vld [vmem:[%s139 + $0xdc] sm:$0xf]
      %v204 = vld [vmem:[%s139 + $0xe0] sm:$0xf]
      %v205 = vld [vmem:[%s139 + $0xe4] sm:$0xf]
      %v206 = vld [vmem:[%s139 + $0xe8] sm:$0xf]
      %v207 = vld [vmem:[%s139 + $0xec] sm:$0xf]
      %v208 = vld [vmem:[%s139 + $0xf0] sm:$0xf]
      %v209 = vld [vmem:[%s139 + $0xf4] sm:$0xf]
      %v210 = vld [vmem:[%s139 + $0xf8] sm:$0xf]
      %v211 = vld [vmem:[%s139 + $0xfc] sm:$0xf]
      %v212 = vld [vmem:[%s139 + $0x100] sm:$0xf]
      %v213 = vld [vmem:[%s139 + $0x104] sm:$0xf]
      %v214 = vld [vmem:[%s139 + $0x108] sm:$0xf]
      %v215 = vld [vmem:[%s139 + $0x10c] sm:$0xf]
      %v216 = vld [vmem:[%s139 + $0x110] sm:$0xf]
      %v217 = vld [vmem:[%s139 + $0x114] sm:$0xf]
      %v218 = vld [vmem:[%s139 + $0x118] sm:$0xf]
      %v219 = vld [vmem:[%s139 + $0x11c] sm:$0xf]
      %v220 = vld [vmem:[%s139 + $0x120] sm:$0xf]
      %v221 = vld [vmem:[%s139 + $0x124] sm:$0xf]
      %v222 = vld [vmem:[%s139 + $0x128] sm:$0xf]
      %v223 = vld [vmem:[%s139 + $0x12c] sm:$0xf]
      %v224 = vld [vmem:[%s139 + $0x130] sm:$0xf]
      %v225 = vld [vmem:[%s139 + $0x134] sm:$0xf]
      %v226 = vld [vmem:[%s139 + $0x138] sm:$0xf]
      %v227 = vld [vmem:[%s139 + $0x13c] sm:$0xf]
      %v228 = vld [vmem:[%s139 + $0x140] sm:$0xf]
      %v229 = vld [vmem:[%s139 + $0x144] sm:$0xf]
      %v230 = vld [vmem:[%s139 + $0x148] sm:$0xf]
      %v231 = vld [vmem:[%s139 + $0x14c] sm:$0xf]
      %v232 = vld [vmem:[%s139 + $0x150] sm:$0xf]
      %v233 = vld [vmem:[%s139 + $0x154] sm:$0xf]
      %v234 = vld [vmem:[%s139 + $0x158] sm:$0xf]
      %v235 = vld [vmem:[%s139 + $0x15c] sm:$0xf]
      %v236 = vld [vmem:[%s139 + $0x160] sm:$0xf]
      %v237 = vld [vmem:[%s139 + $0x164] sm:$0xf]
      %v238 = vld [vmem:[%s139 + $0x168] sm:$0xf]
      %v239 = vld [vmem:[%s139 + $0x16c] sm:$0xf]
      %v240 = vld [vmem:[%s139 + $0x170] sm:$0xf]
      %v241 = vld [vmem:[%s139 + $0x174] sm:$0xf]
      %v242 = vld [vmem:[%s139 + $0x178] sm:$0xf]
      %v243 = vld [vmem:[%s139 + $0x17c] sm:$0xf]
      %v244 = vld [vmem:[%s139 + $0x180] sm:$0xf]
      %v245 = vld [vmem:[%s139 + $0x184] sm:$0xf]
      %v246 = vld [vmem:[%s139 + $0x188] sm:$0xf]
      %v247 = vld [vmem:[%s139 + $0x18c] sm:$0xf]
      %v248 = vld [vmem:[%s139 + $0x190] sm:$0xf]
      %v249 = vld [vmem:[%s139 + $0x194] sm:$0xf]
      %v250 = vld [vmem:[%s139 + $0x198] sm:$0xf]
      %v251 = vld [vmem:[%s139 + $0x19c] sm:$0xf]
      %v252 = vld [vmem:[%s139 + $0x1a0] sm:$0xf]
      %v253 = vld [vmem:[%s139 + $0x1a4] sm:$0xf]
      %v254 = vld [vmem:[%s139 + $0x1a8] sm:$0xf]
      %v255 = vld [vmem:[%s139 + $0x1ac] sm:$0xf]
      %v256 = vld [vmem:[%s139 + $0x1b0] sm:$0xf]
      %v257 = vld [vmem:[%s139 + $0x1b4] sm:$0xf]
      %v258 = vld [vmem:[%s139 + $0x1b8] sm:$0xf]
      %v259 = vld [vmem:[%s139 + $0x1bc] sm:$0xf]
      %v260 = vld [vmem:[%s139 + $0x1c0] sm:$0xf]
      %v261 = vld [vmem:[%s139 + $0x1c4] sm:$0xf]
      %v262 = vld [vmem:[%s139 + $0x1c8] sm:$0xf]
      %v263 = vld [vmem:[%s139 + $0x1cc] sm:$0xf]
      %v264 = vld [vmem:[%s139 + $0x1d0] sm:$0xf]
      %v265 = vld [vmem:[%s139 + $0x1d4] sm:$0xf]
      %v266 = vld [vmem:[%s139 + $0x1d8] sm:$0xf]
      %v267 = vld [vmem:[%s139 + $0x1dc] sm:$0xf]
      %v268 = vld [vmem:[%s139 + $0x1e0] sm:$0xf]
      %v269 = vld [vmem:[%s139 + $0x1e4] sm:$0xf]
      %v270 = vld [vmem:[%s139 + $0x1e8] sm:$0xf]
      %v271 = vld [vmem:[%s139 + $0x1ec] sm:$0xf]
      %v272 = vld [vmem:[%s139 + $0x1f0] sm:$0xf]
      %v273 = vld [vmem:[%s139 + $0x1f4] sm:$0xf]
      %v274 = vld [vmem:[%s139 + $0x1f8] sm:$0xf]
      %v275 = vld [vmem:[%s139 + $0x1fc] sm:$0xf]
      %v276 = vld [vmem:[%s139 + $0x200] sm:$0xf]
      %v277 = vld [vmem:[%s139 + $0x204] sm:$0xf]
      %v278 = vld [vmem:[%s139 + $0x208] sm:$0xf]
      %v279 = vld [vmem:[%s139 + $0x20c] sm:$0xf]
      %v280 = vld [vmem:[%s139 + $0x210] sm:$0xf]
      %v281 = vld [vmem:[%s139 + $0x214] sm:$0xf]
      %v282 = vld [vmem:[%s139 + $0x218] sm:$0xf]
      %v283 = vld [vmem:[%s139 + $0x21c] sm:$0xf]
      %v284 = vld [vmem:[%s139 + $0x220] sm:$0xf]
      %v285 = vld [vmem:[%s139 + $0x224] sm:$0xf]
      %v286 = vld [vmem:[%s139 + $0x228] sm:$0xf]
      %v287 = vld [vmem:[%s139 + $0x22c] sm:$0xf]
      %v288 = vld [vmem:[%s139 + $0x230] sm:$0xf]
      %v289 = vld [vmem:[%s139 + $0x234] sm:$0xf]
      %v290 = vld [vmem:[%s139 + $0x238] sm:$0xf]
      %v291 = vld [vmem:[%s139 + $0x23c] sm:$0xf]
      %v292 = vld [vmem:[%s139 + $0x240] sm:$0xf]
      %v293 = vld [vmem:[%s139 + $0x244] sm:$0xf]
      %v294 = vld [vmem:[%s139 + $0x248] sm:$0xf]
      %v295 = vld [vmem:[%s139 + $0x24c] sm:$0xf]
      %v296 = vld [vmem:[%s139 + $0x250] sm:$0xf]
      %v297 = vld [vmem:[%s139 + $0x254] sm:$0xf]
      %v298 = vld [vmem:[%s139 + $0x258] sm:$0xf]
      %v299 = vld [vmem:[%s139 + $0x25c] sm:$0xf]
      %v300 = vld [vmem:[%s139 + $0x260] sm:$0xf]
      %v301 = vld [vmem:[%s139 + $0x264] sm:$0xf]
      %v302 = vld [vmem:[%s139 + $0x268] sm:$0xf]
      %v303 = vld [vmem:[%s139 + $0x26c] sm:$0xf]
      %v304 = vld [vmem:[%s139 + $0x270] sm:$0xf]
      %v305 = vld [vmem:[%s139 + $0x274] sm:$0xf]
      %v306 = vld [vmem:[%s139 + $0x278] sm:$0xf]
      %v307 = vld [vmem:[%s139 + $0x27c] sm:$0xf]
      %v308 = vld [vmem:[%s139 + $0x280] sm:$0xf]
      %v309 = vld [vmem:[%s139 + $0x284] sm:$0xf]
      %v310 = vld [vmem:[%s139 + $0x288] sm:$0xf]
      %v311 = vld [vmem:[%s139 + $0x28c] sm:$0xf]
      %v312 = vld [vmem:[%s139 + $0x290] sm:$0xf]
      %v313 = vld [vmem:[%s139 + $0x294] sm:$0xf]
      %v314 = vld [vmem:[%s139 + $0x298] sm:$0xf]
      %v315 = vld [vmem:[%s139 + $0x29c] sm:$0xf]
      %v316 = vld [vmem:[%s139 + $0x2a0] sm:$0xf]
      %v317 = vld [vmem:[%s139 + $0x2a4] sm:$0xf]
      %v318 = vld [vmem:[%s139 + $0x2a8] sm:$0xf]
      %v319 = vld [vmem:[%s139 + $0x2ac] sm:$0xf]
      %v320 = vld [vmem:[%s139 + $0x2b0] sm:$0xf]
      %v321 = vld [vmem:[%s139 + $0x2b4] sm:$0xf]
      %v322 = vld [vmem:[%s139 + $0x2b8] sm:$0xf]
      %v323 = vld [vmem:[%s139 + $0x2bc] sm:$0xf]
      %v324 = vld [vmem:[%s139 + $0x2c0] sm:$0xf]
      %v325 = vld [vmem:[%s139 + $0x2c4] sm:$0xf]
      %v326 = vld [vmem:[%s139 + $0x2c8] sm:$0xf]
      %v327 = vld [vmem:[%s139 + $0x2cc] sm:$0xf]
      %v328 = vld [vmem:[%s139 + $0x2d0] sm:$0xf]
      %v329 = vld [vmem:[%s139 + $0x2d4] sm:$0xf]
      %v330 = vld [vmem:[%s139 + $0x2d8] sm:$0xf]
      %v331 = vld [vmem:[%s139 + $0x2dc] sm:$0xf]
      %v332 = vld [vmem:[%s139 + $0x2e0] sm:$0xf]
      %v333 = vld [vmem:[%s139 + $0x2e4] sm:$0xf]
      %v334 = vld [vmem:[%s139 + $0x2e8] sm:$0xf]
      %v335 = vld [vmem:[%s139 + $0x2ec] sm:$0xf]
      %v336 = vld [vmem:[%s139 + $0x2f0] sm:$0xf]
      %v337 = vld [vmem:[%s139 + $0x2f4] sm:$0xf]
      %v338 = vld [vmem:[%s139 + $0x2f8] sm:$0xf]
      %v339 = vld [vmem:[%s139 + $0x2fc] sm:$0xf]
      %v340 = vld [vmem:[%s139 + $0x300] sm:$0xf]
      %v341 = vld [vmem:[%s139 + $0x304] sm:$0xf]
      %v342 = vld [vmem:[%s139 + $0x308] sm:$0xf]
      %v343 = vld [vmem:[%s139 + $0x30c] sm:$0xf]
      %v344 = vld [vmem:[%s139 + $0x310] sm:$0xf]
      %v345 = vld [vmem:[%s139 + $0x314] sm:$0xf]
      %v346 = vld [vmem:[%s139 + $0x318] sm:$0xf]
      %v347 = vld [vmem:[%s139 + $0x31c] sm:$0xf]
      %v348 = vld [vmem:[%s139 + $0x320] sm:$0xf]
      %v349 = vld [vmem:[%s139 + $0x324] sm:$0xf]
      %v350 = vld [vmem:[%s139 + $0x328] sm:$0xf]
      %v351 = vld [vmem:[%s139 + $0x32c] sm:$0xf]
      %v352 = vld [vmem:[%s139 + $0x330] sm:$0xf]
      %v353 = vld [vmem:[%s139 + $0x334] sm:$0xf]
      %v354 = vld [vmem:[%s139 + $0x338] sm:$0xf]
      %v355 = vld [vmem:[%s139 + $0x33c] sm:$0xf]
      %v356 = vld [vmem:[%s139 + $0x340] sm:$0xf]
      %v357 = vld [vmem:[%s139 + $0x344] sm:$0xf]
      %v358 = vld [vmem:[%s139 + $0x348] sm:$0xf]
      %v359 = vld [vmem:[%s139 + $0x34c] sm:$0xf]
      %v360 = vld [vmem:[%s139 + $0x350] sm:$0xf]
      %v361 = vld [vmem:[%s139 + $0x354] sm:$0xf]
      %v362 = vld [vmem:[%s139 + $0x358] sm:$0xf]
      %v363 = vld [vmem:[%s139 + $0x35c] sm:$0xf]
      %v364 = vld [vmem:[%s139 + $0x360] sm:$0xf]
      %v365 = vld [vmem:[%s139 + $0x364] sm:$0xf]
      %v366 = vld [vmem:[%s139 + $0x368] sm:$0xf]
      %v367 = vld [vmem:[%s139 + $0x36c] sm:$0xf]
      %v368 = vld [vmem:[%s139 + $0x370] sm:$0xf]
      %v369 = vld [vmem:[%s139 + $0x374] sm:$0xf]
      %v370 = vld [vmem:[%s139 + $0x378] sm:$0xf]
      %v371 = vld [vmem:[%s139 + $0x37c] sm:$0xf]
      %v372 = vld [vmem:[%s139 + $0x380] sm:$0xf]
      %v373 = vld [vmem:[%s139 + $0x384] sm:$0xf]
      %v374 = vld [vmem:[%s139 + $0x388] sm:$0xf]
      %v375 = vld [vmem:[%s139 + $0x38c] sm:$0xf]
      %v376 = vld [vmem:[%s139 + $0x390] sm:$0xf]
      %v377 = vld [vmem:[%s139 + $0x394] sm:$0xf]
      %v378 = vld [vmem:[%s139 + $0x398] sm:$0xf]
      %v379 = vld [vmem:[%s139 + $0x39c] sm:$0xf]
      %v380 = vld [vmem:[%s139 + $0x3a0] sm:$0xf]
      %v381 = vld [vmem:[%s139 + $0x3a4] sm:$0xf]
      %v382 = vld [vmem:[%s139 + $0x3a8] sm:$0xf]
      %v383 = vld [vmem:[%s139 + $0x3ac] sm:$0xf]
      %v384 = vld [vmem:[%s139 + $0x3b0] sm:$0xf]
      %v385 = vld [vmem:[%s139 + $0x3b4] sm:$0xf]
      %v386 = vld [vmem:[%s139 + $0x3b8] sm:$0xf]
      %v387 = vld [vmem:[%s139 + $0x3bc] sm:$0xf]
      %v388 = vld [vmem:[%s139 + $0x3c0] sm:$0xf]
      %v389 = vld [vmem:[%s139 + $0x3c4] sm:$0xf]
      %v390 = vld [vmem:[%s139 + $0x3c8] sm:$0xf]
      %v391 = vld [vmem:[%s139 + $0x3cc] sm:$0xf]
      %v392 = vld [vmem:[%s139 + $0x3d0] sm:$0xf]
      %v393 = vld [vmem:[%s139 + $0x3d4] sm:$0xf]
      %v394 = vld [vmem:[%s139 + $0x3d8] sm:$0xf]
      %v395 = vld [vmem:[%s139 + $0x3dc] sm:$0xf]
      %v396 = vld [vmem:[%s139 + $0x3e0] sm:$0xf]
      %v397 = vld [vmem:[%s139 + $0x3e4] sm:$0xf]
      %v398 = vld [vmem:[%s139 + $0x3e8] sm:$0xf]
      %v399 = vld [vmem:[%s139 + $0x3ec] sm:$0xf]
      %v400 = vld [vmem:[%s139 + $0x3f0] sm:$0xf]
      %v401 = vld [vmem:[%s139 + $0x3f4] sm:$0xf]
      %v402 = vld [vmem:[%s139 + $0x3f8] sm:$0xf]
      %v403 = vld [vmem:[%s139 + $0x3fc] sm:$0xf]
      %v404 = vld [vmem:[%s1] sm:$0xf]
      %v661 = vunpack.c.l.b16 %v148
      %v662 = vunpack.c.l.b16 %v149
      %v663 = vunpack.c.l.b16 %v150
      %v664 = vunpack.c.l.b16 %v151
      %v665 = vunpack.c.l.b16 %v152
      %v666 = vunpack.c.l.b16 %v153
      %v667 = vunpack.c.l.b16 %v154
      %v668 = vunpack.c.l.b16 %v155
      %v669 = vunpack.c.l.b16 %v156
      %v670 = vunpack.c.l.b16 %v157
      %v671 = vunpack.c.l.b16 %v158
      %v672 = vunpack.c.l.b16 %v159
      %v673 = vunpack.c.l.b16 %v160
      %v674 = vunpack.c.l.b16 %v161
      %v675 = vunpack.c.l.b16 %v162
      %v676 = vunpack.c.l.b16 %v163
      %v677 = vunpack.c.l.b16 %v164
      %v678 = vunpack.c.l.b16 %v165
      %v679 = vunpack.c.l.b16 %v166
      %v680 = vunpack.c.l.b16 %v167
      %v681 = vunpack.c.l.b16 %v168
      %v682 = vunpack.c.l.b16 %v169
      %v683 = vunpack.c.l.b16 %v170
      %v684 = vunpack.c.l.b16 %v171
      %v685 = vunpack.c.l.b16 %v172
      %v686 = vunpack.c.l.b16 %v173
      %v687 = vunpack.c.l.b16 %v174
      %v688 = vunpack.c.l.b16 %v175
      %v689 = vunpack.c.l.b16 %v176
      %v690 = vunpack.c.l.b16 %v177
      %v691 = vunpack.c.l.b16 %v178
      %v692 = vunpack.c.l.b16 %v179
      %v693 = vunpack.c.l.b16 %v180
      %v694 = vunpack.c.l.b16 %v181
      %v695 = vunpack.c.l.b16 %v182
      %v696 = vunpack.c.l.b16 %v183
      %v697 = vunpack.c.l.b16 %v184
      %v698 = vunpack.c.l.b16 %v185
      %v699 = vunpack.c.l.b16 %v186
      %v700 = vunpack.c.l.b16 %v187
      %v701 = vunpack.c.l.b16 %v188
      %v702 = vunpack.c.l.b16 %v189
      %v703 = vunpack.c.l.b16 %v190
      %v704 = vunpack.c.l.b16 %v191
      %v705 = vunpack.c.l.b16 %v192
      %v706 = vunpack.c.l.b16 %v193
      %v707 = vunpack.c.l.b16 %v194
      %v708 = vunpack.c.l.b16 %v195
      %v709 = vunpack.c.l.b16 %v196
      %v710 = vunpack.c.l.b16 %v197
      %v711 = vunpack.c.l.b16 %v198
      %v712 = vunpack.c.l.b16 %v199
      %v713 = vunpack.c.l.b16 %v200
      %v714 = vunpack.c.l.b16 %v201
      %v715 = vunpack.c.l.b16 %v202
      %v716 = vunpack.c.l.b16 %v203
      %v717 = vunpack.c.l.b16 %v204
      %v718 = vunpack.c.l.b16 %v205
      %v719 = vunpack.c.l.b16 %v206
      %v720 = vunpack.c.l.b16 %v207
      %v721 = vunpack.c.l.b16 %v208
      %v722 = vunpack.c.l.b16 %v209
      %v723 = vunpack.c.l.b16 %v210
      %v724 = vunpack.c.l.b16 %v211
      %v725 = vunpack.c.l.b16 %v212
      %v726 = vunpack.c.l.b16 %v213
      %v727 = vunpack.c.l.b16 %v214
      %v728 = vunpack.c.l.b16 %v215
      %v729 = vunpack.c.l.b16 %v216
      %v730 = vunpack.c.l.b16 %v217
      %v731 = vunpack.c.l.b16 %v218
      %v732 = vunpack.c.l.b16 %v219
      %v733 = vunpack.c.l.b16 %v220
      %v734 = vunpack.c.l.b16 %v221
      %v735 = vunpack.c.l.b16 %v222
      %v736 = vunpack.c.l.b16 %v223
      %v737 = vunpack.c.l.b16 %v224
      %v738 = vunpack.c.l.b16 %v225
      %v739 = vunpack.c.l.b16 %v226
      %v740 = vunpack.c.l.b16 %v227
      %v741 = vunpack.c.l.b16 %v228
      %v742 = vunpack.c.l.b16 %v229
      %v743 = vunpack.c.l.b16 %v230
      %v744 = vunpack.c.l.b16 %v231
      %v745 = vunpack.c.l.b16 %v232
      %v746 = vunpack.c.l.b16 %v233
      %v747 = vunpack.c.l.b16 %v234
      %v748 = vunpack.c.l.b16 %v235
      %v749 = vunpack.c.l.b16 %v236
      %v750 = vunpack.c.l.b16 %v237
      %v751 = vunpack.c.l.b16 %v238
      %v752 = vunpack.c.l.b16 %v239
      %v753 = vunpack.c.l.b16 %v240
      %v754 = vunpack.c.l.b16 %v241
      %v755 = vunpack.c.l.b16 %v242
      %v756 = vunpack.c.l.b16 %v243
      %v757 = vunpack.c.l.b16 %v244
      %v758 = vunpack.c.l.b16 %v245
      %v759 = vunpack.c.l.b16 %v246
      %v760 = vunpack.c.l.b16 %v247
      %v761 = vunpack.c.l.b16 %v248
      %v762 = vunpack.c.l.b16 %v249
      %v763 = vunpack.c.l.b16 %v250
      %v764 = vunpack.c.l.b16 %v251
      %v765 = vunpack.c.l.b16 %v252
      %v766 = vunpack.c.l.b16 %v253
      %v767 = vunpack.c.l.b16 %v254
      %v768 = vunpack.c.l.b16 %v255
      %v769 = vunpack.c.l.b16 %v256
      %v770 = vunpack.c.l.b16 %v257
      %v771 = vunpack.c.l.b16 %v258
      %v772 = vunpack.c.l.b16 %v259
      %v773 = vunpack.c.l.b16 %v260
      %v774 = vunpack.c.l.b16 %v261
      %v775 = vunpack.c.l.b16 %v262
      %v776 = vunpack.c.l.b16 %v263
      %v777 = vunpack.c.l.b16 %v264
      %v778 = vunpack.c.l.b16 %v265
      %v779 = vunpack.c.l.b16 %v266
      %v780 = vunpack.c.l.b16 %v267
      %v781 = vunpack.c.l.b16 %v268
      %v782 = vunpack.c.l.b16 %v269
      %v783 = vunpack.c.l.b16 %v270
      %v784 = vunpack.c.l.b16 %v271
      %v785 = vunpack.c.l.b16 %v272
      %v786 = vunpack.c.l.b16 %v273
      %v787 = vunpack.c.l.b16 %v274
      %v788 = vunpack.c.l.b16 %v275
      %v789 = vunpack.c.l.b16 %v276
      %v790 = vunpack.c.l.b16 %v277
      %v791 = vunpack.c.l.b16 %v278
      %v792 = vunpack.c.l.b16 %v279
      %v793 = vunpack.c.l.b16 %v280
      %v794 = vunpack.c.l.b16 %v281
      %v795 = vunpack.c.l.b16 %v282
      %v796 = vunpack.c.l.b16 %v283
      %v797 = vunpack.c.l.b16 %v284
      %v798 = vunpack.c.l.b16 %v285
      %v799 = vunpack.c.l.b16 %v286
      %v800 = vunpack.c.l.b16 %v287
      %v801 = vunpack.c.l.b16 %v288
      %v802 = vunpack.c.l.b16 %v289
      %v803 = vunpack.c.l.b16 %v290
      %v804 = vunpack.c.l.b16 %v291
      %v805 = vunpack.c.l.b16 %v292
      %v806 = vunpack.c.l.b16 %v293
      %v807 = vunpack.c.l.b16 %v294
      %v808 = vunpack.c.l.b16 %v295
      %v809 = vunpack.c.l.b16 %v296
      %v810 = vunpack.c.l.b16 %v297
      %v811 = vunpack.c.l.b16 %v298
      %v812 = vunpack.c.l.b16 %v299
      %v813 = vunpack.c.l.b16 %v300
      %v814 = vunpack.c.l.b16 %v301
      %v815 = vunpack.c.l.b16 %v302
      %v816 = vunpack.c.l.b16 %v303
      %v817 = vunpack.c.l.b16 %v304
      %v818 = vunpack.c.l.b16 %v305
      %v819 = vunpack.c.l.b16 %v306
      %v820 = vunpack.c.l.b16 %v307
      %v821 = vunpack.c.l.b16 %v308
      %v822 = vunpack.c.l.b16 %v309
      %v823 = vunpack.c.l.b16 %v310
      %v824 = vunpack.c.l.b16 %v311
      %v825 = vunpack.c.l.b16 %v312
      %v826 = vunpack.c.l.b16 %v313
      %v827 = vunpack.c.l.b16 %v314
      %v828 = vunpack.c.l.b16 %v315
      %v829 = vunpack.c.l.b16 %v316
      %v830 = vunpack.c.l.b16 %v317
      %v831 = vunpack.c.l.b16 %v318
      %v832 = vunpack.c.l.b16 %v319
      %v833 = vunpack.c.l.b16 %v320
      %v834 = vunpack.c.l.b16 %v321
      %v835 = vunpack.c.l.b16 %v322
      %v836 = vunpack.c.l.b16 %v323
      %v837 = vunpack.c.l.b16 %v324
      %v838 = vunpack.c.l.b16 %v325
      %v839 = vunpack.c.l.b16 %v326
      %v840 = vunpack.c.l.b16 %v327
      %v841 = vunpack.c.l.b16 %v328
      %v842 = vunpack.c.l.b16 %v329
      %v843 = vunpack.c.l.b16 %v330
      %v844 = vunpack.c.l.b16 %v331
      %v845 = vunpack.c.l.b16 %v332
      %v846 = vunpack.c.l.b16 %v333
      %v847 = vunpack.c.l.b16 %v334
      %v848 = vunpack.c.l.b16 %v335
      %v849 = vunpack.c.l.b16 %v336
      %v850 = vunpack.c.l.b16 %v337
      %v851 = vunpack.c.l.b16 %v338
      %v852 = vunpack.c.l.b16 %v339
      %v853 = vunpack.c.l.b16 %v340
      %v854 = vunpack.c.l.b16 %v341
      %v855 = vunpack.c.l.b16 %v342
      %v856 = vunpack.c.l.b16 %v343
      %v857 = vunpack.c.l.b16 %v344
      %v858 = vunpack.c.l.b16 %v345
      %v859 = vunpack.c.l.b16 %v346
      %v860 = vunpack.c.l.b16 %v347
      %v861 = vunpack.c.l.b16 %v348
      %v862 = vunpack.c.l.b16 %v349
      %v863 = vunpack.c.l.b16 %v350
      %v864 = vunpack.c.l.b16 %v351
      %v865 = vunpack.c.l.b16 %v352
      %v866 = vunpack.c.l.b16 %v353
      %v867 = vunpack.c.l.b16 %v354
      %v868 = vunpack.c.l.b16 %v355
      %v869 = vunpack.c.l.b16 %v356
      %v870 = vunpack.c.l.b16 %v357
      %v871 = vunpack.c.l.b16 %v358
      %v872 = vunpack.c.l.b16 %v359
      %v873 = vunpack.c.l.b16 %v360
      %v874 = vunpack.c.l.b16 %v361
      %v875 = vunpack.c.l.b16 %v362
      %v876 = vunpack.c.l.b16 %v363
      %v877 = vunpack.c.l.b16 %v364
      %v878 = vunpack.c.l.b16 %v365
      %v879 = vunpack.c.l.b16 %v366
      %v880 = vunpack.c.l.b16 %v367
      %v881 = vunpack.c.l.b16 %v368
      %v882 = vunpack.c.l.b16 %v369
      %v883 = vunpack.c.l.b16 %v370
      %v884 = vunpack.c.l.b16 %v371
      %v885 = vunpack.c.l.b16 %v372
      %v886 = vunpack.c.l.b16 %v373
      %v887 = vunpack.c.l.b16 %v374
      %v888 = vunpack.c.l.b16 %v375
      %v889 = vunpack.c.l.b16 %v376
      %v890 = vunpack.c.l.b16 %v377
      %v891 = vunpack.c.l.b16 %v378
      %v892 = vunpack.c.l.b16 %v379
      %v893 = vunpack.c.l.b16 %v380
      %v894 = vunpack.c.l.b16 %v381
      %v895 = vunpack.c.l.b16 %v382
      %v896 = vunpack.c.l.b16 %v383
      %v897 = vunpack.c.l.b16 %v384
      %v898 = vunpack.c.l.b16 %v385
      %v899 = vunpack.c.l.b16 %v386
      %v900 = vunpack.c.l.b16 %v387
      %v901 = vunpack.c.l.b16 %v388
      %v902 = vunpack.c.l.b16 %v389
      %v903 = vunpack.c.l.b16 %v390
      %v904 = vunpack.c.l.b16 %v391
      %v905 = vunpack.c.l.b16 %v392
      %v906 = vunpack.c.l.b16 %v393
      %v907 = vunpack.c.l.b16 %v394
      %v908 = vunpack.c.l.b16 %v395
      %v909 = vunpack.c.l.b16 %v396
      %v910 = vunpack.c.l.b16 %v397
      %v911 = vunpack.c.l.b16 %v398
      %v912 = vunpack.c.l.b16 %v399
      %v913 = vunpack.c.l.b16 %v400
      %v914 = vunpack.c.l.b16 %v401
      %v915 = vunpack.c.l.b16 %v402
      %v916 = vunpack.c.l.b16 %v403
      %v917 = vpack.c.b16 %v662, %v661
      %v918 = vpack.c.b16 %v664, %v663
      %v919 = vpack.c.b16 %v666, %v665
      %v920 = vpack.c.b16 %v668, %v667
      %v921 = vpack.c.b16 %v670, %v669
      %v922 = vpack.c.b16 %v672, %v671
      %v923 = vpack.c.b16 %v674, %v673
      %v924 = vpack.c.b16 %v676, %v675
      %v925 = vpack.c.b16 %v678, %v677
      %v926 = vpack.c.b16 %v680, %v679
      %v927 = vpack.c.b16 %v682, %v681
      %v928 = vpack.c.b16 %v684, %v683
      %v929 = vpack.c.b16 %v686, %v685
      %v930 = vpack.c.b16 %v688, %v687
      %v931 = vpack.c.b16 %v690, %v689
      %v932 = vpack.c.b16 %v692, %v691
      %v933 = vpack.c.b16 %v694, %v693
      %v934 = vpack.c.b16 %v696, %v695
      %v935 = vpack.c.b16 %v698, %v697
      %v936 = vpack.c.b16 %v700, %v699
      %v937 = vpack.c.b16 %v702, %v701
      %v938 = vpack.c.b16 %v704, %v703
      %v939 = vpack.c.b16 %v706, %v705
      %v940 = vpack.c.b16 %v708, %v707
      %v941 = vpack.c.b16 %v710, %v709
      %v942 = vpack.c.b16 %v712, %v711
      %v943 = vpack.c.b16 %v714, %v713
      %v944 = vpack.c.b16 %v716, %v715
      %v945 = vpack.c.b16 %v718, %v717
      %v946 = vpack.c.b16 %v720, %v719
      %v947 = vpack.c.b16 %v722, %v721
      %v948 = vpack.c.b16 %v724, %v723
      %v949 = vpack.c.b16 %v726, %v725
      %v950 = vpack.c.b16 %v728, %v727
      %v951 = vpack.c.b16 %v730, %v729
      %v952 = vpack.c.b16 %v732, %v731
      %v953 = vpack.c.b16 %v734, %v733
      %v954 = vpack.c.b16 %v736, %v735
      %v955 = vpack.c.b16 %v738, %v737
      %v956 = vpack.c.b16 %v740, %v739
      %v957 = vpack.c.b16 %v742, %v741
      %v958 = vpack.c.b16 %v744, %v743
      %v959 = vpack.c.b16 %v746, %v745
      %v960 = vpack.c.b16 %v748, %v747
      %v961 = vpack.c.b16 %v750, %v749
      %v962 = vpack.c.b16 %v752, %v751
      %v963 = vpack.c.b16 %v754, %v753
      %v964 = vpack.c.b16 %v756, %v755
      %v965 = vpack.c.b16 %v758, %v757
      %v966 = vpack.c.b16 %v760, %v759
      %v967 = vpack.c.b16 %v762, %v761
      %v968 = vpack.c.b16 %v764, %v763
      %v969 = vpack.c.b16 %v766, %v765
      %v970 = vpack.c.b16 %v768, %v767
      %v971 = vpack.c.b16 %v770, %v769
      %v972 = vpack.c.b16 %v772, %v771
      %v973 = vpack.c.b16 %v774, %v773
      %v974 = vpack.c.b16 %v776, %v775
      %v975 = vpack.c.b16 %v778, %v777
      %v976 = vpack.c.b16 %v780, %v779
      %v977 = vpack.c.b16 %v782, %v781
      %v978 = vpack.c.b16 %v784, %v783
      %v979 = vpack.c.b16 %v786, %v785
      %v980 = vpack.c.b16 %v788, %v787
      %v981 = vpack.c.b16 %v790, %v789
      %v982 = vpack.c.b16 %v792, %v791
      %v983 = vpack.c.b16 %v794, %v793
      %v984 = vpack.c.b16 %v796, %v795
      %v985 = vpack.c.b16 %v798, %v797
      %v986 = vpack.c.b16 %v800, %v799
      %v987 = vpack.c.b16 %v802, %v801
      %v988 = vpack.c.b16 %v804, %v803
      %v989 = vpack.c.b16 %v806, %v805
      %v990 = vpack.c.b16 %v808, %v807
      %v991 = vpack.c.b16 %v810, %v809
      %v992 = vpack.c.b16 %v812, %v811
      %v993 = vpack.c.b16 %v814, %v813
      %v994 = vpack.c.b16 %v816, %v815
      %v995 = vpack.c.b16 %v818, %v817
      %v996 = vpack.c.b16 %v820, %v819
      %v997 = vpack.c.b16 %v822, %v821
      %v998 = vpack.c.b16 %v824, %v823
      %v999 = vpack.c.b16 %v826, %v825
      %v1000 = vpack.c.b16 %v828, %v827
      %v1001 = vpack.c.b16 %v830, %v829
      %v1002 = vpack.c.b16 %v832, %v831
      %v1003 = vpack.c.b16 %v834, %v833
      %v1004 = vpack.c.b16 %v836, %v835
      %v1005 = vpack.c.b16 %v838, %v837
      %v1006 = vpack.c.b16 %v840, %v839
      %v1007 = vpack.c.b16 %v842, %v841
      %v1008 = vpack.c.b16 %v844, %v843
      %v1009 = vpack.c.b16 %v846, %v845
      %v1010 = vpack.c.b16 %v848, %v847
      %v1011 = vpack.c.b16 %v850, %v849
      %v1012 = vpack.c.b16 %v852, %v851
      %v1013 = vpack.c.b16 %v854, %v853
      %v1014 = vpack.c.b16 %v856, %v855
      %v1015 = vpack.c.b16 %v858, %v857
      %v1016 = vpack.c.b16 %v860, %v859
      %v1017 = vpack.c.b16 %v862, %v861
      %v1018 = vpack.c.b16 %v864, %v863
      %v1019 = vpack.c.b16 %v866, %v865
      %v1020 = vpack.c.b16 %v868, %v867
      %v1021 = vpack.c.b16 %v870, %v869
      %v1022 = vpack.c.b16 %v872, %v871
      %v1023 = vpack.c.b16 %v874, %v873
      %v1024 = vpack.c.b16 %v876, %v875
      %v1025 = vpack.c.b16 %v878, %v877
      %v1026 = vpack.c.b16 %v880, %v879
      %v1027 = vpack.c.b16 %v882, %v881
      %v1028 = vpack.c.b16 %v884, %v883
      %v1029 = vpack.c.b16 %v886, %v885
      %v1030 = vpack.c.b16 %v888, %v887
      %v1031 = vpack.c.b16 %v890, %v889
      %v1032 = vpack.c.b16 %v892, %v891
      %v1033 = vpack.c.b16 %v894, %v893
      %v1034 = vpack.c.b16 %v896, %v895
      %v1035 = vpack.c.b16 %v898, %v897
      %v1036 = vpack.c.b16 %v900, %v899
      %v1037 = vpack.c.b16 %v902, %v901
      %v1038 = vpack.c.b16 %v904, %v903
      %v1039 = vpack.c.b16 %v906, %v905
      %v1040 = vpack.c.b16 %v908, %v907
      %v1041 = vpack.c.b16 %v910, %v909
      %v1042 = vpack.c.b16 %v912, %v911
      %v1043 = vpack.c.b16 %v914, %v913
      %v1044 = vpack.c.b16 %v916, %v915
      %vm1045 = vcmask 64512
      %v1047 = vsel %vm1045, %v917, 0
      %v1050 = vsel %vm1045, %v918, 0
      %v1053 = vsel %vm1045, %v919, 0
      %v1056 = vsel %vm1045, %v920, 0
      %v1059 = vsel %vm1045, %v921, 0
      %v1062 = vsel %vm1045, %v922, 0
      %v1065 = vsel %vm1045, %v923, 0
      %v1068 = vsel %vm1045, %v924, 0
      %v1071 = vsel %vm1045, %v925, 0
      %v1074 = vsel %vm1045, %v926, 0
      %v1077 = vsel %vm1045, %v927, 0
      %v1080 = vsel %vm1045, %v928, 0
      %v1083 = vsel %vm1045, %v929, 0
      %v1086 = vsel %vm1045, %v930, 0
      %v1089 = vsel %vm1045, %v931, 0
      %v1092 = vsel %vm1045, %v932, 0
      %v1095 = vsel %vm1045, %v933, 0
      %v1098 = vsel %vm1045, %v934, 0
      %v1101 = vsel %vm1045, %v935, 0
      %v1104 = vsel %vm1045, %v936, 0
      %v1107 = vsel %vm1045, %v937, 0
      %v1110 = vsel %vm1045, %v938, 0
      %v1113 = vsel %vm1045, %v939, 0
      %v1116 = vsel %vm1045, %v940, 0
      %v1119 = vsel %vm1045, %v941, 0
      %v1122 = vsel %vm1045, %v942, 0
      %v1125 = vsel %vm1045, %v943, 0
      %v1128 = vsel %vm1045, %v944, 0
      %v1131 = vsel %vm1045, %v945, 0
      %v1134 = vsel %vm1045, %v946, 0
      %v1137 = vsel %vm1045, %v947, 0
      %v1140 = vsel %vm1045, %v948, 0
      %v1143 = vsel %vm1045, %v949, 0
      %v1146 = vsel %vm1045, %v950, 0
      %v1149 = vsel %vm1045, %v951, 0
      %v1152 = vsel %vm1045, %v952, 0
      %v1155 = vsel %vm1045, %v953, 0
      %v1158 = vsel %vm1045, %v954, 0
      %v1161 = vsel %vm1045, %v955, 0
      %v1164 = vsel %vm1045, %v956, 0
      %v1167 = vsel %vm1045, %v957, 0
      %v1170 = vsel %vm1045, %v958, 0
      %v1173 = vsel %vm1045, %v959, 0
      %v1176 = vsel %vm1045, %v960, 0
      %v1179 = vsel %vm1045, %v961, 0
      %v1182 = vsel %vm1045, %v962, 0
      %v1185 = vsel %vm1045, %v963, 0
      %v1188 = vsel %vm1045, %v964, 0
      %v1191 = vsel %vm1045, %v965, 0
      %v1194 = vsel %vm1045, %v966, 0
      %v1197 = vsel %vm1045, %v967, 0
      %v1200 = vsel %vm1045, %v968, 0
      %v1203 = vsel %vm1045, %v969, 0
      %v1206 = vsel %vm1045, %v970, 0
      %v1209 = vsel %vm1045, %v971, 0
      %v1212 = vsel %vm1045, %v972, 0
      %v1215 = vsel %vm1045, %v973, 0
      %v1218 = vsel %vm1045, %v974, 0
      %v1221 = vsel %vm1045, %v975, 0
      %v1224 = vsel %vm1045, %v976, 0
      %v1227 = vsel %vm1045, %v977, 0
      %v1230 = vsel %vm1045, %v978, 0
      %v1233 = vsel %vm1045, %v979, 0
      %v1236 = vsel %vm1045, %v980, 0
      %v1239 = vsel %vm1045, %v981, 0
      %v1242 = vsel %vm1045, %v982, 0
      %v1245 = vsel %vm1045, %v983, 0
      %v1248 = vsel %vm1045, %v984, 0
      %v1251 = vsel %vm1045, %v985, 0
      %v1254 = vsel %vm1045, %v986, 0
      %v1257 = vsel %vm1045, %v987, 0
      %v1260 = vsel %vm1045, %v988, 0
      %v1263 = vsel %vm1045, %v989, 0
      %v1266 = vsel %vm1045, %v990, 0
      %v1269 = vsel %vm1045, %v991, 0
      %v1272 = vsel %vm1045, %v992, 0
      %v1275 = vsel %vm1045, %v993, 0
      %v1278 = vsel %vm1045, %v994, 0
      %v1281 = vsel %vm1045, %v995, 0
      %v1284 = vsel %vm1045, %v996, 0
      %v1287 = vsel %vm1045, %v997, 0
      %v1290 = vsel %vm1045, %v998, 0
      %v1293 = vsel %vm1045, %v999, 0
      %v1296 = vsel %vm1045, %v1000, 0
      %v1299 = vsel %vm1045, %v1001, 0
      %v1302 = vsel %vm1045, %v1002, 0
      %v1305 = vsel %vm1045, %v1003, 0
      %v1308 = vsel %vm1045, %v1004, 0
      %v1311 = vsel %vm1045, %v1005, 0
      %v1314 = vsel %vm1045, %v1006, 0
      %v1317 = vsel %vm1045, %v1007, 0
      %v1320 = vsel %vm1045, %v1008, 0
      %v1323 = vsel %vm1045, %v1009, 0
      %v1326 = vsel %vm1045, %v1010, 0
      %v1329 = vsel %vm1045, %v1011, 0
      %v1332 = vsel %vm1045, %v1012, 0
      %v1335 = vsel %vm1045, %v1013, 0
      %v1338 = vsel %vm1045, %v1014, 0
      %v1341 = vsel %vm1045, %v1015, 0
      %v1344 = vsel %vm1045, %v1016, 0
      %v1347 = vsel %vm1045, %v1017, 0
      %v1350 = vsel %vm1045, %v1018, 0
      %v1353 = vsel %vm1045, %v1019, 0
      %v1356 = vsel %vm1045, %v1020, 0
      %v1359 = vsel %vm1045, %v1021, 0
      %v1362 = vsel %vm1045, %v1022, 0
      %v1365 = vsel %vm1045, %v1023, 0
      %v1368 = vsel %vm1045, %v1024, 0
      %v1371 = vsel %vm1045, %v1025, 0
      %v1374 = vsel %vm1045, %v1026, 0
      %v1377 = vsel %vm1045, %v1027, 0
      %v1380 = vsel %vm1045, %v1028, 0
      %v1383 = vsel %vm1045, %v1029, 0
      %v1386 = vsel %vm1045, %v1030, 0
      %v1389 = vsel %vm1045, %v1031, 0
      %v1392 = vsel %vm1045, %v1032, 0
      %v1395 = vsel %vm1045, %v1033, 0
      %v1398 = vsel %vm1045, %v1034, 0
      %v1401 = vsel %vm1045, %v1035, 0
      %v1404 = vsel %vm1045, %v1036, 0
      %v1407 = vsel %vm1045, %v1037, 0
      %v1410 = vsel %vm1045, %v1038, 0
      %v1413 = vsel %vm1045, %v1039, 0
      %v1416 = vsel %vm1045, %v1040, 0
      %v1419 = vsel %vm1045, %v1041, 0
      %v1422 = vsel %vm1045, %v1042, 0
      %v1425 = vsel %vm1045, %v1043, 0
      %v1428 = vsel %vm1045, %v1044, 0
      %vm1430 = vcmask 1043456
      %v1432 = vsel %vm1430, %v404, 0
      %1434 = vmatpush.bf16.msra.mxu0 0
      %1435 = vmatpush.bf16.msra.mxu0 0
      %1436 = vmatpush.bf16.msra.mxu0 0
      %1437 = vmatpush.bf16.msra.mxu0 0
      %1438 = vmatpush.bf16.msra.mxu0 0
      %1439 = vmatpush.bf16.msra.mxu0 0
      %1440 = vmatpush.bf16.msra.mxu0 0
      %1441 = vmatpush.bf16.msra.mxu0 %v1432
      %1442 = vmatmul.bf16.gmra.mxu0 %v1047
      %v1443 = vpop.f32.mrf.mxu0
      %v1444 = vadd.f32 0.0, %v1443
      %v1445 = vpop.f32.mrf.mxu0
      %v1446 = vadd.f32 0.0, %v1445
      %1447 = vmatmul.bf16.gmra.mxu0 %v1050
      %v1448 = vpop.f32.mrf.mxu0
      %v1449 = vadd.f32 0.0, %v1448
      %v1450 = vpop.f32.mrf.mxu0
      %v1451 = vadd.f32 0.0, %v1450
      %1452 = vmatmul.bf16.gmra.mxu0 %v1053
      %v1453 = vpop.f32.mrf.mxu0
      %v1454 = vadd.f32 0.0, %v1453
      %v1455 = vpop.f32.mrf.mxu0
      %v1456 = vadd.f32 0.0, %v1455
      %1457 = vmatmul.bf16.gmra.mxu0 %v1056
      %v1458 = vpop.f32.mrf.mxu0
      %v1459 = vadd.f32 0.0, %v1458
      %v1460 = vpop.f32.mrf.mxu0
      %v1461 = vadd.f32 0.0, %v1460
      %1462 = vmatmul.bf16.gmra.mxu0 %v1059
      %v1463 = vpop.f32.mrf.mxu0
      %v1464 = vadd.f32 0.0, %v1463
      %v1465 = vpop.f32.mrf.mxu0
      %v1466 = vadd.f32 0.0, %v1465
      %1467 = vmatmul.bf16.gmra.mxu0 %v1062
      %v1468 = vpop.f32.mrf.mxu0
      %v1469 = vadd.f32 0.0, %v1468
      %v1470 = vpop.f32.mrf.mxu0
      %v1471 = vadd.f32 0.0, %v1470
      %1472 = vmatmul.bf16.gmra.mxu0 %v1065
      %v1473 = vpop.f32.mrf.mxu0
      %v1474 = vadd.f32 0.0, %v1473
      %v1475 = vpop.f32.mrf.mxu0
      %v1476 = vadd.f32 0.0, %v1475
      %1477 = vmatmul.bf16.gmra.mxu0 %v1068
      %v1478 = vpop.f32.mrf.mxu0
      %v1479 = vadd.f32 0.0, %v1478
      %v1480 = vpop.f32.mrf.mxu0
      %v1481 = vadd.f32 0.0, %v1480
      %1482 = vmatmul.bf16.gmra.mxu0 %v1071
      %v1483 = vpop.f32.mrf.mxu0
      %v1484 = vadd.f32 0.0, %v1483
      %v1485 = vpop.f32.mrf.mxu0
      %v1486 = vadd.f32 0.0, %v1485
      %1487 = vmatmul.bf16.gmra.mxu0 %v1074
      %v1488 = vpop.f32.mrf.mxu0
      %v1489 = vadd.f32 0.0, %v1488
      %v1490 = vpop.f32.mrf.mxu0
      %v1491 = vadd.f32 0.0, %v1490
      %1492 = vmatmul.bf16.gmra.mxu0 %v1077
      %v1493 = vpop.f32.mrf.mxu0
      %v1494 = vadd.f32 0.0, %v1493
      %v1495 = vpop.f32.mrf.mxu0
      %v1496 = vadd.f32 0.0, %v1495
      %1497 = vmatmul.bf16.gmra.mxu0 %v1080
      %v1498 = vpop.f32.mrf.mxu0
      %v1499 = vadd.f32 0.0, %v1498
      %v1500 = vpop.f32.mrf.mxu0
      %v1501 = vadd.f32 0.0, %v1500
      %1502 = vmatmul.bf16.gmra.mxu0 %v1083
      %v1503 = vpop.f32.mrf.mxu0
      %v1504 = vadd.f32 0.0, %v1503
      %v1505 = vpop.f32.mrf.mxu0
      %v1506 = vadd.f32 0.0, %v1505
      %1507 = vmatmul.bf16.gmra.mxu0 %v1086
      %v1508 = vpop.f32.mrf.mxu0
      %v1509 = vadd.f32 0.0, %v1508
      %v1510 = vpop.f32.mrf.mxu0
      %v1511 = vadd.f32 0.0, %v1510
      %1512 = vmatmul.bf16.gmra.mxu0 %v1089
      %v1513 = vpop.f32.mrf.mxu0
      %v1514 = vadd.f32 0.0, %v1513
      %v1515 = vpop.f32.mrf.mxu0
      %v1516 = vadd.f32 0.0, %v1515
      %1517 = vmatmul.bf16.gmra.mxu0 %v1092
      %v1518 = vpop.f32.mrf.mxu0
      %v1519 = vadd.f32 0.0, %v1518
      %v1520 = vpop.f32.mrf.mxu0
      %v1521 = vadd.f32 0.0, %v1520
      %1522 = vmatmul.bf16.gmra.mxu0 %v1095
      %v1523 = vpop.f32.mrf.mxu0
      %v1524 = vadd.f32 0.0, %v1523
      %v1525 = vpop.f32.mrf.mxu0
      %v1526 = vadd.f32 0.0, %v1525
      %1527 = vmatmul.bf16.gmra.mxu0 %v1098
      %v1528 = vpop.f32.mrf.mxu0
      %v1529 = vadd.f32 0.0, %v1528
      %v1530 = vpop.f32.mrf.mxu0
      %v1531 = vadd.f32 0.0, %v1530
      %1532 = vmatmul.bf16.gmra.mxu0 %v1101
      %v1533 = vpop.f32.mrf.mxu0
      %v1534 = vadd.f32 0.0, %v1533
      %v1535 = vpop.f32.mrf.mxu0
      %v1536 = vadd.f32 0.0, %v1535
      %1537 = vmatmul.bf16.gmra.mxu0 %v1104
      %v1538 = vpop.f32.mrf.mxu0
      %v1539 = vadd.f32 0.0, %v1538
      %v1540 = vpop.f32.mrf.mxu0
      %v1541 = vadd.f32 0.0, %v1540
      %1542 = vmatmul.bf16.gmra.mxu0 %v1107
      %v1543 = vpop.f32.mrf.mxu0
      %v1544 = vadd.f32 0.0, %v1543
      %v1545 = vpop.f32.mrf.mxu0
      %v1546 = vadd.f32 0.0, %v1545
      %1547 = vmatmul.bf16.gmra.mxu0 %v1110
      %v1548 = vpop.f32.mrf.mxu0
      %v1549 = vadd.f32 0.0, %v1548
      %v1550 = vpop.f32.mrf.mxu0
      %v1551 = vadd.f32 0.0, %v1550
      %1552 = vmatmul.bf16.gmra.mxu0 %v1113
      %v1553 = vpop.f32.mrf.mxu0
      %v1554 = vadd.f32 0.0, %v1553
      %v1555 = vpop.f32.mrf.mxu0
      %v1556 = vadd.f32 0.0, %v1555
      %1557 = vmatmul.bf16.gmra.mxu0 %v1116
      %v1558 = vpop.f32.mrf.mxu0
      %v1559 = vadd.f32 0.0, %v1558
      %v1560 = vpop.f32.mrf.mxu0
      %v1561 = vadd.f32 0.0, %v1560
      %1562 = vmatmul.bf16.gmra.mxu0 %v1119
      %v1563 = vpop.f32.mrf.mxu0
      %v1564 = vadd.f32 0.0, %v1563
      %v1565 = vpop.f32.mrf.mxu0
      %v1566 = vadd.f32 0.0, %v1565
      %1567 = vmatmul.bf16.gmra.mxu0 %v1122
      %v1568 = vpop.f32.mrf.mxu0
      %v1569 = vadd.f32 0.0, %v1568
      %v1570 = vpop.f32.mrf.mxu0
      %v1571 = vadd.f32 0.0, %v1570
      %1572 = vmatmul.bf16.gmra.mxu0 %v1125
      %v1573 = vpop.f32.mrf.mxu0
      %v1574 = vadd.f32 0.0, %v1573
      %v1575 = vpop.f32.mrf.mxu0
      %v1576 = vadd.f32 0.0, %v1575
      %1577 = vmatmul.bf16.gmra.mxu0 %v1128
      %v1578 = vpop.f32.mrf.mxu0
      %v1579 = vadd.f32 0.0, %v1578
      %v1580 = vpop.f32.mrf.mxu0
      %v1581 = vadd.f32 0.0, %v1580
      %1582 = vmatmul.bf16.gmra.mxu0 %v1131
      %v1583 = vpop.f32.mrf.mxu0
      %v1584 = vadd.f32 0.0, %v1583
      %v1585 = vpop.f32.mrf.mxu0
      %v1586 = vadd.f32 0.0, %v1585
      %1587 = vmatmul.bf16.gmra.mxu0 %v1134
      %v1588 = vpop.f32.mrf.mxu0
      %v1589 = vadd.f32 0.0, %v1588
      %v1590 = vpop.f32.mrf.mxu0
      %v1591 = vadd.f32 0.0, %v1590
      %1592 = vmatmul.bf16.gmra.mxu0 %v1137
      %v1593 = vpop.f32.mrf.mxu0
      %v1594 = vadd.f32 0.0, %v1593
      %v1595 = vpop.f32.mrf.mxu0
      %v1596 = vadd.f32 0.0, %v1595
      %1597 = vmatmul.bf16.gmra.mxu0 %v1140
      %v1598 = vpop.f32.mrf.mxu0
      %v1599 = vadd.f32 0.0, %v1598
      %v1600 = vpop.f32.mrf.mxu0
      %v1601 = vadd.f32 0.0, %v1600
      %1602 = vmatmul.bf16.gmra.mxu0 %v1143
      %v1603 = vpop.f32.mrf.mxu0
      %v1604 = vadd.f32 0.0, %v1603
      %v1605 = vpop.f32.mrf.mxu0
      %v1606 = vadd.f32 0.0, %v1605
      %1607 = vmatmul.bf16.gmra.mxu0 %v1146
      %v1608 = vpop.f32.mrf.mxu0
      %v1609 = vadd.f32 0.0, %v1608
      %v1610 = vpop.f32.mrf.mxu0
      %v1611 = vadd.f32 0.0, %v1610
      %1612 = vmatmul.bf16.gmra.mxu0 %v1149
      %v1613 = vpop.f32.mrf.mxu0
      %v1614 = vadd.f32 0.0, %v1613
      %v1615 = vpop.f32.mrf.mxu0
      %v1616 = vadd.f32 0.0, %v1615
      %1617 = vmatmul.bf16.gmra.mxu0 %v1152
      %v1618 = vpop.f32.mrf.mxu0
      %v1619 = vadd.f32 0.0, %v1618
      %v1620 = vpop.f32.mrf.mxu0
      %v1621 = vadd.f32 0.0, %v1620
      %1622 = vmatmul.bf16.gmra.mxu0 %v1155
      %v1623 = vpop.f32.mrf.mxu0
      %v1624 = vadd.f32 0.0, %v1623
      %v1625 = vpop.f32.mrf.mxu0
      %v1626 = vadd.f32 0.0, %v1625
      %1627 = vmatmul.bf16.gmra.mxu0 %v1158
      %v1628 = vpop.f32.mrf.mxu0
      %v1629 = vadd.f32 0.0, %v1628
      %v1630 = vpop.f32.mrf.mxu0
      %v1631 = vadd.f32 0.0, %v1630
      %1632 = vmatmul.bf16.gmra.mxu0 %v1161
      %v1633 = vpop.f32.mrf.mxu0
      %v1634 = vadd.f32 0.0, %v1633
      %v1635 = vpop.f32.mrf.mxu0
      %v1636 = vadd.f32 0.0, %v1635
      %1637 = vmatmul.bf16.gmra.mxu0 %v1164
      %v1638 = vpop.f32.mrf.mxu0
      %v1639 = vadd.f32 0.0, %v1638
      %v1640 = vpop.f32.mrf.mxu0
      %v1641 = vadd.f32 0.0, %v1640
      %1642 = vmatmul.bf16.gmra.mxu0 %v1167
      %v1643 = vpop.f32.mrf.mxu0
      %v1644 = vadd.f32 0.0, %v1643
      %v1645 = vpop.f32.mrf.mxu0
      %v1646 = vadd.f32 0.0, %v1645
      %1647 = vmatmul.bf16.gmra.mxu0 %v1170
      %v1648 = vpop.f32.mrf.mxu0
      %v1649 = vadd.f32 0.0, %v1648
      %v1650 = vpop.f32.mrf.mxu0
      %v1651 = vadd.f32 0.0, %v1650
      %1652 = vmatmul.bf16.gmra.mxu0 %v1173
      %v1653 = vpop.f32.mrf.mxu0
      %v1654 = vadd.f32 0.0, %v1653
      %v1655 = vpop.f32.mrf.mxu0
      %v1656 = vadd.f32 0.0, %v1655
      %1657 = vmatmul.bf16.gmra.mxu0 %v1176
      %v1658 = vpop.f32.mrf.mxu0
      %v1659 = vadd.f32 0.0, %v1658
      %v1660 = vpop.f32.mrf.mxu0
      %v1661 = vadd.f32 0.0, %v1660
      %1662 = vmatmul.bf16.gmra.mxu0 %v1179
      %v1663 = vpop.f32.mrf.mxu0
      %v1664 = vadd.f32 0.0, %v1663
      %v1665 = vpop.f32.mrf.mxu0
      %v1666 = vadd.f32 0.0, %v1665
      %1667 = vmatmul.bf16.gmra.mxu0 %v1182
      %v1668 = vpop.f32.mrf.mxu0
      %v1669 = vadd.f32 0.0, %v1668
      %v1670 = vpop.f32.mrf.mxu0
      %v1671 = vadd.f32 0.0, %v1670
      %1672 = vmatmul.bf16.gmra.mxu0 %v1185
      %v1673 = vpop.f32.mrf.mxu0
      %v1674 = vadd.f32 0.0, %v1673
      %v1675 = vpop.f32.mrf.mxu0
      %v1676 = vadd.f32 0.0, %v1675
      %1677 = vmatmul.bf16.gmra.mxu0 %v1188
      %v1678 = vpop.f32.mrf.mxu0
      %v1679 = vadd.f32 0.0, %v1678
      %v1680 = vpop.f32.mrf.mxu0
      %v1681 = vadd.f32 0.0, %v1680
      %1682 = vmatmul.bf16.gmra.mxu0 %v1191
      %v1683 = vpop.f32.mrf.mxu0
      %v1684 = vadd.f32 0.0, %v1683
      %v1685 = vpop.f32.mrf.mxu0
      %v1686 = vadd.f32 0.0, %v1685
      %1687 = vmatmul.bf16.gmra.mxu0 %v1194
      %v1688 = vpop.f32.mrf.mxu0
      %v1689 = vadd.f32 0.0, %v1688
      %v1690 = vpop.f32.mrf.mxu0
      %v1691 = vadd.f32 0.0, %v1690
      %1692 = vmatmul.bf16.gmra.mxu0 %v1197
      %v1693 = vpop.f32.mrf.mxu0
      %v1694 = vadd.f32 0.0, %v1693
      %v1695 = vpop.f32.mrf.mxu0
      %v1696 = vadd.f32 0.0, %v1695
      %1697 = vmatmul.bf16.gmra.mxu0 %v1200
      %v1698 = vpop.f32.mrf.mxu0
      %v1699 = vadd.f32 0.0, %v1698
      %v1700 = vpop.f32.mrf.mxu0
      %v1701 = vadd.f32 0.0, %v1700
      %1702 = vmatmul.bf16.gmra.mxu0 %v1203
      %v1703 = vpop.f32.mrf.mxu0
      %v1704 = vadd.f32 0.0, %v1703
      %v1705 = vpop.f32.mrf.mxu0
      %v1706 = vadd.f32 0.0, %v1705
      %1707 = vmatmul.bf16.gmra.mxu0 %v1206
      %v1708 = vpop.f32.mrf.mxu0
      %v1709 = vadd.f32 0.0, %v1708
      %v1710 = vpop.f32.mrf.mxu0
      %v1711 = vadd.f32 0.0, %v1710
      %1712 = vmatmul.bf16.gmra.mxu0 %v1209
      %v1713 = vpop.f32.mrf.mxu0
      %v1714 = vadd.f32 0.0, %v1713
      %v1715 = vpop.f32.mrf.mxu0
      %v1716 = vadd.f32 0.0, %v1715
      %1717 = vmatmul.bf16.gmra.mxu0 %v1212
      %v1718 = vpop.f32.mrf.mxu0
      %v1719 = vadd.f32 0.0, %v1718
      %v1720 = vpop.f32.mrf.mxu0
      %v1721 = vadd.f32 0.0, %v1720
      %1722 = vmatmul.bf16.gmra.mxu0 %v1215
      %v1723 = vpop.f32.mrf.mxu0
      %v1724 = vadd.f32 0.0, %v1723
      %v1725 = vpop.f32.mrf.mxu0
      %v1726 = vadd.f32 0.0, %v1725
      %1727 = vmatmul.bf16.gmra.mxu0 %v1218
      %v1728 = vpop.f32.mrf.mxu0
      %v1729 = vadd.f32 0.0, %v1728
      %v1730 = vpop.f32.mrf.mxu0
      %v1731 = vadd.f32 0.0, %v1730
      %1732 = vmatmul.bf16.gmra.mxu0 %v1221
      %v1733 = vpop.f32.mrf.mxu0
      %v1734 = vadd.f32 0.0, %v1733
      %v1735 = vpop.f32.mrf.mxu0
      %v1736 = vadd.f32 0.0, %v1735
      %1737 = vmatmul.bf16.gmra.mxu0 %v1224
      %v1738 = vpop.f32.mrf.mxu0
      %v1739 = vadd.f32 0.0, %v1738
      %v1740 = vpop.f32.mrf.mxu0
      %v1741 = vadd.f32 0.0, %v1740
      %1742 = vmatmul.bf16.gmra.mxu0 %v1227
      %v1743 = vpop.f32.mrf.mxu0
      %v1744 = vadd.f32 0.0, %v1743
      %v1745 = vpop.f32.mrf.mxu0
      %v1746 = vadd.f32 0.0, %v1745
      %1747 = vmatmul.bf16.gmra.mxu0 %v1230
      %v1748 = vpop.f32.mrf.mxu0
      %v1749 = vadd.f32 0.0, %v1748
      %v1750 = vpop.f32.mrf.mxu0
      %v1751 = vadd.f32 0.0, %v1750
      %1752 = vmatmul.bf16.gmra.mxu0 %v1233
      %v1753 = vpop.f32.mrf.mxu0
      %v1754 = vadd.f32 0.0, %v1753
      %v1755 = vpop.f32.mrf.mxu0
      %v1756 = vadd.f32 0.0, %v1755
      %1757 = vmatmul.bf16.gmra.mxu0 %v1236
      %v1758 = vpop.f32.mrf.mxu0
      %v1759 = vadd.f32 0.0, %v1758
      %v1760 = vpop.f32.mrf.mxu0
      %v1761 = vadd.f32 0.0, %v1760
      %1762 = vmatmul.bf16.gmra.mxu0 %v1239
      %v1763 = vpop.f32.mrf.mxu0
      %v1764 = vadd.f32 0.0, %v1763
      %v1765 = vpop.f32.mrf.mxu0
      %v1766 = vadd.f32 0.0, %v1765
      %1767 = vmatmul.bf16.gmra.mxu0 %v1242
      %v1768 = vpop.f32.mrf.mxu0
      %v1769 = vadd.f32 0.0, %v1768
      %v1770 = vpop.f32.mrf.mxu0
      %v1771 = vadd.f32 0.0, %v1770
      %1772 = vmatmul.bf16.gmra.mxu0 %v1245
      %v1773 = vpop.f32.mrf.mxu0
      %v1774 = vadd.f32 0.0, %v1773
      %v1775 = vpop.f32.mrf.mxu0
      %v1776 = vadd.f32 0.0, %v1775
      %1777 = vmatmul.bf16.gmra.mxu0 %v1248
      %v1778 = vpop.f32.mrf.mxu0
      %v1779 = vadd.f32 0.0, %v1778
      %v1780 = vpop.f32.mrf.mxu0
      %v1781 = vadd.f32 0.0, %v1780
      %1782 = vmatmul.bf16.gmra.mxu0 %v1251
      %v1783 = vpop.f32.mrf.mxu0
      %v1784 = vadd.f32 0.0, %v1783
      %v1785 = vpop.f32.mrf.mxu0
      %v1786 = vadd.f32 0.0, %v1785
      %1787 = vmatmul.bf16.gmra.mxu0 %v1254
      %v1788 = vpop.f32.mrf.mxu0
      %v1789 = vadd.f32 0.0, %v1788
      %v1790 = vpop.f32.mrf.mxu0
      %v1791 = vadd.f32 0.0, %v1790
      %1792 = vmatmul.bf16.gmra.mxu0 %v1257
      %v1793 = vpop.f32.mrf.mxu0
      %v1794 = vadd.f32 0.0, %v1793
      %v1795 = vpop.f32.mrf.mxu0
      %v1796 = vadd.f32 0.0, %v1795
      %1797 = vmatmul.bf16.gmra.mxu0 %v1260
      %v1798 = vpop.f32.mrf.mxu0
      %v1799 = vadd.f32 0.0, %v1798
      %v1800 = vpop.f32.mrf.mxu0
      %v1801 = vadd.f32 0.0, %v1800
      %1802 = vmatmul.bf16.gmra.mxu0 %v1263
      %v1803 = vpop.f32.mrf.mxu0
      %v1804 = vadd.f32 0.0, %v1803
      %v1805 = vpop.f32.mrf.mxu0
      %v1806 = vadd.f32 0.0, %v1805
      %1807 = vmatmul.bf16.gmra.mxu0 %v1266
      %v1808 = vpop.f32.mrf.mxu0
      %v1809 = vadd.f32 0.0, %v1808
      %v1810 = vpop.f32.mrf.mxu0
      %v1811 = vadd.f32 0.0, %v1810
      %1812 = vmatmul.bf16.gmra.mxu0 %v1269
      %v1813 = vpop.f32.mrf.mxu0
      %v1814 = vadd.f32 0.0, %v1813
      %v1815 = vpop.f32.mrf.mxu0
      %v1816 = vadd.f32 0.0, %v1815
      %1817 = vmatmul.bf16.gmra.mxu0 %v1272
      %v1818 = vpop.f32.mrf.mxu0
      %v1819 = vadd.f32 0.0, %v1818
      %v1820 = vpop.f32.mrf.mxu0
      %v1821 = vadd.f32 0.0, %v1820
      %1822 = vmatmul.bf16.gmra.mxu0 %v1275
      %v1823 = vpop.f32.mrf.mxu0
      %v1824 = vadd.f32 0.0, %v1823
      %v1825 = vpop.f32.mrf.mxu0
      %v1826 = vadd.f32 0.0, %v1825
      %1827 = vmatmul.bf16.gmra.mxu0 %v1278
      %v1828 = vpop.f32.mrf.mxu0
      %v1829 = vadd.f32 0.0, %v1828
      %v1830 = vpop.f32.mrf.mxu0
      %v1831 = vadd.f32 0.0, %v1830
      %1832 = vmatmul.bf16.gmra.mxu0 %v1281
      %v1833 = vpop.f32.mrf.mxu0
      %v1834 = vadd.f32 0.0, %v1833
      %v1835 = vpop.f32.mrf.mxu0
      %v1836 = vadd.f32 0.0, %v1835
      %1837 = vmatmul.bf16.gmra.mxu0 %v1284
      %v1838 = vpop.f32.mrf.mxu0
      %v1839 = vadd.f32 0.0, %v1838
      %v1840 = vpop.f32.mrf.mxu0
      %v1841 = vadd.f32 0.0, %v1840
      %1842 = vmatmul.bf16.gmra.mxu0 %v1287
      %v1843 = vpop.f32.mrf.mxu0
      %v1844 = vadd.f32 0.0, %v1843
      %v1845 = vpop.f32.mrf.mxu0
      %v1846 = vadd.f32 0.0, %v1845
      %1847 = vmatmul.bf16.gmra.mxu0 %v1290
      %v1848 = vpop.f32.mrf.mxu0
      %v1849 = vadd.f32 0.0, %v1848
      %v1850 = vpop.f32.mrf.mxu0
      %v1851 = vadd.f32 0.0, %v1850
      %1852 = vmatmul.bf16.gmra.mxu0 %v1293
      %v1853 = vpop.f32.mrf.mxu0
      %v1854 = vadd.f32 0.0, %v1853
      %v1855 = vpop.f32.mrf.mxu0
      %v1856 = vadd.f32 0.0, %v1855
      %1857 = vmatmul.bf16.gmra.mxu0 %v1296
      %v1858 = vpop.f32.mrf.mxu0
      %v1859 = vadd.f32 0.0, %v1858
      %v1860 = vpop.f32.mrf.mxu0
      %v1861 = vadd.f32 0.0, %v1860
      %1862 = vmatmul.bf16.gmra.mxu0 %v1299
      %v1863 = vpop.f32.mrf.mxu0
      %v1864 = vadd.f32 0.0, %v1863
      %v1865 = vpop.f32.mrf.mxu0
      %v1866 = vadd.f32 0.0, %v1865
      %1867 = vmatmul.bf16.gmra.mxu0 %v1302
      %v1868 = vpop.f32.mrf.mxu0
      %v1869 = vadd.f32 0.0, %v1868
      %v1870 = vpop.f32.mrf.mxu0
      %v1871 = vadd.f32 0.0, %v1870
      %1872 = vmatmul.bf16.gmra.mxu0 %v1305
      %v1873 = vpop.f32.mrf.mxu0
      %v1874 = vadd.f32 0.0, %v1873
      %v1875 = vpop.f32.mrf.mxu0
      %v1876 = vadd.f32 0.0, %v1875
      %1877 = vmatmul.bf16.gmra.mxu0 %v1308
      %v1878 = vpop.f32.mrf.mxu0
      %v1879 = vadd.f32 0.0, %v1878
      %v1880 = vpop.f32.mrf.mxu0
      %v1881 = vadd.f32 0.0, %v1880
      %1882 = vmatmul.bf16.gmra.mxu0 %v1311
      %v1883 = vpop.f32.mrf.mxu0
      %v1884 = vadd.f32 0.0, %v1883
      %v1885 = vpop.f32.mrf.mxu0
      %v1886 = vadd.f32 0.0, %v1885
      %1887 = vmatmul.bf16.gmra.mxu0 %v1314
      %v1888 = vpop.f32.mrf.mxu0
      %v1889 = vadd.f32 0.0, %v1888
      %v1890 = vpop.f32.mrf.mxu0
      %v1891 = vadd.f32 0.0, %v1890
      %1892 = vmatmul.bf16.gmra.mxu0 %v1317
      %v1893 = vpop.f32.mrf.mxu0
      %v1894 = vadd.f32 0.0, %v1893
      %v1895 = vpop.f32.mrf.mxu0
      %v1896 = vadd.f32 0.0, %v1895
      %1897 = vmatmul.bf16.gmra.mxu0 %v1320
      %v1898 = vpop.f32.mrf.mxu0
      %v1899 = vadd.f32 0.0, %v1898
      %v1900 = vpop.f32.mrf.mxu0
      %v1901 = vadd.f32 0.0, %v1900
      %1902 = vmatmul.bf16.gmra.mxu0 %v1323
      %v1903 = vpop.f32.mrf.mxu0
      %v1904 = vadd.f32 0.0, %v1903
      %v1905 = vpop.f32.mrf.mxu0
      %v1906 = vadd.f32 0.0, %v1905
      %1907 = vmatmul.bf16.gmra.mxu0 %v1326
      %v1908 = vpop.f32.mrf.mxu0
      %v1909 = vadd.f32 0.0, %v1908
      %v1910 = vpop.f32.mrf.mxu0
      %v1911 = vadd.f32 0.0, %v1910
      %1912 = vmatmul.bf16.gmra.mxu0 %v1329
      %v1913 = vpop.f32.mrf.mxu0
      %v1914 = vadd.f32 0.0, %v1913
      %v1915 = vpop.f32.mrf.mxu0
      %v1916 = vadd.f32 0.0, %v1915
      %1917 = vmatmul.bf16.gmra.mxu0 %v1332
      %v1918 = vpop.f32.mrf.mxu0
      %v1919 = vadd.f32 0.0, %v1918
      %v1920 = vpop.f32.mrf.mxu0
      %v1921 = vadd.f32 0.0, %v1920
      %1922 = vmatmul.bf16.gmra.mxu0 %v1335
      %v1923 = vpop.f32.mrf.mxu0
      %v1924 = vadd.f32 0.0, %v1923
      %v1925 = vpop.f32.mrf.mxu0
      %v1926 = vadd.f32 0.0, %v1925
      %1927 = vmatmul.bf16.gmra.mxu0 %v1338
      %v1928 = vpop.f32.mrf.mxu0
      %v1929 = vadd.f32 0.0, %v1928
      %v1930 = vpop.f32.mrf.mxu0
      %v1931 = vadd.f32 0.0, %v1930
      %1932 = vmatmul.bf16.gmra.mxu0 %v1341
      %v1933 = vpop.f32.mrf.mxu0
      %v1934 = vadd.f32 0.0, %v1933
      %v1935 = vpop.f32.mrf.mxu0
      %v1936 = vadd.f32 0.0, %v1935
      %1937 = vmatmul.bf16.gmra.mxu0 %v1344
      %v1938 = vpop.f32.mrf.mxu0
      %v1939 = vadd.f32 0.0, %v1938
      %v1940 = vpop.f32.mrf.mxu0
      %v1941 = vadd.f32 0.0, %v1940
      %1942 = vmatmul.bf16.gmra.mxu0 %v1347
      %v1943 = vpop.f32.mrf.mxu0
      %v1944 = vadd.f32 0.0, %v1943
      %v1945 = vpop.f32.mrf.mxu0
      %v1946 = vadd.f32 0.0, %v1945
      %1947 = vmatmul.bf16.gmra.mxu0 %v1350
      %v1948 = vpop.f32.mrf.mxu0
      %v1949 = vadd.f32 0.0, %v1948
      %v1950 = vpop.f32.mrf.mxu0
      %v1951 = vadd.f32 0.0, %v1950
      %1952 = vmatmul.bf16.gmra.mxu0 %v1353
      %v1953 = vpop.f32.mrf.mxu0
      %v1954 = vadd.f32 0.0, %v1953
      %v1955 = vpop.f32.mrf.mxu0
      %v1956 = vadd.f32 0.0, %v1955
      %1957 = vmatmul.bf16.gmra.mxu0 %v1356
      %v1958 = vpop.f32.mrf.mxu0
      %v1959 = vadd.f32 0.0, %v1958
      %v1960 = vpop.f32.mrf.mxu0
      %v1961 = vadd.f32 0.0, %v1960
      %1962 = vmatmul.bf16.gmra.mxu0 %v1359
      %v1963 = vpop.f32.mrf.mxu0
      %v1964 = vadd.f32 0.0, %v1963
      %v1965 = vpop.f32.mrf.mxu0
      %v1966 = vadd.f32 0.0, %v1965
      %1967 = vmatmul.bf16.gmra.mxu0 %v1362
      %v1968 = vpop.f32.mrf.mxu0
      %v1969 = vadd.f32 0.0, %v1968
      %v1970 = vpop.f32.mrf.mxu0
      %v1971 = vadd.f32 0.0, %v1970
      %1972 = vmatmul.bf16.gmra.mxu0 %v1365
      %v1973 = vpop.f32.mrf.mxu0
      %v1974 = vadd.f32 0.0, %v1973
      %v1975 = vpop.f32.mrf.mxu0
      %v1976 = vadd.f32 0.0, %v1975
      %1977 = vmatmul.bf16.gmra.mxu0 %v1368
      %v1978 = vpop.f32.mrf.mxu0
      %v1979 = vadd.f32 0.0, %v1978
      %v1980 = vpop.f32.mrf.mxu0
      %v1981 = vadd.f32 0.0, %v1980
      %1982 = vmatmul.bf16.gmra.mxu0 %v1371
      %v1983 = vpop.f32.mrf.mxu0
      %v1984 = vadd.f32 0.0, %v1983
      %v1985 = vpop.f32.mrf.mxu0
      %v1986 = vadd.f32 0.0, %v1985
      %1987 = vmatmul.bf16.gmra.mxu0 %v1374
      %v1988 = vpop.f32.mrf.mxu0
      %v1989 = vadd.f32 0.0, %v1988
      %v1990 = vpop.f32.mrf.mxu0
      %v1991 = vadd.f32 0.0, %v1990
      %1992 = vmatmul.bf16.gmra.mxu0 %v1377
      %v1993 = vpop.f32.mrf.mxu0
      %v1994 = vadd.f32 0.0, %v1993
      %v1995 = vpop.f32.mrf.mxu0
      %v1996 = vadd.f32 0.0, %v1995
      %1997 = vmatmul.bf16.gmra.mxu0 %v1380
      %v1998 = vpop.f32.mrf.mxu0
      %v1999 = vadd.f32 0.0, %v1998
      %v2000 = vpop.f32.mrf.mxu0
      %v2001 = vadd.f32 0.0, %v2000
      %2002 = vmatmul.bf16.gmra.mxu0 %v1383
      %v2003 = vpop.f32.mrf.mxu0
      %v2004 = vadd.f32 0.0, %v2003
      %v2005 = vpop.f32.mrf.mxu0
      %v2006 = vadd.f32 0.0, %v2005
      %2007 = vmatmul.bf16.gmra.mxu0 %v1386
      %v2008 = vpop.f32.mrf.mxu0
      %v2009 = vadd.f32 0.0, %v2008
      %v2010 = vpop.f32.mrf.mxu0
      %v2011 = vadd.f32 0.0, %v2010
      %2012 = vmatmul.bf16.gmra.mxu0 %v1389
      %v2013 = vpop.f32.mrf.mxu0
      %v2014 = vadd.f32 0.0, %v2013
      %v2015 = vpop.f32.mrf.mxu0
      %v2016 = vadd.f32 0.0, %v2015
      %2017 = vmatmul.bf16.gmra.mxu0 %v1392
      %v2018 = vpop.f32.mrf.mxu0
      %v2019 = vadd.f32 0.0, %v2018
      %v2020 = vpop.f32.mrf.mxu0
      %v2021 = vadd.f32 0.0, %v2020
      %2022 = vmatmul.bf16.gmra.mxu0 %v1395
      %v2023 = vpop.f32.mrf.mxu0
      %v2024 = vadd.f32 0.0, %v2023
      %v2025 = vpop.f32.mrf.mxu0
      %v2026 = vadd.f32 0.0, %v2025
      %2027 = vmatmul.bf16.gmra.mxu0 %v1398
      %v2028 = vpop.f32.mrf.mxu0
      %v2029 = vadd.f32 0.0, %v2028
      %v2030 = vpop.f32.mrf.mxu0
      %v2031 = vadd.f32 0.0, %v2030
      %2032 = vmatmul.bf16.gmra.mxu0 %v1401
      %v2033 = vpop.f32.mrf.mxu0
      %v2034 = vadd.f32 0.0, %v2033
      %v2035 = vpop.f32.mrf.mxu0
      %v2036 = vadd.f32 0.0, %v2035
      %2037 = vmatmul.bf16.gmra.mxu0 %v1404
      %v2038 = vpop.f32.mrf.mxu0
      %v2039 = vadd.f32 0.0, %v2038
      %v2040 = vpop.f32.mrf.mxu0
      %v2041 = vadd.f32 0.0, %v2040
      %2042 = vmatmul.bf16.gmra.mxu0 %v1407
      %v2043 = vpop.f32.mrf.mxu0
      %v2044 = vadd.f32 0.0, %v2043
      %v2045 = vpop.f32.mrf.mxu0
      %v2046 = vadd.f32 0.0, %v2045
      %2047 = vmatmul.bf16.gmra.mxu0 %v1410
      %v2048 = vpop.f32.mrf.mxu0
      %v2049 = vadd.f32 0.0, %v2048
      %v2050 = vpop.f32.mrf.mxu0
      %v2051 = vadd.f32 0.0, %v2050
      %2052 = vmatmul.bf16.gmra.mxu0 %v1413
      %v2053 = vpop.f32.mrf.mxu0
      %v2054 = vadd.f32 0.0, %v2053
      %v2055 = vpop.f32.mrf.mxu0
      %v2056 = vadd.f32 0.0, %v2055
      %2057 = vmatmul.bf16.gmra.mxu0 %v1416
      %v2058 = vpop.f32.mrf.mxu0
      %v2059 = vadd.f32 0.0, %v2058
      %v2060 = vpop.f32.mrf.mxu0
      %v2061 = vadd.f32 0.0, %v2060
      %2062 = vmatmul.bf16.gmra.mxu0 %v1419
      %v2063 = vpop.f32.mrf.mxu0
      %v2064 = vadd.f32 0.0, %v2063
      %v2065 = vpop.f32.mrf.mxu0
      %v2066 = vadd.f32 0.0, %v2065
      %2067 = vmatmul.bf16.gmra.mxu0 %v1422
      %v2068 = vpop.f32.mrf.mxu0
      %v2069 = vadd.f32 0.0, %v2068
      %v2070 = vpop.f32.mrf.mxu0
      %v2071 = vadd.f32 0.0, %v2070
      %2072 = vmatmul.bf16.gmra.mxu0 %v1425
      %v2073 = vpop.f32.mrf.mxu0
      %v2074 = vadd.f32 0.0, %v2073
      %v2075 = vpop.f32.mrf.mxu0
      %v2076 = vadd.f32 0.0, %v2075
      %2077 = vmatmul.bf16.gmra.mxu0 %v1428
      %v2078 = vpop.f32.mrf.mxu0
      %v2079 = vadd.f32 0.0, %v2078
      %v2080 = vpop.f32.mrf.mxu0
      %v2081 = vadd.f32 0.0, %v2080
      %2082 = vdwg.mxu0
      %vm2083 = vcmask 392192
      %2084 = vst.msk [vmem:[%s145] sm:$0xff] %vm2083, %v1444
      %2085 = vst.msk [vmem:[%s145 + $0x8] sm:$0xff] %vm2083, %v1446
      %2086 = vst.msk [vmem:[%s145 + $0x10] sm:$0xff] %vm2083, %v1449
      %2087 = vst.msk [vmem:[%s145 + $0x18] sm:$0xff] %vm2083, %v1451
      %2088 = vst.msk [vmem:[%s145 + $0x20] sm:$0xff] %vm2083, %v1454
      %2089 = vst.msk [vmem:[%s145 + $0x28] sm:$0xff] %vm2083, %v1456
      %2090 = vst.msk [vmem:[%s145 + $0x30] sm:$0xff] %vm2083, %v1459
      %2091 = vst.msk [vmem:[%s145 + $0x38] sm:$0xff] %vm2083, %v1461
      %2092 = vst.msk [vmem:[%s145 + $0x40] sm:$0xff] %vm2083, %v1464
      %2093 = vst.msk [vmem:[%s145 + $0x48] sm:$0xff] %vm2083, %v1466
      %2094 = vst.msk [vmem:[%s145 + $0x50] sm:$0xff] %vm2083, %v1469
      %2095 = vst.msk [vmem:[%s145 + $0x58] sm:$0xff] %vm2083, %v1471
      %2096 = vst.msk [vmem:[%s145 + $0x60] sm:$0xff] %vm2083, %v1474
      %2097 = vst.msk [vmem:[%s145 + $0x68] sm:$0xff] %vm2083, %v1476
      %2098 = vst.msk [vmem:[%s145 + $0x70] sm:$0xff] %vm2083, %v1479
      %2099 = vst.msk [vmem:[%s145 + $0x78] sm:$0xff] %vm2083, %v1481
      %2100 = vst.msk [vmem:[%s145 + $0x80] sm:$0xff] %vm2083, %v1484
      %2101 = vst.msk [vmem:[%s145 + $0x88] sm:$0xff] %vm2083, %v1486
      %2102 = vst.msk [vmem:[%s145 + $0x90] sm:$0xff] %vm2083, %v1489
      %2103 = vst.msk [vmem:[%s145 + $0x98] sm:$0xff] %vm2083, %v1491
      %2104 = vst.msk [vmem:[%s145 + $0xa0] sm:$0xff] %vm2083, %v1494
      %2105 = vst.msk [vmem:[%s145 + $0xa8] sm:$0xff] %vm2083, %v1496
      %2106 = vst.msk [vmem:[%s145 + $0xb0] sm:$0xff] %vm2083, %v1499
      %2107 = vst.msk [vmem:[%s145 + $0xb8] sm:$0xff] %vm2083, %v1501
      %2108 = vst.msk [vmem:[%s145 + $0xc0] sm:$0xff] %vm2083, %v1504
      %2109 = vst.msk [vmem:[%s145 + $0xc8] sm:$0xff] %vm2083, %v1506
      %2110 = vst.msk [vmem:[%s145 + $0xd0] sm:$0xff] %vm2083, %v1509
      %2111 = vst.msk [vmem:[%s145 + $0xd8] sm:$0xff] %vm2083, %v1511
      %2112 = vst.msk [vmem:[%s145 + $0xe0] sm:$0xff] %vm2083, %v1514
      %2113 = vst.msk [vmem:[%s145 + $0xe8] sm:$0xff] %vm2083, %v1516
      %2114 = vst.msk [vmem:[%s145 + $0xf0] sm:$0xff] %vm2083, %v1519
      %2115 = vst.msk [vmem:[%s145 + $0xf8] sm:$0xff] %vm2083, %v1521
      %2116 = vst.msk [vmem:[%s145 + $0x100] sm:$0xff] %vm2083, %v1524
      %2117 = vst.msk [vmem:[%s145 + $0x108] sm:$0xff] %vm2083, %v1526
      %2118 = vst.msk [vmem:[%s145 + $0x110] sm:$0xff] %vm2083, %v1529
      %2119 = vst.msk [vmem:[%s145 + $0x118] sm:$0xff] %vm2083, %v1531
      %2120 = vst.msk [vmem:[%s145 + $0x120] sm:$0xff] %vm2083, %v1534
      %2121 = vst.msk [vmem:[%s145 + $0x128] sm:$0xff] %vm2083, %v1536
      %2122 = vst.msk [vmem:[%s145 + $0x130] sm:$0xff] %vm2083, %v1539
      %2123 = vst.msk [vmem:[%s145 + $0x138] sm:$0xff] %vm2083, %v1541
      %2124 = vst.msk [vmem:[%s145 + $0x140] sm:$0xff] %vm2083, %v1544
      %2125 = vst.msk [vmem:[%s145 + $0x148] sm:$0xff] %vm2083, %v1546
      %2126 = vst.msk [vmem:[%s145 + $0x150] sm:$0xff] %vm2083, %v1549
      %2127 = vst.msk [vmem:[%s145 + $0x158] sm:$0xff] %vm2083, %v1551
      %2128 = vst.msk [vmem:[%s145 + $0x160] sm:$0xff] %vm2083, %v1554
      %2129 = vst.msk [vmem:[%s145 + $0x168] sm:$0xff] %vm2083, %v1556
      %2130 = vst.msk [vmem:[%s145 + $0x170] sm:$0xff] %vm2083, %v1559
      %2131 = vst.msk [vmem:[%s145 + $0x178] sm:$0xff] %vm2083, %v1561
      %2132 = vst.msk [vmem:[%s145 + $0x180] sm:$0xff] %vm2083, %v1564
      %2133 = vst.msk [vmem:[%s145 + $0x188] sm:$0xff] %vm2083, %v1566
      %2134 = vst.msk [vmem:[%s145 + $0x190] sm:$0xff] %vm2083, %v1569
      %2135 = vst.msk [vmem:[%s145 + $0x198] sm:$0xff] %vm2083, %v1571
      %2136 = vst.msk [vmem:[%s145 + $0x1a0] sm:$0xff] %vm2083, %v1574
      %2137 = vst.msk [vmem:[%s145 + $0x1a8] sm:$0xff] %vm2083, %v1576
      %2138 = vst.msk [vmem:[%s145 + $0x1b0] sm:$0xff] %vm2083, %v1579
      %2139 = vst.msk [vmem:[%s145 + $0x1b8] sm:$0xff] %vm2083, %v1581
      %2140 = vst.msk [vmem:[%s145 + $0x1c0] sm:$0xff] %vm2083, %v1584
      %2141 = vst.msk [vmem:[%s145 + $0x1c8] sm:$0xff] %vm2083, %v1586
      %2142 = vst.msk [vmem:[%s145 + $0x1d0] sm:$0xff] %vm2083, %v1589
      %2143 = vst.msk [vmem:[%s145 + $0x1d8] sm:$0xff] %vm2083, %v1591
      %2144 = vst.msk [vmem:[%s145 + $0x1e0] sm:$0xff] %vm2083, %v1594
      %2145 = vst.msk [vmem:[%s145 + $0x1e8] sm:$0xff] %vm2083, %v1596
      %2146 = vst.msk [vmem:[%s145 + $0x1f0] sm:$0xff] %vm2083, %v1599
      %2147 = vst.msk [vmem:[%s145 + $0x1f8] sm:$0xff] %vm2083, %v1601
      %2148 = vst.msk [vmem:[%s145 + $0x200] sm:$0xff] %vm2083, %v1604
      %2149 = vst.msk [vmem:[%s145 + $0x208] sm:$0xff] %vm2083, %v1606
      %2150 = vst.msk [vmem:[%s145 + $0x210] sm:$0xff] %vm2083, %v1609
      %2151 = vst.msk [vmem:[%s145 + $0x218] sm:$0xff] %vm2083, %v1611
      %2152 = vst.msk [vmem:[%s145 + $0x220] sm:$0xff] %vm2083, %v1614
      %2153 = vst.msk [vmem:[%s145 + $0x228] sm:$0xff] %vm2083, %v1616
      %2154 = vst.msk [vmem:[%s145 + $0x230] sm:$0xff] %vm2083, %v1619
      %2155 = vst.msk [vmem:[%s145 + $0x238] sm:$0xff] %vm2083, %v1621
      %2156 = vst.msk [vmem:[%s145 + $0x240] sm:$0xff] %vm2083, %v1624
      %2157 = vst.msk [vmem:[%s145 + $0x248] sm:$0xff] %vm2083, %v1626
      %2158 = vst.msk [vmem:[%s145 + $0x250] sm:$0xff] %vm2083, %v1629
      %2159 = vst.msk [vmem:[%s145 + $0x258] sm:$0xff] %vm2083, %v1631
      %2160 = vst.msk [vmem:[%s145 + $0x260] sm:$0xff] %vm2083, %v1634
      %2161 = vst.msk [vmem:[%s145 + $0x268] sm:$0xff] %vm2083, %v1636
      %2162 = vst.msk [vmem:[%s145 + $0x270] sm:$0xff] %vm2083, %v1639
      %2163 = vst.msk [vmem:[%s145 + $0x278] sm:$0xff] %vm2083, %v1641
      %2164 = vst.msk [vmem:[%s145 + $0x280] sm:$0xff] %vm2083, %v1644
      %2165 = vst.msk [vmem:[%s145 + $0x288] sm:$0xff] %vm2083, %v1646
      %2166 = vst.msk [vmem:[%s145 + $0x290] sm:$0xff] %vm2083, %v1649
      %2167 = vst.msk [vmem:[%s145 + $0x298] sm:$0xff] %vm2083, %v1651
      %2168 = vst.msk [vmem:[%s145 + $0x2a0] sm:$0xff] %vm2083, %v1654
      %2169 = vst.msk [vmem:[%s145 + $0x2a8] sm:$0xff] %vm2083, %v1656
      %2170 = vst.msk [vmem:[%s145 + $0x2b0] sm:$0xff] %vm2083, %v1659
      %2171 = vst.msk [vmem:[%s145 + $0x2b8] sm:$0xff] %vm2083, %v1661
      %2172 = vst.msk [vmem:[%s145 + $0x2c0] sm:$0xff] %vm2083, %v1664
      %2173 = vst.msk [vmem:[%s145 + $0x2c8] sm:$0xff] %vm2083, %v1666
      %2174 = vst.msk [vmem:[%s145 + $0x2d0] sm:$0xff] %vm2083, %v1669
      %2175 = vst.msk [vmem:[%s145 + $0x2d8] sm:$0xff] %vm2083, %v1671
      %2176 = vst.msk [vmem:[%s145 + $0x2e0] sm:$0xff] %vm2083, %v1674
      %2177 = vst.msk [vmem:[%s145 + $0x2e8] sm:$0xff] %vm2083, %v1676
      %2178 = vst.msk [vmem:[%s145 + $0x2f0] sm:$0xff] %vm2083, %v1679
      %2179 = vst.msk [vmem:[%s145 + $0x2f8] sm:$0xff] %vm2083, %v1681
      %2180 = vst.msk [vmem:[%s145 + $0x300] sm:$0xff] %vm2083, %v1684
      %2181 = vst.msk [vmem:[%s145 + $0x308] sm:$0xff] %vm2083, %v1686
      %2182 = vst.msk [vmem:[%s145 + $0x310] sm:$0xff] %vm2083, %v1689
      %2183 = vst.msk [vmem:[%s145 + $0x318] sm:$0xff] %vm2083, %v1691
      %2184 = vst.msk [vmem:[%s145 + $0x320] sm:$0xff] %vm2083, %v1694
      %2185 = vst.msk [vmem:[%s145 + $0x328] sm:$0xff] %vm2083, %v1696
      %2186 = vst.msk [vmem:[%s145 + $0x330] sm:$0xff] %vm2083, %v1699
      %2187 = vst.msk [vmem:[%s145 + $0x338] sm:$0xff] %vm2083, %v1701
      %2188 = vst.msk [vmem:[%s145 + $0x340] sm:$0xff] %vm2083, %v1704
      %2189 = vst.msk [vmem:[%s145 + $0x348] sm:$0xff] %vm2083, %v1706
      %2190 = vst.msk [vmem:[%s145 + $0x350] sm:$0xff] %vm2083, %v1709
      %2191 = vst.msk [vmem:[%s145 + $0x358] sm:$0xff] %vm2083, %v1711
      %2192 = vst.msk [vmem:[%s145 + $0x360] sm:$0xff] %vm2083, %v1714
      %2193 = vst.msk [vmem:[%s145 + $0x368] sm:$0xff] %vm2083, %v1716
      %2194 = vst.msk [vmem:[%s145 + $0x370] sm:$0xff] %vm2083, %v1719
      %2195 = vst.msk [vmem:[%s145 + $0x378] sm:$0xff] %vm2083, %v1721
      %2196 = vst.msk [vmem:[%s145 + $0x380] sm:$0xff] %vm2083, %v1724
      %2197 = vst.msk [vmem:[%s145 + $0x388] sm:$0xff] %vm2083, %v1726
      %2198 = vst.msk [vmem:[%s145 + $0x390] sm:$0xff] %vm2083, %v1729
      %2199 = vst.msk [vmem:[%s145 + $0x398] sm:$0xff] %vm2083, %v1731
      %2200 = vst.msk [vmem:[%s145 + $0x3a0] sm:$0xff] %vm2083, %v1734
      %2201 = vst.msk [vmem:[%s145 + $0x3a8] sm:$0xff] %vm2083, %v1736
      %2202 = vst.msk [vmem:[%s145 + $0x3b0] sm:$0xff] %vm2083, %v1739
      %2203 = vst.msk [vmem:[%s145 + $0x3b8] sm:$0xff] %vm2083, %v1741
      %2204 = vst.msk [vmem:[%s145 + $0x3c0] sm:$0xff] %vm2083, %v1744
      %2205 = vst.msk [vmem:[%s145 + $0x3c8] sm:$0xff] %vm2083, %v1746
      %2206 = vst.msk [vmem:[%s145 + $0x3d0] sm:$0xff] %vm2083, %v1749
      %2207 = vst.msk [vmem:[%s145 + $0x3d8] sm:$0xff] %vm2083, %v1751
      %2208 = vst.msk [vmem:[%s145 + $0x3e0] sm:$0xff] %vm2083, %v1754
      %2209 = vst.msk [vmem:[%s145 + $0x3e8] sm:$0xff] %vm2083, %v1756
      %2210 = vst.msk [vmem:[%s145 + $0x3f0] sm:$0xff] %vm2083, %v1759
      %2211 = vst.msk [vmem:[%s145 + $0x3f8] sm:$0xff] %vm2083, %v1761
      %2212 = vst.msk [vmem:[%s145 + $0x400] sm:$0xff] %vm2083, %v1764
      %2213 = vst.msk [vmem:[%s145 + $0x408] sm:$0xff] %vm2083, %v1766
      %2214 = vst.msk [vmem:[%s145 + $0x410] sm:$0xff] %vm2083, %v1769
      %2215 = vst.msk [vmem:[%s145 + $0x418] sm:$0xff] %vm2083, %v1771
      %2216 = vst.msk [vmem:[%s145 + $0x420] sm:$0xff] %vm2083, %v1774
      %2217 = vst.msk [vmem:[%s145 + $0x428] sm:$0xff] %vm2083, %v1776
      %2218 = vst.msk [vmem:[%s145 + $0x430] sm:$0xff] %vm2083, %v1779
      %2219 = vst.msk [vmem:[%s145 + $0x438] sm:$0xff] %vm2083, %v1781
      %2220 = vst.msk [vmem:[%s145 + $0x440] sm:$0xff] %vm2083, %v1784
      %2221 = vst.msk [vmem:[%s145 + $0x448] sm:$0xff] %vm2083, %v1786
      %2222 = vst.msk [vmem:[%s145 + $0x450] sm:$0xff] %vm2083, %v1789
      %2223 = vst.msk [vmem:[%s145 + $0x458] sm:$0xff] %vm2083, %v1791
      %2224 = vst.msk [vmem:[%s145 + $0x460] sm:$0xff] %vm2083, %v1794
      %2225 = vst.msk [vmem:[%s145 + $0x468] sm:$0xff] %vm2083, %v1796
      %2226 = vst.msk [vmem:[%s145 + $0x470] sm:$0xff] %vm2083, %v1799
      %2227 = vst.msk [vmem:[%s145 + $0x478] sm:$0xff] %vm2083, %v1801
      %2228 = vst.msk [vmem:[%s145 + $0x480] sm:$0xff] %vm2083, %v1804
      %2229 = vst.msk [vmem:[%s145 + $0x488] sm:$0xff] %vm2083, %v1806
      %2230 = vst.msk [vmem:[%s145 + $0x490] sm:$0xff] %vm2083, %v1809
      %2231 = vst.msk [vmem:[%s145 + $0x498] sm:$0xff] %vm2083, %v1811
      %2232 = vst.msk [vmem:[%s145 + $0x4a0] sm:$0xff] %vm2083, %v1814
      %2233 = vst.msk [vmem:[%s145 + $0x4a8] sm:$0xff] %vm2083, %v1816
      %2234 = vst.msk [vmem:[%s145 + $0x4b0] sm:$0xff] %vm2083, %v1819
      %2235 = vst.msk [vmem:[%s145 + $0x4b8] sm:$0xff] %vm2083, %v1821
      %2236 = vst.msk [vmem:[%s145 + $0x4c0] sm:$0xff] %vm2083, %v1824
      %2237 = vst.msk [vmem:[%s145 + $0x4c8] sm:$0xff] %vm2083, %v1826
      %2238 = vst.msk [vmem:[%s145 + $0x4d0] sm:$0xff] %vm2083, %v1829
      %2239 = vst.msk [vmem:[%s145 + $0x4d8] sm:$0xff] %vm2083, %v1831
      %2240 = vst.msk [vmem:[%s145 + $0x4e0] sm:$0xff] %vm2083, %v1834
      %2241 = vst.msk [vmem:[%s145 + $0x4e8] sm:$0xff] %vm2083, %v1836
      %2242 = vst.msk [vmem:[%s145 + $0x4f0] sm:$0xff] %vm2083, %v1839
      %2243 = vst.msk [vmem:[%s145 + $0x4f8] sm:$0xff] %vm2083, %v1841
      %2244 = vst.msk [vmem:[%s145 + $0x500] sm:$0xff] %vm2083, %v1844
      %2245 = vst.msk [vmem:[%s145 + $0x508] sm:$0xff] %vm2083, %v1846
      %2246 = vst.msk [vmem:[%s145 + $0x510] sm:$0xff] %vm2083, %v1849
      %2247 = vst.msk [vmem:[%s145 + $0x518] sm:$0xff] %vm2083, %v1851
      %2248 = vst.msk [vmem:[%s145 + $0x520] sm:$0xff] %vm2083, %v1854
      %2249 = vst.msk [vmem:[%s145 + $0x528] sm:$0xff] %vm2083, %v1856
      %2250 = vst.msk [vmem:[%s145 + $0x530] sm:$0xff] %vm2083, %v1859
      %2251 = vst.msk [vmem:[%s145 + $0x538] sm:$0xff] %vm2083, %v1861
      %2252 = vst.msk [vmem:[%s145 + $0x540] sm:$0xff] %vm2083, %v1864
      %2253 = vst.msk [vmem:[%s145 + $0x548] sm:$0xff] %vm2083, %v1866
      %2254 = vst.msk [vmem:[%s145 + $0x550] sm:$0xff] %vm2083, %v1869
      %2255 = vst.msk [vmem:[%s145 + $0x558] sm:$0xff] %vm2083, %v1871
      %2256 = vst.msk [vmem:[%s145 + $0x560] sm:$0xff] %vm2083, %v1874
      %2257 = vst.msk [vmem:[%s145 + $0x568] sm:$0xff] %vm2083, %v1876
      %2258 = vst.msk [vmem:[%s145 + $0x570] sm:$0xff] %vm2083, %v1879
      %2259 = vst.msk [vmem:[%s145 + $0x578] sm:$0xff] %vm2083, %v1881
      %2260 = vst.msk [vmem:[%s145 + $0x580] sm:$0xff] %vm2083, %v1884
      %2261 = vst.msk [vmem:[%s145 + $0x588] sm:$0xff] %vm2083, %v1886
      %2262 = vst.msk [vmem:[%s145 + $0x590] sm:$0xff] %vm2083, %v1889
      %2263 = vst.msk [vmem:[%s145 + $0x598] sm:$0xff] %vm2083, %v1891
      %2264 = vst.msk [vmem:[%s145 + $0x5a0] sm:$0xff] %vm2083, %v1894
      %2265 = vst.msk [vmem:[%s145 + $0x5a8] sm:$0xff] %vm2083, %v1896
      %2266 = vst.msk [vmem:[%s145 + $0x5b0] sm:$0xff] %vm2083, %v1899
      %2267 = vst.msk [vmem:[%s145 + $0x5b8] sm:$0xff] %vm2083, %v1901
      %2268 = vst.msk [vmem:[%s145 + $0x5c0] sm:$0xff] %vm2083, %v1904
      %2269 = vst.msk [vmem:[%s145 + $0x5c8] sm:$0xff] %vm2083, %v1906
      %2270 = vst.msk [vmem:[%s145 + $0x5d0] sm:$0xff] %vm2083, %v1909
      %2271 = vst.msk [vmem:[%s145 + $0x5d8] sm:$0xff] %vm2083, %v1911
      %2272 = vst.msk [vmem:[%s145 + $0x5e0] sm:$0xff] %vm2083, %v1914
      %2273 = vst.msk [vmem:[%s145 + $0x5e8] sm:$0xff] %vm2083, %v1916
      %2274 = vst.msk [vmem:[%s145 + $0x5f0] sm:$0xff] %vm2083, %v1919
      %2275 = vst.msk [vmem:[%s145 + $0x5f8] sm:$0xff] %vm2083, %v1921
      %2276 = vst.msk [vmem:[%s145 + $0x600] sm:$0xff] %vm2083, %v1924
      %2277 = vst.msk [vmem:[%s145 + $0x608] sm:$0xff] %vm2083, %v1926
      %2278 = vst.msk [vmem:[%s145 + $0x610] sm:$0xff] %vm2083, %v1929
      %2279 = vst.msk [vmem:[%s145 + $0x618] sm:$0xff] %vm2083, %v1931
      %2280 = vst.msk [vmem:[%s145 + $0x620] sm:$0xff] %vm2083, %v1934
      %2281 = vst.msk [vmem:[%s145 + $0x628] sm:$0xff] %vm2083, %v1936
      %2282 = vst.msk [vmem:[%s145 + $0x630] sm:$0xff] %vm2083, %v1939
      %2283 = vst.msk [vmem:[%s145 + $0x638] sm:$0xff] %vm2083, %v1941
      %2284 = vst.msk [vmem:[%s145 + $0x640] sm:$0xff] %vm2083, %v1944
      %2285 = vst.msk [vmem:[%s145 + $0x648] sm:$0xff] %vm2083, %v1946
      %2286 = vst.msk [vmem:[%s145 + $0x650] sm:$0xff] %vm2083, %v1949
      %2287 = vst.msk [vmem:[%s145 + $0x658] sm:$0xff] %vm2083, %v1951
      %2288 = vst.msk [vmem:[%s145 + $0x660] sm:$0xff] %vm2083, %v1954
      %2289 = vst.msk [vmem:[%s145 + $0x668] sm:$0xff] %vm2083, %v1956
      %2290 = vst.msk [vmem:[%s145 + $0x670] sm:$0xff] %vm2083, %v1959
      %2291 = vst.msk [vmem:[%s145 + $0x678] sm:$0xff] %vm2083, %v1961
      %2292 = vst.msk [vmem:[%s145 + $0x680] sm:$0xff] %vm2083, %v1964
      %2293 = vst.msk [vmem:[%s145 + $0x688] sm:$0xff] %vm2083, %v1966
      %2294 = vst.msk [vmem:[%s145 + $0x690] sm:$0xff] %vm2083, %v1969
      %2295 = vst.msk [vmem:[%s145 + $0x698] sm:$0xff] %vm2083, %v1971
      %2296 = vst.msk [vmem:[%s145 + $0x6a0] sm:$0xff] %vm2083, %v1974
      %2297 = vst.msk [vmem:[%s145 + $0x6a8] sm:$0xff] %vm2083, %v1976
      %2298 = vst.msk [vmem:[%s145 + $0x6b0] sm:$0xff] %vm2083, %v1979
      %2299 = vst.msk [vmem:[%s145 + $0x6b8] sm:$0xff] %vm2083, %v1981
      %2300 = vst.msk [vmem:[%s145 + $0x6c0] sm:$0xff] %vm2083, %v1984
      %2301 = vst.msk [vmem:[%s145 + $0x6c8] sm:$0xff] %vm2083, %v1986
      %2302 = vst.msk [vmem:[%s145 + $0x6d0] sm:$0xff] %vm2083, %v1989
      %2303 = vst.msk [vmem:[%s145 + $0x6d8] sm:$0xff] %vm2083, %v1991
      %2304 = vst.msk [vmem:[%s145 + $0x6e0] sm:$0xff] %vm2083, %v1994
      %2305 = vst.msk [vmem:[%s145 + $0x6e8] sm:$0xff] %vm2083, %v1996
      %2306 = vst.msk [vmem:[%s145 + $0x6f0] sm:$0xff] %vm2083, %v1999
      %2307 = vst.msk [vmem:[%s145 + $0x6f8] sm:$0xff] %vm2083, %v2001
      %2308 = vst.msk [vmem:[%s145 + $0x700] sm:$0xff] %vm2083, %v2004
      %2309 = vst.msk [vmem:[%s145 + $0x708] sm:$0xff] %vm2083, %v2006
      %2310 = vst.msk [vmem:[%s145 + $0x710] sm:$0xff] %vm2083, %v2009
      %2311 = vst.msk [vmem:[%s145 + $0x718] sm:$0xff] %vm2083, %v2011
      %2312 = vst.msk [vmem:[%s145 + $0x720] sm:$0xff] %vm2083, %v2014
      %2313 = vst.msk [vmem:[%s145 + $0x728] sm:$0xff] %vm2083, %v2016
      %2314 = vst.msk [vmem:[%s145 + $0x730] sm:$0xff] %vm2083, %v2019
      %2315 = vst.msk [vmem:[%s145 + $0x738] sm:$0xff] %vm2083, %v2021
      %2316 = vst.msk [vmem:[%s145 + $0x740] sm:$0xff] %vm2083, %v2024
      %2317 = vst.msk [vmem:[%s145 + $0x748] sm:$0xff] %vm2083, %v2026
      %2318 = vst.msk [vmem:[%s145 + $0x750] sm:$0xff] %vm2083, %v2029
      %2319 = vst.msk [vmem:[%s145 + $0x758] sm:$0xff] %vm2083, %v2031
      %2320 = vst.msk [vmem:[%s145 + $0x760] sm:$0xff] %vm2083, %v2034
      %2321 = vst.msk [vmem:[%s145 + $0x768] sm:$0xff] %vm2083, %v2036
      %2322 = vst.msk [vmem:[%s145 + $0x770] sm:$0xff] %vm2083, %v2039
      %2323 = vst.msk [vmem:[%s145 + $0x778] sm:$0xff] %vm2083, %v2041
      %2324 = vst.msk [vmem:[%s145 + $0x780] sm:$0xff] %vm2083, %v2044
      %2325 = vst.msk [vmem:[%s145 + $0x788] sm:$0xff] %vm2083, %v2046
      %2326 = vst.msk [vmem:[%s145 + $0x790] sm:$0xff] %vm2083, %v2049
      %2327 = vst.msk [vmem:[%s145 + $0x798] sm:$0xff] %vm2083, %v2051
      %2328 = vst.msk [vmem:[%s145 + $0x7a0] sm:$0xff] %vm2083, %v2054
      %2329 = vst.msk [vmem:[%s145 + $0x7a8] sm:$0xff] %vm2083, %v2056
      %2330 = vst.msk [vmem:[%s145 + $0x7b0] sm:$0xff] %vm2083, %v2059
      %2331 = vst.msk [vmem:[%s145 + $0x7b8] sm:$0xff] %vm2083, %v2061
      %2332 = vst.msk [vmem:[%s145 + $0x7c0] sm:$0xff] %vm2083, %v2064
      %2333 = vst.msk [vmem:[%s145 + $0x7c8] sm:$0xff] %vm2083, %v2066
      %2334 = vst.msk [vmem:[%s145 + $0x7d0] sm:$0xff] %vm2083, %v2069
      %2335 = vst.msk [vmem:[%s145 + $0x7d8] sm:$0xff] %vm2083, %v2071
      %2336 = vst.msk [vmem:[%s145 + $0x7e0] sm:$0xff] %vm2083, %v2074
      %2337 = vst.msk [vmem:[%s145 + $0x7e8] sm:$0xff] %vm2083, %v2076
      %2338 = vst.msk [vmem:[%s145 + $0x7f0] sm:$0xff] %vm2083, %v2079
      %2339 = vst.msk [vmem:[%s145 + $0x7f8] sm:$0xff] %vm2083, %v2081
      %s2340 = smul.u32 256, %s13
      %p2341 = scmp.lt.s32.totalorder %s2340, 4095
      %s2342 = scalar_select %p2341, %s2340, 4095
      %s2343 = smul.addr %s2342, 8
      %s2344 = scalar_lea.vmem %s2, %s2343
      // Predicated region
      $region29: #{decoder_forward.21} parent=27 // pred_check
        %p2345 = pneg %p78
      $region30: #{decoder_forward.21} parent=27 // pred_check_branch
        %2347 = sbr.rel (%p2345) target = $region32
      $region31: #{decoder_forward.21} parent=27 // pred_region
        %s2348 = smul.u32 256, %s13
      $region32: #{decoder_forward.21} parent=27 // pred_fallthru
        _
    $region28: #{decoder_forward.21} parent=5 // pred_fallthru
      _
    %p2349 = scmp.le.s32.totalorder 2, %s8
    // Predicated region
    $region33: #{decoder_forward.21} parent=5 // pred_check
      %p2350 = pneg %p2349
    $region34: #{decoder_forward.21} parent=5 // pred_check_branch
      %2352 = sbr.rel (%p2350) target = $region36
    $region35: #{decoder_forward.21} parent=5 // pred_region
      %s2353 = ssub.s32 %s8, 2
      // Predicated region
      $region37: #{decoder_forward.21} parent=35 // pred_check
        %p2354 = pneg %p84
      $region38: #{decoder_forward.21} parent=35 // pred_check_branch
        %2356 = sbr.rel (%p2354) target = $region40
      $region39: #{decoder_forward.21} parent=35 // pred_region
        %s2357 = smul.u32 256, %s14
        %p2358 = scmp.lt.s32.totalorder %s2357, 4095
        %s2359 = scalar_select %p2358, %s2357, 4095
        %s2360 = smul.addr %s2359, 8
        %s2361 = scalar_lea.vmem %s2, %s2360
      $region40: #{decoder_forward.21} parent=35 // pred_fallthru
        _
    $region36: #{decoder_forward.21} parent=5 // pred_fallthru
      _
  $region6: #{decoder_forward.21} parent=0 // loop_footer
    %s12 = sadd.s32 1, %s8
  $region7: #{decoder_forward.21} parent=0 // loop_footer_branch
    %7 = sbr.rel target = $region3
  $region8: #{decoder_forward.21} parent=0 // loop_exit
    _

</llo_original>
